<compile_context>
chip_gen: v5e
topology: v5e:2x2
jax: 0.10.0
libtpu: 0.0.40
codegen_flags: <defaults>
</compile_context>

<pallas_src>
import functools

import jax
import jax.numpy as jnp
from jax import lax
from jax.experimental import pallas as pl
from jax.experimental.pallas import tpu as pltpu


def _round_up(x, m):
    return (x + m - 1) // m * m


def _aspp_kernel(x_hbm, w_ref, b_ref, o_ref, xslab, sem, acc_ref, *,
                 rates, max_rate, n_rows):
    """One grid step = (batch n, row-slab i, cout-tile j).

    x_hbm  : (N, Hp, Wp, Cin_p)        bf16 zero-padded NHWC input, HBM (pl.ANY)
    w_ref  : (n_j*Rn*9, Cin_p, TC)     bf16 per-tap weight matrices, resident in VMEM
    b_ref  : (1, TC)                   f32 summed bias over rates
    o_ref  : (1, TH*W, TC)             f32 output tile (flattened rows)
    xslab  : (2, TH+2R, Wp, Cin_p)     bf16 double-buffered row slab (incl. halo)
    sem    : DMA semaphores, shape (2,)
    acc_ref: (TH*W, TC)                f32 VMEM accumulator
    """
    n = pl.program_id(0)
    i = pl.program_id(1)
    j = pl.program_id(2)
    n_i = pl.num_programs(1)

    TH_W, TC = acc_ref.shape
    Cin_p = xslab.shape[3]
    R = max_rate
    TH = n_rows
    W = TH_W // TH
    Rn = len(rates)

    def slab_copy(img, row_blk, slot_idx):
        return pltpu.make_async_copy(
            x_hbm.at[img, pl.ds(row_blk * TH, TH + 2 * R), :, :],
            xslab.at[slot_idx],
            sem.at[slot_idx])

    slot = lax.rem(i, 2)

    # Prime: fetch the first slab of this image (exposed once per image).
    @pl.when((j == 0) & (i == 0))
    def _prime():
        slab_copy(n, 0, 0).start()

    # Wait for the slab of the current row block (fetched here or prefetched
    # at the previous row block).
    @pl.when(j == 0)
    def _wait():
        slab_copy(n, i, slot).wait()

    # Prefetch the next row slab of the SAME image; it overlaps with all the
    # compute of this slab.  Restricting to the same image keeps this correct
    # when the batch axis is split across TensorCores.
    @pl.when((j == 0) & (i + 1 < n_i))
    def _prefetch():
        slab_copy(n, i + 1, 1 - slot).start()

    xv = xslab.at[slot]                      # (TH + 2R, Wp, Cin_p) view

    # Bias-initialized f32 accumulator in VMEM.
    acc_ref[...] = jnp.broadcast_to(b_ref[...], (TH_W, TC)).astype(jnp.float32)

    # Per-tap matmuls: K = Cin_p (>= 128), f32 accumulation.  Static tap
    # offsets; the kw shift is a sublane-misaligned slice (relayout) but is
    # hidden under the MXU work.
    for ri, r in enumerate(rates):
        for kh in range(3):
            r0 = R + r * (kh - 1)                           # static int
            for kw in range(3):
                c0 = R + r * (kw - 1)                       # static int
                patch = xv[r0:r0 + TH, c0:c0 + W, :].reshape(TH_W, Cin_p)
                widx = j * (Rn * 9) + (ri * 9 + kh * 3 + kw)
                acc_ref[...] += jnp.dot(patch, w_ref[widx],
                                        preferred_element_type=jnp.float32)

    o_ref[0] = acc_ref[...]


def aspp_forward(x_nchw, weights, biases, rates, *, tile_h=8):
    """ASPP forward.

    x_nchw : (N, Cin, H, W)            float32 (PyTorch layout)
    weights: list of (Cout, Cin, 3, 3) OIHW, one per rate
    biases : list of (Cout,)           one per rate
    rates  : tuple of ints
    returns: (N, Cout, H, W) float32
    """
    N, Cin, H, W = x_nchw.shape
    Cout = weights[0].shape[0]
    Rn = len(rates)
    maxR = max(rates)

    Cin_p = _round_up(Cin, 128)                 # lane-dense input channels
    Cout_p = _round_up(Cout, 128)               # lane-dense output channels
    TC = 256 if Cout_p % 256 == 0 else 128      # 256-wide MXU on v6e/v7x
    n_j = Cout_p // TC
    Wp = W + 2 * maxR

    # Row-slab height: keep M = TH*W a multiple of 8 (sublane aligned).
    TH = max(1, tile_h)
    while (TH * W) % 8 != 0:
        TH *= 2

    # Shrink TH if the VMEM working set would exceed a conservative budget
    # (v7x has only 64 MiB; keep headroom for double-buffered out tiles etc.).
    VMEM_BUDGET = 48 * 1024 * 1024

    def _vmem_need(th):
        slab = 2 * (th + 2 * maxR) * Wp * Cin_p * 2          # 2 slots, bf16
        wts = 2 * (n_j * Rn * 9) * Cin_p * TC * 2            # pipeline buffers
        outb = 2 * th * W * TC * 4
        accb = th * W * TC * 4
        return slab + wts + outb + accb

    while TH > 1 and _vmem_need(TH) > VMEM_BUDGET and ((TH // 2) * W) % 8 == 0:
        TH //= 2

    H_pad = _round_up(H, TH)                    # junk rows are sliced off
    n_i = H_pad // TH
    Hp = H_pad + 2 * maxR

    # NCHW -> NHWC, zero-pad: spatial halo (maxR), H up to H_pad, channels to
    # Cin_p; cast to bf16.  (Zero rows/channels contribute zero, matching the
    # conv's own zero padding, so results for valid rows are unchanged.)
    x = jnp.transpose(x_nchw, (0, 2, 3, 1))
    x = jnp.pad(x, ((0, 0),
                    (maxR, maxR + (H_pad - H)),
                    (maxR, maxR),
                    (0, Cin_p - Cin)))
    x = x.astype(jnp.bfloat16)

    # Per-tap weight matrices, ordered (rate, kh, kw), each (Cin_p, Cout_p),
    # then reorganized so the Cout tile index j is the leading block:
    # w_stack[j*(Rn*9) + ri*9 + kh*3 + kw] = (Cin_p, TC).
    taps = []
    for w in weights:                                        # (Cout, Cin, 3, 3)
        for kh in range(3):
            for kw in range(3):
                m = jnp.transpose(w[:, :, kh, kw], (1, 0))   # (Cin, Cout)
                m = jnp.pad(m, ((0, Cin_p - Cin), (0, Cout_p - Cout)))
                taps.append(m)
    w_all = jnp.stack(taps, axis=0)                          # (Rn*9, Cin_p, Cout_p)
    w_all = w_all.reshape(Rn * 9, Cin_p, n_j, TC)
    w_all = jnp.transpose(w_all, (2, 0, 1, 3))               # (n_j, Rn*9, Cin_p, TC)
    w_stack = w_all.reshape(n_j * Rn * 9, Cin_p, TC).astype(jnp.bfloat16)

    # Summed bias over rates (the conv biases simply add up).
    bias_sum = jnp.sum(jnp.stack(biases, axis=0), axis=0)
    bias_sum = jnp.pad(bias_sum, (0, Cout_p - Cout)).reshape(1, Cout_p)
    bias_sum = bias_sum.astype(jnp.float32)

    kernel = functools.partial(_aspp_kernel, rates=tuple(rates),
                               max_rate=maxR, n_rows=TH)

    grid = (N, n_i, n_j)

    vmem_limit = min(128 * 1024 * 1024,
                     max(32 * 1024 * 1024, _vmem_need(TH) + (8 << 20)))

    cost = pl.CostEstimate(
        flops=2 * N * H_pad * W * (9 * Rn * Cin_p) * Cout_p,
        transcendentals=0,
        bytes_accessed=(x.size * 2 + w_stack.size * 2 + bias_sum.size * 4
                        + N * H_pad * W * Cout_p * 4),
    )

    out_flat = pl.pallas_call(
        kernel,
        out_shape=jax.ShapeDtypeStruct((N, H_pad * W, Cout_p), jnp.float32),
        grid_spec=pltpu.PrefetchScalarGridSpec(
            num_scalar_prefetch=0,
            grid=grid,
            in_specs=[
                pl.BlockSpec(memory_space=pl.ANY),                 # x stays in HBM
                pl.BlockSpec((n_j * Rn * 9, Cin_p, TC),
                             lambda n, i, j: (0, 0, 0)),           # resident weights
                pl.BlockSpec((1, TC), lambda n, i, j: (0, j)),     # bias tile
            ],
            out_specs=pl.BlockSpec((1, TH * W, TC),
                                   lambda n, i, j: (n, i, j)),
            scratch_shapes=[
                pltpu.VMEM((2, TH + 2 * maxR, Wp, Cin_p), jnp.bfloat16),
                pltpu.SemaphoreType.DMA((2,)),
                pltpu.VMEM((TH * W, TC), jnp.float32),
            ],
        ),
        compiler_params=pltpu.CompilerParams(
            dimension_semantics=("parallel", "arbitrary", "arbitrary"),
            vmem_limit_bytes=vmem_limit),
        cost_estimate=cost,
    )(x, w_stack, bias_sum)

    out = out_flat.reshape(N, H_pad, W, Cout_p)[:, :H, :, :Cout]
    return jnp.transpose(out, (0, 3, 1, 2))


def aspp_reference(x_nchw, weights, biases, rates):
    """Pure-JAX reference (lax dilated convs), mirroring the PyTorch module."""
    out = None
    for w, b, r in zip(weights, biases, rates):
        y = lax.conv_general_dilated(
            x_nchw, w,
            window_strides=(1, 1),
            padding=((r, r), (r, r)),
            rhs_dilation=(r, r),
            dimension_numbers=("NCHW", "OIHW", "NCHW"),
        ) + b[None, :, None, None]
        out = y if out is None else out + y
    return out


if __name__ == "__main__":
    # Small shapes: N=2, in_ch=4, out_ch=8, H=W=16, rates=(1, 2, 4)
    N, Cin, Cout, H, W = 2, 4, 8, 16, 16
    rates = (1, 2, 4)

    key = jax.random.PRNGKey(0)
    kx, kb, *kws = jax.random.split(key, 2 + len(rates))

    x = jax.random.normal(kx, (N, Cin, H, W), dtype=jnp.float32)

    # std=0.01 weights like nn.init.normal_; small random biases exercise the
    # bias path (the module inits them to 0, semantics unchanged).
    weights = [
        0.01 * jax.random.normal(k, (Cout, Cin, 3, 3), dtype=jnp.float32)
        for k in kws
    ]
    bkeys = jax.random.split(kb, len(rates))
    biases = [0.1 * jax.random.normal(k, (Cout,), dtype=jnp.float32) for k in bkeys]

    out = aspp_forward(x, weights, biases, rates)
    out = jax.block_until_ready(out)

    ref = aspp_reference(x, weights, biases, rates)
    assert out.shape == (N, Cout, H, W)
    # bf16 operands / f32 accumulation -> bf16-appropriate tolerance.
    assert jnp.allclose(out, ref, atol=1e-2, rtol=1e-2), "mismatch vs lax reference"

    print("KERNEL_OK")
</pallas_src>

<mosaic_0001>
module attributes {stable_mosaic.version = 11 : i64} {
  func.func @_aspp_kernel(%arg0: i32, %arg1: i32, %arg2: i32, %arg3: memref<2x24x24x128xbf16, #tpu.memory_space<any>>, %arg4: memref<27x128x128xbf16, #tpu.memory_space<vmem>>, %arg5: memref<1x128xf32, #tpu.memory_space<vmem>>, %arg6: memref<1x128x128xf32, #tpu.memory_space<vmem>>, %arg7: memref<2x16x24x128xbf16, #tpu.memory_space<vmem>>, %arg8: memref<2x!tpu.dma_semaphore, #tpu.memory_space<semaphore_mem>>, %arg9: memref<128x128xf32, #tpu.memory_space<vmem>>) attributes {dimension_semantics = [#tpu.dimension_semantics<parallel>, #tpu.dimension_semantics<arbitrary>, #tpu.dimension_semantics<arbitrary>], iteration_bounds = array<i64: 2, 2, 1>, scalar_prefetch = 0 : i64, scratch_operands = 3 : i64, tpu.core_type = #tpu.core_type<tc>, window_params = [{}, {pipeline_mode = #tpu.pipeline_mode<synchronous>, transform_indices = @transform_1, window_bounds = array<i64: 27, 128, 128>}, {transform_indices = @transform_2, window_bounds = array<i64: 1, 128>}, {transform_indices = @transform_3, window_bounds = array<i64: 1, 128, 128>}]} {
    %c2_i32 = arith.constant 2 : i32
    %0 = arith.remsi %arg1, %c2_i32 : i32
    %c0_i32 = arith.constant 0 : i32
    %1 = arith.cmpi eq, %arg2, %c0_i32 : i32
    %c0_i32_0 = arith.constant 0 : i32
    %2 = arith.cmpi eq, %arg1, %c0_i32_0 : i32
    %3 = arith.andi %1, %2 : i1
    %4 = arith.extui %3 : i1 to i32
    %c0_i32_1 = arith.constant 0 : i32
    %5 = arith.cmpi ne, %4, %c0_i32_1 : i32
    scf.if %5 {
      %c0_i32_388 = arith.constant 0 : i32
      %c0_i32_389 = arith.constant 0 : i32
      %c0_i32_390 = arith.constant 0 : i32
      %c0_i32_391 = arith.constant 0 : i32
      %c0_i32_392 = arith.constant 0 : i32
      %374 = tpu.memref_slice %arg3[%arg0, %c0_i32_390, %c0_i32_391, %c0_i32_392] : memref<2x24x24x128xbf16, #tpu.memory_space<any>> -> memref<1x16x24x128xbf16, #tpu.memory_space<any>>
      %375 = tpu.memref_squeeze %374 : memref<1x16x24x128xbf16, #tpu.memory_space<any>> -> memref<16x24x128xbf16, #tpu.memory_space<any>>
      %c0_i32_393 = arith.constant 0 : i32
      %c0_i32_394 = arith.constant 0 : i32
      %c0_i32_395 = arith.constant 0 : i32
      %376 = tpu.memref_slice %arg7[%c0_i32_388, %c0_i32_393, %c0_i32_394, %c0_i32_395] : memref<2x16x24x128xbf16, #tpu.memory_space<vmem>> -> memref<1x16x24x128xbf16, #tpu.memory_space<vmem>>
      %377 = tpu.memref_squeeze %376 : memref<1x16x24x128xbf16, #tpu.memory_space<vmem>> -> memref<16x24x128xbf16, #tpu.memory_space<vmem>>
      %378 = tpu.memref_slice %arg8[%c0_i32_389] : memref<2x!tpu.dma_semaphore, #tpu.memory_space<semaphore_mem>> -> memref<1x!tpu.dma_semaphore, #tpu.memory_space<semaphore_mem>>
      %379 = tpu.memref_squeeze %378 : memref<1x!tpu.dma_semaphore, #tpu.memory_space<semaphore_mem>> -> memref<!tpu.dma_semaphore, #tpu.memory_space<semaphore_mem>>
      tpu.enqueue_dma source(%375 : memref<16x24x128xbf16, #tpu.memory_space<any>>) target(%377 : memref<16x24x128xbf16, #tpu.memory_space<vmem>>) target_semaphore(%379 : memref<!tpu.dma_semaphore, #tpu.memory_space<semaphore_mem>>)
    } else {
    }
    %c0_i32_2 = arith.constant 0 : i32
    %6 = arith.cmpi eq, %arg2, %c0_i32_2 : i32
    %7 = arith.extui %6 : i1 to i32
    %c0_i32_3 = arith.constant 0 : i32
    %8 = arith.cmpi ne, %7, %c0_i32_3 : i32
    scf.if %8 {
      %c8_i32_388 = arith.constant 8 : i32
      %374 = arith.muli %arg1, %c8_i32_388 : i32
      %c0_i32_389 = arith.constant 0 : i32
      %c0_i32_390 = arith.constant 0 : i32
      %375 = tpu.memref_slice %arg3[%arg0, %374, %c0_i32_389, %c0_i32_390] : memref<2x24x24x128xbf16, #tpu.memory_space<any>> -> memref<1x16x24x128xbf16, #tpu.memory_space<any>>
      %376 = tpu.memref_squeeze %375 : memref<1x16x24x128xbf16, #tpu.memory_space<any>> -> memref<16x24x128xbf16, #tpu.memory_space<any>>
      %c0_i32_391 = arith.constant 0 : i32
      %c0_i32_392 = arith.constant 0 : i32
      %c0_i32_393 = arith.constant 0 : i32
      %377 = tpu.memref_slice %arg7[%0, %c0_i32_391, %c0_i32_392, %c0_i32_393] : memref<2x16x24x128xbf16, #tpu.memory_space<vmem>> -> memref<1x16x24x128xbf16, #tpu.memory_space<vmem>>
      %378 = tpu.memref_squeeze %377 : memref<1x16x24x128xbf16, #tpu.memory_space<vmem>> -> memref<16x24x128xbf16, #tpu.memory_space<vmem>>
      %379 = tpu.memref_slice %arg8[%0] : memref<2x!tpu.dma_semaphore, #tpu.memory_space<semaphore_mem>> -> memref<1x!tpu.dma_semaphore, #tpu.memory_space<semaphore_mem>>
      %380 = tpu.memref_squeeze %379 : memref<1x!tpu.dma_semaphore, #tpu.memory_space<semaphore_mem>> -> memref<!tpu.dma_semaphore, #tpu.memory_space<semaphore_mem>>
      tpu.wait_dma2 semaphore(%380 : memref<!tpu.dma_semaphore, #tpu.memory_space<semaphore_mem>>) src(%376 : memref<16x24x128xbf16, #tpu.memory_space<any>>) dst(%378 : memref<16x24x128xbf16, #tpu.memory_space<vmem>>)
    } else {
    }
    %c0_i32_4 = arith.constant 0 : i32
    %9 = arith.cmpi eq, %arg2, %c0_i32_4 : i32
    %c1_i32 = arith.constant 1 : i32
    %10 = arith.addi %arg1, %c1_i32 : i32
    %c2_i32_5 = arith.constant 2 : i32
    %11 = arith.cmpi slt, %10, %c2_i32_5 : i32
    %12 = arith.andi %9, %11 : i1
    %13 = arith.extui %12 : i1 to i32
    %c0_i32_6 = arith.constant 0 : i32
    %14 = arith.cmpi ne, %13, %c0_i32_6 : i32
    scf.if %14 {
      %c1_i32_388 = arith.constant 1 : i32
      %374 = arith.addi %arg1, %c1_i32_388 : i32
      %c1_i32_389 = arith.constant 1 : i32
      %375 = arith.subi %c1_i32_389, %0 : i32
      %c8_i32_390 = arith.constant 8 : i32
      %376 = arith.muli %374, %c8_i32_390 : i32
      %c0_i32_391 = arith.constant 0 : i32
      %c0_i32_392 = arith.constant 0 : i32
      %377 = tpu.memref_slice %arg3[%arg0, %376, %c0_i32_391, %c0_i32_392] : memref<2x24x24x128xbf16, #tpu.memory_space<any>> -> memref<1x16x24x128xbf16, #tpu.memory_space<any>>
      %378 = tpu.memref_squeeze %377 : memref<1x16x24x128xbf16, #tpu.memory_space<any>> -> memref<16x24x128xbf16, #tpu.memory_space<any>>
      %c0_i32_393 = arith.constant 0 : i32
      %c0_i32_394 = arith.constant 0 : i32
      %c0_i32_395 = arith.constant 0 : i32
      %379 = tpu.memref_slice %arg7[%375, %c0_i32_393, %c0_i32_394, %c0_i32_395] : memref<2x16x24x128xbf16, #tpu.memory_space<vmem>> -> memref<1x16x24x128xbf16, #tpu.memory_space<vmem>>
      %380 = tpu.memref_squeeze %379 : memref<1x16x24x128xbf16, #tpu.memory_space<vmem>> -> memref<16x24x128xbf16, #tpu.memory_space<vmem>>
      %381 = tpu.memref_slice %arg8[%375] : memref<2x!tpu.dma_semaphore, #tpu.memory_space<semaphore_mem>> -> memref<1x!tpu.dma_semaphore, #tpu.memory_space<semaphore_mem>>
      %382 = tpu.memref_squeeze %381 : memref<1x!tpu.dma_semaphore, #tpu.memory_space<semaphore_mem>> -> memref<!tpu.dma_semaphore, #tpu.memory_space<semaphore_mem>>
      tpu.enqueue_dma source(%378 : memref<16x24x128xbf16, #tpu.memory_space<any>>) target(%380 : memref<16x24x128xbf16, #tpu.memory_space<vmem>>) target_semaphore(%382 : memref<!tpu.dma_semaphore, #tpu.memory_space<semaphore_mem>>)
    } else {
    }
    %c0 = arith.constant 0 : index
    %c0_7 = arith.constant 0 : index
    %15 = vector.load %arg5[%c0, %c0_7] : memref<1x128xf32, #tpu.memory_space<vmem>>, vector<1x128xf32>
    %16 = vector.shape_cast %15 : vector<1x128xf32> to vector<1x128xf32>
    %17 = vector.broadcast %16 : vector<1x128xf32> to vector<128x128xf32>
    %c0_8 = arith.constant 0 : index
    %c0_9 = arith.constant 0 : index
    %18 = vector.load %arg9[%c0_8, %c0_9] : memref<128x128xf32, #tpu.memory_space<vmem>>, vector<128x128xf32>
    tpu.vector_store %arg9[%c0_8, %c0_9], %17 {strides = array<i32>} : memref<128x128xf32, #tpu.memory_space<vmem>>, vector<128x128xf32>,
    %c0_i32_10 = arith.constant 0 : i32
    %c0_i32_11 = arith.constant 0 : i32
    %c0_i32_12 = arith.constant 0 : i32
    %19 = tpu.memref_slice %arg7[%0, %c0_i32_10, %c0_i32_11, %c0_i32_12] : memref<2x16x24x128xbf16, #tpu.memory_space<vmem>> -> memref<1x16x24x128xbf16, #tpu.memory_space<vmem>>
    %20 = tpu.memref_squeeze %19 : memref<1x16x24x128xbf16, #tpu.memory_space<vmem>> -> memref<16x24x128xbf16, #tpu.memory_space<vmem>>
    %c3 = arith.constant 3 : index
    %c3_13 = arith.constant 3 : index
    %c0_14 = arith.constant 0 : index
    %21 = vector.load %20[%c3, %c3_13, %c0_14] : memref<16x24x128xbf16, #tpu.memory_space<vmem>>, vector<8x16x128xbf16>
    %22 = vector.shape_cast %21 : vector<8x16x128xbf16> to vector<128x128xbf16>
    %c27_i32 = arith.constant 27 : i32
    %23 = arith.muli %arg2, %c27_i32 : i32
    %c0_i32_15 = arith.constant 0 : i32
    %24 = arith.addi %23, %c0_i32_15 : i32
    %c0_16 = arith.constant 0 : index
    %c0_17 = arith.constant 0 : index
    %25 = vector.load %arg9[%c0_16, %c0_17] : memref<128x128xf32, #tpu.memory_space<vmem>>, vector<128x128xf32>
    %26 = arith.index_cast %24 : i32 to index
    %c0_18 = arith.constant 0 : index
    %c0_19 = arith.constant 0 : index
    %27 = vector.load %arg4[%26, %c0_18, %c0_19] : memref<27x128x128xbf16, #tpu.memory_space<vmem>>, vector<1x128x128xbf16>
    %28 = vector.shape_cast %27 : vector<1x128x128xbf16> to vector<128x128xbf16>
    %cst = arith.constant dense<0.000000e+00> : vector<128x128xf32>
    %29 = tpu.matmul %22, %28, %cst {dimension_numbers = #tpu.dot_dimension_numbers<[1], [0], [0], [1], [0, 0, 1, 1], [], []>} : vector<128x128xbf16>, vector<128x128xbf16>, vector<128x128xf32> -> vector<128x128xf32>
    %30 = arith.addf %25, %29 : vector<128x128xf32>
    %c0_20 = arith.constant 0 : index
    %c0_21 = arith.constant 0 : index
    %31 = vector.load %arg9[%c0_20, %c0_21] : memref<128x128xf32, #tpu.memory_space<vmem>>, vector<128x128xf32>
    tpu.vector_store %arg9[%c0_20, %c0_21], %30 {strides = array<i32>} : memref<128x128xf32, #tpu.memory_space<vmem>>, vector<128x128xf32>,
    %c0_i32_22 = arith.constant 0 : i32
    %c0_i32_23 = arith.constant 0 : i32
    %c0_i32_24 = arith.constant 0 : i32
    %32 = tpu.memref_slice %arg7[%0, %c0_i32_22, %c0_i32_23, %c0_i32_24] : memref<2x16x24x128xbf16, #tpu.memory_space<vmem>> -> memref<1x16x24x128xbf16, #tpu.memory_space<vmem>>
    %33 = tpu.memref_squeeze %32 : memref<1x16x24x128xbf16, #tpu.memory_space<vmem>> -> memref<16x24x128xbf16, #tpu.memory_space<vmem>>
    %c3_25 = arith.constant 3 : index
    %c4 = arith.constant 4 : index
    %c0_26 = arith.constant 0 : index
    %34 = vector.load %33[%c3_25, %c4, %c0_26] : memref<16x24x128xbf16, #tpu.memory_space<vmem>>, vector<8x16x128xbf16>
    %35 = vector.shape_cast %34 : vector<8x16x128xbf16> to vector<128x128xbf16>
    %c27_i32_27 = arith.constant 27 : i32
    %36 = arith.muli %arg2, %c27_i32_27 : i32
    %c1_i32_28 = arith.constant 1 : i32
    %37 = arith.addi %36, %c1_i32_28 : i32
    %c0_29 = arith.constant 0 : index
    %c0_30 = arith.constant 0 : index
    %38 = vector.load %arg9[%c0_29, %c0_30] : memref<128x128xf32, #tpu.memory_space<vmem>>, vector<128x128xf32>
    %39 = arith.index_cast %37 : i32 to index
    %c0_31 = arith.constant 0 : index
    %c0_32 = arith.constant 0 : index
    %40 = vector.load %arg4[%39, %c0_31, %c0_32] : memref<27x128x128xbf16, #tpu.memory_space<vmem>>, vector<1x128x128xbf16>
    %41 = vector.shape_cast %40 : vector<1x128x128xbf16> to vector<128x128xbf16>
    %cst_33 = arith.constant dense<0.000000e+00> : vector<128x128xf32>
    %42 = tpu.matmul %35, %41, %cst_33 {dimension_numbers = #tpu.dot_dimension_numbers<[1], [0], [0], [1], [0, 0, 1, 1], [], []>} : vector<128x128xbf16>, vector<128x128xbf16>, vector<128x128xf32> -> vector<128x128xf32>
    %43 = arith.addf %38, %42 : vector<128x128xf32>
    %c0_34 = arith.constant 0 : index
    %c0_35 = arith.constant 0 : index
    %44 = vector.load %arg9[%c0_34, %c0_35] : memref<128x128xf32, #tpu.memory_space<vmem>>, vector<128x128xf32>
    tpu.vector_store %arg9[%c0_34, %c0_35], %43 {strides = array<i32>} : memref<128x128xf32, #tpu.memory_space<vmem>>, vector<128x128xf32>,
    %c0_i32_36 = arith.constant 0 : i32
    %c0_i32_37 = arith.constant 0 : i32
    %c0_i32_38 = arith.constant 0 : i32
    %45 = tpu.memref_slice %arg7[%0, %c0_i32_36, %c0_i32_37, %c0_i32_38] : memref<2x16x24x128xbf16, #tpu.memory_space<vmem>> -> memref<1x16x24x128xbf16, #tpu.memory_space<vmem>>
    %46 = tpu.memref_squeeze %45 : memref<1x16x24x128xbf16, #tpu.memory_space<vmem>> -> memref<16x24x128xbf16, #tpu.memory_space<vmem>>
    %c3_39 = arith.constant 3 : index
    %c5 = arith.constant 5 : index
    %c0_40 = arith.constant 0 : index
    %47 = vector.load %46[%c3_39, %c5, %c0_40] : memref<16x24x128xbf16, #tpu.memory_space<vmem>>, vector<8x16x128xbf16>
    %48 = vector.shape_cast %47 : vector<8x16x128xbf16> to vector<128x128xbf16>
    %c27_i32_41 = arith.constant 27 : i32
    %49 = arith.muli %arg2, %c27_i32_41 : i32
    %c2_i32_42 = arith.constant 2 : i32
    %50 = arith.addi %49, %c2_i32_42 : i32
    %c0_43 = arith.constant 0 : index
    %c0_44 = arith.constant 0 : index
    %51 = vector.load %arg9[%c0_43, %c0_44] : memref<128x128xf32, #tpu.memory_space<vmem>>, vector<128x128xf32>
    %52 = arith.index_cast %50 : i32 to index
    %c0_45 = arith.constant 0 : index
    %c0_46 = arith.constant 0 : index
    %53 = vector.load %arg4[%52, %c0_45, %c0_46] : memref<27x128x128xbf16, #tpu.memory_space<vmem>>, vector<1x128x128xbf16>
    %54 = vector.shape_cast %53 : vector<1x128x128xbf16> to vector<128x128xbf16>
    %cst_47 = arith.constant dense<0.000000e+00> : vector<128x128xf32>
    %55 = tpu.matmul %48, %54, %cst_47 {dimension_numbers = #tpu.dot_dimension_numbers<[1], [0], [0], [1], [0, 0, 1, 1], [], []>} : vector<128x128xbf16>, vector<128x128xbf16>, vector<128x128xf32> -> vector<128x128xf32>
    %56 = arith.addf %51, %55 : vector<128x128xf32>
    %c0_48 = arith.constant 0 : index
    %c0_49 = arith.constant 0 : index
    %57 = vector.load %arg9[%c0_48, %c0_49] : memref<128x128xf32, #tpu.memory_space<vmem>>, vector<128x128xf32>
    tpu.vector_store %arg9[%c0_48, %c0_49], %56 {strides = array<i32>} : memref<128x128xf32, #tpu.memory_space<vmem>>, vector<128x128xf32>,
    %c0_i32_50 = arith.constant 0 : i32
    %c0_i32_51 = arith.constant 0 : i32
    %c0_i32_52 = arith.constant 0 : i32
    %58 = tpu.memref_slice %arg7[%0, %c0_i32_50, %c0_i32_51, %c0_i32_52] : memref<2x16x24x128xbf16, #tpu.memory_space<vmem>> -> memref<1x16x24x128xbf16, #tpu.memory_space<vmem>>
    %59 = tpu.memref_squeeze %58 : memref<1x16x24x128xbf16, #tpu.memory_space<vmem>> -> memref<16x24x128xbf16, #tpu.memory_space<vmem>>
    %c4_53 = arith.constant 4 : index
    %c3_54 = arith.constant 3 : index
    %c0_55 = arith.constant 0 : index
    %60 = vector.load %59[%c4_53, %c3_54, %c0_55] : memref<16x24x128xbf16, #tpu.memory_space<vmem>>, vector<8x16x128xbf16>
    %61 = vector.shape_cast %60 : vector<8x16x128xbf16> to vector<128x128xbf16>
    %c27_i32_56 = arith.constant 27 : i32
    %62 = arith.muli %arg2, %c27_i32_56 : i32
    %c3_i32 = arith.constant 3 : i32
    %63 = arith.addi %62, %c3_i32 : i32
    %c0_57 = arith.constant 0 : index
    %c0_58 = arith.constant 0 : index
    %64 = vector.load %arg9[%c0_57, %c0_58] : memref<128x128xf32, #tpu.memory_space<vmem>>, vector<128x128xf32>
    %65 = arith.index_cast %63 : i32 to index
    %c0_59 = arith.constant 0 : index
    %c0_60 = arith.constant 0 : index
    %66 = vector.load %arg4[%65, %c0_59, %c0_60] : memref<27x128x128xbf16, #tpu.memory_space<vmem>>, vector<1x128x128xbf16>
    %67 = vector.shape_cast %66 : vector<1x128x128xbf16> to vector<128x128xbf16>
    %cst_61 = arith.constant dense<0.000000e+00> : vector<128x128xf32>
    %68 = tpu.matmul %61, %67, %cst_61 {dimension_numbers = #tpu.dot_dimension_numbers<[1], [0], [0], [1], [0, 0, 1, 1], [], []>} : vector<128x128xbf16>, vector<128x128xbf16>, vector<128x128xf32> -> vector<128x128xf32>
    %69 = arith.addf %64, %68 : vector<128x128xf32>
    %c0_62 = arith.constant 0 : index
    %c0_63 = arith.constant 0 : index
    %70 = vector.load %arg9[%c0_62, %c0_63] : memref<128x128xf32, #tpu.memory_space<vmem>>, vector<128x128xf32>
    tpu.vector_store %arg9[%c0_62, %c0_63], %69 {strides = array<i32>} : memref<128x128xf32, #tpu.memory_space<vmem>>, vector<128x128xf32>,
    %c0_i32_64 = arith.constant 0 : i32
    %c0_i32_65 = arith.constant 0 : i32
    %c0_i32_66 = arith.constant 0 : i32
    %71 = tpu.memref_slice %arg7[%0, %c0_i32_64, %c0_i32_65, %c0_i32_66] : memref<2x16x24x128xbf16, #tpu.memory_space<vmem>> -> memref<1x16x24x128xbf16, #tpu.memory_space<vmem>>
    %72 = tpu.memref_squeeze %71 : memref<1x16x24x128xbf16, #tpu.memory_space<vmem>> -> memref<16x24x128xbf16, #tpu.memory_space<vmem>>
    %c4_67 = arith.constant 4 : index
    %c4_68 = arith.constant 4 : index
    %c0_69 = arith.constant 0 : index
    %73 = vector.load %72[%c4_67, %c4_68, %c0_69] : memref<16x24x128xbf16, #tpu.memory_space<vmem>>, vector<8x16x128xbf16>
    %74 = vector.shape_cast %73 : vector<8x16x128xbf16> to vector<128x128xbf16>
    %c27_i32_70 = arith.constant 27 : i32
    %75 = arith.muli %arg2, %c27_i32_70 : i32
    %c4_i32 = arith.constant 4 : i32
    %76 = arith.addi %75, %c4_i32 : i32
    %c0_71 = arith.constant 0 : index
    %c0_72 = arith.constant 0 : index
    %77 = vector.load %arg9[%c0_71, %c0_72] : memref<128x128xf32, #tpu.memory_space<vmem>>, vector<128x128xf32>
    %78 = arith.index_cast %76 : i32 to index
    %c0_73 = arith.constant 0 : index
    %c0_74 = arith.constant 0 : index
    %79 = vector.load %arg4[%78, %c0_73, %c0_74] : memref<27x128x128xbf16, #tpu.memory_space<vmem>>, vector<1x128x128xbf16>
    %80 = vector.shape_cast %79 : vector<1x128x128xbf16> to vector<128x128xbf16>
    %cst_75 = arith.constant dense<0.000000e+00> : vector<128x128xf32>
    %81 = tpu.matmul %74, %80, %cst_75 {dimension_numbers = #tpu.dot_dimension_numbers<[1], [0], [0], [1], [0, 0, 1, 1], [], []>} : vector<128x128xbf16>, vector<128x128xbf16>, vector<128x128xf32> -> vector<128x128xf32>
    %82 = arith.addf %77, %81 : vector<128x128xf32>
    %c0_76 = arith.constant 0 : index
    %c0_77 = arith.constant 0 : index
    %83 = vector.load %arg9[%c0_76, %c0_77] : memref<128x128xf32, #tpu.memory_space<vmem>>, vector<128x128xf32>
    tpu.vector_store %arg9[%c0_76, %c0_77], %82 {strides = array<i32>} : memref<128x128xf32, #tpu.memory_space<vmem>>, vector<128x128xf32>,
    %c0_i32_78 = arith.constant 0 : i32
    %c0_i32_79 = arith.constant 0 : i32
    %c0_i32_80 = arith.constant 0 : i32
    %84 = tpu.memref_slice %arg7[%0, %c0_i32_78, %c0_i32_79, %c0_i32_80] : memref<2x16x24x128xbf16, #tpu.memory_space<vmem>> -> memref<1x16x24x128xbf16, #tpu.memory_space<vmem>>
    %85 = tpu.memref_squeeze %84 : memref<1x16x24x128xbf16, #tpu.memory_space<vmem>> -> memref<16x24x128xbf16, #tpu.memory_space<vmem>>
    %c4_81 = arith.constant 4 : index
    %c5_82 = arith.constant 5 : index
    %c0_83 = arith.constant 0 : index
    %86 = vector.load %85[%c4_81, %c5_82, %c0_83] : memref<16x24x128xbf16, #tpu.memory_space<vmem>>, vector<8x16x128xbf16>
    %87 = vector.shape_cast %86 : vector<8x16x128xbf16> to vector<128x128xbf16>
    %c27_i32_84 = arith.constant 27 : i32
    %88 = arith.muli %arg2, %c27_i32_84 : i32
    %c5_i32 = arith.constant 5 : i32
    %89 = arith.addi %88, %c5_i32 : i32
    %c0_85 = arith.constant 0 : index
    %c0_86 = arith.constant 0 : index
    %90 = vector.load %arg9[%c0_85, %c0_86] : memref<128x128xf32, #tpu.memory_space<vmem>>, vector<128x128xf32>
    %91 = arith.index_cast %89 : i32 to index
    %c0_87 = arith.constant 0 : index
    %c0_88 = arith.constant 0 : index
    %92 = vector.load %arg4[%91, %c0_87, %c0_88] : memref<27x128x128xbf16, #tpu.memory_space<vmem>>, vector<1x128x128xbf16>
    %93 = vector.shape_cast %92 : vector<1x128x128xbf16> to vector<128x128xbf16>
    %cst_89 = arith.constant dense<0.000000e+00> : vector<128x128xf32>
    %94 = tpu.matmul %87, %93, %cst_89 {dimension_numbers = #tpu.dot_dimension_numbers<[1], [0], [0], [1], [0, 0, 1, 1], [], []>} : vector<128x128xbf16>, vector<128x128xbf16>, vector<128x128xf32> -> vector<128x128xf32>
    %95 = arith.addf %90, %94 : vector<128x128xf32>
    %c0_90 = arith.constant 0 : index
    %c0_91 = arith.constant 0 : index
    %96 = vector.load %arg9[%c0_90, %c0_91] : memref<128x128xf32, #tpu.memory_space<vmem>>, vector<128x128xf32>
    tpu.vector_store %arg9[%c0_90, %c0_91], %95 {strides = array<i32>} : memref<128x128xf32, #tpu.memory_space<vmem>>, vector<128x128xf32>,
    %c0_i32_92 = arith.constant 0 : i32
    %c0_i32_93 = arith.constant 0 : i32
    %c0_i32_94 = arith.constant 0 : i32
    %97 = tpu.memref_slice %arg7[%0, %c0_i32_92, %c0_i32_93, %c0_i32_94] : memref<2x16x24x128xbf16, #tpu.memory_space<vmem>> -> memref<1x16x24x128xbf16, #tpu.memory_space<vmem>>
    %98 = tpu.memref_squeeze %97 : memref<1x16x24x128xbf16, #tpu.memory_space<vmem>> -> memref<16x24x128xbf16, #tpu.memory_space<vmem>>
    %c5_95 = arith.constant 5 : index
    %c3_96 = arith.constant 3 : index
    %c0_97 = arith.constant 0 : index
    %99 = vector.load %98[%c5_95, %c3_96, %c0_97] : memref<16x24x128xbf16, #tpu.memory_space<vmem>>, vector<8x16x128xbf16>
    %100 = vector.shape_cast %99 : vector<8x16x128xbf16> to vector<128x128xbf16>
    %c27_i32_98 = arith.constant 27 : i32
    %101 = arith.muli %arg2, %c27_i32_98 : i32
    %c6_i32 = arith.constant 6 : i32
    %102 = arith.addi %101, %c6_i32 : i32
    %c0_99 = arith.constant 0 : index
    %c0_100 = arith.constant 0 : index
    %103 = vector.load %arg9[%c0_99, %c0_100] : memref<128x128xf32, #tpu.memory_space<vmem>>, vector<128x128xf32>
    %104 = arith.index_cast %102 : i32 to index
    %c0_101 = arith.constant 0 : index
    %c0_102 = arith.constant 0 : index
    %105 = vector.load %arg4[%104, %c0_101, %c0_102] : memref<27x128x128xbf16, #tpu.memory_space<vmem>>, vector<1x128x128xbf16>
    %106 = vector.shape_cast %105 : vector<1x128x128xbf16> to vector<128x128xbf16>
    %cst_103 = arith.constant dense<0.000000e+00> : vector<128x128xf32>
    %107 = tpu.matmul %100, %106, %cst_103 {dimension_numbers = #tpu.dot_dimension_numbers<[1], [0], [0], [1], [0, 0, 1, 1], [], []>} : vector<128x128xbf16>, vector<128x128xbf16>, vector<128x128xf32> -> vector<128x128xf32>
    %108 = arith.addf %103, %107 : vector<128x128xf32>
    %c0_104 = arith.constant 0 : index
    %c0_105 = arith.constant 0 : index
    %109 = vector.load %arg9[%c0_104, %c0_105] : memref<128x128xf32, #tpu.memory_space<vmem>>, vector<128x128xf32>
    tpu.vector_store %arg9[%c0_104, %c0_105], %108 {strides = array<i32>} : memref<128x128xf32, #tpu.memory_space<vmem>>, vector<128x128xf32>,
    %c0_i32_106 = arith.constant 0 : i32
    %c0_i32_107 = arith.constant 0 : i32
    %c0_i32_108 = arith.constant 0 : i32
    %110 = tpu.memref_slice %arg7[%0, %c0_i32_106, %c0_i32_107, %c0_i32_108] : memref<2x16x24x128xbf16, #tpu.memory_space<vmem>> -> memref<1x16x24x128xbf16, #tpu.memory_space<vmem>>
    %111 = tpu.memref_squeeze %110 : memref<1x16x24x128xbf16, #tpu.memory_space<vmem>> -> memref<16x24x128xbf16, #tpu.memory_space<vmem>>
    %c5_109 = arith.constant 5 : index
    %c4_110 = arith.constant 4 : index
    %c0_111 = arith.constant 0 : index
    %112 = vector.load %111[%c5_109, %c4_110, %c0_111] : memref<16x24x128xbf16, #tpu.memory_space<vmem>>, vector<8x16x128xbf16>
    %113 = vector.shape_cast %112 : vector<8x16x128xbf16> to vector<128x128xbf16>
    %c27_i32_112 = arith.constant 27 : i32
    %114 = arith.muli %arg2, %c27_i32_112 : i32
    %c7_i32 = arith.constant 7 : i32
    %115 = arith.addi %114, %c7_i32 : i32
    %c0_113 = arith.constant 0 : index
    %c0_114 = arith.constant 0 : index
    %116 = vector.load %arg9[%c0_113, %c0_114] : memref<128x128xf32, #tpu.memory_space<vmem>>, vector<128x128xf32>
    %117 = arith.index_cast %115 : i32 to index
    %c0_115 = arith.constant 0 : index
    %c0_116 = arith.constant 0 : index
    %118 = vector.load %arg4[%117, %c0_115, %c0_116] : memref<27x128x128xbf16, #tpu.memory_space<vmem>>, vector<1x128x128xbf16>
    %119 = vector.shape_cast %118 : vector<1x128x128xbf16> to vector<128x128xbf16>
    %cst_117 = arith.constant dense<0.000000e+00> : vector<128x128xf32>
    %120 = tpu.matmul %113, %119, %cst_117 {dimension_numbers = #tpu.dot_dimension_numbers<[1], [0], [0], [1], [0, 0, 1, 1], [], []>} : vector<128x128xbf16>, vector<128x128xbf16>, vector<128x128xf32> -> vector<128x128xf32>
    %121 = arith.addf %116, %120 : vector<128x128xf32>
    %c0_118 = arith.constant 0 : index
    %c0_119 = arith.constant 0 : index
    %122 = vector.load %arg9[%c0_118, %c0_119] : memref<128x128xf32, #tpu.memory_space<vmem>>, vector<128x128xf32>
    tpu.vector_store %arg9[%c0_118, %c0_119], %121 {strides = array<i32>} : memref<128x128xf32, #tpu.memory_space<vmem>>, vector<128x128xf32>,
    %c0_i32_120 = arith.constant 0 : i32
    %c0_i32_121 = arith.constant 0 : i32
    %c0_i32_122 = arith.constant 0 : i32
    %123 = tpu.memref_slice %arg7[%0, %c0_i32_120, %c0_i32_121, %c0_i32_122] : memref<2x16x24x128xbf16, #tpu.memory_space<vmem>> -> memref<1x16x24x128xbf16, #tpu.memory_space<vmem>>
    %124 = tpu.memref_squeeze %123 : memref<1x16x24x128xbf16, #tpu.memory_space<vmem>> -> memref<16x24x128xbf16, #tpu.memory_space<vmem>>
    %c5_123 = arith.constant 5 : index
    %c5_124 = arith.constant 5 : index
    %c0_125 = arith.constant 0 : index
    %125 = vector.load %124[%c5_123, %c5_124, %c0_125] : memref<16x24x128xbf16, #tpu.memory_space<vmem>>, vector<8x16x128xbf16>
    %126 = vector.shape_cast %125 : vector<8x16x128xbf16> to vector<128x128xbf16>
    %c27_i32_126 = arith.constant 27 : i32
    %127 = arith.muli %arg2, %c27_i32_126 : i32
    %c8_i32 = arith.constant 8 : i32
    %128 = arith.addi %127, %c8_i32 : i32
    %c0_127 = arith.constant 0 : index
    %c0_128 = arith.constant 0 : index
    %129 = vector.load %arg9[%c0_127, %c0_128] : memref<128x128xf32, #tpu.memory_space<vmem>>, vector<128x128xf32>
    %130 = arith.index_cast %128 : i32 to index
    %c0_129 = arith.constant 0 : index
    %c0_130 = arith.constant 0 : index
    %131 = vector.load %arg4[%130, %c0_129, %c0_130] : memref<27x128x128xbf16, #tpu.memory_space<vmem>>, vector<1x128x128xbf16>
    %132 = vector.shape_cast %131 : vector<1x128x128xbf16> to vector<128x128xbf16>
    %cst_131 = arith.constant dense<0.000000e+00> : vector<128x128xf32>
    %133 = tpu.matmul %126, %132, %cst_131 {dimension_numbers = #tpu.dot_dimension_numbers<[1], [0], [0], [1], [0, 0, 1, 1], [], []>} : vector<128x128xbf16>, vector<128x128xbf16>, vector<128x128xf32> -> vector<128x128xf32>
    %134 = arith.addf %129, %133 : vector<128x128xf32>
    %c0_132 = arith.constant 0 : index
    %c0_133 = arith.constant 0 : index
    %135 = vector.load %arg9[%c0_132, %c0_133] : memref<128x128xf32, #tpu.memory_space<vmem>>, vector<128x128xf32>
    tpu.vector_store %arg9[%c0_132, %c0_133], %134 {strides = array<i32>} : memref<128x128xf32, #tpu.memory_space<vmem>>, vector<128x128xf32>,
    %c0_i32_134 = arith.constant 0 : i32
    %c0_i32_135 = arith.constant 0 : i32
    %c0_i32_136 = arith.constant 0 : i32
    %136 = tpu.memref_slice %arg7[%0, %c0_i32_134, %c0_i32_135, %c0_i32_136] : memref<2x16x24x128xbf16, #tpu.memory_space<vmem>> -> memref<1x16x24x128xbf16, #tpu.memory_space<vmem>>
    %137 = tpu.memref_squeeze %136 : memref<1x16x24x128xbf16, #tpu.memory_space<vmem>> -> memref<16x24x128xbf16, #tpu.memory_space<vmem>>
    %c2 = arith.constant 2 : index
    %c2_137 = arith.constant 2 : index
    %c0_138 = arith.constant 0 : index
    %138 = vector.load %137[%c2, %c2_137, %c0_138] : memref<16x24x128xbf16, #tpu.memory_space<vmem>>, vector<8x16x128xbf16>
    %139 = vector.shape_cast %138 : vector<8x16x128xbf16> to vector<128x128xbf16>
    %c27_i32_139 = arith.constant 27 : i32
    %140 = arith.muli %arg2, %c27_i32_139 : i32
    %c9_i32 = arith.constant 9 : i32
    %141 = arith.addi %140, %c9_i32 : i32
    %c0_140 = arith.constant 0 : index
    %c0_141 = arith.constant 0 : index
    %142 = vector.load %arg9[%c0_140, %c0_141] : memref<128x128xf32, #tpu.memory_space<vmem>>, vector<128x128xf32>
    %143 = arith.index_cast %141 : i32 to index
    %c0_142 = arith.constant 0 : index
    %c0_143 = arith.constant 0 : index
    %144 = vector.load %arg4[%143, %c0_142, %c0_143] : memref<27x128x128xbf16, #tpu.memory_space<vmem>>, vector<1x128x128xbf16>
    %145 = vector.shape_cast %144 : vector<1x128x128xbf16> to vector<128x128xbf16>
    %cst_144 = arith.constant dense<0.000000e+00> : vector<128x128xf32>
    %146 = tpu.matmul %139, %145, %cst_144 {dimension_numbers = #tpu.dot_dimension_numbers<[1], [0], [0], [1], [0, 0, 1, 1], [], []>} : vector<128x128xbf16>, vector<128x128xbf16>, vector<128x128xf32> -> vector<128x128xf32>
    %147 = arith.addf %142, %146 : vector<128x128xf32>
    %c0_145 = arith.constant 0 : index
    %c0_146 = arith.constant 0 : index
    %148 = vector.load %arg9[%c0_145, %c0_146] : memref<128x128xf32, #tpu.memory_space<vmem>>, vector<128x128xf32>
    tpu.vector_store %arg9[%c0_145, %c0_146], %147 {strides = array<i32>} : memref<128x128xf32, #tpu.memory_space<vmem>>, vector<128x128xf32>,
    %c0_i32_147 = arith.constant 0 : i32
    %c0_i32_148 = arith.constant 0 : i32
    %c0_i32_149 = arith.constant 0 : i32
    %149 = tpu.memref_slice %arg7[%0, %c0_i32_147, %c0_i32_148, %c0_i32_149] : memref<2x16x24x128xbf16, #tpu.memory_space<vmem>> -> memref<1x16x24x128xbf16, #tpu.memory_space<vmem>>
    %150 = tpu.memref_squeeze %149 : memref<1x16x24x128xbf16, #tpu.memory_space<vmem>> -> memref<16x24x128xbf16, #tpu.memory_space<vmem>>
    %c2_150 = arith.constant 2 : index
    %c4_151 = arith.constant 4 : index
    %c0_152 = arith.constant 0 : index
    %151 = vector.load %150[%c2_150, %c4_151, %c0_152] : memref<16x24x128xbf16, #tpu.memory_space<vmem>>, vector<8x16x128xbf16>
    %152 = vector.shape_cast %151 : vector<8x16x128xbf16> to vector<128x128xbf16>
    %c27_i32_153 = arith.constant 27 : i32
    %153 = arith.muli %arg2, %c27_i32_153 : i32
    %c10_i32 = arith.constant 10 : i32
    %154 = arith.addi %153, %c10_i32 : i32
    %c0_154 = arith.constant 0 : index
    %c0_155 = arith.constant 0 : index
    %155 = vector.load %arg9[%c0_154, %c0_155] : memref<128x128xf32, #tpu.memory_space<vmem>>, vector<128x128xf32>
    %156 = arith.index_cast %154 : i32 to index
    %c0_156 = arith.constant 0 : index
    %c0_157 = arith.constant 0 : index
    %157 = vector.load %arg4[%156, %c0_156, %c0_157] : memref<27x128x128xbf16, #tpu.memory_space<vmem>>, vector<1x128x128xbf16>
    %158 = vector.shape_cast %157 : vector<1x128x128xbf16> to vector<128x128xbf16>
    %cst_158 = arith.constant dense<0.000000e+00> : vector<128x128xf32>
    %159 = tpu.matmul %152, %158, %cst_158 {dimension_numbers = #tpu.dot_dimension_numbers<[1], [0], [0], [1], [0, 0, 1, 1], [], []>} : vector<128x128xbf16>, vector<128x128xbf16>, vector<128x128xf32> -> vector<128x128xf32>
    %160 = arith.addf %155, %159 : vector<128x128xf32>
    %c0_159 = arith.constant 0 : index
    %c0_160 = arith.constant 0 : index
    %161 = vector.load %arg9[%c0_159, %c0_160] : memref<128x128xf32, #tpu.memory_space<vmem>>, vector<128x128xf32>
    tpu.vector_store %arg9[%c0_159, %c0_160], %160 {strides = array<i32>} : memref<128x128xf32, #tpu.memory_space<vmem>>, vector<128x128xf32>,
    %c0_i32_161 = arith.constant 0 : i32
    %c0_i32_162 = arith.constant 0 : i32
    %c0_i32_163 = arith.constant 0 : i32
    %162 = tpu.memref_slice %arg7[%0, %c0_i32_161, %c0_i32_162, %c0_i32_163] : memref<2x16x24x128xbf16, #tpu.memory_space<vmem>> -> memref<1x16x24x128xbf16, #tpu.memory_space<vmem>>
    %163 = tpu.memref_squeeze %162 : memref<1x16x24x128xbf16, #tpu.memory_space<vmem>> -> memref<16x24x128xbf16, #tpu.memory_space<vmem>>
    %c2_164 = arith.constant 2 : index
    %c6 = arith.constant 6 : index
    %c0_165 = arith.constant 0 : index
    %164 = vector.load %163[%c2_164, %c6, %c0_165] : memref<16x24x128xbf16, #tpu.memory_space<vmem>>, vector<8x16x128xbf16>
    %165 = vector.shape_cast %164 : vector<8x16x128xbf16> to vector<128x128xbf16>
    %c27_i32_166 = arith.constant 27 : i32
    %166 = arith.muli %arg2, %c27_i32_166 : i32
    %c11_i32 = arith.constant 11 : i32
    %167 = arith.addi %166, %c11_i32 : i32
    %c0_167 = arith.constant 0 : index
    %c0_168 = arith.constant 0 : index
    %168 = vector.load %arg9[%c0_167, %c0_168] : memref<128x128xf32, #tpu.memory_space<vmem>>, vector<128x128xf32>
    %169 = arith.index_cast %167 : i32 to index
    %c0_169 = arith.constant 0 : index
    %c0_170 = arith.constant 0 : index
    %170 = vector.load %arg4[%169, %c0_169, %c0_170] : memref<27x128x128xbf16, #tpu.memory_space<vmem>>, vector<1x128x128xbf16>
    %171 = vector.shape_cast %170 : vector<1x128x128xbf16> to vector<128x128xbf16>
    %cst_171 = arith.constant dense<0.000000e+00> : vector<128x128xf32>
    %172 = tpu.matmul %165, %171, %cst_171 {dimension_numbers = #tpu.dot_dimension_numbers<[1], [0], [0], [1], [0, 0, 1, 1], [], []>} : vector<128x128xbf16>, vector<128x128xbf16>, vector<128x128xf32> -> vector<128x128xf32>
    %173 = arith.addf %168, %172 : vector<128x128xf32>
    %c0_172 = arith.constant 0 : index
    %c0_173 = arith.constant 0 : index
    %174 = vector.load %arg9[%c0_172, %c0_173] : memref<128x128xf32, #tpu.memory_space<vmem>>, vector<128x128xf32>
    tpu.vector_store %arg9[%c0_172, %c0_173], %173 {strides = array<i32>} : memref<128x128xf32, #tpu.memory_space<vmem>>, vector<128x128xf32>,
    %c0_i32_174 = arith.constant 0 : i32
    %c0_i32_175 = arith.constant 0 : i32
    %c0_i32_176 = arith.constant 0 : i32
    %175 = tpu.memref_slice %arg7[%0, %c0_i32_174, %c0_i32_175, %c0_i32_176] : memref<2x16x24x128xbf16, #tpu.memory_space<vmem>> -> memref<1x16x24x128xbf16, #tpu.memory_space<vmem>>
    %176 = tpu.memref_squeeze %175 : memref<1x16x24x128xbf16, #tpu.memory_space<vmem>> -> memref<16x24x128xbf16, #tpu.memory_space<vmem>>
    %c4_177 = arith.constant 4 : index
    %c2_178 = arith.constant 2 : index
    %c0_179 = arith.constant 0 : index
    %177 = vector.load %176[%c4_177, %c2_178, %c0_179] : memref<16x24x128xbf16, #tpu.memory_space<vmem>>, vector<8x16x128xbf16>
    %178 = vector.shape_cast %177 : vector<8x16x128xbf16> to vector<128x128xbf16>
    %c27_i32_180 = arith.constant 27 : i32
    %179 = arith.muli %arg2, %c27_i32_180 : i32
    %c12_i32 = arith.constant 12 : i32
    %180 = arith.addi %179, %c12_i32 : i32
    %c0_181 = arith.constant 0 : index
    %c0_182 = arith.constant 0 : index
    %181 = vector.load %arg9[%c0_181, %c0_182] : memref<128x128xf32, #tpu.memory_space<vmem>>, vector<128x128xf32>
    %182 = arith.index_cast %180 : i32 to index
    %c0_183 = arith.constant 0 : index
    %c0_184 = arith.constant 0 : index
    %183 = vector.load %arg4[%182, %c0_183, %c0_184] : memref<27x128x128xbf16, #tpu.memory_space<vmem>>, vector<1x128x128xbf16>
    %184 = vector.shape_cast %183 : vector<1x128x128xbf16> to vector<128x128xbf16>
    %cst_185 = arith.constant dense<0.000000e+00> : vector<128x128xf32>
    %185 = tpu.matmul %178, %184, %cst_185 {dimension_numbers = #tpu.dot_dimension_numbers<[1], [0], [0], [1], [0, 0, 1, 1], [], []>} : vector<128x128xbf16>, vector<128x128xbf16>, vector<128x128xf32> -> vector<128x128xf32>
    %186 = arith.addf %181, %185 : vector<128x128xf32>
    %c0_186 = arith.constant 0 : index
    %c0_187 = arith.constant 0 : index
    %187 = vector.load %arg9[%c0_186, %c0_187] : memref<128x128xf32, #tpu.memory_space<vmem>>, vector<128x128xf32>
    tpu.vector_store %arg9[%c0_186, %c0_187], %186 {strides = array<i32>} : memref<128x128xf32, #tpu.memory_space<vmem>>, vector<128x128xf32>,
    %c0_i32_188 = arith.constant 0 : i32
    %c0_i32_189 = arith.constant 0 : i32
    %c0_i32_190 = arith.constant 0 : i32
    %188 = tpu.memref_slice %arg7[%0, %c0_i32_188, %c0_i32_189, %c0_i32_190] : memref<2x16x24x128xbf16, #tpu.memory_space<vmem>> -> memref<1x16x24x128xbf16, #tpu.memory_space<vmem>>
    %189 = tpu.memref_squeeze %188 : memref<1x16x24x128xbf16, #tpu.memory_space<vmem>> -> memref<16x24x128xbf16, #tpu.memory_space<vmem>>
    %c4_191 = arith.constant 4 : index
    %c4_192 = arith.constant 4 : index
    %c0_193 = arith.constant 0 : index
    %190 = vector.load %189[%c4_191, %c4_192, %c0_193] : memref<16x24x128xbf16, #tpu.memory_space<vmem>>, vector<8x16x128xbf16>
    %191 = vector.shape_cast %190 : vector<8x16x128xbf16> to vector<128x128xbf16>
    %c27_i32_194 = arith.constant 27 : i32
    %192 = arith.muli %arg2, %c27_i32_194 : i32
    %c13_i32 = arith.constant 13 : i32
    %193 = arith.addi %192, %c13_i32 : i32
    %c0_195 = arith.constant 0 : index
    %c0_196 = arith.constant 0 : index
    %194 = vector.load %arg9[%c0_195, %c0_196] : memref<128x128xf32, #tpu.memory_space<vmem>>, vector<128x128xf32>
    %195 = arith.index_cast %193 : i32 to index
    %c0_197 = arith.constant 0 : index
    %c0_198 = arith.constant 0 : index
    %196 = vector.load %arg4[%195, %c0_197, %c0_198] : memref<27x128x128xbf16, #tpu.memory_space<vmem>>, vector<1x128x128xbf16>
    %197 = vector.shape_cast %196 : vector<1x128x128xbf16> to vector<128x128xbf16>
    %cst_199 = arith.constant dense<0.000000e+00> : vector<128x128xf32>
    %198 = tpu.matmul %191, %197, %cst_199 {dimension_numbers = #tpu.dot_dimension_numbers<[1], [0], [0], [1], [0, 0, 1, 1], [], []>} : vector<128x128xbf16>, vector<128x128xbf16>, vector<128x128xf32> -> vector<128x128xf32>
    %199 = arith.addf %194, %198 : vector<128x128xf32>
    %c0_200 = arith.constant 0 : index
    %c0_201 = arith.constant 0 : index
    %200 = vector.load %arg9[%c0_200, %c0_201] : memref<128x128xf32, #tpu.memory_space<vmem>>, vector<128x128xf32>
    tpu.vector_store %arg9[%c0_200, %c0_201], %199 {strides = array<i32>} : memref<128x128xf32, #tpu.memory_space<vmem>>, vector<128x128xf32>,
    %c0_i32_202 = arith.constant 0 : i32
    %c0_i32_203 = arith.constant 0 : i32
    %c0_i32_204 = arith.constant 0 : i32
    %201 = tpu.memref_slice %arg7[%0, %c0_i32_202, %c0_i32_203, %c0_i32_204] : memref<2x16x24x128xbf16, #tpu.memory_space<vmem>> -> memref<1x16x24x128xbf16, #tpu.memory_space<vmem>>
    %202 = tpu.memref_squeeze %201 : memref<1x16x24x128xbf16, #tpu.memory_space<vmem>> -> memref<16x24x128xbf16, #tpu.memory_space<vmem>>
    %c4_205 = arith.constant 4 : index
    %c6_206 = arith.constant 6 : index
    %c0_207 = arith.constant 0 : index
    %203 = vector.load %202[%c4_205, %c6_206, %c0_207] : memref<16x24x128xbf16, #tpu.memory_space<vmem>>, vector<8x16x128xbf16>
    %204 = vector.shape_cast %203 : vector<8x16x128xbf16> to vector<128x128xbf16>
    %c27_i32_208 = arith.constant 27 : i32
    %205 = arith.muli %arg2, %c27_i32_208 : i32
    %c14_i32 = arith.constant 14 : i32
    %206 = arith.addi %205, %c14_i32 : i32
    %c0_209 = arith.constant 0 : index
    %c0_210 = arith.constant 0 : index
    %207 = vector.load %arg9[%c0_209, %c0_210] : memref<128x128xf32, #tpu.memory_space<vmem>>, vector<128x128xf32>
    %208 = arith.index_cast %206 : i32 to index
    %c0_211 = arith.constant 0 : index
    %c0_212 = arith.constant 0 : index
    %209 = vector.load %arg4[%208, %c0_211, %c0_212] : memref<27x128x128xbf16, #tpu.memory_space<vmem>>, vector<1x128x128xbf16>
    %210 = vector.shape_cast %209 : vector<1x128x128xbf16> to vector<128x128xbf16>
    %cst_213 = arith.constant dense<0.000000e+00> : vector<128x128xf32>
    %211 = tpu.matmul %204, %210, %cst_213 {dimension_numbers = #tpu.dot_dimension_numbers<[1], [0], [0], [1], [0, 0, 1, 1], [], []>} : vector<128x128xbf16>, vector<128x128xbf16>, vector<128x128xf32> -> vector<128x128xf32>
    %212 = arith.addf %207, %211 : vector<128x128xf32>
    %c0_214 = arith.constant 0 : index
    %c0_215 = arith.constant 0 : index
    %213 = vector.load %arg9[%c0_214, %c0_215] : memref<128x128xf32, #tpu.memory_space<vmem>>, vector<128x128xf32>
    tpu.vector_store %arg9[%c0_214, %c0_215], %212 {strides = array<i32>} : memref<128x128xf32, #tpu.memory_space<vmem>>, vector<128x128xf32>,
    %c0_i32_216 = arith.constant 0 : i32
    %c0_i32_217 = arith.constant 0 : i32
    %c0_i32_218 = arith.constant 0 : i32
    %214 = tpu.memref_slice %arg7[%0, %c0_i32_216, %c0_i32_217, %c0_i32_218] : memref<2x16x24x128xbf16, #tpu.memory_space<vmem>> -> memref<1x16x24x128xbf16, #tpu.memory_space<vmem>>
    %215 = tpu.memref_squeeze %214 : memref<1x16x24x128xbf16, #tpu.memory_space<vmem>> -> memref<16x24x128xbf16, #tpu.memory_space<vmem>>
    %c6_219 = arith.constant 6 : index
    %c2_220 = arith.constant 2 : index
    %c0_221 = arith.constant 0 : index
    %216 = vector.load %215[%c6_219, %c2_220, %c0_221] : memref<16x24x128xbf16, #tpu.memory_space<vmem>>, vector<8x16x128xbf16>
    %217 = vector.shape_cast %216 : vector<8x16x128xbf16> to vector<128x128xbf16>
    %c27_i32_222 = arith.constant 27 : i32
    %218 = arith.muli %arg2, %c27_i32_222 : i32
    %c15_i32 = arith.constant 15 : i32
    %219 = arith.addi %218, %c15_i32 : i32
    %c0_223 = arith.constant 0 : index
    %c0_224 = arith.constant 0 : index
    %220 = vector.load %arg9[%c0_223, %c0_224] : memref<128x128xf32, #tpu.memory_space<vmem>>, vector<128x128xf32>
    %221 = arith.index_cast %219 : i32 to index
    %c0_225 = arith.constant 0 : index
    %c0_226 = arith.constant 0 : index
    %222 = vector.load %arg4[%221, %c0_225, %c0_226] : memref<27x128x128xbf16, #tpu.memory_space<vmem>>, vector<1x128x128xbf16>
    %223 = vector.shape_cast %222 : vector<1x128x128xbf16> to vector<128x128xbf16>
    %cst_227 = arith.constant dense<0.000000e+00> : vector<128x128xf32>
    %224 = tpu.matmul %217, %223, %cst_227 {dimension_numbers = #tpu.dot_dimension_numbers<[1], [0], [0], [1], [0, 0, 1, 1], [], []>} : vector<128x128xbf16>, vector<128x128xbf16>, vector<128x128xf32> -> vector<128x128xf32>
    %225 = arith.addf %220, %224 : vector<128x128xf32>
    %c0_228 = arith.constant 0 : index
    %c0_229 = arith.constant 0 : index
    %226 = vector.load %arg9[%c0_228, %c0_229] : memref<128x128xf32, #tpu.memory_space<vmem>>, vector<128x128xf32>
    tpu.vector_store %arg9[%c0_228, %c0_229], %225 {strides = array<i32>} : memref<128x128xf32, #tpu.memory_space<vmem>>, vector<128x128xf32>,
    %c0_i32_230 = arith.constant 0 : i32
    %c0_i32_231 = arith.constant 0 : i32
    %c0_i32_232 = arith.constant 0 : i32
    %227 = tpu.memref_slice %arg7[%0, %c0_i32_230, %c0_i32_231, %c0_i32_232] : memref<2x16x24x128xbf16, #tpu.memory_space<vmem>> -> memref<1x16x24x128xbf16, #tpu.memory_space<vmem>>
    %228 = tpu.memref_squeeze %227 : memref<1x16x24x128xbf16, #tpu.memory_space<vmem>> -> memref<16x24x128xbf16, #tpu.memory_space<vmem>>
    %c6_233 = arith.constant 6 : index
    %c4_234 = arith.constant 4 : index
    %c0_235 = arith.constant 0 : index
    %229 = vector.load %228[%c6_233, %c4_234, %c0_235] : memref<16x24x128xbf16, #tpu.memory_space<vmem>>, vector<8x16x128xbf16>
    %230 = vector.shape_cast %229 : vector<8x16x128xbf16> to vector<128x128xbf16>
    %c27_i32_236 = arith.constant 27 : i32
    %231 = arith.muli %arg2, %c27_i32_236 : i32
    %c16_i32 = arith.constant 16 : i32
    %232 = arith.addi %231, %c16_i32 : i32
    %c0_237 = arith.constant 0 : index
    %c0_238 = arith.constant 0 : index
    %233 = vector.load %arg9[%c0_237, %c0_238] : memref<128x128xf32, #tpu.memory_space<vmem>>, vector<128x128xf32>
    %234 = arith.index_cast %232 : i32 to index
    %c0_239 = arith.constant 0 : index
    %c0_240 = arith.constant 0 : index
    %235 = vector.load %arg4[%234, %c0_239, %c0_240] : memref<27x128x128xbf16, #tpu.memory_space<vmem>>, vector<1x128x128xbf16>
    %236 = vector.shape_cast %235 : vector<1x128x128xbf16> to vector<128x128xbf16>
    %cst_241 = arith.constant dense<0.000000e+00> : vector<128x128xf32>
    %237 = tpu.matmul %230, %236, %cst_241 {dimension_numbers = #tpu.dot_dimension_numbers<[1], [0], [0], [1], [0, 0, 1, 1], [], []>} : vector<128x128xbf16>, vector<128x128xbf16>, vector<128x128xf32> -> vector<128x128xf32>
    %238 = arith.addf %233, %237 : vector<128x128xf32>
    %c0_242 = arith.constant 0 : index
    %c0_243 = arith.constant 0 : index
    %239 = vector.load %arg9[%c0_242, %c0_243] : memref<128x128xf32, #tpu.memory_space<vmem>>, vector<128x128xf32>
    tpu.vector_store %arg9[%c0_242, %c0_243], %238 {strides = array<i32>} : memref<128x128xf32, #tpu.memory_space<vmem>>, vector<128x128xf32>,
    %c0_i32_244 = arith.constant 0 : i32
    %c0_i32_245 = arith.constant 0 : i32
    %c0_i32_246 = arith.constant 0 : i32
    %240 = tpu.memref_slice %arg7[%0, %c0_i32_244, %c0_i32_245, %c0_i32_246] : memref<2x16x24x128xbf16, #tpu.memory_space<vmem>> -> memref<1x16x24x128xbf16, #tpu.memory_space<vmem>>
    %241 = tpu.memref_squeeze %240 : memref<1x16x24x128xbf16, #tpu.memory_space<vmem>> -> memref<16x24x128xbf16, #tpu.memory_space<vmem>>
    %c6_247 = arith.constant 6 : index
    %c6_248 = arith.constant 6 : index
    %c0_249 = arith.constant 0 : index
    %242 = vector.load %241[%c6_247, %c6_248, %c0_249] : memref<16x24x128xbf16, #tpu.memory_space<vmem>>, vector<8x16x128xbf16>
    %243 = vector.shape_cast %242 : vector<8x16x128xbf16> to vector<128x128xbf16>
    %c27_i32_250 = arith.constant 27 : i32
    %244 = arith.muli %arg2, %c27_i32_250 : i32
    %c17_i32 = arith.constant 17 : i32
    %245 = arith.addi %244, %c17_i32 : i32
    %c0_251 = arith.constant 0 : index
    %c0_252 = arith.constant 0 : index
    %246 = vector.load %arg9[%c0_251, %c0_252] : memref<128x128xf32, #tpu.memory_space<vmem>>, vector<128x128xf32>
    %247 = arith.index_cast %245 : i32 to index
    %c0_253 = arith.constant 0 : index
    %c0_254 = arith.constant 0 : index
    %248 = vector.load %arg4[%247, %c0_253, %c0_254] : memref<27x128x128xbf16, #tpu.memory_space<vmem>>, vector<1x128x128xbf16>
    %249 = vector.shape_cast %248 : vector<1x128x128xbf16> to vector<128x128xbf16>
    %cst_255 = arith.constant dense<0.000000e+00> : vector<128x128xf32>
    %250 = tpu.matmul %243, %249, %cst_255 {dimension_numbers = #tpu.dot_dimension_numbers<[1], [0], [0], [1], [0, 0, 1, 1], [], []>} : vector<128x128xbf16>, vector<128x128xbf16>, vector<128x128xf32> -> vector<128x128xf32>
    %251 = arith.addf %246, %250 : vector<128x128xf32>
    %c0_256 = arith.constant 0 : index
    %c0_257 = arith.constant 0 : index
    %252 = vector.load %arg9[%c0_256, %c0_257] : memref<128x128xf32, #tpu.memory_space<vmem>>, vector<128x128xf32>
    tpu.vector_store %arg9[%c0_256, %c0_257], %251 {strides = array<i32>} : memref<128x128xf32, #tpu.memory_space<vmem>>, vector<128x128xf32>,
    %c0_i32_258 = arith.constant 0 : i32
    %c0_i32_259 = arith.constant 0 : i32
    %c0_i32_260 = arith.constant 0 : i32
    %253 = tpu.memref_slice %arg7[%0, %c0_i32_258, %c0_i32_259, %c0_i32_260] : memref<2x16x24x128xbf16, #tpu.memory_space<vmem>> -> memref<1x16x24x128xbf16, #tpu.memory_space<vmem>>
    %254 = tpu.memref_squeeze %253 : memref<1x16x24x128xbf16, #tpu.memory_space<vmem>> -> memref<16x24x128xbf16, #tpu.memory_space<vmem>>
    %c0_261 = arith.constant 0 : index
    %c0_262 = arith.constant 0 : index
    %c0_263 = arith.constant 0 : index
    %255 = vector.load %254[%c0_261, %c0_262, %c0_263] : memref<16x24x128xbf16, #tpu.memory_space<vmem>>, vector<8x16x128xbf16>
    %256 = vector.shape_cast %255 : vector<8x16x128xbf16> to vector<128x128xbf16>
    %c27_i32_264 = arith.constant 27 : i32
    %257 = arith.muli %arg2, %c27_i32_264 : i32
    %c18_i32 = arith.constant 18 : i32
    %258 = arith.addi %257, %c18_i32 : i32
    %c0_265 = arith.constant 0 : index
    %c0_266 = arith.constant 0 : index
    %259 = vector.load %arg9[%c0_265, %c0_266] : memref<128x128xf32, #tpu.memory_space<vmem>>, vector<128x128xf32>
    %260 = arith.index_cast %258 : i32 to index
    %c0_267 = arith.constant 0 : index
    %c0_268 = arith.constant 0 : index
    %261 = vector.load %arg4[%260, %c0_267, %c0_268] : memref<27x128x128xbf16, #tpu.memory_space<vmem>>, vector<1x128x128xbf16>
    %262 = vector.shape_cast %261 : vector<1x128x128xbf16> to vector<128x128xbf16>
    %cst_269 = arith.constant dense<0.000000e+00> : vector<128x128xf32>
    %263 = tpu.matmul %256, %262, %cst_269 {dimension_numbers = #tpu.dot_dimension_numbers<[1], [0], [0], [1], [0, 0, 1, 1], [], []>} : vector<128x128xbf16>, vector<128x128xbf16>, vector<128x128xf32> -> vector<128x128xf32>
    %264 = arith.addf %259, %263 : vector<128x128xf32>
    %c0_270 = arith.constant 0 : index
    %c0_271 = arith.constant 0 : index
    %265 = vector.load %arg9[%c0_270, %c0_271] : memref<128x128xf32, #tpu.memory_space<vmem>>, vector<128x128xf32>
    tpu.vector_store %arg9[%c0_270, %c0_271], %264 {strides = array<i32>} : memref<128x128xf32, #tpu.memory_space<vmem>>, vector<128x128xf32>,
    %c0_i32_272 = arith.constant 0 : i32
    %c0_i32_273 = arith.constant 0 : i32
    %c0_i32_274 = arith.constant 0 : i32
    %266 = tpu.memref_slice %arg7[%0, %c0_i32_272, %c0_i32_273, %c0_i32_274] : memref<2x16x24x128xbf16, #tpu.memory_space<vmem>> -> memref<1x16x24x128xbf16, #tpu.memory_space<vmem>>
    %267 = tpu.memref_squeeze %266 : memref<1x16x24x128xbf16, #tpu.memory_space<vmem>> -> memref<16x24x128xbf16, #tpu.memory_space<vmem>>
    %c0_275 = arith.constant 0 : index
    %c4_276 = arith.constant 4 : index
    %c0_277 = arith.constant 0 : index
    %268 = vector.load %267[%c0_275, %c4_276, %c0_277] : memref<16x24x128xbf16, #tpu.memory_space<vmem>>, vector<8x16x128xbf16>
    %269 = vector.shape_cast %268 : vector<8x16x128xbf16> to vector<128x128xbf16>
    %c27_i32_278 = arith.constant 27 : i32
    %270 = arith.muli %arg2, %c27_i32_278 : i32
    %c19_i32 = arith.constant 19 : i32
    %271 = arith.addi %270, %c19_i32 : i32
    %c0_279 = arith.constant 0 : index
    %c0_280 = arith.constant 0 : index
    %272 = vector.load %arg9[%c0_279, %c0_280] : memref<128x128xf32, #tpu.memory_space<vmem>>, vector<128x128xf32>
    %273 = arith.index_cast %271 : i32 to index
    %c0_281 = arith.constant 0 : index
    %c0_282 = arith.constant 0 : index
    %274 = vector.load %arg4[%273, %c0_281, %c0_282] : memref<27x128x128xbf16, #tpu.memory_space<vmem>>, vector<1x128x128xbf16>
    %275 = vector.shape_cast %274 : vector<1x128x128xbf16> to vector<128x128xbf16>
    %cst_283 = arith.constant dense<0.000000e+00> : vector<128x128xf32>
    %276 = tpu.matmul %269, %275, %cst_283 {dimension_numbers = #tpu.dot_dimension_numbers<[1], [0], [0], [1], [0, 0, 1, 1], [], []>} : vector<128x128xbf16>, vector<128x128xbf16>, vector<128x128xf32> -> vector<128x128xf32>
    %277 = arith.addf %272, %276 : vector<128x128xf32>
    %c0_284 = arith.constant 0 : index
    %c0_285 = arith.constant 0 : index
    %278 = vector.load %arg9[%c0_284, %c0_285] : memref<128x128xf32, #tpu.memory_space<vmem>>, vector<128x128xf32>
    tpu.vector_store %arg9[%c0_284, %c0_285], %277 {strides = array<i32>} : memref<128x128xf32, #tpu.memory_space<vmem>>, vector<128x128xf32>,
    %c0_i32_286 = arith.constant 0 : i32
    %c0_i32_287 = arith.constant 0 : i32
    %c0_i32_288 = arith.constant 0 : i32
    %279 = tpu.memref_slice %arg7[%0, %c0_i32_286, %c0_i32_287, %c0_i32_288] : memref<2x16x24x128xbf16, #tpu.memory_space<vmem>> -> memref<1x16x24x128xbf16, #tpu.memory_space<vmem>>
    %280 = tpu.memref_squeeze %279 : memref<1x16x24x128xbf16, #tpu.memory_space<vmem>> -> memref<16x24x128xbf16, #tpu.memory_space<vmem>>
    %c0_289 = arith.constant 0 : index
    %c8 = arith.constant 8 : index
    %c0_290 = arith.constant 0 : index
    %281 = vector.load %280[%c0_289, %c8, %c0_290] : memref<16x24x128xbf16, #tpu.memory_space<vmem>>, vector<8x16x128xbf16>
    %282 = vector.shape_cast %281 : vector<8x16x128xbf16> to vector<128x128xbf16>
    %c27_i32_291 = arith.constant 27 : i32
    %283 = arith.muli %arg2, %c27_i32_291 : i32
    %c20_i32 = arith.constant 20 : i32
    %284 = arith.addi %283, %c20_i32 : i32
    %c0_292 = arith.constant 0 : index
    %c0_293 = arith.constant 0 : index
    %285 = vector.load %arg9[%c0_292, %c0_293] : memref<128x128xf32, #tpu.memory_space<vmem>>, vector<128x128xf32>
    %286 = arith.index_cast %284 : i32 to index
    %c0_294 = arith.constant 0 : index
    %c0_295 = arith.constant 0 : index
    %287 = vector.load %arg4[%286, %c0_294, %c0_295] : memref<27x128x128xbf16, #tpu.memory_space<vmem>>, vector<1x128x128xbf16>
    %288 = vector.shape_cast %287 : vector<1x128x128xbf16> to vector<128x128xbf16>
    %cst_296 = arith.constant dense<0.000000e+00> : vector<128x128xf32>
    %289 = tpu.matmul %282, %288, %cst_296 {dimension_numbers = #tpu.dot_dimension_numbers<[1], [0], [0], [1], [0, 0, 1, 1], [], []>} : vector<128x128xbf16>, vector<128x128xbf16>, vector<128x128xf32> -> vector<128x128xf32>
    %290 = arith.addf %285, %289 : vector<128x128xf32>
    %c0_297 = arith.constant 0 : index
    %c0_298 = arith.constant 0 : index
    %291 = vector.load %arg9[%c0_297, %c0_298] : memref<128x128xf32, #tpu.memory_space<vmem>>, vector<128x128xf32>
    tpu.vector_store %arg9[%c0_297, %c0_298], %290 {strides = array<i32>} : memref<128x128xf32, #tpu.memory_space<vmem>>, vector<128x128xf32>,
    %c0_i32_299 = arith.constant 0 : i32
    %c0_i32_300 = arith.constant 0 : i32
    %c0_i32_301 = arith.constant 0 : i32
    %292 = tpu.memref_slice %arg7[%0, %c0_i32_299, %c0_i32_300, %c0_i32_301] : memref<2x16x24x128xbf16, #tpu.memory_space<vmem>> -> memref<1x16x24x128xbf16, #tpu.memory_space<vmem>>
    %293 = tpu.memref_squeeze %292 : memref<1x16x24x128xbf16, #tpu.memory_space<vmem>> -> memref<16x24x128xbf16, #tpu.memory_space<vmem>>
    %c4_302 = arith.constant 4 : index
    %c0_303 = arith.constant 0 : index
    %c0_304 = arith.constant 0 : index
    %294 = vector.load %293[%c4_302, %c0_303, %c0_304] : memref<16x24x128xbf16, #tpu.memory_space<vmem>>, vector<8x16x128xbf16>
    %295 = vector.shape_cast %294 : vector<8x16x128xbf16> to vector<128x128xbf16>
    %c27_i32_305 = arith.constant 27 : i32
    %296 = arith.muli %arg2, %c27_i32_305 : i32
    %c21_i32 = arith.constant 21 : i32
    %297 = arith.addi %296, %c21_i32 : i32
    %c0_306 = arith.constant 0 : index
    %c0_307 = arith.constant 0 : index
    %298 = vector.load %arg9[%c0_306, %c0_307] : memref<128x128xf32, #tpu.memory_space<vmem>>, vector<128x128xf32>
    %299 = arith.index_cast %297 : i32 to index
    %c0_308 = arith.constant 0 : index
    %c0_309 = arith.constant 0 : index
    %300 = vector.load %arg4[%299, %c0_308, %c0_309] : memref<27x128x128xbf16, #tpu.memory_space<vmem>>, vector<1x128x128xbf16>
    %301 = vector.shape_cast %300 : vector<1x128x128xbf16> to vector<128x128xbf16>
    %cst_310 = arith.constant dense<0.000000e+00> : vector<128x128xf32>
    %302 = tpu.matmul %295, %301, %cst_310 {dimension_numbers = #tpu.dot_dimension_numbers<[1], [0], [0], [1], [0, 0, 1, 1], [], []>} : vector<128x128xbf16>, vector<128x128xbf16>, vector<128x128xf32> -> vector<128x128xf32>
    %303 = arith.addf %298, %302 : vector<128x128xf32>
    %c0_311 = arith.constant 0 : index
    %c0_312 = arith.constant 0 : index
    %304 = vector.load %arg9[%c0_311, %c0_312] : memref<128x128xf32, #tpu.memory_space<vmem>>, vector<128x128xf32>
    tpu.vector_store %arg9[%c0_311, %c0_312], %303 {strides = array<i32>} : memref<128x128xf32, #tpu.memory_space<vmem>>, vector<128x128xf32>,
    %c0_i32_313 = arith.constant 0 : i32
    %c0_i32_314 = arith.constant 0 : i32
    %c0_i32_315 = arith.constant 0 : i32
    %305 = tpu.memref_slice %arg7[%0, %c0_i32_313, %c0_i32_314, %c0_i32_315] : memref<2x16x24x128xbf16, #tpu.memory_space<vmem>> -> memref<1x16x24x128xbf16, #tpu.memory_space<vmem>>
    %306 = tpu.memref_squeeze %305 : memref<1x16x24x128xbf16, #tpu.memory_space<vmem>> -> memref<16x24x128xbf16, #tpu.memory_space<vmem>>
    %c4_316 = arith.constant 4 : index
    %c4_317 = arith.constant 4 : index
    %c0_318 = arith.constant 0 : index
    %307 = vector.load %306[%c4_316, %c4_317, %c0_318] : memref<16x24x128xbf16, #tpu.memory_space<vmem>>, vector<8x16x128xbf16>
    %308 = vector.shape_cast %307 : vector<8x16x128xbf16> to vector<128x128xbf16>
    %c27_i32_319 = arith.constant 27 : i32
    %309 = arith.muli %arg2, %c27_i32_319 : i32
    %c22_i32 = arith.constant 22 : i32
    %310 = arith.addi %309, %c22_i32 : i32
    %c0_320 = arith.constant 0 : index
    %c0_321 = arith.constant 0 : index
    %311 = vector.load %arg9[%c0_320, %c0_321] : memref<128x128xf32, #tpu.memory_space<vmem>>, vector<128x128xf32>
    %312 = arith.index_cast %310 : i32 to index
    %c0_322 = arith.constant 0 : index
    %c0_323 = arith.constant 0 : index
    %313 = vector.load %arg4[%312, %c0_322, %c0_323] : memref<27x128x128xbf16, #tpu.memory_space<vmem>>, vector<1x128x128xbf16>
    %314 = vector.shape_cast %313 : vector<1x128x128xbf16> to vector<128x128xbf16>
    %cst_324 = arith.constant dense<0.000000e+00> : vector<128x128xf32>
    %315 = tpu.matmul %308, %314, %cst_324 {dimension_numbers = #tpu.dot_dimension_numbers<[1], [0], [0], [1], [0, 0, 1, 1], [], []>} : vector<128x128xbf16>, vector<128x128xbf16>, vector<128x128xf32> -> vector<128x128xf32>
    %316 = arith.addf %311, %315 : vector<128x128xf32>
    %c0_325 = arith.constant 0 : index
    %c0_326 = arith.constant 0 : index
    %317 = vector.load %arg9[%c0_325, %c0_326] : memref<128x128xf32, #tpu.memory_space<vmem>>, vector<128x128xf32>
    tpu.vector_store %arg9[%c0_325, %c0_326], %316 {strides = array<i32>} : memref<128x128xf32, #tpu.memory_space<vmem>>, vector<128x128xf32>,
    %c0_i32_327 = arith.constant 0 : i32
    %c0_i32_328 = arith.constant 0 : i32
    %c0_i32_329 = arith.constant 0 : i32
    %318 = tpu.memref_slice %arg7[%0, %c0_i32_327, %c0_i32_328, %c0_i32_329] : memref<2x16x24x128xbf16, #tpu.memory_space<vmem>> -> memref<1x16x24x128xbf16, #tpu.memory_space<vmem>>
    %319 = tpu.memref_squeeze %318 : memref<1x16x24x128xbf16, #tpu.memory_space<vmem>> -> memref<16x24x128xbf16, #tpu.memory_space<vmem>>
    %c4_330 = arith.constant 4 : index
    %c8_331 = arith.constant 8 : index
    %c0_332 = arith.constant 0 : index
    %320 = vector.load %319[%c4_330, %c8_331, %c0_332] : memref<16x24x128xbf16, #tpu.memory_space<vmem>>, vector<8x16x128xbf16>
    %321 = vector.shape_cast %320 : vector<8x16x128xbf16> to vector<128x128xbf16>
    %c27_i32_333 = arith.constant 27 : i32
    %322 = arith.muli %arg2, %c27_i32_333 : i32
    %c23_i32 = arith.constant 23 : i32
    %323 = arith.addi %322, %c23_i32 : i32
    %c0_334 = arith.constant 0 : index
    %c0_335 = arith.constant 0 : index
    %324 = vector.load %arg9[%c0_334, %c0_335] : memref<128x128xf32, #tpu.memory_space<vmem>>, vector<128x128xf32>
    %325 = arith.index_cast %323 : i32 to index
    %c0_336 = arith.constant 0 : index
    %c0_337 = arith.constant 0 : index
    %326 = vector.load %arg4[%325, %c0_336, %c0_337] : memref<27x128x128xbf16, #tpu.memory_space<vmem>>, vector<1x128x128xbf16>
    %327 = vector.shape_cast %326 : vector<1x128x128xbf16> to vector<128x128xbf16>
    %cst_338 = arith.constant dense<0.000000e+00> : vector<128x128xf32>
    %328 = tpu.matmul %321, %327, %cst_338 {dimension_numbers = #tpu.dot_dimension_numbers<[1], [0], [0], [1], [0, 0, 1, 1], [], []>} : vector<128x128xbf16>, vector<128x128xbf16>, vector<128x128xf32> -> vector<128x128xf32>
    %329 = arith.addf %324, %328 : vector<128x128xf32>
    %c0_339 = arith.constant 0 : index
    %c0_340 = arith.constant 0 : index
    %330 = vector.load %arg9[%c0_339, %c0_340] : memref<128x128xf32, #tpu.memory_space<vmem>>, vector<128x128xf32>
    tpu.vector_store %arg9[%c0_339, %c0_340], %329 {strides = array<i32>} : memref<128x128xf32, #tpu.memory_space<vmem>>, vector<128x128xf32>,
    %c0_i32_341 = arith.constant 0 : i32
    %c0_i32_342 = arith.constant 0 : i32
    %c0_i32_343 = arith.constant 0 : i32
    %331 = tpu.memref_slice %arg7[%0, %c0_i32_341, %c0_i32_342, %c0_i32_343] : memref<2x16x24x128xbf16, #tpu.memory_space<vmem>> -> memref<1x16x24x128xbf16, #tpu.memory_space<vmem>>
    %332 = tpu.memref_squeeze %331 : memref<1x16x24x128xbf16, #tpu.memory_space<vmem>> -> memref<16x24x128xbf16, #tpu.memory_space<vmem>>
    %c8_344 = arith.constant 8 : index
    %c0_345 = arith.constant 0 : index
    %c0_346 = arith.constant 0 : index
    %333 = vector.load %332[%c8_344, %c0_345, %c0_346] : memref<16x24x128xbf16, #tpu.memory_space<vmem>>, vector<8x16x128xbf16>
    %334 = vector.shape_cast %333 : vector<8x16x128xbf16> to vector<128x128xbf16>
    %c27_i32_347 = arith.constant 27 : i32
    %335 = arith.muli %arg2, %c27_i32_347 : i32
    %c24_i32 = arith.constant 24 : i32
    %336 = arith.addi %335, %c24_i32 : i32
    %c0_348 = arith.constant 0 : index
    %c0_349 = arith.constant 0 : index
    %337 = vector.load %arg9[%c0_348, %c0_349] : memref<128x128xf32, #tpu.memory_space<vmem>>, vector<128x128xf32>
    %338 = arith.index_cast %336 : i32 to index
    %c0_350 = arith.constant 0 : index
    %c0_351 = arith.constant 0 : index
    %339 = vector.load %arg4[%338, %c0_350, %c0_351] : memref<27x128x128xbf16, #tpu.memory_space<vmem>>, vector<1x128x128xbf16>
    %340 = vector.shape_cast %339 : vector<1x128x128xbf16> to vector<128x128xbf16>
    %cst_352 = arith.constant dense<0.000000e+00> : vector<128x128xf32>
    %341 = tpu.matmul %334, %340, %cst_352 {dimension_numbers = #tpu.dot_dimension_numbers<[1], [0], [0], [1], [0, 0, 1, 1], [], []>} : vector<128x128xbf16>, vector<128x128xbf16>, vector<128x128xf32> -> vector<128x128xf32>
    %342 = arith.addf %337, %341 : vector<128x128xf32>
    %c0_353 = arith.constant 0 : index
    %c0_354 = arith.constant 0 : index
    %343 = vector.load %arg9[%c0_353, %c0_354] : memref<128x128xf32, #tpu.memory_space<vmem>>, vector<128x128xf32>
    tpu.vector_store %arg9[%c0_353, %c0_354], %342 {strides = array<i32>} : memref<128x128xf32, #tpu.memory_space<vmem>>, vector<128x128xf32>,
    %c0_i32_355 = arith.constant 0 : i32
    %c0_i32_356 = arith.constant 0 : i32
    %c0_i32_357 = arith.constant 0 : i32
    %344 = tpu.memref_slice %arg7[%0, %c0_i32_355, %c0_i32_356, %c0_i32_357] : memref<2x16x24x128xbf16, #tpu.memory_space<vmem>> -> memref<1x16x24x128xbf16, #tpu.memory_space<vmem>>
    %345 = tpu.memref_squeeze %344 : memref<1x16x24x128xbf16, #tpu.memory_space<vmem>> -> memref<16x24x128xbf16, #tpu.memory_space<vmem>>
    %c8_358 = arith.constant 8 : index
    %c4_359 = arith.constant 4 : index
    %c0_360 = arith.constant 0 : index
    %346 = vector.load %345[%c8_358, %c4_359, %c0_360] : memref<16x24x128xbf16, #tpu.memory_space<vmem>>, vector<8x16x128xbf16>
    %347 = vector.shape_cast %346 : vector<8x16x128xbf16> to vector<128x128xbf16>
    %c27_i32_361 = arith.constant 27 : i32
    %348 = arith.muli %arg2, %c27_i32_361 : i32
    %c25_i32 = arith.constant 25 : i32
    %349 = arith.addi %348, %c25_i32 : i32
    %c0_362 = arith.constant 0 : index
    %c0_363 = arith.constant 0 : index
    %350 = vector.load %arg9[%c0_362, %c0_363] : memref<128x128xf32, #tpu.memory_space<vmem>>, vector<128x128xf32>
    %351 = arith.index_cast %349 : i32 to index
    %c0_364 = arith.constant 0 : index
    %c0_365 = arith.constant 0 : index
    %352 = vector.load %arg4[%351, %c0_364, %c0_365] : memref<27x128x128xbf16, #tpu.memory_space<vmem>>, vector<1x128x128xbf16>
    %353 = vector.shape_cast %352 : vector<1x128x128xbf16> to vector<128x128xbf16>
    %cst_366 = arith.constant dense<0.000000e+00> : vector<128x128xf32>
    %354 = tpu.matmul %347, %353, %cst_366 {dimension_numbers = #tpu.dot_dimension_numbers<[1], [0], [0], [1], [0, 0, 1, 1], [], []>} : vector<128x128xbf16>, vector<128x128xbf16>, vector<128x128xf32> -> vector<128x128xf32>
    %355 = arith.addf %350, %354 : vector<128x128xf32>
    %c0_367 = arith.constant 0 : index
    %c0_368 = arith.constant 0 : index
    %356 = vector.load %arg9[%c0_367, %c0_368] : memref<128x128xf32, #tpu.memory_space<vmem>>, vector<128x128xf32>
    tpu.vector_store %arg9[%c0_367, %c0_368], %355 {strides = array<i32>} : memref<128x128xf32, #tpu.memory_space<vmem>>, vector<128x128xf32>,
    %c0_i32_369 = arith.constant 0 : i32
    %c0_i32_370 = arith.constant 0 : i32
    %c0_i32_371 = arith.constant 0 : i32
    %357 = tpu.memref_slice %arg7[%0, %c0_i32_369, %c0_i32_370, %c0_i32_371] : memref<2x16x24x128xbf16, #tpu.memory_space<vmem>> -> memref<1x16x24x128xbf16, #tpu.memory_space<vmem>>
    %358 = tpu.memref_squeeze %357 : memref<1x16x24x128xbf16, #tpu.memory_space<vmem>> -> memref<16x24x128xbf16, #tpu.memory_space<vmem>>
    %c8_372 = arith.constant 8 : index
    %c8_373 = arith.constant 8 : index
    %c0_374 = arith.constant 0 : index
    %359 = vector.load %358[%c8_372, %c8_373, %c0_374] : memref<16x24x128xbf16, #tpu.memory_space<vmem>>, vector<8x16x128xbf16>
    %360 = vector.shape_cast %359 : vector<8x16x128xbf16> to vector<128x128xbf16>
    %c27_i32_375 = arith.constant 27 : i32
    %361 = arith.muli %arg2, %c27_i32_375 : i32
    %c26_i32 = arith.constant 26 : i32
    %362 = arith.addi %361, %c26_i32 : i32
    %c0_376 = arith.constant 0 : index
    %c0_377 = arith.constant 0 : index
    %363 = vector.load %arg9[%c0_376, %c0_377] : memref<128x128xf32, #tpu.memory_space<vmem>>, vector<128x128xf32>
    %364 = arith.index_cast %362 : i32 to index
    %c0_378 = arith.constant 0 : index
    %c0_379 = arith.constant 0 : index
    %365 = vector.load %arg4[%364, %c0_378, %c0_379] : memref<27x128x128xbf16, #tpu.memory_space<vmem>>, vector<1x128x128xbf16>
    %366 = vector.shape_cast %365 : vector<1x128x128xbf16> to vector<128x128xbf16>
    %cst_380 = arith.constant dense<0.000000e+00> : vector<128x128xf32>
    %367 = tpu.matmul %360, %366, %cst_380 {dimension_numbers = #tpu.dot_dimension_numbers<[1], [0], [0], [1], [0, 0, 1, 1], [], []>} : vector<128x128xbf16>, vector<128x128xbf16>, vector<128x128xf32> -> vector<128x128xf32>
    %368 = arith.addf %363, %367 : vector<128x128xf32>
    %c0_381 = arith.constant 0 : index
    %c0_382 = arith.constant 0 : index
    %369 = vector.load %arg9[%c0_381, %c0_382] : memref<128x128xf32, #tpu.memory_space<vmem>>, vector<128x128xf32>
    tpu.vector_store %arg9[%c0_381, %c0_382], %368 {strides = array<i32>} : memref<128x128xf32, #tpu.memory_space<vmem>>, vector<128x128xf32>,
    %c0_383 = arith.constant 0 : index
    %c0_384 = arith.constant 0 : index
    %370 = vector.load %arg9[%c0_383, %c0_384] : memref<128x128xf32, #tpu.memory_space<vmem>>, vector<128x128xf32>
    %c0_385 = arith.constant 0 : index
    %c0_386 = arith.constant 0 : index
    %c0_387 = arith.constant 0 : index
    %371 = vector.load %arg6[%c0_385, %c0_386, %c0_387] : memref<1x128x128xf32, #tpu.memory_space<vmem>>, vector<1x128x128xf32>
    %372 = vector.shape_cast %371 : vector<1x128x128xf32> to vector<128x128xf32>
    %373 = vector.shape_cast %370 : vector<128x128xf32> to vector<1x128x128xf32>
    tpu.vector_store %arg6[%c0_385, %c0_386, %c0_387], %373 {strides = array<i32>} : memref<1x128x128xf32, #tpu.memory_space<vmem>>, vector<1x128x128xf32>,
    return
  }
  func.func @transform_1(%arg0: i32, %arg1: i32, %arg2: i32) -> (i32, i32, i32) {
    %c0_i32 = arith.constant 0 : i32
    %c0_i32_0 = arith.constant 0 : i32
    %c0_i32_1 = arith.constant 0 : i32
    %c0_i32_2 = arith.constant 0 : i32
    return %c0_i32, %c0_i32_0, %c0_i32_1 : i32, i32, i32
  }
  func.func @transform_2(%arg0: i32, %arg1: i32, %arg2: i32) -> (i32, i32) {
    %c0_i32 = arith.constant 0 : i32
    %c0_i32_0 = arith.constant 0 : i32
    return %c0_i32, %arg2 : i32, i32
  }
  func.func @transform_3(%arg0: i32, %arg1: i32, %arg2: i32) -> (i32, i32, i32) {
    %c0_i32 = arith.constant 0 : i32
    return %arg0, %arg1, %arg2 : i32, i32, i32
  }
}

</mosaic_0001>

<llo_original>
// kernel: tpu_custom_call.1
$region0: #{tpu_custom_call.1}
  #allocation0 [shape = 'u32[]', space=smem, size = 0x4, offset = 0x4, fixed_abs, tag = 'smem constant byte address 0x4 - core index']
  #allocation1 [shape = 'u32[72,128]{1,0:T(1,128)}', space=vmem, size = 0x9000, scoped, tag = 'internal scratch']
  #allocation2 [shape = 'bf16[2,16,24,128]{3,2,1,0:T(8,128)(2,1)}', space=vmem, size = 0x30000, scoped, tag = 'scratch operand']
  #allocation3 [shape = 's32[2]{0}', space=sflag, size = 0x8, scoped, tag = 'scratch operand']
  #allocation4 [shape = 'f32[128,128]{1,0:T(8,128)}', space=vmem, size = 0x10000, scoped, tag = 'scratch operand']
  #allocation9 [shape = 's32[]', space=sflag, size = 0x4, offset = 0, fixed_abs, tag = 'sflag constant byte address 0x0 - dummy sync flag']
  #allocation10 [shape = 's32[]', space=sflag, size = 0x4, offset = 0, fixed_abs, tag = 'sflag constant byte address 0x0 - dummy sync flag']
  #allocation11 [shape = 'u32[]', space=smem, size = 0x4, offset = 0x44, fixed_abs, tag = 'smem constant byte address 0x44 - assertion arg 0']
  #allocation12 [shape = 'u32[]', space=smem, size = 0x4, offset = 0x48, fixed_abs, tag = 'smem constant byte address 0x48 - assertion arg 1']
  #allocation13 [shape = 's32[]', space=sflag, size = 0x4, offset = 0, fixed_abs, tag = 'sflag constant byte address 0x0 - dummy sync flag']
  #allocation14 [shape = 's32[]', space=sflag, size = 0x4, offset = 0, fixed_abs, tag = 'sflag constant byte address 0x0 - dummy sync flag']
  %s0 = inlined_call_operand.hbm [shape: bf16[2,24,24,128], index: 0, kind: input, shape index: {}]
  %s1 = inlined_call_operand.hbm [shape: bf16[27,128,128], index: 1, kind: input, shape index: {}]
  %s2 = inlined_call_operand.vmem [shape: f32[1,128], index: 2, kind: input, shape index: {}]
  %s3 = inlined_call_operand.hbm [shape: f32[2,256,128], index: 3, kind: output, shape index: {}]
  %s4 = sld [smem:[#allocation0]]
  $region65: #{tpu_custom_call.1} parent=0
    _
  %s6 = ssub.s32 1, %s4
  %s7 = scalar_select 0, %s6, %s4
  $region1: #{tpu_custom_call.1} parent=0
    #allocation5 [shape = 'u8[884736]{0}', space=vmem, size = 0xd8000, scoped, tag = 'input window, operand 1, single buffered']
    #allocation6 [shape = 's32[2]{0}', space=sflag, size = 0x8, scoped, tag = 'scoped memory for tpu_custom_call.1']
    #allocation7 [shape = 's32[2]{0}', space=sflag, size = 0x8, scoped, tag = 'scoped memory for tpu_custom_call.1']
    #allocation8 [shape = 'u8[131072]{0}', space=vmem, size = 0x20000, scoped, tag = 'output window, operand 0']
    %8 = vsyncpa [#allocation6], 0
    %9 = vsyncpa [#allocation7], 0
    %s10 = scalar_lea.sflag [#allocation7], 1
    %11 = vsyncpa %s10, 0
    loop: start=0, step=1, limit=6
    $region2: #{tpu_custom_call.1} parent=1 // loop_pre_header
      _
    $region3: #{tpu_custom_call.1} parent=1 // loop_header
      %s13 = sphi 0, %s17
      %p14 = scmp.ge.s32.totalorder %s13, 6
      %s20 = sphi 0, %s39
      %s21 = sphi 0, %s35
      %s22 = sphi 0, %s31
      %s23 = sphi 0, %s20
      %s24 = sphi 0, %s21
      %s25 = sphi 0, %s22
      %s26 = sphi 0, %s23
      %s27 = sphi 0, %s24
      %s28 = sphi 0, %s25
      %s40 = sphi 0, %s40
      %s42 = sphi 0, %s40
      %s43 = sphi 0, %s42
      %s57 = sphi 0, %s43
      %s63 = sphi 0, %s65
      %s66 = sphi 0, %s63
      %s67 = sphi 0, %s66
      %s83 = sphi 0, %s67
      %s93 = sphi 0, %s95
      %s96 = sphi 0, %s93
      %s97 = sphi 0, %s96
      %s113 = sphi 0, %s97
    $region4: #{tpu_custom_call.1} parent=1 // loop_header_branch
      %16 = sbr.rel (%p14) target = $region8
    $region5: #{tpu_custom_call.1} parent=1 // loop_body
      %s18 = ssub.s32 %s13, 1
      %s19 = ssub.s32 %s13, 2
      %s29 = sadd.s32 1, %s22
      %p30 = scmp.ge.s32.totalorder %s29, 1
      %s31 = scalar_select %p30, 0, %s29
      %s32 = sadd.s32 1, %s21
      %s33 = scalar_select %p30, %s32, %s21
      %p34 = scmp.ge.s32.totalorder %s33, 2
      %s35 = scalar_select %p34, 0, %s33
      %s36 = sadd.s32 1, %s20
      %s37 = scalar_select %p34, %s36, %s20
      %p38 = scmp.ge.s32.totalorder %s37, 2
      %s39 = scalar_select %p38, 0, %s37
      %s41 = sadd.s32 %s40, 1
      %p44 = scmp.eq.s32.totalorder %s13, 3
      %p45 = scmp.ne.s32.totalorder %s40, %s42
      %p46 = scmp.eq.s32.totalorder %s13, 0
      %p47 = por %p45, %p46
      %p48 = scmp.ne.s32.totalorder %s40, %s42
      %p49 = scmp.eq.s32.totalorder %s18, 3
      %p50 = por %p48, %p49
      %p51 = scmp.ne.s32.totalorder %s42, %s43
      %p52 = scmp.eq.s32.totalorder %s18, 0
      %p53 = por %p51, %p52
      %p54 = scmp.ne.s32.totalorder %s42, %s43
      %p55 = scmp.eq.s32.totalorder %s19, 3
      %p56 = por %p54, %p55
      %p58 = scmp.ne.s32.totalorder %s43, %s57
      %p59 = scmp.eq.s32.totalorder %s19, 0
      %p60 = por %p58, %p59
      %s61 = ssub.s32 %s22, %s31
      %p62 = scmp.eq.s32.totalorder %s61, 0
      %s64 = sadd.s32 %s63, 1
      %s65 = scalar_select %p62, %s63, %s64
      %p68 = pneg %p62
      %p69 = scmp.eq.s32.totalorder %s13, 3
      %p70 = por %p68, %p69
      %p71 = scmp.ne.s32.totalorder %s63, %s66
      %p72 = scmp.eq.s32.totalorder %s13, 0
      %p73 = por %p71, %p72
      %p74 = scmp.ne.s32.totalorder %s63, %s66
      %p75 = scmp.eq.s32.totalorder %s18, 3
      %p76 = por %p74, %p75
      %p77 = scmp.ne.s32.totalorder %s66, %s67
      %p78 = scmp.eq.s32.totalorder %s18, 0
      %p79 = por %p77, %p78
      %p80 = scmp.ne.s32.totalorder %s66, %s67
      %p81 = scmp.eq.s32.totalorder %s19, 3
      %p82 = por %p80, %p81
      %p84 = scmp.ne.s32.totalorder %s67, %s83
      %p85 = scmp.eq.s32.totalorder %s19, 0
      %p86 = por %p84, %p85
      %s87 = ssub.s32 %s20, %s39
      %s88 = ssub.s32 %s21, %s35
      %s89 = sor.u32 %s87, %s88
      %s90 = ssub.s32 %s22, %s31
      %s91 = sor.u32 %s89, %s90
      %p92 = scmp.eq.s32.totalorder %s91, 0
      %s94 = sadd.s32 %s93, 1
      %s95 = scalar_select %p92, %s93, %s94
      %p98 = pneg %p92
      %p99 = scmp.eq.s32.totalorder %s13, 3
      %p100 = por %p98, %p99
      %p101 = scmp.ne.s32.totalorder %s93, %s96
      %p102 = scmp.eq.s32.totalorder %s13, 0
      %p103 = por %p101, %p102
      %p104 = scmp.ne.s32.totalorder %s93, %s96
      %p105 = scmp.eq.s32.totalorder %s18, 3
      %p106 = por %p104, %p105
      %p107 = scmp.ne.s32.totalorder %s96, %s97
      %p108 = scmp.eq.s32.totalorder %s18, 0
      %p109 = por %p107, %p108
      %p110 = scmp.ne.s32.totalorder %s96, %s97
      %p111 = scmp.eq.s32.totalorder %s19, 3
      %p112 = por %p110, %p111
      %p114 = scmp.ne.s32.totalorder %s97, %s113
      %p115 = scmp.eq.s32.totalorder %s19, 0
      %p116 = por %p114, %p115
      %p117 = scmp.le.s32.totalorder 1, %s13
      %p118 = scmp.lt.s32.totalorder %s13, 5
      %p119 = pnand %p117, %p118
      %p120 = pneg %p119
      // Predicated region
      $region9: #{tpu_custom_call.1} parent=5 // pred_check
        _
      $region10: #{tpu_custom_call.1} parent=5 // pred_check_branch
        %122 = sbr.rel (%p119) target = $region12
      $region11: #{tpu_custom_call.1} parent=5 // pred_region
        %s123 = ssub.s32 %s13, 1
        // Predicated region
        $region13: #{tpu_custom_call.1} parent=11 // pred_check
          %p124 = pneg %p53
        $region14: #{tpu_custom_call.1} parent=11 // pred_check_branch
          %126 = sbr.rel (%p124) target = $region16
        $region15: #{tpu_custom_call.1} parent=11 // pred_region
          %128 = vsyncadd [#allocation6], 0
          %s129 = sshll.u32 %s1, 4
          %s130 = int_to_ptr.hbm [resolvable:$true] %s129
          %s131 = sshll.u32 [#allocation5], 4
          %s132 = int_to_ptr.vmem [resolvable:$true] %s131
          %137 = dma.hbm_to_vmem [thread:$0]  %s130, 27648, %s132, [#allocation6], 64, 64, 4
        $region16: #{tpu_custom_call.1} parent=11 // pred_fallthru
          _
        // Predicated region
        $region17: #{tpu_custom_call.1} parent=11 // pred_check
          %p138 = pneg %p79
        $region18: #{tpu_custom_call.1} parent=11 // pred_check_branch
          %140 = sbr.rel (%p138) target = $region20
        $region19: #{tpu_custom_call.1} parent=11 // pred_region
          %p141 = scmp.lt.s32.totalorder %s25, 0
          %s142 = scalar_select %p141, %s25, 0
          %s143 = scalar_lea.vmem %s2, %s142
        $region20: #{tpu_custom_call.1} parent=11 // pred_fallthru
          _
      $region12: #{tpu_custom_call.1} parent=5 // pred_fallthru
        _
      %p144 = scmp.lt.s32.totalorder %s13, 4
      // Predicated region
      $region21: #{tpu_custom_call.1} parent=5 // pred_check
        %p145 = pneg %p144
      $region22: #{tpu_custom_call.1} parent=5 // pred_check_branch
        %147 = sbr.rel (%p145) target = $region24
      $region23: #{tpu_custom_call.1} parent=5 // pred_region
        _
      $region24: #{tpu_custom_call.1} parent=5 // pred_fallthru
        _
      %p148 = scmp.le.s32.totalorder 1, %s13
      %p149 = scmp.lt.s32.totalorder %s13, 5
      %p150 = pnand %p148, %p149
      %p151 = pneg %p150
      // Predicated region
      $region25: #{tpu_custom_call.1} parent=5 // pred_check
        _
      $region26: #{tpu_custom_call.1} parent=5 // pred_check_branch
        %153 = sbr.rel (%p150) target = $region28
      $region27: #{tpu_custom_call.1} parent=5 // pred_region
        %s154 = ssub.s32 %s13, 1
        // Predicated region
        $region29: #{tpu_custom_call.1} parent=27 // pred_check
          %p155 = pneg %p53
        $region30: #{tpu_custom_call.1} parent=27 // pred_check_branch
          %157 = sbr.rel (%p155) target = $region32
        $region31: #{tpu_custom_call.1} parent=27 // pred_region
          %159 = dma.done [#allocation6], 27648
        $region32: #{tpu_custom_call.1} parent=27 // pred_fallthru
          _
        %p160 = pneg %p53
        %p161 = pneg %p50
        %p162 = scmp.lt.s32.totalorder %s25, 0
        %s163 = scalar_select %p162, %s25, 0
        %s164 = scalar_lea.vmem %s2, %s163
        %p165 = pneg %p79
        %p166 = pneg %p76
        %p167 = pneg %p109
        %p168 = pneg %p106
        %s169 = sand.u32 %s96, 1
        %s170 = scalar_lea.sflag [#allocation7], %s169
        %s171 = sand.u32 %s96, 1
        %s172 = smul.addr %s171, 128
        %s173 = scalar_lea.vmem [#allocation8], %s172
        %p174 = scmp.lt.s32.totalorder %s25, 0
        %s175 = scalar_select %p174, %s25, 0
        %s176 = scalar_lea.vmem %s2, %s175
        %s177 = smul.u32 16, %s24
        %p178 = scmp.lt.s32.totalorder %s24, 0
        %s179 = ssub.s32 0, %s24
        %s180 = scalar_select %p178, %s179, %s24
        %s181 = sand.u32 %s180, 1
        %s182 = ssub.s32 0, %s181
        %s183 = scalar_select %p178, %s182, %s181
        %p184 = scmp.eq.s32.totalorder %s25, 0
        %p185 = scmp.eq.s32.totalorder %s24, 0
        %p186 = pnand %p184, %p185
        %p187 = pneg %p186
        // Predicated region
        $region33: #{tpu_custom_call.1} parent=27 // pred_check
          _
        $region34: #{tpu_custom_call.1} parent=27 // pred_check_branch
          %189 = sbr.rel (%p186) target = $region36
        $region35: #{tpu_custom_call.1} parent=27 // pred_region
          %s190 = smul.u32 %s23, 72
          %s191 = smul.addr %s190, 4
          %s192 = scalar_lea.hbm %s0, %s191
          // Predicated region
          $region37: #{tpu_custom_call.1} parent=35 // pred_check
            _
          $region38: #{tpu_custom_call.1} parent=35 // pred_check_branch
            %194 = sbr.rel target = $region40
          $region39: #{tpu_custom_call.1} parent=35 // pred_region
            %195 = sst [smem:[#allocation11]] [#allocation10]
            %196 = sst [smem:[#allocation12]] [#allocation9]
          $region40: #{tpu_custom_call.1} parent=35 // pred_fallthru
            _
          %198 = shalt.err (0)
          %s200 = sshll.u32 %s192, 4
          %s201 = int_to_ptr.hbm [resolvable:$true] %s200
          %s202 = sshll.u32 [#allocation2], 4
          %s203 = int_to_ptr.vmem [resolvable:$true] %s202
          %205 = dma.hbm_to_vmem [thread:$0]  %s201, 3072, %s203, [#allocation3]
        $region36: #{tpu_custom_call.1} parent=27 // pred_fallthru
          _
        // Predicated region
        $region41: #{tpu_custom_call.1} parent=27 // pred_check
          %p206 = pneg %p184
        $region42: #{tpu_custom_call.1} parent=27 // pred_check_branch
          %208 = sbr.rel (%p206) target = $region44
        $region43: #{tpu_custom_call.1} parent=27 // pred_region
          %s209 = scalar_lea.sflag [#allocation3], %s183
          %s210 = smul.u32 4, 16
          %s211 = smul.u32 %s210, 3
          %s212 = smul.u32 %s211, 1
          %s213 = sshll.u32 %s212, 4
          %214 = dma.done %s209, %s213
        $region44: #{tpu_custom_call.1} parent=27 // pred_fallthru
          _
        %s215 = sadd.s32 %s24, 1
        %p216 = scmp.lt.s32.totalorder %s215, 2
        %p217 = pnand %p184, %p216
        %p218 = pneg %p217
        // Predicated region
        $region45: #{tpu_custom_call.1} parent=27 // pred_check
          _
        $region46: #{tpu_custom_call.1} parent=27 // pred_check_branch
          %220 = sbr.rel (%p217) target = $region48
        $region47: #{tpu_custom_call.1} parent=27 // pred_region
          %s221 = ssub.s32 1, %s183
          %s222 = smul.u32 %s215, 8
          %s223 = smul.u32 %s222, 3
          %s224 = smul.u32 %s23, 72
          %s225 = sadd.s32 %s223, %s224
          %s226 = smul.addr %s225, 4
          %s227 = scalar_lea.hbm %s0, %s226
          %s228 = smul.u32 %s221, 48
          %s229 = smul.addr %s228, 4
          %s230 = scalar_lea.vmem [#allocation2], %s229
          %s231 = scalar_lea.sflag [#allocation3], %s221
          // Predicated region
          $region49: #{tpu_custom_call.1} parent=47 // pred_check
            _
          $region50: #{tpu_custom_call.1} parent=47 // pred_check_branch
            %233 = sbr.rel target = $region52
          $region51: #{tpu_custom_call.1} parent=47 // pred_region
            %234 = sst [smem:[#allocation11]] [#allocation14]
            %235 = sst [smem:[#allocation12]] [#allocation13]
          $region52: #{tpu_custom_call.1} parent=47 // pred_fallthru
            _
          %237 = shalt.err (0)
          %s239 = sshll.u32 %s227, 4
          %s240 = int_to_ptr.hbm [resolvable:$true] %s239
          %s241 = sshll.u32 %s230, 4
          %s242 = int_to_ptr.vmem [resolvable:$true] %s241
          %244 = dma.hbm_to_vmem [thread:$0]  %s240, 3072, %s242, %s231
        $region48: #{tpu_custom_call.1} parent=27 // pred_fallthru
          _
        %v245 = vld [vmem:[%s176] sm:$0x1]
        %v247 = vperm.slane %v245, 0
        %249 = vst [vmem:[#allocation4] sm:$0xff] %v247
        %250 = vst [vmem:[#allocation4 + $0x8] sm:$0xff] %v247
        %251 = vst [vmem:[#allocation4 + $0x10] sm:$0xff] %v247
        %252 = vst [vmem:[#allocation4 + $0x18] sm:$0xff] %v247
        %253 = vst [vmem:[#allocation4 + $0x20] sm:$0xff] %v247
        %254 = vst [vmem:[#allocation4 + $0x28] sm:$0xff] %v247
        %255 = vst [vmem:[#allocation4 + $0x30] sm:$0xff] %v247
        %256 = vst [vmem:[#allocation4 + $0x38] sm:$0xff] %v247
        %257 = vst [vmem:[#allocation4 + $0x40] sm:$0xff] %v247
        %258 = vst [vmem:[#allocation4 + $0x48] sm:$0xff] %v247
        %259 = vst [vmem:[#allocation4 + $0x50] sm:$0xff] %v247
        %260 = vst [vmem:[#allocation4 + $0x58] sm:$0xff] %v247
        %261 = vst [vmem:[#allocation4 + $0x60] sm:$0xff] %v247
        %262 = vst [vmem:[#allocation4 + $0x68] sm:$0xff] %v247
        %263 = vst [vmem:[#allocation4 + $0x70] sm:$0xff] %v247
        %264 = vst [vmem:[#allocation4 + $0x78] sm:$0xff] %v247
        %s265 = smul.u32 %s183, 48
        %s266 = smul.addr %s265, 4
        %s267 = scalar_lea.vmem [#allocation2], %s266
        %s268 = scalar_lea.vmem %s267, 36 [#allocation2]
        %v269 = vld [vmem:[%s268] sm:$0xe]
        %v270 = vld [vmem:[%s268 + $0x4] sm:$0xf]
        %v271 = vld [vmem:[%s268 + $0x8] sm:$0x3]
        %v272 = vld [vmem:[%s268 + $0xc] sm:$0xe]
        %v273 = vld [vmem:[%s268 + $0x10] sm:$0xf]
        %v274 = vld [vmem:[%s268 + $0x14] sm:$0x3]
        %v275 = vld [vmem:[%s268 + $0x18] sm:$0xe]
        %v276 = vld [vmem:[%s268 + $0x1c] sm:$0xf]
        %v277 = vld [vmem:[%s268 + $0x20] sm:$0x3]
        %v278 = vld [vmem:[%s268 + $0x24] sm:$0xe]
        %v279 = vld [vmem:[%s268 + $0x28] sm:$0xf]
        %v280 = vld [vmem:[%s268 + $0x2c] sm:$0x3]
        %v281 = vld [vmem:[%s268 + $0x30] sm:$0xe]
        %v282 = vld [vmem:[%s268 + $0x34] sm:$0xf]
        %v283 = vld [vmem:[%s268 + $0x38] sm:$0x3]
        %v284 = vld [vmem:[%s268 + $0x3c] sm:$0xe]
        %v285 = vld [vmem:[%s268 + $0x40] sm:$0xf]
        %v286 = vld [vmem:[%s268 + $0x44] sm:$0x3]
        %v287 = vld [vmem:[%s268 + $0x48] sm:$0xe]
        %v288 = vld [vmem:[%s268 + $0x4c] sm:$0xf]
        %v289 = vld [vmem:[%s268 + $0x50] sm:$0x3]
        %v290 = vld [vmem:[%s268 + $0x54] sm:$0xe]
        %v291 = vld [vmem:[%s268 + $0x58] sm:$0xf]
        %v292 = vld [vmem:[%s268 + $0x5c] sm:$0x3]
        %vm293 = vsmask.f32 2304
        %vm294 = vsmask.f32 6416
        %vm295 = vmor %vm293, %vm294
        %v297 = vshrl.u32 %v269, 16
        %v299 = vrot.slane %v297, 5
        %v300 = vshll.u32 %v269, 16
        %v302 = vrot.slane %v300, 6
        %v303 = vor.u32 %v299, %v302
        %v304 = vrot.slane %v303, 4
        %v306 = vshrl.u32 %v270, 16
        %v308 = vrot.slane %v306, 5
        %v309 = vshll.u32 %v270, 16
        %v311 = vrot.slane %v309, 6
        %v312 = vor.u32 %v308, %v311
        %v313 = vsel %vm295, %v304, %v312
        %v314 = vrot.slane %v312, 4
        %v316 = vshrl.u32 %v271, 16
        %v318 = vrot.slane %v316, 5
        %v319 = vshll.u32 %v271, 16
        %v321 = vrot.slane %v319, 6
        %v322 = vor.u32 %v318, %v321
        %v323 = vsel %vm295, %v314, %v322
        %v325 = vshrl.u32 %v272, 16
        %v327 = vrot.slane %v325, 5
        %v328 = vshll.u32 %v272, 16
        %v330 = vrot.slane %v328, 6
        %v331 = vor.u32 %v327, %v330
        %v332 = vrot.slane %v331, 4
        %v334 = vshrl.u32 %v273, 16
        %v336 = vrot.slane %v334, 5
        %v337 = vshll.u32 %v273, 16
        %v339 = vrot.slane %v337, 6
        %v340 = vor.u32 %v336, %v339
        %v341 = vsel %vm295, %v332, %v340
        %v342 = vrot.slane %v340, 4
        %v344 = vshrl.u32 %v274, 16
        %v346 = vrot.slane %v344, 5
        %v347 = vshll.u32 %v274, 16
        %v349 = vrot.slane %v347, 6
        %v350 = vor.u32 %v346, %v349
        %v351 = vsel %vm295, %v342, %v350
        %v353 = vshrl.u32 %v275, 16
        %v355 = vrot.slane %v353, 5
        %v356 = vshll.u32 %v275, 16
        %v358 = vrot.slane %v356, 6
        %v359 = vor.u32 %v355, %v358
        %v360 = vrot.slane %v359, 4
        %v362 = vshrl.u32 %v276, 16
        %v364 = vrot.slane %v362, 5
        %v365 = vshll.u32 %v276, 16
        %v367 = vrot.slane %v365, 6
        %v368 = vor.u32 %v364, %v367
        %v369 = vsel %vm295, %v360, %v368
        %v370 = vrot.slane %v368, 4
        %v372 = vshrl.u32 %v277, 16
        %v374 = vrot.slane %v372, 5
        %v375 = vshll.u32 %v277, 16
        %v377 = vrot.slane %v375, 6
        %v378 = vor.u32 %v374, %v377
        %v379 = vsel %vm295, %v370, %v378
        %v381 = vshrl.u32 %v278, 16
        %v383 = vrot.slane %v381, 5
        %v384 = vshll.u32 %v278, 16
        %v386 = vrot.slane %v384, 6
        %v387 = vor.u32 %v383, %v386
        %v388 = vrot.slane %v387, 4
        %v390 = vshrl.u32 %v279, 16
        %v392 = vrot.slane %v390, 5
        %v393 = vshll.u32 %v279, 16
        %v395 = vrot.slane %v393, 6
        %v396 = vor.u32 %v392, %v395
        %v397 = vsel %vm295, %v388, %v396
        %v398 = vrot.slane %v396, 4
        %v400 = vshrl.u32 %v280, 16
        %v402 = vrot.slane %v400, 5
        %v403 = vshll.u32 %v280, 16
        %v405 = vrot.slane %v403, 6
        %v406 = vor.u32 %v402, %v405
        %v407 = vsel %vm295, %v398, %v406
        %v409 = vshrl.u32 %v281, 16
        %v411 = vrot.slane %v409, 5
        %v412 = vshll.u32 %v281, 16
        %v414 = vrot.slane %v412, 6
        %v415 = vor.u32 %v411, %v414
        %v416 = vrot.slane %v415, 4
        %v418 = vshrl.u32 %v282, 16
        %v420 = vrot.slane %v418, 5
        %v421 = vshll.u32 %v282, 16
        %v423 = vrot.slane %v421, 6
        %v424 = vor.u32 %v420, %v423
        %v425 = vsel %vm295, %v416, %v424
        %v426 = vrot.slane %v424, 4
        %v428 = vshrl.u32 %v283, 16
        %v430 = vrot.slane %v428, 5
        %v431 = vshll.u32 %v283, 16
        %v433 = vrot.slane %v431, 6
        %v434 = vor.u32 %v430, %v433
        %v435 = vsel %vm295, %v426, %v434
        %v437 = vshrl.u32 %v284, 16
        %v439 = vrot.slane %v437, 5
        %v440 = vshll.u32 %v284, 16
        %v442 = vrot.slane %v440, 6
        %v443 = vor.u32 %v439, %v442
        %v444 = vrot.slane %v443, 4
        %v446 = vshrl.u32 %v285, 16
        %v448 = vrot.slane %v446, 5
        %v449 = vshll.u32 %v285, 16
        %v451 = vrot.slane %v449, 6
        %v452 = vor.u32 %v448, %v451
        %v453 = vsel %vm295, %v444, %v452
        %v454 = vrot.slane %v452, 4
        %v456 = vshrl.u32 %v286, 16
        %v458 = vrot.slane %v456, 5
        %v459 = vshll.u32 %v286, 16
        %v461 = vrot.slane %v459, 6
        %v462 = vor.u32 %v458, %v461
        %v463 = vsel %vm295, %v454, %v462
        %v465 = vshrl.u32 %v287, 16
        %v467 = vrot.slane %v465, 5
        %v468 = vshll.u32 %v287, 16
        %v470 = vrot.slane %v468, 6
        %v471 = vor.u32 %v467, %v470
        %v472 = vrot.slane %v471, 4
        %v474 = vshrl.u32 %v288, 16
        %v476 = vrot.slane %v474, 5
        %v477 = vshll.u32 %v288, 16
        %v479 = vrot.slane %v477, 6
        %v480 = vor.u32 %v476, %v479
        %v481 = vsel %vm295, %v472, %v480
        %v482 = vrot.slane %v480, 4
        %v484 = vshrl.u32 %v289, 16
        %v486 = vrot.slane %v484, 5
        %v487 = vshll.u32 %v289, 16
        %v489 = vrot.slane %v487, 6
        %v490 = vor.u32 %v486, %v489
        %v491 = vsel %vm295, %v482, %v490
        %v493 = vshrl.u32 %v290, 16
        %v495 = vrot.slane %v493, 5
        %v496 = vshll.u32 %v290, 16
        %v498 = vrot.slane %v496, 6
        %v499 = vor.u32 %v495, %v498
        %v500 = vrot.slane %v499, 4
        %v502 = vshrl.u32 %v291, 16
        %v504 = vrot.slane %v502, 5
        %v505 = vshll.u32 %v291, 16
        %v507 = vrot.slane %v505, 6
        %v508 = vor.u32 %v504, %v507
        %v509 = vsel %vm295, %v500, %v508
        %v510 = vrot.slane %v508, 4
        %v512 = vshrl.u32 %v292, 16
        %v514 = vrot.slane %v512, 5
        %v515 = vshll.u32 %v292, 16
        %v517 = vrot.slane %v515, 6
        %v518 = vor.u32 %v514, %v517
        %v519 = vsel %vm295, %v510, %v518
        %s520 = smul.u32 %s25, 27
        %v521 = vld [vmem:[#allocation4] sm:$0xff]
        %v522 = vld [vmem:[#allocation4 + $0x8] sm:$0xff]
        %v523 = vld [vmem:[#allocation4 + $0x10] sm:$0xff]
        %v524 = vld [vmem:[#allocation4 + $0x18] sm:$0xff]
        %v525 = vld [vmem:[#allocation4 + $0x20] sm:$0xff]
        %v526 = vld [vmem:[#allocation4 + $0x28] sm:$0xff]
        %v527 = vld [vmem:[#allocation4 + $0x30] sm:$0xff]
        %v528 = vld [vmem:[#allocation4 + $0x38] sm:$0xff]
        %v529 = vld [vmem:[#allocation4 + $0x40] sm:$0xff]
        %v530 = vld [vmem:[#allocation4 + $0x48] sm:$0xff]
        %v531 = vld [vmem:[#allocation4 + $0x50] sm:$0xff]
        %v532 = vld [vmem:[#allocation4 + $0x58] sm:$0xff]
        %v533 = vld [vmem:[#allocation4 + $0x60] sm:$0xff]
        %v534 = vld [vmem:[#allocation4 + $0x68] sm:$0xff]
        %v535 = vld [vmem:[#allocation4 + $0x70] sm:$0xff]
        %v536 = vld [vmem:[#allocation4 + $0x78] sm:$0xff]
        %s537 = smul.u32 %s520, 16
        %s538 = smul.addr %s537, 4
        %s539 = scalar_lea.vmem [#allocation5], %s538
        %v540 = vld [vmem:[%s539] sm:$0xf]
        %v541 = vld [vmem:[%s539 + $0x4] sm:$0xf]
        %v542 = vld [vmem:[%s539 + $0x8] sm:$0xf]
        %v543 = vld [vmem:[%s539 + $0xc] sm:$0xf]
        %v544 = vld [vmem:[%s539 + $0x10] sm:$0xf]
        %v545 = vld [vmem:[%s539 + $0x14] sm:$0xf]
        %v546 = vld [vmem:[%s539 + $0x18] sm:$0xf]
        %v547 = vld [vmem:[%s539 + $0x1c] sm:$0xf]
        %v548 = vld [vmem:[%s539 + $0x20] sm:$0xf]
        %v549 = vld [vmem:[%s539 + $0x24] sm:$0xf]
        %v550 = vld [vmem:[%s539 + $0x28] sm:$0xf]
        %v551 = vld [vmem:[%s539 + $0x2c] sm:$0xf]
        %v552 = vld [vmem:[%s539 + $0x30] sm:$0xf]
        %v553 = vld [vmem:[%s539 + $0x34] sm:$0xf]
        %v554 = vld [vmem:[%s539 + $0x38] sm:$0xf]
        %v555 = vld [vmem:[%s539 + $0x3c] sm:$0xf]
        %v556 = vunpack.c.l.b16 %v313
        %v557 = vunpack.c.l.b16 %v323
        %v558 = vunpack.c.l.b16 %v341
        %v559 = vunpack.c.l.b16 %v351
        %v560 = vunpack.c.l.b16 %v369
        %v561 = vunpack.c.l.b16 %v379
        %v562 = vunpack.c.l.b16 %v397
        %v563 = vunpack.c.l.b16 %v407
        %v564 = vunpack.c.l.b16 %v425
        %v565 = vunpack.c.l.b16 %v435
        %v566 = vunpack.c.l.b16 %v453
        %v567 = vunpack.c.l.b16 %v463
        %v568 = vunpack.c.l.b16 %v481
        %v569 = vunpack.c.l.b16 %v491
        %v570 = vunpack.c.l.b16 %v509
        %v571 = vunpack.c.l.b16 %v519
        %v572 = vpack.c.b16 %v557, %v556
        %v573 = vpack.c.b16 %v559, %v558
        %v574 = vpack.c.b16 %v561, %v560
        %v575 = vpack.c.b16 %v563, %v562
        %v576 = vpack.c.b16 %v565, %v564
        %v577 = vpack.c.b16 %v567, %v566
        %v578 = vpack.c.b16 %v569, %v568
        %v579 = vpack.c.b16 %v571, %v570
        %v604 = vunpack.c.l.b16 %v540
        %v605 = vunpack.c.l.b16 %v541
        %v606 = vunpack.c.l.b16 %v542
        %v607 = vunpack.c.l.b16 %v543
        %v608 = vunpack.c.l.b16 %v544
        %v609 = vunpack.c.l.b16 %v545
        %v610 = vunpack.c.l.b16 %v546
        %v611 = vunpack.c.l.b16 %v547
        %v612 = vunpack.c.l.b16 %v548
        %v613 = vunpack.c.l.b16 %v549
        %v614 = vunpack.c.l.b16 %v550
        %v615 = vunpack.c.l.b16 %v551
        %v616 = vunpack.c.l.b16 %v552
        %v617 = vunpack.c.l.b16 %v553
        %v618 = vunpack.c.l.b16 %v554
        %v619 = vunpack.c.l.b16 %v555
        %v620 = vpack.c.b16 %v605, %v604
        %v621 = vpack.c.b16 %v607, %v606
        %v622 = vpack.c.b16 %v609, %v608
        %v623 = vpack.c.b16 %v611, %v610
        %v624 = vpack.c.b16 %v613, %v612
        %v625 = vpack.c.b16 %v615, %v614
        %v626 = vpack.c.b16 %v617, %v616
        %v627 = vpack.c.b16 %v619, %v618
        %636 = vmatpush.bf16.msra.mxu0 %v627
        %637 = vmatpush.bf16.msra.mxu0 %v626
        %638 = vmatpush.bf16.msra.mxu0 %v625
        %639 = vmatpush.bf16.msra.mxu0 %v624
        %640 = vmatpush.bf16.msra.mxu0 %v623
        %641 = vmatpush.bf16.msra.mxu0 %v622
        %642 = vmatpush.bf16.msra.mxu0 %v621
        %643 = vmatpush.bf16.msra.mxu0 %v620
        %644 = vmatmul.bf16.gmra.mxu0 %v572
        %v645 = vpop.f32.mrf.mxu0
        %v646 = vadd.f32 0.0, %v645
        %v647 = vpop.f32.mrf.mxu0
        %v648 = vadd.f32 0.0, %v647
        %649 = vmatmul.bf16.gmra.mxu0 %v573
        %v650 = vpop.f32.mrf.mxu0
        %v651 = vadd.f32 0.0, %v650
        %v652 = vpop.f32.mrf.mxu0
        %v653 = vadd.f32 0.0, %v652
        %654 = vmatmul.bf16.gmra.mxu0 %v574
        %v655 = vpop.f32.mrf.mxu0
        %v656 = vadd.f32 0.0, %v655
        %v657 = vpop.f32.mrf.mxu0
        %v658 = vadd.f32 0.0, %v657
        %659 = vmatmul.bf16.gmra.mxu0 %v575
        %v660 = vpop.f32.mrf.mxu0
        %v661 = vadd.f32 0.0, %v660
        %v662 = vpop.f32.mrf.mxu0
        %v663 = vadd.f32 0.0, %v662
        %664 = vmatmul.bf16.gmra.mxu0 %v576
        %v665 = vpop.f32.mrf.mxu0
        %v666 = vadd.f32 0.0, %v665
        %v667 = vpop.f32.mrf.mxu0
        %v668 = vadd.f32 0.0, %v667
        %669 = vmatmul.bf16.gmra.mxu0 %v577
        %v670 = vpop.f32.mrf.mxu0
        %v671 = vadd.f32 0.0, %v670
        %v672 = vpop.f32.mrf.mxu0
        %v673 = vadd.f32 0.0, %v672
        %674 = vmatmul.bf16.gmra.mxu0 %v578
        %v675 = vpop.f32.mrf.mxu0
        %v676 = vadd.f32 0.0, %v675
        %v677 = vpop.f32.mrf.mxu0
        %v678 = vadd.f32 0.0, %v677
        %679 = vmatmul.bf16.gmra.mxu0 %v579
        %v680 = vpop.f32.mrf.mxu0
        %v681 = vadd.f32 0.0, %v680
        %v682 = vpop.f32.mrf.mxu0
        %v683 = vadd.f32 0.0, %v682
        %684 = vdwg.mxu0
        %v685 = vadd.f32 %v521, %v646
        %v686 = vadd.f32 %v522, %v648
        %v687 = vadd.f32 %v523, %v651
        %v688 = vadd.f32 %v524, %v653
        %v689 = vadd.f32 %v525, %v656
        %v690 = vadd.f32 %v526, %v658
        %v691 = vadd.f32 %v527, %v661
        %v692 = vadd.f32 %v528, %v663
        %v693 = vadd.f32 %v529, %v666
        %v694 = vadd.f32 %v530, %v668
        %v695 = vadd.f32 %v531, %v671
        %v696 = vadd.f32 %v532, %v673
        %v697 = vadd.f32 %v533, %v676
        %v698 = vadd.f32 %v534, %v678
        %v699 = vadd.f32 %v535, %v681
        %v700 = vadd.f32 %v536, %v683
        %701 = vst [vmem:[#allocation4] sm:$0xff] %v685
        %702 = vst [vmem:[#allocation4 + $0x8] sm:$0xff] %v686
        %703 = vst [vmem:[#allocation4 + $0x10] sm:$0xff] %v687
        %704 = vst [vmem:[#allocation4 + $0x18] sm:$0xff] %v688
        %705 = vst [vmem:[#allocation4 + $0x20] sm:$0xff] %v689
        %706 = vst [vmem:[#allocation4 + $0x28] sm:$0xff] %v690
        %707 = vst [vmem:[#allocation4 + $0x30] sm:$0xff] %v691
        %708 = vst [vmem:[#allocation4 + $0x38] sm:$0xff] %v692
        %709 = vst [vmem:[#allocation4 + $0x40] sm:$0xff] %v693
        %710 = vst [vmem:[#allocation4 + $0x48] sm:$0xff] %v694
        %711 = vst [vmem:[#allocation4 + $0x50] sm:$0xff] %v695
        %712 = vst [vmem:[#allocation4 + $0x58] sm:$0xff] %v696
        %713 = vst [vmem:[#allocation4 + $0x60] sm:$0xff] %v697
        %714 = vst [vmem:[#allocation4 + $0x68] sm:$0xff] %v698
        %715 = vst [vmem:[#allocation4 + $0x70] sm:$0xff] %v699
        %716 = vst [vmem:[#allocation4 + $0x78] sm:$0xff] %v700
        %v717 = vld [vmem:[%s268] sm:$0xc]
        %v718 = vld [vmem:[%s268 + $0x4] sm:$0xf]
        %v719 = vld [vmem:[%s268 + $0x8] sm:$0x3]
        %v720 = vld [vmem:[%s268 + $0xc] sm:$0xc]
        %v721 = vld [vmem:[%s268 + $0x10] sm:$0xf]
        %v722 = vld [vmem:[%s268 + $0x14] sm:$0x3]
        %v723 = vld [vmem:[%s268 + $0x18] sm:$0xc]
        %v724 = vld [vmem:[%s268 + $0x1c] sm:$0xf]
        %v725 = vld [vmem:[%s268 + $0x20] sm:$0x3]
        %v726 = vld [vmem:[%s268 + $0x24] sm:$0xc]
        %v727 = vld [vmem:[%s268 + $0x28] sm:$0xf]
        %v728 = vld [vmem:[%s268 + $0x2c] sm:$0x3]
        %v729 = vld [vmem:[%s268 + $0x30] sm:$0xc]
        %v730 = vld [vmem:[%s268 + $0x34] sm:$0xf]
        %v731 = vld [vmem:[%s268 + $0x38] sm:$0x3]
        %v732 = vld [vmem:[%s268 + $0x3c] sm:$0xc]
        %v733 = vld [vmem:[%s268 + $0x40] sm:$0xf]
        %v734 = vld [vmem:[%s268 + $0x44] sm:$0x3]
        %v735 = vld [vmem:[%s268 + $0x48] sm:$0xc]
        %v736 = vld [vmem:[%s268 + $0x4c] sm:$0xf]
        %v737 = vld [vmem:[%s268 + $0x50] sm:$0x3]
        %v738 = vld [vmem:[%s268 + $0x54] sm:$0xc]
        %v739 = vld [vmem:[%s268 + $0x58] sm:$0xf]
        %v740 = vld [vmem:[%s268 + $0x5c] sm:$0x3]
        %vm765 = vcmask 1041408
        %vm766 = vcmask 1045508
        %vm767 = vmor %vm765, %vm766
        %v768 = vrot.slane %v717, 6
        %v769 = vrot.slane %v768, 4
        %v770 = vrot.slane %v718, 6
        %v771 = vsel %vm767, %v769, %v770
        %v772 = vrot.slane %v770, 4
        %v773 = vrot.slane %v719, 6
        %v774 = vsel %vm767, %v772, %v773
        %v775 = vrot.slane %v720, 6
        %v776 = vrot.slane %v775, 4
        %v777 = vrot.slane %v721, 6
        %v778 = vsel %vm767, %v776, %v777
        %v779 = vrot.slane %v777, 4
        %v780 = vrot.slane %v722, 6
        %v781 = vsel %vm767, %v779, %v780
        %v782 = vrot.slane %v723, 6
        %v783 = vrot.slane %v782, 4
        %v784 = vrot.slane %v724, 6
        %v785 = vsel %vm767, %v783, %v784
        %v786 = vrot.slane %v784, 4
        %v787 = vrot.slane %v725, 6
        %v788 = vsel %vm767, %v786, %v787
        %v789 = vrot.slane %v726, 6
        %v790 = vrot.slane %v789, 4
        %v791 = vrot.slane %v727, 6
        %v792 = vsel %vm767, %v790, %v791
        %v793 = vrot.slane %v791, 4
        %v794 = vrot.slane %v728, 6
        %v795 = vsel %vm767, %v793, %v794
        %v796 = vrot.slane %v729, 6
        %v797 = vrot.slane %v796, 4
        %v798 = vrot.slane %v730, 6
        %v799 = vsel %vm767, %v797, %v798
        %v800 = vrot.slane %v798, 4
        %v801 = vrot.slane %v731, 6
        %v802 = vsel %vm767, %v800, %v801
        %v803 = vrot.slane %v732, 6
        %v804 = vrot.slane %v803, 4
        %v805 = vrot.slane %v733, 6
        %v806 = vsel %vm767, %v804, %v805
        %v807 = vrot.slane %v805, 4
        %v808 = vrot.slane %v734, 6
        %v809 = vsel %vm767, %v807, %v808
        %v810 = vrot.slane %v735, 6
        %v811 = vrot.slane %v810, 4
        %v812 = vrot.slane %v736, 6
        %v813 = vsel %vm767, %v811, %v812
        %v814 = vrot.slane %v812, 4
        %v815 = vrot.slane %v737, 6
        %v816 = vsel %vm767, %v814, %v815
        %v817 = vrot.slane %v738, 6
        %v818 = vrot.slane %v817, 4
        %v819 = vrot.slane %v739, 6
        %v820 = vsel %vm767, %v818, %v819
        %v821 = vrot.slane %v819, 4
        %v822 = vrot.slane %v740, 6
        %v823 = vsel %vm767, %v821, %v822
        %s824 = sadd.s32 %s520, 1
        %v825 = vld [vmem:[#allocation4] sm:$0xff]
        %v826 = vld [vmem:[#allocation4 + $0x8] sm:$0xff]
        %v827 = vld [vmem:[#allocation4 + $0x10] sm:$0xff]
        %v828 = vld [vmem:[#allocation4 + $0x18] sm:$0xff]
        %v829 = vld [vmem:[#allocation4 + $0x20] sm:$0xff]
        %v830 = vld [vmem:[#allocation4 + $0x28] sm:$0xff]
        %v831 = vld [vmem:[#allocation4 + $0x30] sm:$0xff]
        %v832 = vld [vmem:[#allocation4 + $0x38] sm:$0xff]
        %v833 = vld [vmem:[#allocation4 + $0x40] sm:$0xff]
        %v834 = vld [vmem:[#allocation4 + $0x48] sm:$0xff]
        %v835 = vld [vmem:[#allocation4 + $0x50] sm:$0xff]
        %v836 = vld [vmem:[#allocation4 + $0x58] sm:$0xff]
        %v837 = vld [vmem:[#allocation4 + $0x60] sm:$0xff]
        %v838 = vld [vmem:[#allocation4 + $0x68] sm:$0xff]
        %v839 = vld [vmem:[#allocation4 + $0x70] sm:$0xff]
        %v840 = vld [vmem:[#allocation4 + $0x78] sm:$0xff]
        %s841 = smul.u32 %s824, 16
        %s842 = smul.addr %s841, 4
        %s843 = scalar_lea.vmem [#allocation5], %s842
        %v844 = vld [vmem:[%s843] sm:$0xf]
        %v845 = vld [vmem:[%s843 + $0x4] sm:$0xf]
        %v846 = vld [vmem:[%s843 + $0x8] sm:$0xf]
        %v847 = vld [vmem:[%s843 + $0xc] sm:$0xf]
        %v848 = vld [vmem:[%s843 + $0x10] sm:$0xf]
        %v849 = vld [vmem:[%s843 + $0x14] sm:$0xf]
        %v850 = vld [vmem:[%s843 + $0x18] sm:$0xf]
        %v851 = vld [vmem:[%s843 + $0x1c] sm:$0xf]
        %v852 = vld [vmem:[%s843 + $0x20] sm:$0xf]
        %v853 = vld [vmem:[%s843 + $0x24] sm:$0xf]
        %v854 = vld [vmem:[%s843 + $0x28] sm:$0xf]
        %v855 = vld [vmem:[%s843 + $0x2c] sm:$0xf]
        %v856 = vld [vmem:[%s843 + $0x30] sm:$0xf]
        %v857 = vld [vmem:[%s843 + $0x34] sm:$0xf]
        %v858 = vld [vmem:[%s843 + $0x38] sm:$0xf]
        %v859 = vld [vmem:[%s843 + $0x3c] sm:$0xf]
        %v860 = vunpack.c.l.b16 %v771
        %v861 = vunpack.c.l.b16 %v774
        %v862 = vunpack.c.l.b16 %v778
        %v863 = vunpack.c.l.b16 %v781
        %v864 = vunpack.c.l.b16 %v785
        %v865 = vunpack.c.l.b16 %v788
        %v866 = vunpack.c.l.b16 %v792
        %v867 = vunpack.c.l.b16 %v795
        %v868 = vunpack.c.l.b16 %v799
        %v869 = vunpack.c.l.b16 %v802
        %v870 = vunpack.c.l.b16 %v806
        %v871 = vunpack.c.l.b16 %v809
        %v872 = vunpack.c.l.b16 %v813
        %v873 = vunpack.c.l.b16 %v816
        %v874 = vunpack.c.l.b16 %v820
        %v875 = vunpack.c.l.b16 %v823
        %v876 = vpack.c.b16 %v861, %v860
        %v877 = vpack.c.b16 %v863, %v862
        %v878 = vpack.c.b16 %v865, %v864
        %v879 = vpack.c.b16 %v867, %v866
        %v880 = vpack.c.b16 %v869, %v868
        %v881 = vpack.c.b16 %v871, %v870
        %v882 = vpack.c.b16 %v873, %v872
        %v883 = vpack.c.b16 %v875, %v874
        %v908 = vunpack.c.l.b16 %v844
        %v909 = vunpack.c.l.b16 %v845
        %v910 = vunpack.c.l.b16 %v846
        %v911 = vunpack.c.l.b16 %v847
        %v912 = vunpack.c.l.b16 %v848
        %v913 = vunpack.c.l.b16 %v849
        %v914 = vunpack.c.l.b16 %v850
        %v915 = vunpack.c.l.b16 %v851
        %v916 = vunpack.c.l.b16 %v852
        %v917 = vunpack.c.l.b16 %v853
        %v918 = vunpack.c.l.b16 %v854
        %v919 = vunpack.c.l.b16 %v855
        %v920 = vunpack.c.l.b16 %v856
        %v921 = vunpack.c.l.b16 %v857
        %v922 = vunpack.c.l.b16 %v858
        %v923 = vunpack.c.l.b16 %v859
        %v924 = vpack.c.b16 %v909, %v908
        %v925 = vpack.c.b16 %v911, %v910
        %v926 = vpack.c.b16 %v913, %v912
        %v927 = vpack.c.b16 %v915, %v914
        %v928 = vpack.c.b16 %v917, %v916
        %v929 = vpack.c.b16 %v919, %v918
        %v930 = vpack.c.b16 %v921, %v920
        %v931 = vpack.c.b16 %v923, %v922
        %940 = vmatpush.bf16.msra.mxu0 %v931
        %941 = vmatpush.bf16.msra.mxu0 %v930
        %942 = vmatpush.bf16.msra.mxu0 %v929
        %943 = vmatpush.bf16.msra.mxu0 %v928
        %944 = vmatpush.bf16.msra.mxu0 %v927
        %945 = vmatpush.bf16.msra.mxu0 %v926
        %946 = vmatpush.bf16.msra.mxu0 %v925
        %947 = vmatpush.bf16.msra.mxu0 %v924
        %948 = vmatmul.bf16.gmra.mxu0 %v876
        %v949 = vpop.f32.mrf.mxu0
        %v950 = vadd.f32 0.0, %v949
        %v951 = vpop.f32.mrf.mxu0
        %v952 = vadd.f32 0.0, %v951
        %953 = vmatmul.bf16.gmra.mxu0 %v877
        %v954 = vpop.f32.mrf.mxu0
        %v955 = vadd.f32 0.0, %v954
        %v956 = vpop.f32.mrf.mxu0
        %v957 = vadd.f32 0.0, %v956
        %958 = vmatmul.bf16.gmra.mxu0 %v878
        %v959 = vpop.f32.mrf.mxu0
        %v960 = vadd.f32 0.0, %v959
        %v961 = vpop.f32.mrf.mxu0
        %v962 = vadd.f32 0.0, %v961
        %963 = vmatmul.bf16.gmra.mxu0 %v879
        %v964 = vpop.f32.mrf.mxu0
        %v965 = vadd.f32 0.0, %v964
        %v966 = vpop.f32.mrf.mxu0
        %v967 = vadd.f32 0.0, %v966
        %968 = vmatmul.bf16.gmra.mxu0 %v880
        %v969 = vpop.f32.mrf.mxu0
        %v970 = vadd.f32 0.0, %v969
        %v971 = vpop.f32.mrf.mxu0
        %v972 = vadd.f32 0.0, %v971
        %973 = vmatmul.bf16.gmra.mxu0 %v881
        %v974 = vpop.f32.mrf.mxu0
        %v975 = vadd.f32 0.0, %v974
        %v976 = vpop.f32.mrf.mxu0
        %v977 = vadd.f32 0.0, %v976
        %978 = vmatmul.bf16.gmra.mxu0 %v882
        %v979 = vpop.f32.mrf.mxu0
        %v980 = vadd.f32 0.0, %v979
        %v981 = vpop.f32.mrf.mxu0
        %v982 = vadd.f32 0.0, %v981
        %983 = vmatmul.bf16.gmra.mxu0 %v883
        %v984 = vpop.f32.mrf.mxu0
        %v985 = vadd.f32 0.0, %v984
        %v986 = vpop.f32.mrf.mxu0
        %v987 = vadd.f32 0.0, %v986
        %988 = vdwg.mxu0
        %v989 = vadd.f32 %v825, %v950
        %v990 = vadd.f32 %v826, %v952
        %v991 = vadd.f32 %v827, %v955
        %v992 = vadd.f32 %v828, %v957
        %v993 = vadd.f32 %v829, %v960
        %v994 = vadd.f32 %v830, %v962
        %v995 = vadd.f32 %v831, %v965
        %v996 = vadd.f32 %v832, %v967
        %v997 = vadd.f32 %v833, %v970
        %v998 = vadd.f32 %v834, %v972
        %v999 = vadd.f32 %v835, %v975
        %v1000 = vadd.f32 %v836, %v977
        %v1001 = vadd.f32 %v837, %v980
        %v1002 = vadd.f32 %v838, %v982
        %v1003 = vadd.f32 %v839, %v985
        %v1004 = vadd.f32 %v840, %v987
        %1005 = vst [vmem:[#allocation4] sm:$0xff] %v989
        %1006 = vst [vmem:[#allocation4 + $0x8] sm:$0xff] %v990
        %1007 = vst [vmem:[#allocation4 + $0x10] sm:$0xff] %v991
        %1008 = vst [vmem:[#allocation4 + $0x18] sm:$0xff] %v992
        %1009 = vst [vmem:[#allocation4 + $0x20] sm:$0xff] %v993
        %1010 = vst [vmem:[#allocation4 + $0x28] sm:$0xff] %v994
        %1011 = vst [vmem:[#allocation4 + $0x30] sm:$0xff] %v995
        %1012 = vst [vmem:[#allocation4 + $0x38] sm:$0xff] %v996
        %1013 = vst [vmem:[#allocation4 + $0x40] sm:$0xff] %v997
        %1014 = vst [vmem:[#allocation4 + $0x48] sm:$0xff] %v998
        %1015 = vst [vmem:[#allocation4 + $0x50] sm:$0xff] %v999
        %1016 = vst [vmem:[#allocation4 + $0x58] sm:$0xff] %v1000
        %1017 = vst [vmem:[#allocation4 + $0x60] sm:$0xff] %v1001
        %1018 = vst [vmem:[#allocation4 + $0x68] sm:$0xff] %v1002
        %1019 = vst [vmem:[#allocation4 + $0x70] sm:$0xff] %v1003
        %1020 = vst [vmem:[#allocation4 + $0x78] sm:$0xff] %v1004
        %v1021 = vld [vmem:[%s268] sm:$0xc]
        %v1022 = vld [vmem:[%s268 + $0x4] sm:$0xf]
        %v1023 = vld [vmem:[%s268 + $0x8] sm:$0x7]
        %v1024 = vld [vmem:[%s268 + $0xc] sm:$0xc]
        %v1025 = vld [vmem:[%s268 + $0x10] sm:$0xf]
        %v1026 = vld [vmem:[%s268 + $0x14] sm:$0x7]
        %v1027 = vld [vmem:[%s268 + $0x18] sm:$0xc]
        %v1028 = vld [vmem:[%s268 + $0x1c] sm:$0xf]
        %v1029 = vld [vmem:[%s268 + $0x20] sm:$0x7]
        %v1030 = vld [vmem:[%s268 + $0x24] sm:$0xc]
        %v1031 = vld [vmem:[%s268 + $0x28] sm:$0xf]
        %v1032 = vld [vmem:[%s268 + $0x2c] sm:$0x7]
        %v1033 = vld [vmem:[%s268 + $0x30] sm:$0xc]
        %v1034 = vld [vmem:[%s268 + $0x34] sm:$0xf]
        %v1035 = vld [vmem:[%s268 + $0x38] sm:$0x7]
        %v1036 = vld [vmem:[%s268 + $0x3c] sm:$0xc]
        %v1037 = vld [vmem:[%s268 + $0x40] sm:$0xf]
        %v1038 = vld [vmem:[%s268 + $0x44] sm:$0x7]
        %v1039 = vld [vmem:[%s268 + $0x48] sm:$0xc]
        %v1040 = vld [vmem:[%s268 + $0x4c] sm:$0xf]
        %v1041 = vld [vmem:[%s268 + $0x50] sm:$0x7]
        %v1042 = vld [vmem:[%s268 + $0x54] sm:$0xc]
        %v1043 = vld [vmem:[%s268 + $0x58] sm:$0xf]
        %v1044 = vld [vmem:[%s268 + $0x5c] sm:$0x7]
        %vm1045 = vsmask.f32 1280
        %vm1046 = vsmask.f32 5392
        %vm1047 = vmor %vm1045, %vm1046
        %v1049 = vshrl.u32 %v1021, 16
        %v1051 = vrot.slane %v1049, 6
        %v1052 = vshll.u32 %v1021, 16
        %v1054 = vrot.slane %v1052, 7
        %v1055 = vor.u32 %v1051, %v1054
        %v1056 = vrot.slane %v1055, 4
        %v1058 = vshrl.u32 %v1022, 16
        %v1060 = vrot.slane %v1058, 6
        %v1061 = vshll.u32 %v1022, 16
        %v1063 = vrot.slane %v1061, 7
        %v1064 = vor.u32 %v1060, %v1063
        %v1065 = vsel %vm1047, %v1056, %v1064
        %v1066 = vrot.slane %v1064, 4
        %v1068 = vshrl.u32 %v1023, 16
        %v1070 = vrot.slane %v1068, 6
        %v1071 = vshll.u32 %v1023, 16
        %v1073 = vrot.slane %v1071, 7
        %v1074 = vor.u32 %v1070, %v1073
        %v1075 = vsel %vm1047, %v1066, %v1074
        %v1077 = vshrl.u32 %v1024, 16
        %v1079 = vrot.slane %v1077, 6
        %v1080 = vshll.u32 %v1024, 16
        %v1082 = vrot.slane %v1080, 7
        %v1083 = vor.u32 %v1079, %v1082
        %v1084 = vrot.slane %v1083, 4
        %v1086 = vshrl.u32 %v1025, 16
        %v1088 = vrot.slane %v1086, 6
        %v1089 = vshll.u32 %v1025, 16
        %v1091 = vrot.slane %v1089, 7
        %v1092 = vor.u32 %v1088, %v1091
        %v1093 = vsel %vm1047, %v1084, %v1092
        %v1094 = vrot.slane %v1092, 4
        %v1096 = vshrl.u32 %v1026, 16
        %v1098 = vrot.slane %v1096, 6
        %v1099 = vshll.u32 %v1026, 16
        %v1101 = vrot.slane %v1099, 7
        %v1102 = vor.u32 %v1098, %v1101
        %v1103 = vsel %vm1047, %v1094, %v1102
        %v1105 = vshrl.u32 %v1027, 16
        %v1107 = vrot.slane %v1105, 6
        %v1108 = vshll.u32 %v1027, 16
        %v1110 = vrot.slane %v1108, 7
        %v1111 = vor.u32 %v1107, %v1110
        %v1112 = vrot.slane %v1111, 4
        %v1114 = vshrl.u32 %v1028, 16
        %v1116 = vrot.slane %v1114, 6
        %v1117 = vshll.u32 %v1028, 16
        %v1119 = vrot.slane %v1117, 7
        %v1120 = vor.u32 %v1116, %v1119
        %v1121 = vsel %vm1047, %v1112, %v1120
        %v1122 = vrot.slane %v1120, 4
        %v1124 = vshrl.u32 %v1029, 16
        %v1126 = vrot.slane %v1124, 6
        %v1127 = vshll.u32 %v1029, 16
        %v1129 = vrot.slane %v1127, 7
        %v1130 = vor.u32 %v1126, %v1129
        %v1131 = vsel %vm1047, %v1122, %v1130
        %v1133 = vshrl.u32 %v1030, 16
        %v1135 = vrot.slane %v1133, 6
        %v1136 = vshll.u32 %v1030, 16
        %v1138 = vrot.slane %v1136, 7
        %v1139 = vor.u32 %v1135, %v1138
        %v1140 = vrot.slane %v1139, 4
        %v1142 = vshrl.u32 %v1031, 16
        %v1144 = vrot.slane %v1142, 6
        %v1145 = vshll.u32 %v1031, 16
        %v1147 = vrot.slane %v1145, 7
        %v1148 = vor.u32 %v1144, %v1147
        %v1149 = vsel %vm1047, %v1140, %v1148
        %v1150 = vrot.slane %v1148, 4
        %v1152 = vshrl.u32 %v1032, 16
        %v1154 = vrot.slane %v1152, 6
        %v1155 = vshll.u32 %v1032, 16
        %v1157 = vrot.slane %v1155, 7
        %v1158 = vor.u32 %v1154, %v1157
        %v1159 = vsel %vm1047, %v1150, %v1158
        %v1161 = vshrl.u32 %v1033, 16
        %v1163 = vrot.slane %v1161, 6
        %v1164 = vshll.u32 %v1033, 16
        %v1166 = vrot.slane %v1164, 7
        %v1167 = vor.u32 %v1163, %v1166
        %v1168 = vrot.slane %v1167, 4
        %v1170 = vshrl.u32 %v1034, 16
        %v1172 = vrot.slane %v1170, 6
        %v1173 = vshll.u32 %v1034, 16
        %v1175 = vrot.slane %v1173, 7
        %v1176 = vor.u32 %v1172, %v1175
        %v1177 = vsel %vm1047, %v1168, %v1176
        %v1178 = vrot.slane %v1176, 4
        %v1180 = vshrl.u32 %v1035, 16
        %v1182 = vrot.slane %v1180, 6
        %v1183 = vshll.u32 %v1035, 16
        %v1185 = vrot.slane %v1183, 7
        %v1186 = vor.u32 %v1182, %v1185
        %v1187 = vsel %vm1047, %v1178, %v1186
        %v1189 = vshrl.u32 %v1036, 16
        %v1191 = vrot.slane %v1189, 6
        %v1192 = vshll.u32 %v1036, 16
        %v1194 = vrot.slane %v1192, 7
        %v1195 = vor.u32 %v1191, %v1194
        %v1196 = vrot.slane %v1195, 4
        %v1198 = vshrl.u32 %v1037, 16
        %v1200 = vrot.slane %v1198, 6
        %v1201 = vshll.u32 %v1037, 16
        %v1203 = vrot.slane %v1201, 7
        %v1204 = vor.u32 %v1200, %v1203
        %v1205 = vsel %vm1047, %v1196, %v1204
        %v1206 = vrot.slane %v1204, 4
        %v1208 = vshrl.u32 %v1038, 16
        %v1210 = vrot.slane %v1208, 6
        %v1211 = vshll.u32 %v1038, 16
        %v1213 = vrot.slane %v1211, 7
        %v1214 = vor.u32 %v1210, %v1213
        %v1215 = vsel %vm1047, %v1206, %v1214
        %v1217 = vshrl.u32 %v1039, 16
        %v1219 = vrot.slane %v1217, 6
        %v1220 = vshll.u32 %v1039, 16
        %v1222 = vrot.slane %v1220, 7
        %v1223 = vor.u32 %v1219, %v1222
        %v1224 = vrot.slane %v1223, 4
        %v1226 = vshrl.u32 %v1040, 16
        %v1228 = vrot.slane %v1226, 6
        %v1229 = vshll.u32 %v1040, 16
        %v1231 = vrot.slane %v1229, 7
        %v1232 = vor.u32 %v1228, %v1231
        %v1233 = vsel %vm1047, %v1224, %v1232
        %v1234 = vrot.slane %v1232, 4
        %v1236 = vshrl.u32 %v1041, 16
        %v1238 = vrot.slane %v1236, 6
        %v1239 = vshll.u32 %v1041, 16
        %v1241 = vrot.slane %v1239, 7
        %v1242 = vor.u32 %v1238, %v1241
        %v1243 = vsel %vm1047, %v1234, %v1242
        %v1245 = vshrl.u32 %v1042, 16
        %v1247 = vrot.slane %v1245, 6
        %v1248 = vshll.u32 %v1042, 16
        %v1250 = vrot.slane %v1248, 7
        %v1251 = vor.u32 %v1247, %v1250
        %v1252 = vrot.slane %v1251, 4
        %v1254 = vshrl.u32 %v1043, 16
        %v1256 = vrot.slane %v1254, 6
        %v1257 = vshll.u32 %v1043, 16
        %v1259 = vrot.slane %v1257, 7
        %v1260 = vor.u32 %v1256, %v1259
        %v1261 = vsel %vm1047, %v1252, %v1260
        %v1262 = vrot.slane %v1260, 4
        %v1264 = vshrl.u32 %v1044, 16
        %v1266 = vrot.slane %v1264, 6
        %v1267 = vshll.u32 %v1044, 16
        %v1269 = vrot.slane %v1267, 7
        %v1270 = vor.u32 %v1266, %v1269
        %v1271 = vsel %vm1047, %v1262, %v1270
        %s1272 = sadd.s32 %s520, 2
        %v1273 = vld [vmem:[#allocation4] sm:$0xff]
        %v1274 = vld [vmem:[#allocation4 + $0x8] sm:$0xff]
        %v1275 = vld [vmem:[#allocation4 + $0x10] sm:$0xff]
        %v1276 = vld [vmem:[#allocation4 + $0x18] sm:$0xff]
        %v1277 = vld [vmem:[#allocation4 + $0x20] sm:$0xff]
        %v1278 = vld [vmem:[#allocation4 + $0x28] sm:$0xff]
        %v1279 = vld [vmem:[#allocation4 + $0x30] sm:$0xff]
        %v1280 = vld [vmem:[#allocation4 + $0x38] sm:$0xff]
        %v1281 = vld [vmem:[#allocation4 + $0x40] sm:$0xff]
        %v1282 = vld [vmem:[#allocation4 + $0x48] sm:$0xff]
        %v1283 = vld [vmem:[#allocation4 + $0x50] sm:$0xff]
        %v1284 = vld [vmem:[#allocation4 + $0x58] sm:$0xff]
        %v1285 = vld [vmem:[#allocation4 + $0x60] sm:$0xff]
        %v1286 = vld [vmem:[#allocation4 + $0x68] sm:$0xff]
        %v1287 = vld [vmem:[#allocation4 + $0x70] sm:$0xff]
        %v1288 = vld [vmem:[#allocation4 + $0x78] sm:$0xff]
        %s1289 = smul.u32 %s1272, 16
        %s1290 = smul.addr %s1289, 4
        %s1291 = scalar_lea.vmem [#allocation5], %s1290
        %v1292 = vld [vmem:[%s1291] sm:$0xf]
        %v1293 = vld [vmem:[%s1291 + $0x4] sm:$0xf]
        %v1294 = vld [vmem:[%s1291 + $0x8] sm:$0xf]
        %v1295 = vld [vmem:[%s1291 + $0xc] sm:$0xf]
        %v1296 = vld [vmem:[%s1291 + $0x10] sm:$0xf]
        %v1297 = vld [vmem:[%s1291 + $0x14] sm:$0xf]
        %v1298 = vld [vmem:[%s1291 + $0x18] sm:$0xf]
        %v1299 = vld [vmem:[%s1291 + $0x1c] sm:$0xf]
        %v1300 = vld [vmem:[%s1291 + $0x20] sm:$0xf]
        %v1301 = vld [vmem:[%s1291 + $0x24] sm:$0xf]
        %v1302 = vld [vmem:[%s1291 + $0x28] sm:$0xf]
        %v1303 = vld [vmem:[%s1291 + $0x2c] sm:$0xf]
        %v1304 = vld [vmem:[%s1291 + $0x30] sm:$0xf]
        %v1305 = vld [vmem:[%s1291 + $0x34] sm:$0xf]
        %v1306 = vld [vmem:[%s1291 + $0x38] sm:$0xf]
        %v1307 = vld [vmem:[%s1291 + $0x3c] sm:$0xf]
        %v1308 = vunpack.c.l.b16 %v1065
        %v1309 = vunpack.c.l.b16 %v1075
        %v1310 = vunpack.c.l.b16 %v1093
        %v1311 = vunpack.c.l.b16 %v1103
        %v1312 = vunpack.c.l.b16 %v1121
        %v1313 = vunpack.c.l.b16 %v1131
        %v1314 = vunpack.c.l.b16 %v1149
        %v1315 = vunpack.c.l.b16 %v1159
        %v1316 = vunpack.c.l.b16 %v1177
        %v1317 = vunpack.c.l.b16 %v1187
        %v1318 = vunpack.c.l.b16 %v1205
        %v1319 = vunpack.c.l.b16 %v1215
        %v1320 = vunpack.c.l.b16 %v1233
        %v1321 = vunpack.c.l.b16 %v1243
        %v1322 = vunpack.c.l.b16 %v1261
        %v1323 = vunpack.c.l.b16 %v1271
        %v1324 = vpack.c.b16 %v1309, %v1308
        %v1325 = vpack.c.b16 %v1311, %v1310
        %v1326 = vpack.c.b16 %v1313, %v1312
        %v1327 = vpack.c.b16 %v1315, %v1314
        %v1328 = vpack.c.b16 %v1317, %v1316
        %v1329 = vpack.c.b16 %v1319, %v1318
        %v1330 = vpack.c.b16 %v1321, %v1320
        %v1331 = vpack.c.b16 %v1323, %v1322
        %v1356 = vunpack.c.l.b16 %v1292
        %v1357 = vunpack.c.l.b16 %v1293
        %v1358 = vunpack.c.l.b16 %v1294
        %v1359 = vunpack.c.l.b16 %v1295
        %v1360 = vunpack.c.l.b16 %v1296
        %v1361 = vunpack.c.l.b16 %v1297
        %v1362 = vunpack.c.l.b16 %v1298
        %v1363 = vunpack.c.l.b16 %v1299
        %v1364 = vunpack.c.l.b16 %v1300
        %v1365 = vunpack.c.l.b16 %v1301
        %v1366 = vunpack.c.l.b16 %v1302
        %v1367 = vunpack.c.l.b16 %v1303
        %v1368 = vunpack.c.l.b16 %v1304
        %v1369 = vunpack.c.l.b16 %v1305
        %v1370 = vunpack.c.l.b16 %v1306
        %v1371 = vunpack.c.l.b16 %v1307
        %v1372 = vpack.c.b16 %v1357, %v1356
        %v1373 = vpack.c.b16 %v1359, %v1358
        %v1374 = vpack.c.b16 %v1361, %v1360
        %v1375 = vpack.c.b16 %v1363, %v1362
        %v1376 = vpack.c.b16 %v1365, %v1364
        %v1377 = vpack.c.b16 %v1367, %v1366
        %v1378 = vpack.c.b16 %v1369, %v1368
        %v1379 = vpack.c.b16 %v1371, %v1370
        %1388 = vmatpush.bf16.msra.mxu0 %v1379
        %1389 = vmatpush.bf16.msra.mxu0 %v1378
        %1390 = vmatpush.bf16.msra.mxu0 %v1377
        %1391 = vmatpush.bf16.msra.mxu0 %v1376
        %1392 = vmatpush.bf16.msra.mxu0 %v1375
        %1393 = vmatpush.bf16.msra.mxu0 %v1374
        %1394 = vmatpush.bf16.msra.mxu0 %v1373
        %1395 = vmatpush.bf16.msra.mxu0 %v1372
        %1396 = vmatmul.bf16.gmra.mxu0 %v1324
        %v1397 = vpop.f32.mrf.mxu0
        %v1398 = vadd.f32 0.0, %v1397
        %v1399 = vpop.f32.mrf.mxu0
        %v1400 = vadd.f32 0.0, %v1399
        %1401 = vmatmul.bf16.gmra.mxu0 %v1325
        %v1402 = vpop.f32.mrf.mxu0
        %v1403 = vadd.f32 0.0, %v1402
        %v1404 = vpop.f32.mrf.mxu0
        %v1405 = vadd.f32 0.0, %v1404
        %1406 = vmatmul.bf16.gmra.mxu0 %v1326
        %v1407 = vpop.f32.mrf.mxu0
        %v1408 = vadd.f32 0.0, %v1407
        %v1409 = vpop.f32.mrf.mxu0
        %v1410 = vadd.f32 0.0, %v1409
        %1411 = vmatmul.bf16.gmra.mxu0 %v1327
        %v1412 = vpop.f32.mrf.mxu0
        %v1413 = vadd.f32 0.0, %v1412
        %v1414 = vpop.f32.mrf.mxu0
        %v1415 = vadd.f32 0.0, %v1414
        %1416 = vmatmul.bf16.gmra.mxu0 %v1328
        %v1417 = vpop.f32.mrf.mxu0
        %v1418 = vadd.f32 0.0, %v1417
        %v1419 = vpop.f32.mrf.mxu0
        %v1420 = vadd.f32 0.0, %v1419
        %1421 = vmatmul.bf16.gmra.mxu0 %v1329
        %v1422 = vpop.f32.mrf.mxu0
        %v1423 = vadd.f32 0.0, %v1422
        %v1424 = vpop.f32.mrf.mxu0
        %v1425 = vadd.f32 0.0, %v1424
        %1426 = vmatmul.bf16.gmra.mxu0 %v1330
        %v1427 = vpop.f32.mrf.mxu0
        %v1428 = vadd.f32 0.0, %v1427
        %v1429 = vpop.f32.mrf.mxu0
        %v1430 = vadd.f32 0.0, %v1429
        %1431 = vmatmul.bf16.gmra.mxu0 %v1331
        %v1432 = vpop.f32.mrf.mxu0
        %v1433 = vadd.f32 0.0, %v1432
        %v1434 = vpop.f32.mrf.mxu0
        %v1435 = vadd.f32 0.0, %v1434
        %1436 = vdwg.mxu0
        %v1437 = vadd.f32 %v1273, %v1398
        %v1438 = vadd.f32 %v1274, %v1400
        %v1439 = vadd.f32 %v1275, %v1403
        %v1440 = vadd.f32 %v1276, %v1405
        %v1441 = vadd.f32 %v1277, %v1408
        %v1442 = vadd.f32 %v1278, %v1410
        %v1443 = vadd.f32 %v1279, %v1413
        %v1444 = vadd.f32 %v1280, %v1415
        %v1445 = vadd.f32 %v1281, %v1418
        %v1446 = vadd.f32 %v1282, %v1420
        %v1447 = vadd.f32 %v1283, %v1423
        %v1448 = vadd.f32 %v1284, %v1425
        %v1449 = vadd.f32 %v1285, %v1428
        %v1450 = vadd.f32 %v1286, %v1430
        %v1451 = vadd.f32 %v1287, %v1433
        %v1452 = vadd.f32 %v1288, %v1435
        %1453 = vst [vmem:[#allocation4] sm:$0xff] %v1437
        %1454 = vst [vmem:[#allocation4 + $0x8] sm:$0xff] %v1438
        %1455 = vst [vmem:[#allocation4 + $0x10] sm:$0xff] %v1439
        %1456 = vst [vmem:[#allocation4 + $0x18] sm:$0xff] %v1440
        %1457 = vst [vmem:[#allocation4 + $0x20] sm:$0xff] %v1441
        %1458 = vst [vmem:[#allocation4 + $0x28] sm:$0xff] %v1442
        %1459 = vst [vmem:[#allocation4 + $0x30] sm:$0xff] %v1443
        %1460 = vst [vmem:[#allocation4 + $0x38] sm:$0xff] %v1444
        %1461 = vst [vmem:[#allocation4 + $0x40] sm:$0xff] %v1445
        %1462 = vst [vmem:[#allocation4 + $0x48] sm:$0xff] %v1446
        %1463 = vst [vmem:[#allocation4 + $0x50] sm:$0xff] %v1447
        %1464 = vst [vmem:[#allocation4 + $0x58] sm:$0xff] %v1448
        %1465 = vst [vmem:[#allocation4 + $0x60] sm:$0xff] %v1449
        %1466 = vst [vmem:[#allocation4 + $0x68] sm:$0xff] %v1450
        %1467 = vst [vmem:[#allocation4 + $0x70] sm:$0xff] %v1451
        %1468 = vst [vmem:[#allocation4 + $0x78] sm:$0xff] %v1452
        %s1469 = scalar_lea.vmem %s267, 48 [#allocation2]
        %v1470 = vld [vmem:[%s1469] sm:$0xe]
        %v1471 = vld [vmem:[%s1469 + $0x4] sm:$0xf]
        %v1472 = vld [vmem:[%s1469 + $0x8] sm:$0x3]
        %v1473 = vld [vmem:[%s1469 + $0xc] sm:$0xe]
        %v1474 = vld [vmem:[%s1469 + $0x10] sm:$0xf]
        %v1475 = vld [vmem:[%s1469 + $0x14] sm:$0x3]
        %v1476 = vld [vmem:[%s1469 + $0x18] sm:$0xe]
        %v1477 = vld [vmem:[%s1469 + $0x1c] sm:$0xf]
        %v1478 = vld [vmem:[%s1469 + $0x20] sm:$0x3]
        %v1479 = vld [vmem:[%s1469 + $0x24] sm:$0xe]
        %v1480 = vld [vmem:[%s1469 + $0x28] sm:$0xf]
        %v1481 = vld [vmem:[%s1469 + $0x2c] sm:$0x3]
        %v1482 = vld [vmem:[%s1469 + $0x30] sm:$0xe]
        %v1483 = vld [vmem:[%s1469 + $0x34] sm:$0xf]
        %v1484 = vld [vmem:[%s1469 + $0x38] sm:$0x3]
        %v1485 = vld [vmem:[%s1469 + $0x3c] sm:$0xe]
        %v1486 = vld [vmem:[%s1469 + $0x40] sm:$0xf]
        %v1487 = vld [vmem:[%s1469 + $0x44] sm:$0x3]
        %v1488 = vld [vmem:[%s1469 + $0x48] sm:$0xe]
        %v1489 = vld [vmem:[%s1469 + $0x4c] sm:$0xf]
        %v1490 = vld [vmem:[%s1469 + $0x50] sm:$0x3]
        %v1491 = vld [vmem:[%s1469 + $0x54] sm:$0xe]
        %v1492 = vld [vmem:[%s1469 + $0x58] sm:$0xf]
        %v1493 = vld [vmem:[%s1469 + $0x5c] sm:$0x3]
        %v1495 = vshrl.u32 %v1470, 16
        %v1497 = vrot.slane %v1495, 5
        %v1498 = vshll.u32 %v1470, 16
        %v1500 = vrot.slane %v1498, 6
        %v1501 = vor.u32 %v1497, %v1500
        %v1502 = vrot.slane %v1501, 4
        %v1504 = vshrl.u32 %v1471, 16
        %v1506 = vrot.slane %v1504, 5
        %v1507 = vshll.u32 %v1471, 16
        %v1509 = vrot.slane %v1507, 6
        %v1510 = vor.u32 %v1506, %v1509
        %v1511 = vsel %vm295, %v1502, %v1510
        %v1512 = vrot.slane %v1510, 4
        %v1514 = vshrl.u32 %v1472, 16
        %v1516 = vrot.slane %v1514, 5
        %v1517 = vshll.u32 %v1472, 16
        %v1519 = vrot.slane %v1517, 6
        %v1520 = vor.u32 %v1516, %v1519
        %v1521 = vsel %vm295, %v1512, %v1520
        %v1523 = vshrl.u32 %v1473, 16
        %v1525 = vrot.slane %v1523, 5
        %v1526 = vshll.u32 %v1473, 16
        %v1528 = vrot.slane %v1526, 6
        %v1529 = vor.u32 %v1525, %v1528
        %v1530 = vrot.slane %v1529, 4
        %v1532 = vshrl.u32 %v1474, 16
        %v1534 = vrot.slane %v1532, 5
        %v1535 = vshll.u32 %v1474, 16
        %v1537 = vrot.slane %v1535, 6
        %v1538 = vor.u32 %v1534, %v1537
        %v1539 = vsel %vm295, %v1530, %v1538
        %v1540 = vrot.slane %v1538, 4
        %v1542 = vshrl.u32 %v1475, 16
        %v1544 = vrot.slane %v1542, 5
        %v1545 = vshll.u32 %v1475, 16
        %v1547 = vrot.slane %v1545, 6
        %v1548 = vor.u32 %v1544, %v1547
        %v1549 = vsel %vm295, %v1540, %v1548
        %v1551 = vshrl.u32 %v1476, 16
        %v1553 = vrot.slane %v1551, 5
        %v1554 = vshll.u32 %v1476, 16
        %v1556 = vrot.slane %v1554, 6
        %v1557 = vor.u32 %v1553, %v1556
        %v1558 = vrot.slane %v1557, 4
        %v1560 = vshrl.u32 %v1477, 16
        %v1562 = vrot.slane %v1560, 5
        %v1563 = vshll.u32 %v1477, 16
        %v1565 = vrot.slane %v1563, 6
        %v1566 = vor.u32 %v1562, %v1565
        %v1567 = vsel %vm295, %v1558, %v1566
        %v1568 = vrot.slane %v1566, 4
        %v1570 = vshrl.u32 %v1478, 16
        %v1572 = vrot.slane %v1570, 5
        %v1573 = vshll.u32 %v1478, 16
        %v1575 = vrot.slane %v1573, 6
        %v1576 = vor.u32 %v1572, %v1575
        %v1577 = vsel %vm295, %v1568, %v1576
        %v1579 = vshrl.u32 %v1479, 16
        %v1581 = vrot.slane %v1579, 5
        %v1582 = vshll.u32 %v1479, 16
        %v1584 = vrot.slane %v1582, 6
        %v1585 = vor.u32 %v1581, %v1584
        %v1586 = vrot.slane %v1585, 4
        %v1588 = vshrl.u32 %v1480, 16
        %v1590 = vrot.slane %v1588, 5
        %v1591 = vshll.u32 %v1480, 16
        %v1593 = vrot.slane %v1591, 6
        %v1594 = vor.u32 %v1590, %v1593
        %v1595 = vsel %vm295, %v1586, %v1594
        %v1596 = vrot.slane %v1594, 4
        %v1598 = vshrl.u32 %v1481, 16
        %v1600 = vrot.slane %v1598, 5
        %v1601 = vshll.u32 %v1481, 16
        %v1603 = vrot.slane %v1601, 6
        %v1604 = vor.u32 %v1600, %v1603
        %v1605 = vsel %vm295, %v1596, %v1604
        %v1607 = vshrl.u32 %v1482, 16
        %v1609 = vrot.slane %v1607, 5
        %v1610 = vshll.u32 %v1482, 16
        %v1612 = vrot.slane %v1610, 6
        %v1613 = vor.u32 %v1609, %v1612
        %v1614 = vrot.slane %v1613, 4
        %v1616 = vshrl.u32 %v1483, 16
        %v1618 = vrot.slane %v1616, 5
        %v1619 = vshll.u32 %v1483, 16
        %v1621 = vrot.slane %v1619, 6
        %v1622 = vor.u32 %v1618, %v1621
        %v1623 = vsel %vm295, %v1614, %v1622
        %v1624 = vrot.slane %v1622, 4
        %v1626 = vshrl.u32 %v1484, 16
        %v1628 = vrot.slane %v1626, 5
        %v1629 = vshll.u32 %v1484, 16
        %v1631 = vrot.slane %v1629, 6
        %v1632 = vor.u32 %v1628, %v1631
        %v1633 = vsel %vm295, %v1624, %v1632
        %v1635 = vshrl.u32 %v1485, 16
        %v1637 = vrot.slane %v1635, 5
        %v1638 = vshll.u32 %v1485, 16
        %v1640 = vrot.slane %v1638, 6
        %v1641 = vor.u32 %v1637, %v1640
        %v1642 = vrot.slane %v1641, 4
        %v1644 = vshrl.u32 %v1486, 16
        %v1646 = vrot.slane %v1644, 5
        %v1647 = vshll.u32 %v1486, 16
        %v1649 = vrot.slane %v1647, 6
        %v1650 = vor.u32 %v1646, %v1649
        %v1651 = vsel %vm295, %v1642, %v1650
        %v1652 = vrot.slane %v1650, 4
        %v1654 = vshrl.u32 %v1487, 16
        %v1656 = vrot.slane %v1654, 5
        %v1657 = vshll.u32 %v1487, 16
        %v1659 = vrot.slane %v1657, 6
        %v1660 = vor.u32 %v1656, %v1659
        %v1661 = vsel %vm295, %v1652, %v1660
        %v1663 = vshrl.u32 %v1488, 16
        %v1665 = vrot.slane %v1663, 5
        %v1666 = vshll.u32 %v1488, 16
        %v1668 = vrot.slane %v1666, 6
        %v1669 = vor.u32 %v1665, %v1668
        %v1670 = vrot.slane %v1669, 4
        %v1672 = vshrl.u32 %v1489, 16
        %v1674 = vrot.slane %v1672, 5
        %v1675 = vshll.u32 %v1489, 16
        %v1677 = vrot.slane %v1675, 6
        %v1678 = vor.u32 %v1674, %v1677
        %v1679 = vsel %vm295, %v1670, %v1678
        %v1680 = vrot.slane %v1678, 4
        %v1682 = vshrl.u32 %v1490, 16
        %v1684 = vrot.slane %v1682, 5
        %v1685 = vshll.u32 %v1490, 16
        %v1687 = vrot.slane %v1685, 6
        %v1688 = vor.u32 %v1684, %v1687
        %v1689 = vsel %vm295, %v1680, %v1688
        %v1691 = vshrl.u32 %v1491, 16
        %v1693 = vrot.slane %v1691, 5
        %v1694 = vshll.u32 %v1491, 16
        %v1696 = vrot.slane %v1694, 6
        %v1697 = vor.u32 %v1693, %v1696
        %v1698 = vrot.slane %v1697, 4
        %v1700 = vshrl.u32 %v1492, 16
        %v1702 = vrot.slane %v1700, 5
        %v1703 = vshll.u32 %v1492, 16
        %v1705 = vrot.slane %v1703, 6
        %v1706 = vor.u32 %v1702, %v1705
        %v1707 = vsel %vm295, %v1698, %v1706
        %v1708 = vrot.slane %v1706, 4
        %v1710 = vshrl.u32 %v1493, 16
        %v1712 = vrot.slane %v1710, 5
        %v1713 = vshll.u32 %v1493, 16
        %v1715 = vrot.slane %v1713, 6
        %v1716 = vor.u32 %v1712, %v1715
        %v1717 = vsel %vm295, %v1708, %v1716
        %s1718 = sadd.s32 %s520, 3
        %v1719 = vld [vmem:[#allocation4] sm:$0xff]
        %v1720 = vld [vmem:[#allocation4 + $0x8] sm:$0xff]
        %v1721 = vld [vmem:[#allocation4 + $0x10] sm:$0xff]
        %v1722 = vld [vmem:[#allocation4 + $0x18] sm:$0xff]
        %v1723 = vld [vmem:[#allocation4 + $0x20] sm:$0xff]
        %v1724 = vld [vmem:[#allocation4 + $0x28] sm:$0xff]
        %v1725 = vld [vmem:[#allocation4 + $0x30] sm:$0xff]
        %v1726 = vld [vmem:[#allocation4 + $0x38] sm:$0xff]
        %v1727 = vld [vmem:[#allocation4 + $0x40] sm:$0xff]
        %v1728 = vld [vmem:[#allocation4 + $0x48] sm:$0xff]
        %v1729 = vld [vmem:[#allocation4 + $0x50] sm:$0xff]
        %v1730 = vld [vmem:[#allocation4 + $0x58] sm:$0xff]
        %v1731 = vld [vmem:[#allocation4 + $0x60] sm:$0xff]
        %v1732 = vld [vmem:[#allocation4 + $0x68] sm:$0xff]
        %v1733 = vld [vmem:[#allocation4 + $0x70] sm:$0xff]
        %v1734 = vld [vmem:[#allocation4 + $0x78] sm:$0xff]
        %s1735 = smul.u32 %s1718, 16
        %s1736 = smul.addr %s1735, 4
        %s1737 = scalar_lea.vmem [#allocation5], %s1736
        %v1738 = vld [vmem:[%s1737] sm:$0xf]
        %v1739 = vld [vmem:[%s1737 + $0x4] sm:$0xf]
        %v1740 = vld [vmem:[%s1737 + $0x8] sm:$0xf]
        %v1741 = vld [vmem:[%s1737 + $0xc] sm:$0xf]
        %v1742 = vld [vmem:[%s1737 + $0x10] sm:$0xf]
        %v1743 = vld [vmem:[%s1737 + $0x14] sm:$0xf]
        %v1744 = vld [vmem:[%s1737 + $0x18] sm:$0xf]
        %v1745 = vld [vmem:[%s1737 + $0x1c] sm:$0xf]
        %v1746 = vld [vmem:[%s1737 + $0x20] sm:$0xf]
        %v1747 = vld [vmem:[%s1737 + $0x24] sm:$0xf]
        %v1748 = vld [vmem:[%s1737 + $0x28] sm:$0xf]
        %v1749 = vld [vmem:[%s1737 + $0x2c] sm:$0xf]
        %v1750 = vld [vmem:[%s1737 + $0x30] sm:$0xf]
        %v1751 = vld [vmem:[%s1737 + $0x34] sm:$0xf]
        %v1752 = vld [vmem:[%s1737 + $0x38] sm:$0xf]
        %v1753 = vld [vmem:[%s1737 + $0x3c] sm:$0xf]
        %v1754 = vunpack.c.l.b16 %v1511
        %v1755 = vunpack.c.l.b16 %v1521
        %v1756 = vunpack.c.l.b16 %v1539
        %v1757 = vunpack.c.l.b16 %v1549
        %v1758 = vunpack.c.l.b16 %v1567
        %v1759 = vunpack.c.l.b16 %v1577
        %v1760 = vunpack.c.l.b16 %v1595
        %v1761 = vunpack.c.l.b16 %v1605
        %v1762 = vunpack.c.l.b16 %v1623
        %v1763 = vunpack.c.l.b16 %v1633
        %v1764 = vunpack.c.l.b16 %v1651
        %v1765 = vunpack.c.l.b16 %v1661
        %v1766 = vunpack.c.l.b16 %v1679
        %v1767 = vunpack.c.l.b16 %v1689
        %v1768 = vunpack.c.l.b16 %v1707
        %v1769 = vunpack.c.l.b16 %v1717
        %v1770 = vpack.c.b16 %v1755, %v1754
        %v1771 = vpack.c.b16 %v1757, %v1756
        %v1772 = vpack.c.b16 %v1759, %v1758
        %v1773 = vpack.c.b16 %v1761, %v1760
        %v1774 = vpack.c.b16 %v1763, %v1762
        %v1775 = vpack.c.b16 %v1765, %v1764
        %v1776 = vpack.c.b16 %v1767, %v1766
        %v1777 = vpack.c.b16 %v1769, %v1768
        %v1802 = vunpack.c.l.b16 %v1738
        %v1803 = vunpack.c.l.b16 %v1739
        %v1804 = vunpack.c.l.b16 %v1740
        %v1805 = vunpack.c.l.b16 %v1741
        %v1806 = vunpack.c.l.b16 %v1742
        %v1807 = vunpack.c.l.b16 %v1743
        %v1808 = vunpack.c.l.b16 %v1744
        %v1809 = vunpack.c.l.b16 %v1745
        %v1810 = vunpack.c.l.b16 %v1746
        %v1811 = vunpack.c.l.b16 %v1747
        %v1812 = vunpack.c.l.b16 %v1748
        %v1813 = vunpack.c.l.b16 %v1749
        %v1814 = vunpack.c.l.b16 %v1750
        %v1815 = vunpack.c.l.b16 %v1751
        %v1816 = vunpack.c.l.b16 %v1752
        %v1817 = vunpack.c.l.b16 %v1753
        %v1818 = vpack.c.b16 %v1803, %v1802
        %v1819 = vpack.c.b16 %v1805, %v1804
        %v1820 = vpack.c.b16 %v1807, %v1806
        %v1821 = vpack.c.b16 %v1809, %v1808
        %v1822 = vpack.c.b16 %v1811, %v1810
        %v1823 = vpack.c.b16 %v1813, %v1812
        %v1824 = vpack.c.b16 %v1815, %v1814
        %v1825 = vpack.c.b16 %v1817, %v1816
        %1834 = vmatpush.bf16.msra.mxu0 %v1825
        %1835 = vmatpush.bf16.msra.mxu0 %v1824
        %1836 = vmatpush.bf16.msra.mxu0 %v1823
        %1837 = vmatpush.bf16.msra.mxu0 %v1822
        %1838 = vmatpush.bf16.msra.mxu0 %v1821
        %1839 = vmatpush.bf16.msra.mxu0 %v1820
        %1840 = vmatpush.bf16.msra.mxu0 %v1819
        %1841 = vmatpush.bf16.msra.mxu0 %v1818
        %1842 = vmatmul.bf16.gmra.mxu0 %v1770
        %v1843 = vpop.f32.mrf.mxu0
        %v1844 = vadd.f32 0.0, %v1843
        %v1845 = vpop.f32.mrf.mxu0
        %v1846 = vadd.f32 0.0, %v1845
        %1847 = vmatmul.bf16.gmra.mxu0 %v1771
        %v1848 = vpop.f32.mrf.mxu0
        %v1849 = vadd.f32 0.0, %v1848
        %v1850 = vpop.f32.mrf.mxu0
        %v1851 = vadd.f32 0.0, %v1850
        %1852 = vmatmul.bf16.gmra.mxu0 %v1772
        %v1853 = vpop.f32.mrf.mxu0
        %v1854 = vadd.f32 0.0, %v1853
        %v1855 = vpop.f32.mrf.mxu0
        %v1856 = vadd.f32 0.0, %v1855
        %1857 = vmatmul.bf16.gmra.mxu0 %v1773
        %v1858 = vpop.f32.mrf.mxu0
        %v1859 = vadd.f32 0.0, %v1858
        %v1860 = vpop.f32.mrf.mxu0
        %v1861 = vadd.f32 0.0, %v1860
        %1862 = vmatmul.bf16.gmra.mxu0 %v1774
        %v1863 = vpop.f32.mrf.mxu0
        %v1864 = vadd.f32 0.0, %v1863
        %v1865 = vpop.f32.mrf.mxu0
        %v1866 = vadd.f32 0.0, %v1865
        %1867 = vmatmul.bf16.gmra.mxu0 %v1775
        %v1868 = vpop.f32.mrf.mxu0
        %v1869 = vadd.f32 0.0, %v1868
        %v1870 = vpop.f32.mrf.mxu0
        %v1871 = vadd.f32 0.0, %v1870
        %1872 = vmatmul.bf16.gmra.mxu0 %v1776
        %v1873 = vpop.f32.mrf.mxu0
        %v1874 = vadd.f32 0.0, %v1873
        %v1875 = vpop.f32.mrf.mxu0
        %v1876 = vadd.f32 0.0, %v1875
        %1877 = vmatmul.bf16.gmra.mxu0 %v1777
        %v1878 = vpop.f32.mrf.mxu0
        %v1879 = vadd.f32 0.0, %v1878
        %v1880 = vpop.f32.mrf.mxu0
        %v1881 = vadd.f32 0.0, %v1880
        %1882 = vdwg.mxu0
        %v1883 = vadd.f32 %v1719, %v1844
        %v1884 = vadd.f32 %v1720, %v1846
        %v1885 = vadd.f32 %v1721, %v1849
        %v1886 = vadd.f32 %v1722, %v1851
        %v1887 = vadd.f32 %v1723, %v1854
        %v1888 = vadd.f32 %v1724, %v1856
        %v1889 = vadd.f32 %v1725, %v1859
        %v1890 = vadd.f32 %v1726, %v1861
        %v1891 = vadd.f32 %v1727, %v1864
        %v1892 = vadd.f32 %v1728, %v1866
        %v1893 = vadd.f32 %v1729, %v1869
        %v1894 = vadd.f32 %v1730, %v1871
        %v1895 = vadd.f32 %v1731, %v1874
        %v1896 = vadd.f32 %v1732, %v1876
        %v1897 = vadd.f32 %v1733, %v1879
        %v1898 = vadd.f32 %v1734, %v1881
        %1899 = vst [vmem:[#allocation4] sm:$0xff] %v1883
        %1900 = vst [vmem:[#allocation4 + $0x8] sm:$0xff] %v1884
        %1901 = vst [vmem:[#allocation4 + $0x10] sm:$0xff] %v1885
        %1902 = vst [vmem:[#allocation4 + $0x18] sm:$0xff] %v1886
        %1903 = vst [vmem:[#allocation4 + $0x20] sm:$0xff] %v1887
        %1904 = vst [vmem:[#allocation4 + $0x28] sm:$0xff] %v1888
        %1905 = vst [vmem:[#allocation4 + $0x30] sm:$0xff] %v1889
        %1906 = vst [vmem:[#allocation4 + $0x38] sm:$0xff] %v1890
        %1907 = vst [vmem:[#allocation4 + $0x40] sm:$0xff] %v1891
        %1908 = vst [vmem:[#allocation4 + $0x48] sm:$0xff] %v1892
        %1909 = vst [vmem:[#allocation4 + $0x50] sm:$0xff] %v1893
        %1910 = vst [vmem:[#allocation4 + $0x58] sm:$0xff] %v1894
        %1911 = vst [vmem:[#allocation4 + $0x60] sm:$0xff] %v1895
        %1912 = vst [vmem:[#allocation4 + $0x68] sm:$0xff] %v1896
        %1913 = vst [vmem:[#allocation4 + $0x70] sm:$0xff] %v1897
        %1914 = vst [vmem:[#allocation4 + $0x78] sm:$0xff] %v1898
        %v1915 = vld [vmem:[%s1469] sm:$0xc]
        %v1916 = vld [vmem:[%s1469 + $0x4] sm:$0xf]
        %v1917 = vld [vmem:[%s1469 + $0x8] sm:$0x3]
        %v1918 = vld [vmem:[%s1469 + $0xc] sm:$0xc]
        %v1919 = vld [vmem:[%s1469 + $0x10] sm:$0xf]
        %v1920 = vld [vmem:[%s1469 + $0x14] sm:$0x3]
        %v1921 = vld [vmem:[%s1469 + $0x18] sm:$0xc]
        %v1922 = vld [vmem:[%s1469 + $0x1c] sm:$0xf]
        %v1923 = vld [vmem:[%s1469 + $0x20] sm:$0x3]
        %v1924 = vld [vmem:[%s1469 + $0x24] sm:$0xc]
        %v1925 = vld [vmem:[%s1469 + $0x28] sm:$0xf]
        %v1926 = vld [vmem:[%s1469 + $0x2c] sm:$0x3]
        %v1927 = vld [vmem:[%s1469 + $0x30] sm:$0xc]
        %v1928 = vld [vmem:[%s1469 + $0x34] sm:$0xf]
        %v1929 = vld [vmem:[%s1469 + $0x38] sm:$0x3]
        %v1930 = vld [vmem:[%s1469 + $0x3c] sm:$0xc]
        %v1931 = vld [vmem:[%s1469 + $0x40] sm:$0xf]
        %v1932 = vld [vmem:[%s1469 + $0x44] sm:$0x3]
        %v1933 = vld [vmem:[%s1469 + $0x48] sm:$0xc]
        %v1934 = vld [vmem:[%s1469 + $0x4c] sm:$0xf]
        %v1935 = vld [vmem:[%s1469 + $0x50] sm:$0x3]
        %v1936 = vld [vmem:[%s1469 + $0x54] sm:$0xc]
        %v1937 = vld [vmem:[%s1469 + $0x58] sm:$0xf]
        %v1938 = vld [vmem:[%s1469 + $0x5c] sm:$0x3]
        %v1963 = vrot.slane %v1915, 6
        %v1964 = vrot.slane %v1963, 4
        %v1965 = vrot.slane %v1916, 6
        %v1966 = vsel %vm767, %v1964, %v1965
        %v1967 = vrot.slane %v1965, 4
        %v1968 = vrot.slane %v1917, 6
        %v1969 = vsel %vm767, %v1967, %v1968
        %v1970 = vrot.slane %v1918, 6
        %v1971 = vrot.slane %v1970, 4
        %v1972 = vrot.slane %v1919, 6
        %v1973 = vsel %vm767, %v1971, %v1972
        %v1974 = vrot.slane %v1972, 4
        %v1975 = vrot.slane %v1920, 6
        %v1976 = vsel %vm767, %v1974, %v1975
        %v1977 = vrot.slane %v1921, 6
        %v1978 = vrot.slane %v1977, 4
        %v1979 = vrot.slane %v1922, 6
        %v1980 = vsel %vm767, %v1978, %v1979
        %v1981 = vrot.slane %v1979, 4
        %v1982 = vrot.slane %v1923, 6
        %v1983 = vsel %vm767, %v1981, %v1982
        %v1984 = vrot.slane %v1924, 6
        %v1985 = vrot.slane %v1984, 4
        %v1986 = vrot.slane %v1925, 6
        %v1987 = vsel %vm767, %v1985, %v1986
        %v1988 = vrot.slane %v1986, 4
        %v1989 = vrot.slane %v1926, 6
        %v1990 = vsel %vm767, %v1988, %v1989
        %v1991 = vrot.slane %v1927, 6
        %v1992 = vrot.slane %v1991, 4
        %v1993 = vrot.slane %v1928, 6
        %v1994 = vsel %vm767, %v1992, %v1993
        %v1995 = vrot.slane %v1993, 4
        %v1996 = vrot.slane %v1929, 6
        %v1997 = vsel %vm767, %v1995, %v1996
        %v1998 = vrot.slane %v1930, 6
        %v1999 = vrot.slane %v1998, 4
        %v2000 = vrot.slane %v1931, 6
        %v2001 = vsel %vm767, %v1999, %v2000
        %v2002 = vrot.slane %v2000, 4
        %v2003 = vrot.slane %v1932, 6
        %v2004 = vsel %vm767, %v2002, %v2003
        %v2005 = vrot.slane %v1933, 6
        %v2006 = vrot.slane %v2005, 4
        %v2007 = vrot.slane %v1934, 6
        %v2008 = vsel %vm767, %v2006, %v2007
        %v2009 = vrot.slane %v2007, 4
        %v2010 = vrot.slane %v1935, 6
        %v2011 = vsel %vm767, %v2009, %v2010
        %v2012 = vrot.slane %v1936, 6
        %v2013 = vrot.slane %v2012, 4
        %v2014 = vrot.slane %v1937, 6
        %v2015 = vsel %vm767, %v2013, %v2014
        %v2016 = vrot.slane %v2014, 4
        %v2017 = vrot.slane %v1938, 6
        %v2018 = vsel %vm767, %v2016, %v2017
        %s2019 = sadd.s32 %s520, 4
        %v2020 = vld [vmem:[#allocation4] sm:$0xff]
        %v2021 = vld [vmem:[#allocation4 + $0x8] sm:$0xff]
        %v2022 = vld [vmem:[#allocation4 + $0x10] sm:$0xff]
        %v2023 = vld [vmem:[#allocation4 + $0x18] sm:$0xff]
        %v2024 = vld [vmem:[#allocation4 + $0x20] sm:$0xff]
        %v2025 = vld [vmem:[#allocation4 + $0x28] sm:$0xff]
        %v2026 = vld [vmem:[#allocation4 + $0x30] sm:$0xff]
        %v2027 = vld [vmem:[#allocation4 + $0x38] sm:$0xff]
        %v2028 = vld [vmem:[#allocation4 + $0x40] sm:$0xff]
        %v2029 = vld [vmem:[#allocation4 + $0x48] sm:$0xff]
        %v2030 = vld [vmem:[#allocation4 + $0x50] sm:$0xff]
        %v2031 = vld [vmem:[#allocation4 + $0x58] sm:$0xff]
        %v2032 = vld [vmem:[#allocation4 + $0x60] sm:$0xff]
        %v2033 = vld [vmem:[#allocation4 + $0x68] sm:$0xff]
        %v2034 = vld [vmem:[#allocation4 + $0x70] sm:$0xff]
        %v2035 = vld [vmem:[#allocation4 + $0x78] sm:$0xff]
        %s2036 = smul.u32 %s2019, 16
        %s2037 = smul.addr %s2036, 4
        %s2038 = scalar_lea.vmem [#allocation5], %s2037
        %v2039 = vld [vmem:[%s2038] sm:$0xf]
        %v2040 = vld [vmem:[%s2038 + $0x4] sm:$0xf]
        %v2041 = vld [vmem:[%s2038 + $0x8] sm:$0xf]
        %v2042 = vld [vmem:[%s2038 + $0xc] sm:$0xf]
        %v2043 = vld [vmem:[%s2038 + $0x10] sm:$0xf]
        %v2044 = vld [vmem:[%s2038 + $0x14] sm:$0xf]
        %v2045 = vld [vmem:[%s2038 + $0x18] sm:$0xf]
        %v2046 = vld [vmem:[%s2038 + $0x1c] sm:$0xf]
        %v2047 = vld [vmem:[%s2038 + $0x20] sm:$0xf]
        %v2048 = vld [vmem:[%s2038 + $0x24] sm:$0xf]
        %v2049 = vld [vmem:[%s2038 + $0x28] sm:$0xf]
        %v2050 = vld [vmem:[%s2038 + $0x2c] sm:$0xf]
        %v2051 = vld [vmem:[%s2038 + $0x30] sm:$0xf]
        %v2052 = vld [vmem:[%s2038 + $0x34] sm:$0xf]
        %v2053 = vld [vmem:[%s2038 + $0x38] sm:$0xf]
        %v2054 = vld [vmem:[%s2038 + $0x3c] sm:$0xf]
        %v2055 = vunpack.c.l.b16 %v1966
        %v2056 = vunpack.c.l.b16 %v1969
        %v2057 = vunpack.c.l.b16 %v1973
        %v2058 = vunpack.c.l.b16 %v1976
        %v2059 = vunpack.c.l.b16 %v1980
        %v2060 = vunpack.c.l.b16 %v1983
        %v2061 = vunpack.c.l.b16 %v1987
        %v2062 = vunpack.c.l.b16 %v1990
        %v2063 = vunpack.c.l.b16 %v1994
        %v2064 = vunpack.c.l.b16 %v1997
        %v2065 = vunpack.c.l.b16 %v2001
        %v2066 = vunpack.c.l.b16 %v2004
        %v2067 = vunpack.c.l.b16 %v2008
        %v2068 = vunpack.c.l.b16 %v2011
        %v2069 = vunpack.c.l.b16 %v2015
        %v2070 = vunpack.c.l.b16 %v2018
        %v2071 = vpack.c.b16 %v2056, %v2055
        %v2072 = vpack.c.b16 %v2058, %v2057
        %v2073 = vpack.c.b16 %v2060, %v2059
        %v2074 = vpack.c.b16 %v2062, %v2061
        %v2075 = vpack.c.b16 %v2064, %v2063
        %v2076 = vpack.c.b16 %v2066, %v2065
        %v2077 = vpack.c.b16 %v2068, %v2067
        %v2078 = vpack.c.b16 %v2070, %v2069
        %v2103 = vunpack.c.l.b16 %v2039
        %v2104 = vunpack.c.l.b16 %v2040
        %v2105 = vunpack.c.l.b16 %v2041
        %v2106 = vunpack.c.l.b16 %v2042
        %v2107 = vunpack.c.l.b16 %v2043
        %v2108 = vunpack.c.l.b16 %v2044
        %v2109 = vunpack.c.l.b16 %v2045
        %v2110 = vunpack.c.l.b16 %v2046
        %v2111 = vunpack.c.l.b16 %v2047
        %v2112 = vunpack.c.l.b16 %v2048
        %v2113 = vunpack.c.l.b16 %v2049
        %v2114 = vunpack.c.l.b16 %v2050
        %v2115 = vunpack.c.l.b16 %v2051
        %v2116 = vunpack.c.l.b16 %v2052
        %v2117 = vunpack.c.l.b16 %v2053
        %v2118 = vunpack.c.l.b16 %v2054
        %v2119 = vpack.c.b16 %v2104, %v2103
        %v2120 = vpack.c.b16 %v2106, %v2105
        %v2121 = vpack.c.b16 %v2108, %v2107
        %v2122 = vpack.c.b16 %v2110, %v2109
        %v2123 = vpack.c.b16 %v2112, %v2111
        %v2124 = vpack.c.b16 %v2114, %v2113
        %v2125 = vpack.c.b16 %v2116, %v2115
        %v2126 = vpack.c.b16 %v2118, %v2117
        %2135 = vmatpush.bf16.msra.mxu0 %v2126
        %2136 = vmatpush.bf16.msra.mxu0 %v2125
        %2137 = vmatpush.bf16.msra.mxu0 %v2124
        %2138 = vmatpush.bf16.msra.mxu0 %v2123
        %2139 = vmatpush.bf16.msra.mxu0 %v2122
        %2140 = vmatpush.bf16.msra.mxu0 %v2121
        %2141 = vmatpush.bf16.msra.mxu0 %v2120
        %2142 = vmatpush.bf16.msra.mxu0 %v2119
        %2143 = vmatmul.bf16.gmra.mxu0 %v2071
        %v2144 = vpop.f32.mrf.mxu0
        %v2145 = vadd.f32 0.0, %v2144
        %v2146 = vpop.f32.mrf.mxu0
        %v2147 = vadd.f32 0.0, %v2146
        %2148 = vmatmul.bf16.gmra.mxu0 %v2072
        %v2149 = vpop.f32.mrf.mxu0
        %v2150 = vadd.f32 0.0, %v2149
        %v2151 = vpop.f32.mrf.mxu0
        %v2152 = vadd.f32 0.0, %v2151
        %2153 = vmatmul.bf16.gmra.mxu0 %v2073
        %v2154 = vpop.f32.mrf.mxu0
        %v2155 = vadd.f32 0.0, %v2154
        %v2156 = vpop.f32.mrf.mxu0
        %v2157 = vadd.f32 0.0, %v2156
        %2158 = vmatmul.bf16.gmra.mxu0 %v2074
        %v2159 = vpop.f32.mrf.mxu0
        %v2160 = vadd.f32 0.0, %v2159
        %v2161 = vpop.f32.mrf.mxu0
        %v2162 = vadd.f32 0.0, %v2161
        %2163 = vmatmul.bf16.gmra.mxu0 %v2075
        %v2164 = vpop.f32.mrf.mxu0
        %v2165 = vadd.f32 0.0, %v2164
        %v2166 = vpop.f32.mrf.mxu0
        %v2167 = vadd.f32 0.0, %v2166
        %2168 = vmatmul.bf16.gmra.mxu0 %v2076
        %v2169 = vpop.f32.mrf.mxu0
        %v2170 = vadd.f32 0.0, %v2169
        %v2171 = vpop.f32.mrf.mxu0
        %v2172 = vadd.f32 0.0, %v2171
        %2173 = vmatmul.bf16.gmra.mxu0 %v2077
        %v2174 = vpop.f32.mrf.mxu0
        %v2175 = vadd.f32 0.0, %v2174
        %v2176 = vpop.f32.mrf.mxu0
        %v2177 = vadd.f32 0.0, %v2176
        %2178 = vmatmul.bf16.gmra.mxu0 %v2078
        %v2179 = vpop.f32.mrf.mxu0
        %v2180 = vadd.f32 0.0, %v2179
        %v2181 = vpop.f32.mrf.mxu0
        %v2182 = vadd.f32 0.0, %v2181
        %2183 = vdwg.mxu0
        %v2184 = vadd.f32 %v2020, %v2145
        %v2185 = vadd.f32 %v2021, %v2147
        %v2186 = vadd.f32 %v2022, %v2150
        %v2187 = vadd.f32 %v2023, %v2152
        %v2188 = vadd.f32 %v2024, %v2155
        %v2189 = vadd.f32 %v2025, %v2157
        %v2190 = vadd.f32 %v2026, %v2160
        %v2191 = vadd.f32 %v2027, %v2162
        %v2192 = vadd.f32 %v2028, %v2165
        %v2193 = vadd.f32 %v2029, %v2167
        %v2194 = vadd.f32 %v2030, %v2170
        %v2195 = vadd.f32 %v2031, %v2172
        %v2196 = vadd.f32 %v2032, %v2175
        %v2197 = vadd.f32 %v2033, %v2177
        %v2198 = vadd.f32 %v2034, %v2180
        %v2199 = vadd.f32 %v2035, %v2182
        %2200 = vst [vmem:[#allocation4] sm:$0xff] %v2184
        %2201 = vst [vmem:[#allocation4 + $0x8] sm:$0xff] %v2185
        %2202 = vst [vmem:[#allocation4 + $0x10] sm:$0xff] %v2186
        %2203 = vst [vmem:[#allocation4 + $0x18] sm:$0xff] %v2187
        %2204 = vst [vmem:[#allocation4 + $0x20] sm:$0xff] %v2188
        %2205 = vst [vmem:[#allocation4 + $0x28] sm:$0xff] %v2189
        %2206 = vst [vmem:[#allocation4 + $0x30] sm:$0xff] %v2190
        %2207 = vst [vmem:[#allocation4 + $0x38] sm:$0xff] %v2191
        %2208 = vst [vmem:[#allocation4 + $0x40] sm:$0xff] %v2192
        %2209 = vst [vmem:[#allocation4 + $0x48] sm:$0xff] %v2193
        %2210 = vst [vmem:[#allocation4 + $0x50] sm:$0xff] %v2194
        %2211 = vst [vmem:[#allocation4 + $0x58] sm:$0xff] %v2195
        %2212 = vst [vmem:[#allocation4 + $0x60] sm:$0xff] %v2196
        %2213 = vst [vmem:[#allocation4 + $0x68] sm:$0xff] %v2197
        %2214 = vst [vmem:[#allocation4 + $0x70] sm:$0xff] %v2198
        %2215 = vst [vmem:[#allocation4 + $0x78] sm:$0xff] %v2199
        %v2216 = vld [vmem:[%s1469] sm:$0xc]
        %v2217 = vld [vmem:[%s1469 + $0x4] sm:$0xf]
        %v2218 = vld [vmem:[%s1469 + $0x8] sm:$0x7]
        %v2219 = vld [vmem:[%s1469 + $0xc] sm:$0xc]
        %v2220 = vld [vmem:[%s1469 + $0x10] sm:$0xf]
        %v2221 = vld [vmem:[%s1469 + $0x14] sm:$0x7]
        %v2222 = vld [vmem:[%s1469 + $0x18] sm:$0xc]
        %v2223 = vld [vmem:[%s1469 + $0x1c] sm:$0xf]
        %v2224 = vld [vmem:[%s1469 + $0x20] sm:$0x7]
        %v2225 = vld [vmem:[%s1469 + $0x24] sm:$0xc]
        %v2226 = vld [vmem:[%s1469 + $0x28] sm:$0xf]
        %v2227 = vld [vmem:[%s1469 + $0x2c] sm:$0x7]
        %v2228 = vld [vmem:[%s1469 + $0x30] sm:$0xc]
        %v2229 = vld [vmem:[%s1469 + $0x34] sm:$0xf]
        %v2230 = vld [vmem:[%s1469 + $0x38] sm:$0x7]
        %v2231 = vld [vmem:[%s1469 + $0x3c] sm:$0xc]
        %v2232 = vld [vmem:[%s1469 + $0x40] sm:$0xf]
        %v2233 = vld [vmem:[%s1469 + $0x44] sm:$0x7]
        %v2234 = vld [vmem:[%s1469 + $0x48] sm:$0xc]
        %v2235 = vld [vmem:[%s1469 + $0x4c] sm:$0xf]
        %v2236 = vld [vmem:[%s1469 + $0x50] sm:$0x7]
        %v2237 = vld [vmem:[%s1469 + $0x54] sm:$0xc]
        %v2238 = vld [vmem:[%s1469 + $0x58] sm:$0xf]
        %v2239 = vld [vmem:[%s1469 + $0x5c] sm:$0x7]
        %v2241 = vshrl.u32 %v2216, 16
        %v2243 = vrot.slane %v2241, 6
        %v2244 = vshll.u32 %v2216, 16
        %v2246 = vrot.slane %v2244, 7
        %v2247 = vor.u32 %v2243, %v2246
        %v2248 = vrot.slane %v2247, 4
        %v2250 = vshrl.u32 %v2217, 16
        %v2252 = vrot.slane %v2250, 6
        %v2253 = vshll.u32 %v2217, 16
        %v2255 = vrot.slane %v2253, 7
        %v2256 = vor.u32 %v2252, %v2255
        %v2257 = vsel %vm1047, %v2248, %v2256
        %v2258 = vrot.slane %v2256, 4
        %v2260 = vshrl.u32 %v2218, 16
        %v2262 = vrot.slane %v2260, 6
        %v2263 = vshll.u32 %v2218, 16
        %v2265 = vrot.slane %v2263, 7
        %v2266 = vor.u32 %v2262, %v2265
        %v2267 = vsel %vm1047, %v2258, %v2266
        %v2269 = vshrl.u32 %v2219, 16
        %v2271 = vrot.slane %v2269, 6
        %v2272 = vshll.u32 %v2219, 16
        %v2274 = vrot.slane %v2272, 7
        %v2275 = vor.u32 %v2271, %v2274
        %v2276 = vrot.slane %v2275, 4
        %v2278 = vshrl.u32 %v2220, 16
        %v2280 = vrot.slane %v2278, 6
        %v2281 = vshll.u32 %v2220, 16
        %v2283 = vrot.slane %v2281, 7
        %v2284 = vor.u32 %v2280, %v2283
        %v2285 = vsel %vm1047, %v2276, %v2284
        %v2286 = vrot.slane %v2284, 4
        %v2288 = vshrl.u32 %v2221, 16
        %v2290 = vrot.slane %v2288, 6
        %v2291 = vshll.u32 %v2221, 16
        %v2293 = vrot.slane %v2291, 7
        %v2294 = vor.u32 %v2290, %v2293
        %v2295 = vsel %vm1047, %v2286, %v2294
        %v2297 = vshrl.u32 %v2222, 16
        %v2299 = vrot.slane %v2297, 6
        %v2300 = vshll.u32 %v2222, 16
        %v2302 = vrot.slane %v2300, 7
        %v2303 = vor.u32 %v2299, %v2302
        %v2304 = vrot.slane %v2303, 4
        %v2306 = vshrl.u32 %v2223, 16
        %v2308 = vrot.slane %v2306, 6
        %v2309 = vshll.u32 %v2223, 16
        %v2311 = vrot.slane %v2309, 7
        %v2312 = vor.u32 %v2308, %v2311
        %v2313 = vsel %vm1047, %v2304, %v2312
        %v2314 = vrot.slane %v2312, 4
        %v2316 = vshrl.u32 %v2224, 16
        %v2318 = vrot.slane %v2316, 6
        %v2319 = vshll.u32 %v2224, 16
        %v2321 = vrot.slane %v2319, 7
        %v2322 = vor.u32 %v2318, %v2321
        %v2323 = vsel %vm1047, %v2314, %v2322
        %v2325 = vshrl.u32 %v2225, 16
        %v2327 = vrot.slane %v2325, 6
        %v2328 = vshll.u32 %v2225, 16
        %v2330 = vrot.slane %v2328, 7
        %v2331 = vor.u32 %v2327, %v2330
        %v2332 = vrot.slane %v2331, 4
        %v2334 = vshrl.u32 %v2226, 16
        %v2336 = vrot.slane %v2334, 6
        %v2337 = vshll.u32 %v2226, 16
        %v2339 = vrot.slane %v2337, 7
        %v2340 = vor.u32 %v2336, %v2339
        %v2341 = vsel %vm1047, %v2332, %v2340
        %v2342 = vrot.slane %v2340, 4
        %v2344 = vshrl.u32 %v2227, 16
        %v2346 = vrot.slane %v2344, 6
        %v2347 = vshll.u32 %v2227, 16
        %v2349 = vrot.slane %v2347, 7
        %v2350 = vor.u32 %v2346, %v2349
        %v2351 = vsel %vm1047, %v2342, %v2350
        %v2353 = vshrl.u32 %v2228, 16
        %v2355 = vrot.slane %v2353, 6
        %v2356 = vshll.u32 %v2228, 16
        %v2358 = vrot.slane %v2356, 7
        %v2359 = vor.u32 %v2355, %v2358
        %v2360 = vrot.slane %v2359, 4
        %v2362 = vshrl.u32 %v2229, 16
        %v2364 = vrot.slane %v2362, 6
        %v2365 = vshll.u32 %v2229, 16
        %v2367 = vrot.slane %v2365, 7
        %v2368 = vor.u32 %v2364, %v2367
        %v2369 = vsel %vm1047, %v2360, %v2368
        %v2370 = vrot.slane %v2368, 4
        %v2372 = vshrl.u32 %v2230, 16
        %v2374 = vrot.slane %v2372, 6
        %v2375 = vshll.u32 %v2230, 16
        %v2377 = vrot.slane %v2375, 7
        %v2378 = vor.u32 %v2374, %v2377
        %v2379 = vsel %vm1047, %v2370, %v2378
        %v2381 = vshrl.u32 %v2231, 16
        %v2383 = vrot.slane %v2381, 6
        %v2384 = vshll.u32 %v2231, 16
        %v2386 = vrot.slane %v2384, 7
        %v2387 = vor.u32 %v2383, %v2386
        %v2388 = vrot.slane %v2387, 4
        %v2390 = vshrl.u32 %v2232, 16
        %v2392 = vrot.slane %v2390, 6
        %v2393 = vshll.u32 %v2232, 16
        %v2395 = vrot.slane %v2393, 7
        %v2396 = vor.u32 %v2392, %v2395
        %v2397 = vsel %vm1047, %v2388, %v2396
        %v2398 = vrot.slane %v2396, 4
        %v2400 = vshrl.u32 %v2233, 16
        %v2402 = vrot.slane %v2400, 6
        %v2403 = vshll.u32 %v2233, 16
        %v2405 = vrot.slane %v2403, 7
        %v2406 = vor.u32 %v2402, %v2405
        %v2407 = vsel %vm1047, %v2398, %v2406
        %v2409 = vshrl.u32 %v2234, 16
        %v2411 = vrot.slane %v2409, 6
        %v2412 = vshll.u32 %v2234, 16
        %v2414 = vrot.slane %v2412, 7
        %v2415 = vor.u32 %v2411, %v2414
        %v2416 = vrot.slane %v2415, 4
        %v2418 = vshrl.u32 %v2235, 16
        %v2420 = vrot.slane %v2418, 6
        %v2421 = vshll.u32 %v2235, 16
        %v2423 = vrot.slane %v2421, 7
        %v2424 = vor.u32 %v2420, %v2423
        %v2425 = vsel %vm1047, %v2416, %v2424
        %v2426 = vrot.slane %v2424, 4
        %v2428 = vshrl.u32 %v2236, 16
        %v2430 = vrot.slane %v2428, 6
        %v2431 = vshll.u32 %v2236, 16
        %v2433 = vrot.slane %v2431, 7
        %v2434 = vor.u32 %v2430, %v2433
        %v2435 = vsel %vm1047, %v2426, %v2434
        %v2437 = vshrl.u32 %v2237, 16
        %v2439 = vrot.slane %v2437, 6
        %v2440 = vshll.u32 %v2237, 16
        %v2442 = vrot.slane %v2440, 7
        %v2443 = vor.u32 %v2439, %v2442
        %v2444 = vrot.slane %v2443, 4
        %v2446 = vshrl.u32 %v2238, 16
        %v2448 = vrot.slane %v2446, 6
        %v2449 = vshll.u32 %v2238, 16
        %v2451 = vrot.slane %v2449, 7
        %v2452 = vor.u32 %v2448, %v2451
        %v2453 = vsel %vm1047, %v2444, %v2452
        %v2454 = vrot.slane %v2452, 4
        %v2456 = vshrl.u32 %v2239, 16
        %v2458 = vrot.slane %v2456, 6
        %v2459 = vshll.u32 %v2239, 16
        %v2461 = vrot.slane %v2459, 7
        %v2462 = vor.u32 %v2458, %v2461
        %v2463 = vsel %vm1047, %v2454, %v2462
        %s2464 = sadd.s32 %s520, 5
        %v2465 = vld [vmem:[#allocation4] sm:$0xff]
        %v2466 = vld [vmem:[#allocation4 + $0x8] sm:$0xff]
        %v2467 = vld [vmem:[#allocation4 + $0x10] sm:$0xff]
        %v2468 = vld [vmem:[#allocation4 + $0x18] sm:$0xff]
        %v2469 = vld [vmem:[#allocation4 + $0x20] sm:$0xff]
        %v2470 = vld [vmem:[#allocation4 + $0x28] sm:$0xff]
        %v2471 = vld [vmem:[#allocation4 + $0x30] sm:$0xff]
        %v2472 = vld [vmem:[#allocation4 + $0x38] sm:$0xff]
        %v2473 = vld [vmem:[#allocation4 + $0x40] sm:$0xff]
        %v2474 = vld [vmem:[#allocation4 + $0x48] sm:$0xff]
        %v2475 = vld [vmem:[#allocation4 + $0x50] sm:$0xff]
        %v2476 = vld [vmem:[#allocation4 + $0x58] sm:$0xff]
        %v2477 = vld [vmem:[#allocation4 + $0x60] sm:$0xff]
        %v2478 = vld [vmem:[#allocation4 + $0x68] sm:$0xff]
        %v2479 = vld [vmem:[#allocation4 + $0x70] sm:$0xff]
        %v2480 = vld [vmem:[#allocation4 + $0x78] sm:$0xff]
        %s2481 = smul.u32 %s2464, 16
        %s2482 = smul.addr %s2481, 4
        %s2483 = scalar_lea.vmem [#allocation5], %s2482
        %v2484 = vld [vmem:[%s2483] sm:$0xf]
        %v2485 = vld [vmem:[%s2483 + $0x4] sm:$0xf]
        %v2486 = vld [vmem:[%s2483 + $0x8] sm:$0xf]
        %v2487 = vld [vmem:[%s2483 + $0xc] sm:$0xf]
        %v2488 = vld [vmem:[%s2483 + $0x10] sm:$0xf]
        %v2489 = vld [vmem:[%s2483 + $0x14] sm:$0xf]
        %v2490 = vld [vmem:[%s2483 + $0x18] sm:$0xf]
        %v2491 = vld [vmem:[%s2483 + $0x1c] sm:$0xf]
        %v2492 = vld [vmem:[%s2483 + $0x20] sm:$0xf]
        %v2493 = vld [vmem:[%s2483 + $0x24] sm:$0xf]
        %v2494 = vld [vmem:[%s2483 + $0x28] sm:$0xf]
        %v2495 = vld [vmem:[%s2483 + $0x2c] sm:$0xf]
        %v2496 = vld [vmem:[%s2483 + $0x30] sm:$0xf]
        %v2497 = vld [vmem:[%s2483 + $0x34] sm:$0xf]
        %v2498 = vld [vmem:[%s2483 + $0x38] sm:$0xf]
        %v2499 = vld [vmem:[%s2483 + $0x3c] sm:$0xf]
        %v2500 = vunpack.c.l.b16 %v2257
        %v2501 = vunpack.c.l.b16 %v2267
        %v2502 = vunpack.c.l.b16 %v2285
        %v2503 = vunpack.c.l.b16 %v2295
        %v2504 = vunpack.c.l.b16 %v2313
        %v2505 = vunpack.c.l.b16 %v2323
        %v2506 = vunpack.c.l.b16 %v2341
        %v2507 = vunpack.c.l.b16 %v2351
        %v2508 = vunpack.c.l.b16 %v2369
        %v2509 = vunpack.c.l.b16 %v2379
        %v2510 = vunpack.c.l.b16 %v2397
        %v2511 = vunpack.c.l.b16 %v2407
        %v2512 = vunpack.c.l.b16 %v2425
        %v2513 = vunpack.c.l.b16 %v2435
        %v2514 = vunpack.c.l.b16 %v2453
        %v2515 = vunpack.c.l.b16 %v2463
        %v2516 = vpack.c.b16 %v2501, %v2500
        %v2517 = vpack.c.b16 %v2503, %v2502
        %v2518 = vpack.c.b16 %v2505, %v2504
        %v2519 = vpack.c.b16 %v2507, %v2506
        %v2520 = vpack.c.b16 %v2509, %v2508
        %v2521 = vpack.c.b16 %v2511, %v2510
        %v2522 = vpack.c.b16 %v2513, %v2512
        %v2523 = vpack.c.b16 %v2515, %v2514
        %v2548 = vunpack.c.l.b16 %v2484
        %v2549 = vunpack.c.l.b16 %v2485
        %v2550 = vunpack.c.l.b16 %v2486
        %v2551 = vunpack.c.l.b16 %v2487
        %v2552 = vunpack.c.l.b16 %v2488
        %v2553 = vunpack.c.l.b16 %v2489
        %v2554 = vunpack.c.l.b16 %v2490
        %v2555 = vunpack.c.l.b16 %v2491
        %v2556 = vunpack.c.l.b16 %v2492
        %v2557 = vunpack.c.l.b16 %v2493
        %v2558 = vunpack.c.l.b16 %v2494
        %v2559 = vunpack.c.l.b16 %v2495
        %v2560 = vunpack.c.l.b16 %v2496
        %v2561 = vunpack.c.l.b16 %v2497
        %v2562 = vunpack.c.l.b16 %v2498
        %v2563 = vunpack.c.l.b16 %v2499
        %v2564 = vpack.c.b16 %v2549, %v2548
        %v2565 = vpack.c.b16 %v2551, %v2550
        %v2566 = vpack.c.b16 %v2553, %v2552
        %v2567 = vpack.c.b16 %v2555, %v2554
        %v2568 = vpack.c.b16 %v2557, %v2556
        %v2569 = vpack.c.b16 %v2559, %v2558
        %v2570 = vpack.c.b16 %v2561, %v2560
        %v2571 = vpack.c.b16 %v2563, %v2562
        %2580 = vmatpush.bf16.msra.mxu0 %v2571
        %2581 = vmatpush.bf16.msra.mxu0 %v2570
        %2582 = vmatpush.bf16.msra.mxu0 %v2569
        %2583 = vmatpush.bf16.msra.mxu0 %v2568
        %2584 = vmatpush.bf16.msra.mxu0 %v2567
        %2585 = vmatpush.bf16.msra.mxu0 %v2566
        %2586 = vmatpush.bf16.msra.mxu0 %v2565
        %2587 = vmatpush.bf16.msra.mxu0 %v2564
        %2588 = vmatmul.bf16.gmra.mxu0 %v2516
        %v2589 = vpop.f32.mrf.mxu0
        %v2590 = vadd.f32 0.0, %v2589
        %v2591 = vpop.f32.mrf.mxu0
        %v2592 = vadd.f32 0.0, %v2591
        %2593 = vmatmul.bf16.gmra.mxu0 %v2517
        %v2594 = vpop.f32.mrf.mxu0
        %v2595 = vadd.f32 0.0, %v2594
        %v2596 = vpop.f32.mrf.mxu0
        %v2597 = vadd.f32 0.0, %v2596
        %2598 = vmatmul.bf16.gmra.mxu0 %v2518
        %v2599 = vpop.f32.mrf.mxu0
        %v2600 = vadd.f32 0.0, %v2599
        %v2601 = vpop.f32.mrf.mxu0
        %v2602 = vadd.f32 0.0, %v2601
        %2603 = vmatmul.bf16.gmra.mxu0 %v2519
        %v2604 = vpop.f32.mrf.mxu0
        %v2605 = vadd.f32 0.0, %v2604
        %v2606 = vpop.f32.mrf.mxu0
        %v2607 = vadd.f32 0.0, %v2606
        %2608 = vmatmul.bf16.gmra.mxu0 %v2520
        %v2609 = vpop.f32.mrf.mxu0
        %v2610 = vadd.f32 0.0, %v2609
        %v2611 = vpop.f32.mrf.mxu0
        %v2612 = vadd.f32 0.0, %v2611
        %2613 = vmatmul.bf16.gmra.mxu0 %v2521
        %v2614 = vpop.f32.mrf.mxu0
        %v2615 = vadd.f32 0.0, %v2614
        %v2616 = vpop.f32.mrf.mxu0
        %v2617 = vadd.f32 0.0, %v2616
        %2618 = vmatmul.bf16.gmra.mxu0 %v2522
        %v2619 = vpop.f32.mrf.mxu0
        %v2620 = vadd.f32 0.0, %v2619
        %v2621 = vpop.f32.mrf.mxu0
        %v2622 = vadd.f32 0.0, %v2621
        %2623 = vmatmul.bf16.gmra.mxu0 %v2523
        %v2624 = vpop.f32.mrf.mxu0
        %v2625 = vadd.f32 0.0, %v2624
        %v2626 = vpop.f32.mrf.mxu0
        %v2627 = vadd.f32 0.0, %v2626
        %2628 = vdwg.mxu0
        %v2629 = vadd.f32 %v2465, %v2590
        %v2630 = vadd.f32 %v2466, %v2592
        %v2631 = vadd.f32 %v2467, %v2595
        %v2632 = vadd.f32 %v2468, %v2597
        %v2633 = vadd.f32 %v2469, %v2600
        %v2634 = vadd.f32 %v2470, %v2602
        %v2635 = vadd.f32 %v2471, %v2605
        %v2636 = vadd.f32 %v2472, %v2607
        %v2637 = vadd.f32 %v2473, %v2610
        %v2638 = vadd.f32 %v2474, %v2612
        %v2639 = vadd.f32 %v2475, %v2615
        %v2640 = vadd.f32 %v2476, %v2617
        %v2641 = vadd.f32 %v2477, %v2620
        %v2642 = vadd.f32 %v2478, %v2622
        %v2643 = vadd.f32 %v2479, %v2625
        %v2644 = vadd.f32 %v2480, %v2627
        %2645 = vst [vmem:[#allocation4] sm:$0xff] %v2629
        %2646 = vst [vmem:[#allocation4 + $0x8] sm:$0xff] %v2630
        %2647 = vst [vmem:[#allocation4 + $0x10] sm:$0xff] %v2631
        %2648 = vst [vmem:[#allocation4 + $0x18] sm:$0xff] %v2632
        %2649 = vst [vmem:[#allocation4 + $0x20] sm:$0xff] %v2633
        %2650 = vst [vmem:[#allocation4 + $0x28] sm:$0xff] %v2634
        %2651 = vst [vmem:[#allocation4 + $0x30] sm:$0xff] %v2635
        %2652 = vst [vmem:[#allocation4 + $0x38] sm:$0xff] %v2636
        %2653 = vst [vmem:[#allocation4 + $0x40] sm:$0xff] %v2637
        %2654 = vst [vmem:[#allocation4 + $0x48] sm:$0xff] %v2638
        %2655 = vst [vmem:[#allocation4 + $0x50] sm:$0xff] %v2639
        %2656 = vst [vmem:[#allocation4 + $0x58] sm:$0xff] %v2640
        %2657 = vst [vmem:[#allocation4 + $0x60] sm:$0xff] %v2641
        %2658 = vst [vmem:[#allocation4 + $0x68] sm:$0xff] %v2642
        %2659 = vst [vmem:[#allocation4 + $0x70] sm:$0xff] %v2643
        %2660 = vst [vmem:[#allocation4 + $0x78] sm:$0xff] %v2644
        %s2661 = scalar_lea.vmem %s267, 60 [#allocation2]
        %v2662 = vld [vmem:[%s2661] sm:$0xe]
        %v2663 = vld [vmem:[%s2661 + $0x4] sm:$0xf]
        %v2664 = vld [vmem:[%s2661 + $0x8] sm:$0x3]
        %v2665 = vld [vmem:[%s2661 + $0xc] sm:$0xe]
        %v2666 = vld [vmem:[%s2661 + $0x10] sm:$0xf]
        %v2667 = vld [vmem:[%s2661 + $0x14] sm:$0x3]
        %v2668 = vld [vmem:[%s2661 + $0x18] sm:$0xe]
        %v2669 = vld [vmem:[%s2661 + $0x1c] sm:$0xf]
        %v2670 = vld [vmem:[%s2661 + $0x20] sm:$0x3]
        %v2671 = vld [vmem:[%s2661 + $0x24] sm:$0xe]
        %v2672 = vld [vmem:[%s2661 + $0x28] sm:$0xf]
        %v2673 = vld [vmem:[%s2661 + $0x2c] sm:$0x3]
        %v2674 = vld [vmem:[%s2661 + $0x30] sm:$0xe]
        %v2675 = vld [vmem:[%s2661 + $0x34] sm:$0xf]
        %v2676 = vld [vmem:[%s2661 + $0x38] sm:$0x3]
        %v2677 = vld [vmem:[%s2661 + $0x3c] sm:$0xe]
        %v2678 = vld [vmem:[%s2661 + $0x40] sm:$0xf]
        %v2679 = vld [vmem:[%s2661 + $0x44] sm:$0x3]
        %v2680 = vld [vmem:[%s2661 + $0x48] sm:$0xe]
        %v2681 = vld [vmem:[%s2661 + $0x4c] sm:$0xf]
        %v2682 = vld [vmem:[%s2661 + $0x50] sm:$0x3]
        %v2683 = vld [vmem:[%s2661 + $0x54] sm:$0xe]
        %v2684 = vld [vmem:[%s2661 + $0x58] sm:$0xf]
        %v2685 = vld [vmem:[%s2661 + $0x5c] sm:$0x3]
        %v2687 = vshrl.u32 %v2662, 16
        %v2689 = vrot.slane %v2687, 5
        %v2690 = vshll.u32 %v2662, 16
        %v2692 = vrot.slane %v2690, 6
        %v2693 = vor.u32 %v2689, %v2692
        %v2694 = vrot.slane %v2693, 4
        %v2696 = vshrl.u32 %v2663, 16
        %v2698 = vrot.slane %v2696, 5
        %v2699 = vshll.u32 %v2663, 16
        %v2701 = vrot.slane %v2699, 6
        %v2702 = vor.u32 %v2698, %v2701
        %v2703 = vsel %vm295, %v2694, %v2702
        %v2704 = vrot.slane %v2702, 4
        %v2706 = vshrl.u32 %v2664, 16
        %v2708 = vrot.slane %v2706, 5
        %v2709 = vshll.u32 %v2664, 16
        %v2711 = vrot.slane %v2709, 6
        %v2712 = vor.u32 %v2708, %v2711
        %v2713 = vsel %vm295, %v2704, %v2712
        %v2715 = vshrl.u32 %v2665, 16
        %v2717 = vrot.slane %v2715, 5
        %v2718 = vshll.u32 %v2665, 16
        %v2720 = vrot.slane %v2718, 6
        %v2721 = vor.u32 %v2717, %v2720
        %v2722 = vrot.slane %v2721, 4
        %v2724 = vshrl.u32 %v2666, 16
        %v2726 = vrot.slane %v2724, 5
        %v2727 = vshll.u32 %v2666, 16
        %v2729 = vrot.slane %v2727, 6
        %v2730 = vor.u32 %v2726, %v2729
        %v2731 = vsel %vm295, %v2722, %v2730
        %v2732 = vrot.slane %v2730, 4
        %v2734 = vshrl.u32 %v2667, 16
        %v2736 = vrot.slane %v2734, 5
        %v2737 = vshll.u32 %v2667, 16
        %v2739 = vrot.slane %v2737, 6
        %v2740 = vor.u32 %v2736, %v2739
        %v2741 = vsel %vm295, %v2732, %v2740
        %v2743 = vshrl.u32 %v2668, 16
        %v2745 = vrot.slane %v2743, 5
        %v2746 = vshll.u32 %v2668, 16
        %v2748 = vrot.slane %v2746, 6
        %v2749 = vor.u32 %v2745, %v2748
        %v2750 = vrot.slane %v2749, 4
        %v2752 = vshrl.u32 %v2669, 16
        %v2754 = vrot.slane %v2752, 5
        %v2755 = vshll.u32 %v2669, 16
        %v2757 = vrot.slane %v2755, 6
        %v2758 = vor.u32 %v2754, %v2757
        %v2759 = vsel %vm295, %v2750, %v2758
        %v2760 = vrot.slane %v2758, 4
        %v2762 = vshrl.u32 %v2670, 16
        %v2764 = vrot.slane %v2762, 5
        %v2765 = vshll.u32 %v2670, 16
        %v2767 = vrot.slane %v2765, 6
        %v2768 = vor.u32 %v2764, %v2767
        %v2769 = vsel %vm295, %v2760, %v2768
        %v2771 = vshrl.u32 %v2671, 16
        %v2773 = vrot.slane %v2771, 5
        %v2774 = vshll.u32 %v2671, 16
        %v2776 = vrot.slane %v2774, 6
        %v2777 = vor.u32 %v2773, %v2776
        %v2778 = vrot.slane %v2777, 4
        %v2780 = vshrl.u32 %v2672, 16
        %v2782 = vrot.slane %v2780, 5
        %v2783 = vshll.u32 %v2672, 16
        %v2785 = vrot.slane %v2783, 6
        %v2786 = vor.u32 %v2782, %v2785
        %v2787 = vsel %vm295, %v2778, %v2786
        %v2788 = vrot.slane %v2786, 4
        %v2790 = vshrl.u32 %v2673, 16
        %v2792 = vrot.slane %v2790, 5
        %v2793 = vshll.u32 %v2673, 16
        %v2795 = vrot.slane %v2793, 6
        %v2796 = vor.u32 %v2792, %v2795
        %v2797 = vsel %vm295, %v2788, %v2796
        %v2799 = vshrl.u32 %v2674, 16
        %v2801 = vrot.slane %v2799, 5
        %v2802 = vshll.u32 %v2674, 16
        %v2804 = vrot.slane %v2802, 6
        %v2805 = vor.u32 %v2801, %v2804
        %v2806 = vrot.slane %v2805, 4
        %v2808 = vshrl.u32 %v2675, 16
        %v2810 = vrot.slane %v2808, 5
        %v2811 = vshll.u32 %v2675, 16
        %v2813 = vrot.slane %v2811, 6
        %v2814 = vor.u32 %v2810, %v2813
        %v2815 = vsel %vm295, %v2806, %v2814
        %v2816 = vrot.slane %v2814, 4
        %v2818 = vshrl.u32 %v2676, 16
        %v2820 = vrot.slane %v2818, 5
        %v2821 = vshll.u32 %v2676, 16
        %v2823 = vrot.slane %v2821, 6
        %v2824 = vor.u32 %v2820, %v2823
        %v2825 = vsel %vm295, %v2816, %v2824
        %v2827 = vshrl.u32 %v2677, 16
        %v2829 = vrot.slane %v2827, 5
        %v2830 = vshll.u32 %v2677, 16
        %v2832 = vrot.slane %v2830, 6
        %v2833 = vor.u32 %v2829, %v2832
        %v2834 = vrot.slane %v2833, 4
        %v2836 = vshrl.u32 %v2678, 16
        %v2838 = vrot.slane %v2836, 5
        %v2839 = vshll.u32 %v2678, 16
        %v2841 = vrot.slane %v2839, 6
        %v2842 = vor.u32 %v2838, %v2841
        %v2843 = vsel %vm295, %v2834, %v2842
        %v2844 = vrot.slane %v2842, 4
        %v2846 = vshrl.u32 %v2679, 16
        %v2848 = vrot.slane %v2846, 5
        %v2849 = vshll.u32 %v2679, 16
        %v2851 = vrot.slane %v2849, 6
        %v2852 = vor.u32 %v2848, %v2851
        %v2853 = vsel %vm295, %v2844, %v2852
        %v2855 = vshrl.u32 %v2680, 16
        %v2857 = vrot.slane %v2855, 5
        %v2858 = vshll.u32 %v2680, 16
        %v2860 = vrot.slane %v2858, 6
        %v2861 = vor.u32 %v2857, %v2860
        %v2862 = vrot.slane %v2861, 4
        %v2864 = vshrl.u32 %v2681, 16
        %v2866 = vrot.slane %v2864, 5
        %v2867 = vshll.u32 %v2681, 16
        %v2869 = vrot.slane %v2867, 6
        %v2870 = vor.u32 %v2866, %v2869
        %v2871 = vsel %vm295, %v2862, %v2870
        %v2872 = vrot.slane %v2870, 4
        %v2874 = vshrl.u32 %v2682, 16
        %v2876 = vrot.slane %v2874, 5
        %v2877 = vshll.u32 %v2682, 16
        %v2879 = vrot.slane %v2877, 6
        %v2880 = vor.u32 %v2876, %v2879
        %v2881 = vsel %vm295, %v2872, %v2880
        %v2883 = vshrl.u32 %v2683, 16
        %v2885 = vrot.slane %v2883, 5
        %v2886 = vshll.u32 %v2683, 16
        %v2888 = vrot.slane %v2886, 6
        %v2889 = vor.u32 %v2885, %v2888
        %v2890 = vrot.slane %v2889, 4
        %v2892 = vshrl.u32 %v2684, 16
        %v2894 = vrot.slane %v2892, 5
        %v2895 = vshll.u32 %v2684, 16
        %v2897 = vrot.slane %v2895, 6
        %v2898 = vor.u32 %v2894, %v2897
        %v2899 = vsel %vm295, %v2890, %v2898
        %v2900 = vrot.slane %v2898, 4
        %v2902 = vshrl.u32 %v2685, 16
        %v2904 = vrot.slane %v2902, 5
        %v2905 = vshll.u32 %v2685, 16
        %v2907 = vrot.slane %v2905, 6
        %v2908 = vor.u32 %v2904, %v2907
        %v2909 = vsel %vm295, %v2900, %v2908
        %s2910 = sadd.s32 %s520, 6
        %v2911 = vld [vmem:[#allocation4] sm:$0xff]
        %v2912 = vld [vmem:[#allocation4 + $0x8] sm:$0xff]
        %v2913 = vld [vmem:[#allocation4 + $0x10] sm:$0xff]
        %v2914 = vld [vmem:[#allocation4 + $0x18] sm:$0xff]
        %v2915 = vld [vmem:[#allocation4 + $0x20] sm:$0xff]
        %v2916 = vld [vmem:[#allocation4 + $0x28] sm:$0xff]
        %v2917 = vld [vmem:[#allocation4 + $0x30] sm:$0xff]
        %v2918 = vld [vmem:[#allocation4 + $0x38] sm:$0xff]
        %v2919 = vld [vmem:[#allocation4 + $0x40] sm:$0xff]
        %v2920 = vld [vmem:[#allocation4 + $0x48] sm:$0xff]
        %v2921 = vld [vmem:[#allocation4 + $0x50] sm:$0xff]
        %v2922 = vld [vmem:[#allocation4 + $0x58] sm:$0xff]
        %v2923 = vld [vmem:[#allocation4 + $0x60] sm:$0xff]
        %v2924 = vld [vmem:[#allocation4 + $0x68] sm:$0xff]
        %v2925 = vld [vmem:[#allocation4 + $0x70] sm:$0xff]
        %v2926 = vld [vmem:[#allocation4 + $0x78] sm:$0xff]
        %s2927 = smul.u32 %s2910, 16
        %s2928 = smul.addr %s2927, 4
        %s2929 = scalar_lea.vmem [#allocation5], %s2928
        %v2930 = vld [vmem:[%s2929] sm:$0xf]
        %v2931 = vld [vmem:[%s2929 + $0x4] sm:$0xf]
        %v2932 = vld [vmem:[%s2929 + $0x8] sm:$0xf]
        %v2933 = vld [vmem:[%s2929 + $0xc] sm:$0xf]
        %v2934 = vld [vmem:[%s2929 + $0x10] sm:$0xf]
        %v2935 = vld [vmem:[%s2929 + $0x14] sm:$0xf]
        %v2936 = vld [vmem:[%s2929 + $0x18] sm:$0xf]
        %v2937 = vld [vmem:[%s2929 + $0x1c] sm:$0xf]
        %v2938 = vld [vmem:[%s2929 + $0x20] sm:$0xf]
        %v2939 = vld [vmem:[%s2929 + $0x24] sm:$0xf]
        %v2940 = vld [vmem:[%s2929 + $0x28] sm:$0xf]
        %v2941 = vld [vmem:[%s2929 + $0x2c] sm:$0xf]
        %v2942 = vld [vmem:[%s2929 + $0x30] sm:$0xf]
        %v2943 = vld [vmem:[%s2929 + $0x34] sm:$0xf]
        %v2944 = vld [vmem:[%s2929 + $0x38] sm:$0xf]
        %v2945 = vld [vmem:[%s2929 + $0x3c] sm:$0xf]
        %v2946 = vunpack.c.l.b16 %v2703
        %v2947 = vunpack.c.l.b16 %v2713
        %v2948 = vunpack.c.l.b16 %v2731
        %v2949 = vunpack.c.l.b16 %v2741
        %v2950 = vunpack.c.l.b16 %v2759
        %v2951 = vunpack.c.l.b16 %v2769
        %v2952 = vunpack.c.l.b16 %v2787
        %v2953 = vunpack.c.l.b16 %v2797
        %v2954 = vunpack.c.l.b16 %v2815
        %v2955 = vunpack.c.l.b16 %v2825
        %v2956 = vunpack.c.l.b16 %v2843
        %v2957 = vunpack.c.l.b16 %v2853
        %v2958 = vunpack.c.l.b16 %v2871
        %v2959 = vunpack.c.l.b16 %v2881
        %v2960 = vunpack.c.l.b16 %v2899
        %v2961 = vunpack.c.l.b16 %v2909
        %v2962 = vpack.c.b16 %v2947, %v2946
        %v2963 = vpack.c.b16 %v2949, %v2948
        %v2964 = vpack.c.b16 %v2951, %v2950
        %v2965 = vpack.c.b16 %v2953, %v2952
        %v2966 = vpack.c.b16 %v2955, %v2954
        %v2967 = vpack.c.b16 %v2957, %v2956
        %v2968 = vpack.c.b16 %v2959, %v2958
        %v2969 = vpack.c.b16 %v2961, %v2960
        %v2994 = vunpack.c.l.b16 %v2930
        %v2995 = vunpack.c.l.b16 %v2931
        %v2996 = vunpack.c.l.b16 %v2932
        %v2997 = vunpack.c.l.b16 %v2933
        %v2998 = vunpack.c.l.b16 %v2934
        %v2999 = vunpack.c.l.b16 %v2935
        %v3000 = vunpack.c.l.b16 %v2936
        %v3001 = vunpack.c.l.b16 %v2937
        %v3002 = vunpack.c.l.b16 %v2938
        %v3003 = vunpack.c.l.b16 %v2939
        %v3004 = vunpack.c.l.b16 %v2940
        %v3005 = vunpack.c.l.b16 %v2941
        %v3006 = vunpack.c.l.b16 %v2942
        %v3007 = vunpack.c.l.b16 %v2943
        %v3008 = vunpack.c.l.b16 %v2944
        %v3009 = vunpack.c.l.b16 %v2945
        %v3010 = vpack.c.b16 %v2995, %v2994
        %v3011 = vpack.c.b16 %v2997, %v2996
        %v3012 = vpack.c.b16 %v2999, %v2998
        %v3013 = vpack.c.b16 %v3001, %v3000
        %v3014 = vpack.c.b16 %v3003, %v3002
        %v3015 = vpack.c.b16 %v3005, %v3004
        %v3016 = vpack.c.b16 %v3007, %v3006
        %v3017 = vpack.c.b16 %v3009, %v3008
        %3026 = vmatpush.bf16.msra.mxu0 %v3017
        %3027 = vmatpush.bf16.msra.mxu0 %v3016
        %3028 = vmatpush.bf16.msra.mxu0 %v3015
        %3029 = vmatpush.bf16.msra.mxu0 %v3014
        %3030 = vmatpush.bf16.msra.mxu0 %v3013
        %3031 = vmatpush.bf16.msra.mxu0 %v3012
        %3032 = vmatpush.bf16.msra.mxu0 %v3011
        %3033 = vmatpush.bf16.msra.mxu0 %v3010
        %3034 = vmatmul.bf16.gmra.mxu0 %v2962
        %v3035 = vpop.f32.mrf.mxu0
        %v3036 = vadd.f32 0.0, %v3035
        %v3037 = vpop.f32.mrf.mxu0
        %v3038 = vadd.f32 0.0, %v3037
        %3039 = vmatmul.bf16.gmra.mxu0 %v2963
        %v3040 = vpop.f32.mrf.mxu0
        %v3041 = vadd.f32 0.0, %v3040
        %v3042 = vpop.f32.mrf.mxu0
        %v3043 = vadd.f32 0.0, %v3042
        %3044 = vmatmul.bf16.gmra.mxu0 %v2964
        %v3045 = vpop.f32.mrf.mxu0
        %v3046 = vadd.f32 0.0, %v3045
        %v3047 = vpop.f32.mrf.mxu0
        %v3048 = vadd.f32 0.0, %v3047
        %3049 = vmatmul.bf16.gmra.mxu0 %v2965
        %v3050 = vpop.f32.mrf.mxu0
        %v3051 = vadd.f32 0.0, %v3050
        %v3052 = vpop.f32.mrf.mxu0
        %v3053 = vadd.f32 0.0, %v3052
        %3054 = vmatmul.bf16.gmra.mxu0 %v2966
        %v3055 = vpop.f32.mrf.mxu0
        %v3056 = vadd.f32 0.0, %v3055
        %v3057 = vpop.f32.mrf.mxu0
        %v3058 = vadd.f32 0.0, %v3057
        %3059 = vmatmul.bf16.gmra.mxu0 %v2967
        %v3060 = vpop.f32.mrf.mxu0
        %v3061 = vadd.f32 0.0, %v3060
        %v3062 = vpop.f32.mrf.mxu0
        %v3063 = vadd.f32 0.0, %v3062
        %3064 = vmatmul.bf16.gmra.mxu0 %v2968
        %v3065 = vpop.f32.mrf.mxu0
        %v3066 = vadd.f32 0.0, %v3065
        %v3067 = vpop.f32.mrf.mxu0
        %v3068 = vadd.f32 0.0, %v3067
        %3069 = vmatmul.bf16.gmra.mxu0 %v2969
        %v3070 = vpop.f32.mrf.mxu0
        %v3071 = vadd.f32 0.0, %v3070
        %v3072 = vpop.f32.mrf.mxu0
        %v3073 = vadd.f32 0.0, %v3072
        %3074 = vdwg.mxu0
        %v3075 = vadd.f32 %v2911, %v3036
        %v3076 = vadd.f32 %v2912, %v3038
        %v3077 = vadd.f32 %v2913, %v3041
        %v3078 = vadd.f32 %v2914, %v3043
        %v3079 = vadd.f32 %v2915, %v3046
        %v3080 = vadd.f32 %v2916, %v3048
        %v3081 = vadd.f32 %v2917, %v3051
        %v3082 = vadd.f32 %v2918, %v3053
        %v3083 = vadd.f32 %v2919, %v3056
        %v3084 = vadd.f32 %v2920, %v3058
        %v3085 = vadd.f32 %v2921, %v3061
        %v3086 = vadd.f32 %v2922, %v3063
        %v3087 = vadd.f32 %v2923, %v3066
        %v3088 = vadd.f32 %v2924, %v3068
        %v3089 = vadd.f32 %v2925, %v3071
        %v3090 = vadd.f32 %v2926, %v3073
        %3091 = vst [vmem:[#allocation4] sm:$0xff] %v3075
        %3092 = vst [vmem:[#allocation4 + $0x8] sm:$0xff] %v3076
        %3093 = vst [vmem:[#allocation4 + $0x10] sm:$0xff] %v3077
        %3094 = vst [vmem:[#allocation4 + $0x18] sm:$0xff] %v3078
        %3095 = vst [vmem:[#allocation4 + $0x20] sm:$0xff] %v3079
        %3096 = vst [vmem:[#allocation4 + $0x28] sm:$0xff] %v3080
        %3097 = vst [vmem:[#allocation4 + $0x30] sm:$0xff] %v3081
        %3098 = vst [vmem:[#allocation4 + $0x38] sm:$0xff] %v3082
        %3099 = vst [vmem:[#allocation4 + $0x40] sm:$0xff] %v3083
        %3100 = vst [vmem:[#allocation4 + $0x48] sm:$0xff] %v3084
        %3101 = vst [vmem:[#allocation4 + $0x50] sm:$0xff] %v3085
        %3102 = vst [vmem:[#allocation4 + $0x58] sm:$0xff] %v3086
        %3103 = vst [vmem:[#allocation4 + $0x60] sm:$0xff] %v3087
        %3104 = vst [vmem:[#allocation4 + $0x68] sm:$0xff] %v3088
        %3105 = vst [vmem:[#allocation4 + $0x70] sm:$0xff] %v3089
        %3106 = vst [vmem:[#allocation4 + $0x78] sm:$0xff] %v3090
        %v3107 = vld [vmem:[%s2661] sm:$0xc]
        %v3108 = vld [vmem:[%s2661 + $0x4] sm:$0xf]
        %v3109 = vld [vmem:[%s2661 + $0x8] sm:$0x3]
        %v3110 = vld [vmem:[%s2661 + $0xc] sm:$0xc]
        %v3111 = vld [vmem:[%s2661 + $0x10] sm:$0xf]
        %v3112 = vld [vmem:[%s2661 + $0x14] sm:$0x3]
        %v3113 = vld [vmem:[%s2661 + $0x18] sm:$0xc]
        %v3114 = vld [vmem:[%s2661 + $0x1c] sm:$0xf]
        %v3115 = vld [vmem:[%s2661 + $0x20] sm:$0x3]
        %v3116 = vld [vmem:[%s2661 + $0x24] sm:$0xc]
        %v3117 = vld [vmem:[%s2661 + $0x28] sm:$0xf]
        %v3118 = vld [vmem:[%s2661 + $0x2c] sm:$0x3]
        %v3119 = vld [vmem:[%s2661 + $0x30] sm:$0xc]
        %v3120 = vld [vmem:[%s2661 + $0x34] sm:$0xf]
        %v3121 = vld [vmem:[%s2661 + $0x38] sm:$0x3]
        %v3122 = vld [vmem:[%s2661 + $0x3c] sm:$0xc]
        %v3123 = vld [vmem:[%s2661 + $0x40] sm:$0xf]
        %v3124 = vld [vmem:[%s2661 + $0x44] sm:$0x3]
        %v3125 = vld [vmem:[%s2661 + $0x48] sm:$0xc]
        %v3126 = vld [vmem:[%s2661 + $0x4c] sm:$0xf]
        %v3127 = vld [vmem:[%s2661 + $0x50] sm:$0x3]
        %v3128 = vld [vmem:[%s2661 + $0x54] sm:$0xc]
        %v3129 = vld [vmem:[%s2661 + $0x58] sm:$0xf]
        %v3130 = vld [vmem:[%s2661 + $0x5c] sm:$0x3]
        %v3155 = vrot.slane %v3107, 6
        %v3156 = vrot.slane %v3155, 4
        %v3157 = vrot.slane %v3108, 6
        %v3158 = vsel %vm767, %v3156, %v3157
        %v3159 = vrot.slane %v3157, 4
        %v3160 = vrot.slane %v3109, 6
        %v3161 = vsel %vm767, %v3159, %v3160
        %v3162 = vrot.slane %v3110, 6
        %v3163 = vrot.slane %v3162, 4
        %v3164 = vrot.slane %v3111, 6
        %v3165 = vsel %vm767, %v3163, %v3164
        %v3166 = vrot.slane %v3164, 4
        %v3167 = vrot.slane %v3112, 6
        %v3168 = vsel %vm767, %v3166, %v3167
        %v3169 = vrot.slane %v3113, 6
        %v3170 = vrot.slane %v3169, 4
        %v3171 = vrot.slane %v3114, 6
        %v3172 = vsel %vm767, %v3170, %v3171
        %v3173 = vrot.slane %v3171, 4
        %v3174 = vrot.slane %v3115, 6
        %v3175 = vsel %vm767, %v3173, %v3174
        %v3176 = vrot.slane %v3116, 6
        %v3177 = vrot.slane %v3176, 4
        %v3178 = vrot.slane %v3117, 6
        %v3179 = vsel %vm767, %v3177, %v3178
        %v3180 = vrot.slane %v3178, 4
        %v3181 = vrot.slane %v3118, 6
        %v3182 = vsel %vm767, %v3180, %v3181
        %v3183 = vrot.slane %v3119, 6
        %v3184 = vrot.slane %v3183, 4
        %v3185 = vrot.slane %v3120, 6
        %v3186 = vsel %vm767, %v3184, %v3185
        %v3187 = vrot.slane %v3185, 4
        %v3188 = vrot.slane %v3121, 6
        %v3189 = vsel %vm767, %v3187, %v3188
        %v3190 = vrot.slane %v3122, 6
        %v3191 = vrot.slane %v3190, 4
        %v3192 = vrot.slane %v3123, 6
        %v3193 = vsel %vm767, %v3191, %v3192
        %v3194 = vrot.slane %v3192, 4
        %v3195 = vrot.slane %v3124, 6
        %v3196 = vsel %vm767, %v3194, %v3195
        %v3197 = vrot.slane %v3125, 6
        %v3198 = vrot.slane %v3197, 4
        %v3199 = vrot.slane %v3126, 6
        %v3200 = vsel %vm767, %v3198, %v3199
        %v3201 = vrot.slane %v3199, 4
        %v3202 = vrot.slane %v3127, 6
        %v3203 = vsel %vm767, %v3201, %v3202
        %v3204 = vrot.slane %v3128, 6
        %v3205 = vrot.slane %v3204, 4
        %v3206 = vrot.slane %v3129, 6
        %v3207 = vsel %vm767, %v3205, %v3206
        %v3208 = vrot.slane %v3206, 4
        %v3209 = vrot.slane %v3130, 6
        %v3210 = vsel %vm767, %v3208, %v3209
        %s3211 = sadd.s32 %s520, 7
        %v3212 = vld [vmem:[#allocation4] sm:$0xff]
        %v3213 = vld [vmem:[#allocation4 + $0x8] sm:$0xff]
        %v3214 = vld [vmem:[#allocation4 + $0x10] sm:$0xff]
        %v3215 = vld [vmem:[#allocation4 + $0x18] sm:$0xff]
        %v3216 = vld [vmem:[#allocation4 + $0x20] sm:$0xff]
        %v3217 = vld [vmem:[#allocation4 + $0x28] sm:$0xff]
        %v3218 = vld [vmem:[#allocation4 + $0x30] sm:$0xff]
        %v3219 = vld [vmem:[#allocation4 + $0x38] sm:$0xff]
        %v3220 = vld [vmem:[#allocation4 + $0x40] sm:$0xff]
        %v3221 = vld [vmem:[#allocation4 + $0x48] sm:$0xff]
        %v3222 = vld [vmem:[#allocation4 + $0x50] sm:$0xff]
        %v3223 = vld [vmem:[#allocation4 + $0x58] sm:$0xff]
        %v3224 = vld [vmem:[#allocation4 + $0x60] sm:$0xff]
        %v3225 = vld [vmem:[#allocation4 + $0x68] sm:$0xff]
        %v3226 = vld [vmem:[#allocation4 + $0x70] sm:$0xff]
        %v3227 = vld [vmem:[#allocation4 + $0x78] sm:$0xff]
        %s3228 = smul.u32 %s3211, 16
        %s3229 = smul.addr %s3228, 4
        %s3230 = scalar_lea.vmem [#allocation5], %s3229
        %v3231 = vld [vmem:[%s3230] sm:$0xf]
        %v3232 = vld [vmem:[%s3230 + $0x4] sm:$0xf]
        %v3233 = vld [vmem:[%s3230 + $0x8] sm:$0xf]
        %v3234 = vld [vmem:[%s3230 + $0xc] sm:$0xf]
        %v3235 = vld [vmem:[%s3230 + $0x10] sm:$0xf]
        %v3236 = vld [vmem:[%s3230 + $0x14] sm:$0xf]
        %v3237 = vld [vmem:[%s3230 + $0x18] sm:$0xf]
        %v3238 = vld [vmem:[%s3230 + $0x1c] sm:$0xf]
        %v3239 = vld [vmem:[%s3230 + $0x20] sm:$0xf]
        %v3240 = vld [vmem:[%s3230 + $0x24] sm:$0xf]
        %v3241 = vld [vmem:[%s3230 + $0x28] sm:$0xf]
        %v3242 = vld [vmem:[%s3230 + $0x2c] sm:$0xf]
        %v3243 = vld [vmem:[%s3230 + $0x30] sm:$0xf]
        %v3244 = vld [vmem:[%s3230 + $0x34] sm:$0xf]
        %v3245 = vld [vmem:[%s3230 + $0x38] sm:$0xf]
        %v3246 = vld [vmem:[%s3230 + $0x3c] sm:$0xf]
        %v3247 = vunpack.c.l.b16 %v3158
        %v3248 = vunpack.c.l.b16 %v3161
        %v3249 = vunpack.c.l.b16 %v3165
        %v3250 = vunpack.c.l.b16 %v3168
        %v3251 = vunpack.c.l.b16 %v3172
        %v3252 = vunpack.c.l.b16 %v3175
        %v3253 = vunpack.c.l.b16 %v3179
        %v3254 = vunpack.c.l.b16 %v3182
        %v3255 = vunpack.c.l.b16 %v3186
        %v3256 = vunpack.c.l.b16 %v3189
        %v3257 = vunpack.c.l.b16 %v3193
        %v3258 = vunpack.c.l.b16 %v3196
        %v3259 = vunpack.c.l.b16 %v3200
        %v3260 = vunpack.c.l.b16 %v3203
        %v3261 = vunpack.c.l.b16 %v3207
        %v3262 = vunpack.c.l.b16 %v3210
        %v3263 = vpack.c.b16 %v3248, %v3247
        %v3264 = vpack.c.b16 %v3250, %v3249
        %v3265 = vpack.c.b16 %v3252, %v3251
        %v3266 = vpack.c.b16 %v3254, %v3253
        %v3267 = vpack.c.b16 %v3256, %v3255
        %v3268 = vpack.c.b16 %v3258, %v3257
        %v3269 = vpack.c.b16 %v3260, %v3259
        %v3270 = vpack.c.b16 %v3262, %v3261
        %v3295 = vunpack.c.l.b16 %v3231
        %v3296 = vunpack.c.l.b16 %v3232
        %v3297 = vunpack.c.l.b16 %v3233
        %v3298 = vunpack.c.l.b16 %v3234
        %v3299 = vunpack.c.l.b16 %v3235
        %v3300 = vunpack.c.l.b16 %v3236
        %v3301 = vunpack.c.l.b16 %v3237
        %v3302 = vunpack.c.l.b16 %v3238
        %v3303 = vunpack.c.l.b16 %v3239
        %v3304 = vunpack.c.l.b16 %v3240
        %v3305 = vunpack.c.l.b16 %v3241
        %v3306 = vunpack.c.l.b16 %v3242
        %v3307 = vunpack.c.l.b16 %v3243
        %v3308 = vunpack.c.l.b16 %v3244
        %v3309 = vunpack.c.l.b16 %v3245
        %v3310 = vunpack.c.l.b16 %v3246
        %v3311 = vpack.c.b16 %v3296, %v3295
        %v3312 = vpack.c.b16 %v3298, %v3297
        %v3313 = vpack.c.b16 %v3300, %v3299
        %v3314 = vpack.c.b16 %v3302, %v3301
        %v3315 = vpack.c.b16 %v3304, %v3303
        %v3316 = vpack.c.b16 %v3306, %v3305
        %v3317 = vpack.c.b16 %v3308, %v3307
        %v3318 = vpack.c.b16 %v3310, %v3309
        %3327 = vmatpush.bf16.msra.mxu0 %v3318
        %3328 = vmatpush.bf16.msra.mxu0 %v3317
        %3329 = vmatpush.bf16.msra.mxu0 %v3316
        %3330 = vmatpush.bf16.msra.mxu0 %v3315
        %3331 = vmatpush.bf16.msra.mxu0 %v3314
        %3332 = vmatpush.bf16.msra.mxu0 %v3313
        %3333 = vmatpush.bf16.msra.mxu0 %v3312
        %3334 = vmatpush.bf16.msra.mxu0 %v3311
        %3335 = vmatmul.bf16.gmra.mxu0 %v3263
        %v3336 = vpop.f32.mrf.mxu0
        %v3337 = vadd.f32 0.0, %v3336
        %v3338 = vpop.f32.mrf.mxu0
        %v3339 = vadd.f32 0.0, %v3338
        %3340 = vmatmul.bf16.gmra.mxu0 %v3264
        %v3341 = vpop.f32.mrf.mxu0
        %v3342 = vadd.f32 0.0, %v3341
        %v3343 = vpop.f32.mrf.mxu0
        %v3344 = vadd.f32 0.0, %v3343
        %3345 = vmatmul.bf16.gmra.mxu0 %v3265
        %v3346 = vpop.f32.mrf.mxu0
        %v3347 = vadd.f32 0.0, %v3346
        %v3348 = vpop.f32.mrf.mxu0
        %v3349 = vadd.f32 0.0, %v3348
        %3350 = vmatmul.bf16.gmra.mxu0 %v3266
        %v3351 = vpop.f32.mrf.mxu0
        %v3352 = vadd.f32 0.0, %v3351
        %v3353 = vpop.f32.mrf.mxu0
        %v3354 = vadd.f32 0.0, %v3353
        %3355 = vmatmul.bf16.gmra.mxu0 %v3267
        %v3356 = vpop.f32.mrf.mxu0
        %v3357 = vadd.f32 0.0, %v3356
        %v3358 = vpop.f32.mrf.mxu0
        %v3359 = vadd.f32 0.0, %v3358
        %3360 = vmatmul.bf16.gmra.mxu0 %v3268
        %v3361 = vpop.f32.mrf.mxu0
        %v3362 = vadd.f32 0.0, %v3361
        %v3363 = vpop.f32.mrf.mxu0
        %v3364 = vadd.f32 0.0, %v3363
        %3365 = vmatmul.bf16.gmra.mxu0 %v3269
        %v3366 = vpop.f32.mrf.mxu0
        %v3367 = vadd.f32 0.0, %v3366
        %v3368 = vpop.f32.mrf.mxu0
        %v3369 = vadd.f32 0.0, %v3368
        %3370 = vmatmul.bf16.gmra.mxu0 %v3270
        %v3371 = vpop.f32.mrf.mxu0
        %v3372 = vadd.f32 0.0, %v3371
        %v3373 = vpop.f32.mrf.mxu0
        %v3374 = vadd.f32 0.0, %v3373
        %3375 = vdwg.mxu0
        %v3376 = vadd.f32 %v3212, %v3337
        %v3377 = vadd.f32 %v3213, %v3339
        %v3378 = vadd.f32 %v3214, %v3342
        %v3379 = vadd.f32 %v3215, %v3344
        %v3380 = vadd.f32 %v3216, %v3347
        %v3381 = vadd.f32 %v3217, %v3349
        %v3382 = vadd.f32 %v3218, %v3352
        %v3383 = vadd.f32 %v3219, %v3354
        %v3384 = vadd.f32 %v3220, %v3357
        %v3385 = vadd.f32 %v3221, %v3359
        %v3386 = vadd.f32 %v3222, %v3362
        %v3387 = vadd.f32 %v3223, %v3364
        %v3388 = vadd.f32 %v3224, %v3367
        %v3389 = vadd.f32 %v3225, %v3369
        %v3390 = vadd.f32 %v3226, %v3372
        %v3391 = vadd.f32 %v3227, %v3374
        %3392 = vst [vmem:[#allocation4] sm:$0xff] %v3376
        %3393 = vst [vmem:[#allocation4 + $0x8] sm:$0xff] %v3377
        %3394 = vst [vmem:[#allocation4 + $0x10] sm:$0xff] %v3378
        %3395 = vst [vmem:[#allocation4 + $0x18] sm:$0xff] %v3379
        %3396 = vst [vmem:[#allocation4 + $0x20] sm:$0xff] %v3380
        %3397 = vst [vmem:[#allocation4 + $0x28] sm:$0xff] %v3381
        %3398 = vst [vmem:[#allocation4 + $0x30] sm:$0xff] %v3382
        %3399 = vst [vmem:[#allocation4 + $0x38] sm:$0xff] %v3383
        %3400 = vst [vmem:[#allocation4 + $0x40] sm:$0xff] %v3384
        %3401 = vst [vmem:[#allocation4 + $0x48] sm:$0xff] %v3385
        %3402 = vst [vmem:[#allocation4 + $0x50] sm:$0xff] %v3386
        %3403 = vst [vmem:[#allocation4 + $0x58] sm:$0xff] %v3387
        %3404 = vst [vmem:[#allocation4 + $0x60] sm:$0xff] %v3388
        %3405 = vst [vmem:[#allocation4 + $0x68] sm:$0xff] %v3389
        %3406 = vst [vmem:[#allocation4 + $0x70] sm:$0xff] %v3390
        %3407 = vst [vmem:[#allocation4 + $0x78] sm:$0xff] %v3391
        %v3408 = vld [vmem:[%s2661] sm:$0xc]
        %v3409 = vld [vmem:[%s2661 + $0x4] sm:$0xf]
        %v3410 = vld [vmem:[%s2661 + $0x8] sm:$0x7]
        %v3411 = vld [vmem:[%s2661 + $0xc] sm:$0xc]
        %v3412 = vld [vmem:[%s2661 + $0x10] sm:$0xf]
        %v3413 = vld [vmem:[%s2661 + $0x14] sm:$0x7]
        %v3414 = vld [vmem:[%s2661 + $0x18] sm:$0xc]
        %v3415 = vld [vmem:[%s2661 + $0x1c] sm:$0xf]
        %v3416 = vld [vmem:[%s2661 + $0x20] sm:$0x7]
        %v3417 = vld [vmem:[%s2661 + $0x24] sm:$0xc]
        %v3418 = vld [vmem:[%s2661 + $0x28] sm:$0xf]
        %v3419 = vld [vmem:[%s2661 + $0x2c] sm:$0x7]
        %v3420 = vld [vmem:[%s2661 + $0x30] sm:$0xc]
        %v3421 = vld [vmem:[%s2661 + $0x34] sm:$0xf]
        %v3422 = vld [vmem:[%s2661 + $0x38] sm:$0x7]
        %v3423 = vld [vmem:[%s2661 + $0x3c] sm:$0xc]
        %v3424 = vld [vmem:[%s2661 + $0x40] sm:$0xf]
        %v3425 = vld [vmem:[%s2661 + $0x44] sm:$0x7]
        %v3426 = vld [vmem:[%s2661 + $0x48] sm:$0xc]
        %v3427 = vld [vmem:[%s2661 + $0x4c] sm:$0xf]
        %v3428 = vld [vmem:[%s2661 + $0x50] sm:$0x7]
        %v3429 = vld [vmem:[%s2661 + $0x54] sm:$0xc]
        %v3430 = vld [vmem:[%s2661 + $0x58] sm:$0xf]
        %v3431 = vld [vmem:[%s2661 + $0x5c] sm:$0x7]
        %v3433 = vshrl.u32 %v3408, 16
        %v3435 = vrot.slane %v3433, 6
        %v3436 = vshll.u32 %v3408, 16
        %v3438 = vrot.slane %v3436, 7
        %v3439 = vor.u32 %v3435, %v3438
        %v3440 = vrot.slane %v3439, 4
        %v3442 = vshrl.u32 %v3409, 16
        %v3444 = vrot.slane %v3442, 6
        %v3445 = vshll.u32 %v3409, 16
        %v3447 = vrot.slane %v3445, 7
        %v3448 = vor.u32 %v3444, %v3447
        %v3449 = vsel %vm1047, %v3440, %v3448
        %v3450 = vrot.slane %v3448, 4
        %v3452 = vshrl.u32 %v3410, 16
        %v3454 = vrot.slane %v3452, 6
        %v3455 = vshll.u32 %v3410, 16
        %v3457 = vrot.slane %v3455, 7
        %v3458 = vor.u32 %v3454, %v3457
        %v3459 = vsel %vm1047, %v3450, %v3458
        %v3461 = vshrl.u32 %v3411, 16
        %v3463 = vrot.slane %v3461, 6
        %v3464 = vshll.u32 %v3411, 16
        %v3466 = vrot.slane %v3464, 7
        %v3467 = vor.u32 %v3463, %v3466
        %v3468 = vrot.slane %v3467, 4
        %v3470 = vshrl.u32 %v3412, 16
        %v3472 = vrot.slane %v3470, 6
        %v3473 = vshll.u32 %v3412, 16
        %v3475 = vrot.slane %v3473, 7
        %v3476 = vor.u32 %v3472, %v3475
        %v3477 = vsel %vm1047, %v3468, %v3476
        %v3478 = vrot.slane %v3476, 4
        %v3480 = vshrl.u32 %v3413, 16
        %v3482 = vrot.slane %v3480, 6
        %v3483 = vshll.u32 %v3413, 16
        %v3485 = vrot.slane %v3483, 7
        %v3486 = vor.u32 %v3482, %v3485
        %v3487 = vsel %vm1047, %v3478, %v3486
        %v3489 = vshrl.u32 %v3414, 16
        %v3491 = vrot.slane %v3489, 6
        %v3492 = vshll.u32 %v3414, 16
        %v3494 = vrot.slane %v3492, 7
        %v3495 = vor.u32 %v3491, %v3494
        %v3496 = vrot.slane %v3495, 4
        %v3498 = vshrl.u32 %v3415, 16
        %v3500 = vrot.slane %v3498, 6
        %v3501 = vshll.u32 %v3415, 16
        %v3503 = vrot.slane %v3501, 7
        %v3504 = vor.u32 %v3500, %v3503
        %v3505 = vsel %vm1047, %v3496, %v3504
        %v3506 = vrot.slane %v3504, 4
        %v3508 = vshrl.u32 %v3416, 16
        %v3510 = vrot.slane %v3508, 6
        %v3511 = vshll.u32 %v3416, 16
        %v3513 = vrot.slane %v3511, 7
        %v3514 = vor.u32 %v3510, %v3513
        %v3515 = vsel %vm1047, %v3506, %v3514
        %v3517 = vshrl.u32 %v3417, 16
        %v3519 = vrot.slane %v3517, 6
        %v3520 = vshll.u32 %v3417, 16
        %v3522 = vrot.slane %v3520, 7
        %v3523 = vor.u32 %v3519, %v3522
        %v3524 = vrot.slane %v3523, 4
        %v3526 = vshrl.u32 %v3418, 16
        %v3528 = vrot.slane %v3526, 6
        %v3529 = vshll.u32 %v3418, 16
        %v3531 = vrot.slane %v3529, 7
        %v3532 = vor.u32 %v3528, %v3531
        %v3533 = vsel %vm1047, %v3524, %v3532
        %v3534 = vrot.slane %v3532, 4
        %v3536 = vshrl.u32 %v3419, 16
        %v3538 = vrot.slane %v3536, 6
        %v3539 = vshll.u32 %v3419, 16
        %v3541 = vrot.slane %v3539, 7
        %v3542 = vor.u32 %v3538, %v3541
        %v3543 = vsel %vm1047, %v3534, %v3542
        %v3545 = vshrl.u32 %v3420, 16
        %v3547 = vrot.slane %v3545, 6
        %v3548 = vshll.u32 %v3420, 16
        %v3550 = vrot.slane %v3548, 7
        %v3551 = vor.u32 %v3547, %v3550
        %v3552 = vrot.slane %v3551, 4
        %v3554 = vshrl.u32 %v3421, 16
        %v3556 = vrot.slane %v3554, 6
        %v3557 = vshll.u32 %v3421, 16
        %v3559 = vrot.slane %v3557, 7
        %v3560 = vor.u32 %v3556, %v3559
        %v3561 = vsel %vm1047, %v3552, %v3560
        %v3562 = vrot.slane %v3560, 4
        %v3564 = vshrl.u32 %v3422, 16
        %v3566 = vrot.slane %v3564, 6
        %v3567 = vshll.u32 %v3422, 16
        %v3569 = vrot.slane %v3567, 7
        %v3570 = vor.u32 %v3566, %v3569
        %v3571 = vsel %vm1047, %v3562, %v3570
        %v3573 = vshrl.u32 %v3423, 16
        %v3575 = vrot.slane %v3573, 6
        %v3576 = vshll.u32 %v3423, 16
        %v3578 = vrot.slane %v3576, 7
        %v3579 = vor.u32 %v3575, %v3578
        %v3580 = vrot.slane %v3579, 4
        %v3582 = vshrl.u32 %v3424, 16
        %v3584 = vrot.slane %v3582, 6
        %v3585 = vshll.u32 %v3424, 16
        %v3587 = vrot.slane %v3585, 7
        %v3588 = vor.u32 %v3584, %v3587
        %v3589 = vsel %vm1047, %v3580, %v3588
        %v3590 = vrot.slane %v3588, 4
        %v3592 = vshrl.u32 %v3425, 16
        %v3594 = vrot.slane %v3592, 6
        %v3595 = vshll.u32 %v3425, 16
        %v3597 = vrot.slane %v3595, 7
        %v3598 = vor.u32 %v3594, %v3597
        %v3599 = vsel %vm1047, %v3590, %v3598
        %v3601 = vshrl.u32 %v3426, 16
        %v3603 = vrot.slane %v3601, 6
        %v3604 = vshll.u32 %v3426, 16
        %v3606 = vrot.slane %v3604, 7
        %v3607 = vor.u32 %v3603, %v3606
        %v3608 = vrot.slane %v3607, 4
        %v3610 = vshrl.u32 %v3427, 16
        %v3612 = vrot.slane %v3610, 6
        %v3613 = vshll.u32 %v3427, 16
        %v3615 = vrot.slane %v3613, 7
        %v3616 = vor.u32 %v3612, %v3615
        %v3617 = vsel %vm1047, %v3608, %v3616
        %v3618 = vrot.slane %v3616, 4
        %v3620 = vshrl.u32 %v3428, 16
        %v3622 = vrot.slane %v3620, 6
        %v3623 = vshll.u32 %v3428, 16
        %v3625 = vrot.slane %v3623, 7
        %v3626 = vor.u32 %v3622, %v3625
        %v3627 = vsel %vm1047, %v3618, %v3626
        %v3629 = vshrl.u32 %v3429, 16
        %v3631 = vrot.slane %v3629, 6
        %v3632 = vshll.u32 %v3429, 16
        %v3634 = vrot.slane %v3632, 7
        %v3635 = vor.u32 %v3631, %v3634
        %v3636 = vrot.slane %v3635, 4
        %v3638 = vshrl.u32 %v3430, 16
        %v3640 = vrot.slane %v3638, 6
        %v3641 = vshll.u32 %v3430, 16
        %v3643 = vrot.slane %v3641, 7
        %v3644 = vor.u32 %v3640, %v3643
        %v3645 = vsel %vm1047, %v3636, %v3644
        %v3646 = vrot.slane %v3644, 4
        %v3648 = vshrl.u32 %v3431, 16
        %v3650 = vrot.slane %v3648, 6
        %v3651 = vshll.u32 %v3431, 16
        %v3653 = vrot.slane %v3651, 7
        %v3654 = vor.u32 %v3650, %v3653
        %v3655 = vsel %vm1047, %v3646, %v3654
        %s3656 = sadd.s32 %s520, 8
        %v3657 = vld [vmem:[#allocation4] sm:$0xff]
        %v3658 = vld [vmem:[#allocation4 + $0x8] sm:$0xff]
        %v3659 = vld [vmem:[#allocation4 + $0x10] sm:$0xff]
        %v3660 = vld [vmem:[#allocation4 + $0x18] sm:$0xff]
        %v3661 = vld [vmem:[#allocation4 + $0x20] sm:$0xff]
        %v3662 = vld [vmem:[#allocation4 + $0x28] sm:$0xff]
        %v3663 = vld [vmem:[#allocation4 + $0x30] sm:$0xff]
        %v3664 = vld [vmem:[#allocation4 + $0x38] sm:$0xff]
        %v3665 = vld [vmem:[#allocation4 + $0x40] sm:$0xff]
        %v3666 = vld [vmem:[#allocation4 + $0x48] sm:$0xff]
        %v3667 = vld [vmem:[#allocation4 + $0x50] sm:$0xff]
        %v3668 = vld [vmem:[#allocation4 + $0x58] sm:$0xff]
        %v3669 = vld [vmem:[#allocation4 + $0x60] sm:$0xff]
        %v3670 = vld [vmem:[#allocation4 + $0x68] sm:$0xff]
        %v3671 = vld [vmem:[#allocation4 + $0x70] sm:$0xff]
        %v3672 = vld [vmem:[#allocation4 + $0x78] sm:$0xff]
        %s3673 = smul.u32 %s3656, 16
        %s3674 = smul.addr %s3673, 4
        %s3675 = scalar_lea.vmem [#allocation5], %s3674
        %v3676 = vld [vmem:[%s3675] sm:$0xf]
        %v3677 = vld [vmem:[%s3675 + $0x4] sm:$0xf]
        %v3678 = vld [vmem:[%s3675 + $0x8] sm:$0xf]
        %v3679 = vld [vmem:[%s3675 + $0xc] sm:$0xf]
        %v3680 = vld [vmem:[%s3675 + $0x10] sm:$0xf]
        %v3681 = vld [vmem:[%s3675 + $0x14] sm:$0xf]
        %v3682 = vld [vmem:[%s3675 + $0x18] sm:$0xf]
        %v3683 = vld [vmem:[%s3675 + $0x1c] sm:$0xf]
        %v3684 = vld [vmem:[%s3675 + $0x20] sm:$0xf]
        %v3685 = vld [vmem:[%s3675 + $0x24] sm:$0xf]
        %v3686 = vld [vmem:[%s3675 + $0x28] sm:$0xf]
        %v3687 = vld [vmem:[%s3675 + $0x2c] sm:$0xf]
        %v3688 = vld [vmem:[%s3675 + $0x30] sm:$0xf]
        %v3689 = vld [vmem:[%s3675 + $0x34] sm:$0xf]
        %v3690 = vld [vmem:[%s3675 + $0x38] sm:$0xf]
        %v3691 = vld [vmem:[%s3675 + $0x3c] sm:$0xf]
        %v3692 = vunpack.c.l.b16 %v3449
        %v3693 = vunpack.c.l.b16 %v3459
        %v3694 = vunpack.c.l.b16 %v3477
        %v3695 = vunpack.c.l.b16 %v3487
        %v3696 = vunpack.c.l.b16 %v3505
        %v3697 = vunpack.c.l.b16 %v3515
        %v3698 = vunpack.c.l.b16 %v3533
        %v3699 = vunpack.c.l.b16 %v3543
        %v3700 = vunpack.c.l.b16 %v3561
        %v3701 = vunpack.c.l.b16 %v3571
        %v3702 = vunpack.c.l.b16 %v3589
        %v3703 = vunpack.c.l.b16 %v3599
        %v3704 = vunpack.c.l.b16 %v3617
        %v3705 = vunpack.c.l.b16 %v3627
        %v3706 = vunpack.c.l.b16 %v3645
        %v3707 = vunpack.c.l.b16 %v3655
        %v3708 = vpack.c.b16 %v3693, %v3692
        %v3709 = vpack.c.b16 %v3695, %v3694
        %v3710 = vpack.c.b16 %v3697, %v3696
        %v3711 = vpack.c.b16 %v3699, %v3698
        %v3712 = vpack.c.b16 %v3701, %v3700
        %v3713 = vpack.c.b16 %v3703, %v3702
        %v3714 = vpack.c.b16 %v3705, %v3704
        %v3715 = vpack.c.b16 %v3707, %v3706
        %v3740 = vunpack.c.l.b16 %v3676
        %v3741 = vunpack.c.l.b16 %v3677
        %v3742 = vunpack.c.l.b16 %v3678
        %v3743 = vunpack.c.l.b16 %v3679
        %v3744 = vunpack.c.l.b16 %v3680
        %v3745 = vunpack.c.l.b16 %v3681
        %v3746 = vunpack.c.l.b16 %v3682
        %v3747 = vunpack.c.l.b16 %v3683
        %v3748 = vunpack.c.l.b16 %v3684
        %v3749 = vunpack.c.l.b16 %v3685
        %v3750 = vunpack.c.l.b16 %v3686
        %v3751 = vunpack.c.l.b16 %v3687
        %v3752 = vunpack.c.l.b16 %v3688
        %v3753 = vunpack.c.l.b16 %v3689
        %v3754 = vunpack.c.l.b16 %v3690
        %v3755 = vunpack.c.l.b16 %v3691
        %v3756 = vpack.c.b16 %v3741, %v3740
        %v3757 = vpack.c.b16 %v3743, %v3742
        %v3758 = vpack.c.b16 %v3745, %v3744
        %v3759 = vpack.c.b16 %v3747, %v3746
        %v3760 = vpack.c.b16 %v3749, %v3748
        %v3761 = vpack.c.b16 %v3751, %v3750
        %v3762 = vpack.c.b16 %v3753, %v3752
        %v3763 = vpack.c.b16 %v3755, %v3754
        %3772 = vmatpush.bf16.msra.mxu0 %v3763
        %3773 = vmatpush.bf16.msra.mxu0 %v3762
        %3774 = vmatpush.bf16.msra.mxu0 %v3761
        %3775 = vmatpush.bf16.msra.mxu0 %v3760
        %3776 = vmatpush.bf16.msra.mxu0 %v3759
        %3777 = vmatpush.bf16.msra.mxu0 %v3758
        %3778 = vmatpush.bf16.msra.mxu0 %v3757
        %3779 = vmatpush.bf16.msra.mxu0 %v3756
        %3780 = vmatmul.bf16.gmra.mxu0 %v3708
        %v3781 = vpop.f32.mrf.mxu0
        %v3782 = vadd.f32 0.0, %v3781
        %v3783 = vpop.f32.mrf.mxu0
        %v3784 = vadd.f32 0.0, %v3783
        %3785 = vmatmul.bf16.gmra.mxu0 %v3709
        %v3786 = vpop.f32.mrf.mxu0
        %v3787 = vadd.f32 0.0, %v3786
        %v3788 = vpop.f32.mrf.mxu0
        %v3789 = vadd.f32 0.0, %v3788
        %3790 = vmatmul.bf16.gmra.mxu0 %v3710
        %v3791 = vpop.f32.mrf.mxu0
        %v3792 = vadd.f32 0.0, %v3791
        %v3793 = vpop.f32.mrf.mxu0
        %v3794 = vadd.f32 0.0, %v3793
        %3795 = vmatmul.bf16.gmra.mxu0 %v3711
        %v3796 = vpop.f32.mrf.mxu0
        %v3797 = vadd.f32 0.0, %v3796
        %v3798 = vpop.f32.mrf.mxu0
        %v3799 = vadd.f32 0.0, %v3798
        %3800 = vmatmul.bf16.gmra.mxu0 %v3712
        %v3801 = vpop.f32.mrf.mxu0
        %v3802 = vadd.f32 0.0, %v3801
        %v3803 = vpop.f32.mrf.mxu0
        %v3804 = vadd.f32 0.0, %v3803
        %3805 = vmatmul.bf16.gmra.mxu0 %v3713
        %v3806 = vpop.f32.mrf.mxu0
        %v3807 = vadd.f32 0.0, %v3806
        %v3808 = vpop.f32.mrf.mxu0
        %v3809 = vadd.f32 0.0, %v3808
        %3810 = vmatmul.bf16.gmra.mxu0 %v3714
        %v3811 = vpop.f32.mrf.mxu0
        %v3812 = vadd.f32 0.0, %v3811
        %v3813 = vpop.f32.mrf.mxu0
        %v3814 = vadd.f32 0.0, %v3813
        %3815 = vmatmul.bf16.gmra.mxu0 %v3715
        %v3816 = vpop.f32.mrf.mxu0
        %v3817 = vadd.f32 0.0, %v3816
        %v3818 = vpop.f32.mrf.mxu0
        %v3819 = vadd.f32 0.0, %v3818
        %3820 = vdwg.mxu0
        %v3821 = vadd.f32 %v3657, %v3782
        %v3822 = vadd.f32 %v3658, %v3784
        %v3823 = vadd.f32 %v3659, %v3787
        %v3824 = vadd.f32 %v3660, %v3789
        %v3825 = vadd.f32 %v3661, %v3792
        %v3826 = vadd.f32 %v3662, %v3794
        %v3827 = vadd.f32 %v3663, %v3797
        %v3828 = vadd.f32 %v3664, %v3799
        %v3829 = vadd.f32 %v3665, %v3802
        %v3830 = vadd.f32 %v3666, %v3804
        %v3831 = vadd.f32 %v3667, %v3807
        %v3832 = vadd.f32 %v3668, %v3809
        %v3833 = vadd.f32 %v3669, %v3812
        %v3834 = vadd.f32 %v3670, %v3814
        %v3835 = vadd.f32 %v3671, %v3817
        %v3836 = vadd.f32 %v3672, %v3819
        %3837 = vst [vmem:[#allocation4] sm:$0xff] %v3821
        %3838 = vst [vmem:[#allocation4 + $0x8] sm:$0xff] %v3822
        %3839 = vst [vmem:[#allocation4 + $0x10] sm:$0xff] %v3823
        %3840 = vst [vmem:[#allocation4 + $0x18] sm:$0xff] %v3824
        %3841 = vst [vmem:[#allocation4 + $0x20] sm:$0xff] %v3825
        %3842 = vst [vmem:[#allocation4 + $0x28] sm:$0xff] %v3826
        %3843 = vst [vmem:[#allocation4 + $0x30] sm:$0xff] %v3827
        %3844 = vst [vmem:[#allocation4 + $0x38] sm:$0xff] %v3828
        %3845 = vst [vmem:[#allocation4 + $0x40] sm:$0xff] %v3829
        %3846 = vst [vmem:[#allocation4 + $0x48] sm:$0xff] %v3830
        %3847 = vst [vmem:[#allocation4 + $0x50] sm:$0xff] %v3831
        %3848 = vst [vmem:[#allocation4 + $0x58] sm:$0xff] %v3832
        %3849 = vst [vmem:[#allocation4 + $0x60] sm:$0xff] %v3833
        %3850 = vst [vmem:[#allocation4 + $0x68] sm:$0xff] %v3834
        %3851 = vst [vmem:[#allocation4 + $0x70] sm:$0xff] %v3835
        %3852 = vst [vmem:[#allocation4 + $0x78] sm:$0xff] %v3836
        %s3853 = scalar_lea.vmem %s267, 24 [#allocation2]
        %v3854 = vld [vmem:[%s3853] sm:$0xe]
        %v3855 = vld [vmem:[%s3853 + $0x4] sm:$0xf]
        %v3856 = vld [vmem:[%s3853 + $0x8] sm:$0x1]
        %v3857 = vld [vmem:[%s3853 + $0xc] sm:$0xe]
        %v3858 = vld [vmem:[%s3853 + $0x10] sm:$0xf]
        %v3859 = vld [vmem:[%s3853 + $0x14] sm:$0x1]
        %v3860 = vld [vmem:[%s3853 + $0x18] sm:$0xe]
        %v3861 = vld [vmem:[%s3853 + $0x1c] sm:$0xf]
        %v3862 = vld [vmem:[%s3853 + $0x20] sm:$0x1]
        %v3863 = vld [vmem:[%s3853 + $0x24] sm:$0xe]
        %v3864 = vld [vmem:[%s3853 + $0x28] sm:$0xf]
        %v3865 = vld [vmem:[%s3853 + $0x2c] sm:$0x1]
        %v3866 = vld [vmem:[%s3853 + $0x30] sm:$0xe]
        %v3867 = vld [vmem:[%s3853 + $0x34] sm:$0xf]
        %v3868 = vld [vmem:[%s3853 + $0x38] sm:$0x1]
        %v3869 = vld [vmem:[%s3853 + $0x3c] sm:$0xe]
        %v3870 = vld [vmem:[%s3853 + $0x40] sm:$0xf]
        %v3871 = vld [vmem:[%s3853 + $0x44] sm:$0x1]
        %v3872 = vld [vmem:[%s3853 + $0x48] sm:$0xe]
        %v3873 = vld [vmem:[%s3853 + $0x4c] sm:$0xf]
        %v3874 = vld [vmem:[%s3853 + $0x50] sm:$0x1]
        %v3875 = vld [vmem:[%s3853 + $0x54] sm:$0xe]
        %v3876 = vld [vmem:[%s3853 + $0x58] sm:$0xf]
        %v3877 = vld [vmem:[%s3853 + $0x5c] sm:$0x1]
        %vm3902 = vcmask 1042432
        %vm3903 = vcmask 1046532
        %vm3904 = vmor %vm3902, %vm3903
        %v3905 = vrot.slane %v3854, 5
        %v3906 = vrot.slane %v3905, 4
        %v3907 = vrot.slane %v3855, 5
        %v3908 = vsel %vm3904, %v3906, %v3907
        %v3909 = vrot.slane %v3907, 4
        %v3910 = vrot.slane %v3856, 5
        %v3911 = vsel %vm3904, %v3909, %v3910
        %v3912 = vrot.slane %v3857, 5
        %v3913 = vrot.slane %v3912, 4
        %v3914 = vrot.slane %v3858, 5
        %v3915 = vsel %vm3904, %v3913, %v3914
        %v3916 = vrot.slane %v3914, 4
        %v3917 = vrot.slane %v3859, 5
        %v3918 = vsel %vm3904, %v3916, %v3917
        %v3919 = vrot.slane %v3860, 5
        %v3920 = vrot.slane %v3919, 4
        %v3921 = vrot.slane %v3861, 5
        %v3922 = vsel %vm3904, %v3920, %v3921
        %v3923 = vrot.slane %v3921, 4
        %v3924 = vrot.slane %v3862, 5
        %v3925 = vsel %vm3904, %v3923, %v3924
        %v3926 = vrot.slane %v3863, 5
        %v3927 = vrot.slane %v3926, 4
        %v3928 = vrot.slane %v3864, 5
        %v3929 = vsel %vm3904, %v3927, %v3928
        %v3930 = vrot.slane %v3928, 4
        %v3931 = vrot.slane %v3865, 5
        %v3932 = vsel %vm3904, %v3930, %v3931
        %v3933 = vrot.slane %v3866, 5
        %v3934 = vrot.slane %v3933, 4
        %v3935 = vrot.slane %v3867, 5
        %v3936 = vsel %vm3904, %v3934, %v3935
        %v3937 = vrot.slane %v3935, 4
        %v3938 = vrot.slane %v3868, 5
        %v3939 = vsel %vm3904, %v3937, %v3938
        %v3940 = vrot.slane %v3869, 5
        %v3941 = vrot.slane %v3940, 4
        %v3942 = vrot.slane %v3870, 5
        %v3943 = vsel %vm3904, %v3941, %v3942
        %v3944 = vrot.slane %v3942, 4
        %v3945 = vrot.slane %v3871, 5
        %v3946 = vsel %vm3904, %v3944, %v3945
        %v3947 = vrot.slane %v3872, 5
        %v3948 = vrot.slane %v3947, 4
        %v3949 = vrot.slane %v3873, 5
        %v3950 = vsel %vm3904, %v3948, %v3949
        %v3951 = vrot.slane %v3949, 4
        %v3952 = vrot.slane %v3874, 5
        %v3953 = vsel %vm3904, %v3951, %v3952
        %v3954 = vrot.slane %v3875, 5
        %v3955 = vrot.slane %v3954, 4
        %v3956 = vrot.slane %v3876, 5
        %v3957 = vsel %vm3904, %v3955, %v3956
        %v3958 = vrot.slane %v3956, 4
        %v3959 = vrot.slane %v3877, 5
        %v3960 = vsel %vm3904, %v3958, %v3959
        %s3961 = sadd.s32 %s520, 9
        %v3962 = vld [vmem:[#allocation4] sm:$0xff]
        %v3963 = vld [vmem:[#allocation4 + $0x8] sm:$0xff]
        %v3964 = vld [vmem:[#allocation4 + $0x10] sm:$0xff]
        %v3965 = vld [vmem:[#allocation4 + $0x18] sm:$0xff]
        %v3966 = vld [vmem:[#allocation4 + $0x20] sm:$0xff]
        %v3967 = vld [vmem:[#allocation4 + $0x28] sm:$0xff]
        %v3968 = vld [vmem:[#allocation4 + $0x30] sm:$0xff]
        %v3969 = vld [vmem:[#allocation4 + $0x38] sm:$0xff]
        %v3970 = vld [vmem:[#allocation4 + $0x40] sm:$0xff]
        %v3971 = vld [vmem:[#allocation4 + $0x48] sm:$0xff]
        %v3972 = vld [vmem:[#allocation4 + $0x50] sm:$0xff]
        %v3973 = vld [vmem:[#allocation4 + $0x58] sm:$0xff]
        %v3974 = vld [vmem:[#allocation4 + $0x60] sm:$0xff]
        %v3975 = vld [vmem:[#allocation4 + $0x68] sm:$0xff]
        %v3976 = vld [vmem:[#allocation4 + $0x70] sm:$0xff]
        %v3977 = vld [vmem:[#allocation4 + $0x78] sm:$0xff]
        %s3978 = smul.u32 %s3961, 16
        %s3979 = smul.addr %s3978, 4
        %s3980 = scalar_lea.vmem [#allocation5], %s3979
        %v3981 = vld [vmem:[%s3980] sm:$0xf]
        %v3982 = vld [vmem:[%s3980 + $0x4] sm:$0xf]
        %v3983 = vld [vmem:[%s3980 + $0x8] sm:$0xf]
        %v3984 = vld [vmem:[%s3980 + $0xc] sm:$0xf]
        %v3985 = vld [vmem:[%s3980 + $0x10] sm:$0xf]
        %v3986 = vld [vmem:[%s3980 + $0x14] sm:$0xf]
        %v3987 = vld [vmem:[%s3980 + $0x18] sm:$0xf]
        %v3988 = vld [vmem:[%s3980 + $0x1c] sm:$0xf]
        %v3989 = vld [vmem:[%s3980 + $0x20] sm:$0xf]
        %v3990 = vld [vmem:[%s3980 + $0x24] sm:$0xf]
        %v3991 = vld [vmem:[%s3980 + $0x28] sm:$0xf]
        %v3992 = vld [vmem:[%s3980 + $0x2c] sm:$0xf]
        %v3993 = vld [vmem:[%s3980 + $0x30] sm:$0xf]
        %v3994 = vld [vmem:[%s3980 + $0x34] sm:$0xf]
        %v3995 = vld [vmem:[%s3980 + $0x38] sm:$0xf]
        %v3996 = vld [vmem:[%s3980 + $0x3c] sm:$0xf]
        %v3997 = vunpack.c.l.b16 %v3908
        %v3998 = vunpack.c.l.b16 %v3911
        %v3999 = vunpack.c.l.b16 %v3915
        %v4000 = vunpack.c.l.b16 %v3918
        %v4001 = vunpack.c.l.b16 %v3922
        %v4002 = vunpack.c.l.b16 %v3925
        %v4003 = vunpack.c.l.b16 %v3929
        %v4004 = vunpack.c.l.b16 %v3932
        %v4005 = vunpack.c.l.b16 %v3936
        %v4006 = vunpack.c.l.b16 %v3939
        %v4007 = vunpack.c.l.b16 %v3943
        %v4008 = vunpack.c.l.b16 %v3946
        %v4009 = vunpack.c.l.b16 %v3950
        %v4010 = vunpack.c.l.b16 %v3953
        %v4011 = vunpack.c.l.b16 %v3957
        %v4012 = vunpack.c.l.b16 %v3960
        %v4013 = vpack.c.b16 %v3998, %v3997
        %v4014 = vpack.c.b16 %v4000, %v3999
        %v4015 = vpack.c.b16 %v4002, %v4001
        %v4016 = vpack.c.b16 %v4004, %v4003
        %v4017 = vpack.c.b16 %v4006, %v4005
        %v4018 = vpack.c.b16 %v4008, %v4007
        %v4019 = vpack.c.b16 %v4010, %v4009
        %v4020 = vpack.c.b16 %v4012, %v4011
        %v4045 = vunpack.c.l.b16 %v3981
        %v4046 = vunpack.c.l.b16 %v3982
        %v4047 = vunpack.c.l.b16 %v3983
        %v4048 = vunpack.c.l.b16 %v3984
        %v4049 = vunpack.c.l.b16 %v3985
        %v4050 = vunpack.c.l.b16 %v3986
        %v4051 = vunpack.c.l.b16 %v3987
        %v4052 = vunpack.c.l.b16 %v3988
        %v4053 = vunpack.c.l.b16 %v3989
        %v4054 = vunpack.c.l.b16 %v3990
        %v4055 = vunpack.c.l.b16 %v3991
        %v4056 = vunpack.c.l.b16 %v3992
        %v4057 = vunpack.c.l.b16 %v3993
        %v4058 = vunpack.c.l.b16 %v3994
        %v4059 = vunpack.c.l.b16 %v3995
        %v4060 = vunpack.c.l.b16 %v3996
        %v4061 = vpack.c.b16 %v4046, %v4045
        %v4062 = vpack.c.b16 %v4048, %v4047
        %v4063 = vpack.c.b16 %v4050, %v4049
        %v4064 = vpack.c.b16 %v4052, %v4051
        %v4065 = vpack.c.b16 %v4054, %v4053
        %v4066 = vpack.c.b16 %v4056, %v4055
        %v4067 = vpack.c.b16 %v4058, %v4057
        %v4068 = vpack.c.b16 %v4060, %v4059
        %4077 = vmatpush.bf16.msra.mxu0 %v4068
        %4078 = vmatpush.bf16.msra.mxu0 %v4067
        %4079 = vmatpush.bf16.msra.mxu0 %v4066
        %4080 = vmatpush.bf16.msra.mxu0 %v4065
        %4081 = vmatpush.bf16.msra.mxu0 %v4064
        %4082 = vmatpush.bf16.msra.mxu0 %v4063
        %4083 = vmatpush.bf16.msra.mxu0 %v4062
        %4084 = vmatpush.bf16.msra.mxu0 %v4061
        %4085 = vmatmul.bf16.gmra.mxu0 %v4013
        %v4086 = vpop.f32.mrf.mxu0
        %v4087 = vadd.f32 0.0, %v4086
        %v4088 = vpop.f32.mrf.mxu0
        %v4089 = vadd.f32 0.0, %v4088
        %4090 = vmatmul.bf16.gmra.mxu0 %v4014
        %v4091 = vpop.f32.mrf.mxu0
        %v4092 = vadd.f32 0.0, %v4091
        %v4093 = vpop.f32.mrf.mxu0
        %v4094 = vadd.f32 0.0, %v4093
        %4095 = vmatmul.bf16.gmra.mxu0 %v4015
        %v4096 = vpop.f32.mrf.mxu0
        %v4097 = vadd.f32 0.0, %v4096
        %v4098 = vpop.f32.mrf.mxu0
        %v4099 = vadd.f32 0.0, %v4098
        %4100 = vmatmul.bf16.gmra.mxu0 %v4016
        %v4101 = vpop.f32.mrf.mxu0
        %v4102 = vadd.f32 0.0, %v4101
        %v4103 = vpop.f32.mrf.mxu0
        %v4104 = vadd.f32 0.0, %v4103
        %4105 = vmatmul.bf16.gmra.mxu0 %v4017
        %v4106 = vpop.f32.mrf.mxu0
        %v4107 = vadd.f32 0.0, %v4106
        %v4108 = vpop.f32.mrf.mxu0
        %v4109 = vadd.f32 0.0, %v4108
        %4110 = vmatmul.bf16.gmra.mxu0 %v4018
        %v4111 = vpop.f32.mrf.mxu0
        %v4112 = vadd.f32 0.0, %v4111
        %v4113 = vpop.f32.mrf.mxu0
        %v4114 = vadd.f32 0.0, %v4113
        %4115 = vmatmul.bf16.gmra.mxu0 %v4019
        %v4116 = vpop.f32.mrf.mxu0
        %v4117 = vadd.f32 0.0, %v4116
        %v4118 = vpop.f32.mrf.mxu0
        %v4119 = vadd.f32 0.0, %v4118
        %4120 = vmatmul.bf16.gmra.mxu0 %v4020
        %v4121 = vpop.f32.mrf.mxu0
        %v4122 = vadd.f32 0.0, %v4121
        %v4123 = vpop.f32.mrf.mxu0
        %v4124 = vadd.f32 0.0, %v4123
        %4125 = vdwg.mxu0
        %v4126 = vadd.f32 %v3962, %v4087
        %v4127 = vadd.f32 %v3963, %v4089
        %v4128 = vadd.f32 %v3964, %v4092
        %v4129 = vadd.f32 %v3965, %v4094
        %v4130 = vadd.f32 %v3966, %v4097
        %v4131 = vadd.f32 %v3967, %v4099
        %v4132 = vadd.f32 %v3968, %v4102
        %v4133 = vadd.f32 %v3969, %v4104
        %v4134 = vadd.f32 %v3970, %v4107
        %v4135 = vadd.f32 %v3971, %v4109
        %v4136 = vadd.f32 %v3972, %v4112
        %v4137 = vadd.f32 %v3973, %v4114
        %v4138 = vadd.f32 %v3974, %v4117
        %v4139 = vadd.f32 %v3975, %v4119
        %v4140 = vadd.f32 %v3976, %v4122
        %v4141 = vadd.f32 %v3977, %v4124
        %4142 = vst [vmem:[#allocation4] sm:$0xff] %v4126
        %4143 = vst [vmem:[#allocation4 + $0x8] sm:$0xff] %v4127
        %4144 = vst [vmem:[#allocation4 + $0x10] sm:$0xff] %v4128
        %4145 = vst [vmem:[#allocation4 + $0x18] sm:$0xff] %v4129
        %4146 = vst [vmem:[#allocation4 + $0x20] sm:$0xff] %v4130
        %4147 = vst [vmem:[#allocation4 + $0x28] sm:$0xff] %v4131
        %4148 = vst [vmem:[#allocation4 + $0x30] sm:$0xff] %v4132
        %4149 = vst [vmem:[#allocation4 + $0x38] sm:$0xff] %v4133
        %4150 = vst [vmem:[#allocation4 + $0x40] sm:$0xff] %v4134
        %4151 = vst [vmem:[#allocation4 + $0x48] sm:$0xff] %v4135
        %4152 = vst [vmem:[#allocation4 + $0x50] sm:$0xff] %v4136
        %4153 = vst [vmem:[#allocation4 + $0x58] sm:$0xff] %v4137
        %4154 = vst [vmem:[#allocation4 + $0x60] sm:$0xff] %v4138
        %4155 = vst [vmem:[#allocation4 + $0x68] sm:$0xff] %v4139
        %4156 = vst [vmem:[#allocation4 + $0x70] sm:$0xff] %v4140
        %4157 = vst [vmem:[#allocation4 + $0x78] sm:$0xff] %v4141
        %v4158 = vld [vmem:[%s3853] sm:$0xc]
        %v4159 = vld [vmem:[%s3853 + $0x4] sm:$0xf]
        %v4160 = vld [vmem:[%s3853 + $0x8] sm:$0x3]
        %v4161 = vld [vmem:[%s3853 + $0xc] sm:$0xc]
        %v4162 = vld [vmem:[%s3853 + $0x10] sm:$0xf]
        %v4163 = vld [vmem:[%s3853 + $0x14] sm:$0x3]
        %v4164 = vld [vmem:[%s3853 + $0x18] sm:$0xc]
        %v4165 = vld [vmem:[%s3853 + $0x1c] sm:$0xf]
        %v4166 = vld [vmem:[%s3853 + $0x20] sm:$0x3]
        %v4167 = vld [vmem:[%s3853 + $0x24] sm:$0xc]
        %v4168 = vld [vmem:[%s3853 + $0x28] sm:$0xf]
        %v4169 = vld [vmem:[%s3853 + $0x2c] sm:$0x3]
        %v4170 = vld [vmem:[%s3853 + $0x30] sm:$0xc]
        %v4171 = vld [vmem:[%s3853 + $0x34] sm:$0xf]
        %v4172 = vld [vmem:[%s3853 + $0x38] sm:$0x3]
        %v4173 = vld [vmem:[%s3853 + $0x3c] sm:$0xc]
        %v4174 = vld [vmem:[%s3853 + $0x40] sm:$0xf]
        %v4175 = vld [vmem:[%s3853 + $0x44] sm:$0x3]
        %v4176 = vld [vmem:[%s3853 + $0x48] sm:$0xc]
        %v4177 = vld [vmem:[%s3853 + $0x4c] sm:$0xf]
        %v4178 = vld [vmem:[%s3853 + $0x50] sm:$0x3]
        %v4179 = vld [vmem:[%s3853 + $0x54] sm:$0xc]
        %v4180 = vld [vmem:[%s3853 + $0x58] sm:$0xf]
        %v4181 = vld [vmem:[%s3853 + $0x5c] sm:$0x3]
        %v4206 = vrot.slane %v4158, 6
        %v4207 = vrot.slane %v4206, 4
        %v4208 = vrot.slane %v4159, 6
        %v4209 = vsel %vm767, %v4207, %v4208
        %v4210 = vrot.slane %v4208, 4
        %v4211 = vrot.slane %v4160, 6
        %v4212 = vsel %vm767, %v4210, %v4211
        %v4213 = vrot.slane %v4161, 6
        %v4214 = vrot.slane %v4213, 4
        %v4215 = vrot.slane %v4162, 6
        %v4216 = vsel %vm767, %v4214, %v4215
        %v4217 = vrot.slane %v4215, 4
        %v4218 = vrot.slane %v4163, 6
        %v4219 = vsel %vm767, %v4217, %v4218
        %v4220 = vrot.slane %v4164, 6
        %v4221 = vrot.slane %v4220, 4
        %v4222 = vrot.slane %v4165, 6
        %v4223 = vsel %vm767, %v4221, %v4222
        %v4224 = vrot.slane %v4222, 4
        %v4225 = vrot.slane %v4166, 6
        %v4226 = vsel %vm767, %v4224, %v4225
        %v4227 = vrot.slane %v4167, 6
        %v4228 = vrot.slane %v4227, 4
        %v4229 = vrot.slane %v4168, 6
        %v4230 = vsel %vm767, %v4228, %v4229
        %v4231 = vrot.slane %v4229, 4
        %v4232 = vrot.slane %v4169, 6
        %v4233 = vsel %vm767, %v4231, %v4232
        %v4234 = vrot.slane %v4170, 6
        %v4235 = vrot.slane %v4234, 4
        %v4236 = vrot.slane %v4171, 6
        %v4237 = vsel %vm767, %v4235, %v4236
        %v4238 = vrot.slane %v4236, 4
        %v4239 = vrot.slane %v4172, 6
        %v4240 = vsel %vm767, %v4238, %v4239
        %v4241 = vrot.slane %v4173, 6
        %v4242 = vrot.slane %v4241, 4
        %v4243 = vrot.slane %v4174, 6
        %v4244 = vsel %vm767, %v4242, %v4243
        %v4245 = vrot.slane %v4243, 4
        %v4246 = vrot.slane %v4175, 6
        %v4247 = vsel %vm767, %v4245, %v4246
        %v4248 = vrot.slane %v4176, 6
        %v4249 = vrot.slane %v4248, 4
        %v4250 = vrot.slane %v4177, 6
        %v4251 = vsel %vm767, %v4249, %v4250
        %v4252 = vrot.slane %v4250, 4
        %v4253 = vrot.slane %v4178, 6
        %v4254 = vsel %vm767, %v4252, %v4253
        %v4255 = vrot.slane %v4179, 6
        %v4256 = vrot.slane %v4255, 4
        %v4257 = vrot.slane %v4180, 6
        %v4258 = vsel %vm767, %v4256, %v4257
        %v4259 = vrot.slane %v4257, 4
        %v4260 = vrot.slane %v4181, 6
        %v4261 = vsel %vm767, %v4259, %v4260
        %s4262 = sadd.s32 %s520, 10
        %v4263 = vld [vmem:[#allocation4] sm:$0xff]
        %v4264 = vld [vmem:[#allocation4 + $0x8] sm:$0xff]
        %v4265 = vld [vmem:[#allocation4 + $0x10] sm:$0xff]
        %v4266 = vld [vmem:[#allocation4 + $0x18] sm:$0xff]
        %v4267 = vld [vmem:[#allocation4 + $0x20] sm:$0xff]
        %v4268 = vld [vmem:[#allocation4 + $0x28] sm:$0xff]
        %v4269 = vld [vmem:[#allocation4 + $0x30] sm:$0xff]
        %v4270 = vld [vmem:[#allocation4 + $0x38] sm:$0xff]
        %v4271 = vld [vmem:[#allocation4 + $0x40] sm:$0xff]
        %v4272 = vld [vmem:[#allocation4 + $0x48] sm:$0xff]
        %v4273 = vld [vmem:[#allocation4 + $0x50] sm:$0xff]
        %v4274 = vld [vmem:[#allocation4 + $0x58] sm:$0xff]
        %v4275 = vld [vmem:[#allocation4 + $0x60] sm:$0xff]
        %v4276 = vld [vmem:[#allocation4 + $0x68] sm:$0xff]
        %v4277 = vld [vmem:[#allocation4 + $0x70] sm:$0xff]
        %v4278 = vld [vmem:[#allocation4 + $0x78] sm:$0xff]
        %s4279 = smul.u32 %s4262, 16
        %s4280 = smul.addr %s4279, 4
        %s4281 = scalar_lea.vmem [#allocation5], %s4280
        %v4282 = vld [vmem:[%s4281] sm:$0xf]
        %v4283 = vld [vmem:[%s4281 + $0x4] sm:$0xf]
        %v4284 = vld [vmem:[%s4281 + $0x8] sm:$0xf]
        %v4285 = vld [vmem:[%s4281 + $0xc] sm:$0xf]
        %v4286 = vld [vmem:[%s4281 + $0x10] sm:$0xf]
        %v4287 = vld [vmem:[%s4281 + $0x14] sm:$0xf]
        %v4288 = vld [vmem:[%s4281 + $0x18] sm:$0xf]
        %v4289 = vld [vmem:[%s4281 + $0x1c] sm:$0xf]
        %v4290 = vld [vmem:[%s4281 + $0x20] sm:$0xf]
        %v4291 = vld [vmem:[%s4281 + $0x24] sm:$0xf]
        %v4292 = vld [vmem:[%s4281 + $0x28] sm:$0xf]
        %v4293 = vld [vmem:[%s4281 + $0x2c] sm:$0xf]
        %v4294 = vld [vmem:[%s4281 + $0x30] sm:$0xf]
        %v4295 = vld [vmem:[%s4281 + $0x34] sm:$0xf]
        %v4296 = vld [vmem:[%s4281 + $0x38] sm:$0xf]
        %v4297 = vld [vmem:[%s4281 + $0x3c] sm:$0xf]
        %v4298 = vunpack.c.l.b16 %v4209
        %v4299 = vunpack.c.l.b16 %v4212
        %v4300 = vunpack.c.l.b16 %v4216
        %v4301 = vunpack.c.l.b16 %v4219
        %v4302 = vunpack.c.l.b16 %v4223
        %v4303 = vunpack.c.l.b16 %v4226
        %v4304 = vunpack.c.l.b16 %v4230
        %v4305 = vunpack.c.l.b16 %v4233
        %v4306 = vunpack.c.l.b16 %v4237
        %v4307 = vunpack.c.l.b16 %v4240
        %v4308 = vunpack.c.l.b16 %v4244
        %v4309 = vunpack.c.l.b16 %v4247
        %v4310 = vunpack.c.l.b16 %v4251
        %v4311 = vunpack.c.l.b16 %v4254
        %v4312 = vunpack.c.l.b16 %v4258
        %v4313 = vunpack.c.l.b16 %v4261
        %v4314 = vpack.c.b16 %v4299, %v4298
        %v4315 = vpack.c.b16 %v4301, %v4300
        %v4316 = vpack.c.b16 %v4303, %v4302
        %v4317 = vpack.c.b16 %v4305, %v4304
        %v4318 = vpack.c.b16 %v4307, %v4306
        %v4319 = vpack.c.b16 %v4309, %v4308
        %v4320 = vpack.c.b16 %v4311, %v4310
        %v4321 = vpack.c.b16 %v4313, %v4312
        %v4346 = vunpack.c.l.b16 %v4282
        %v4347 = vunpack.c.l.b16 %v4283
        %v4348 = vunpack.c.l.b16 %v4284
        %v4349 = vunpack.c.l.b16 %v4285
        %v4350 = vunpack.c.l.b16 %v4286
        %v4351 = vunpack.c.l.b16 %v4287
        %v4352 = vunpack.c.l.b16 %v4288
        %v4353 = vunpack.c.l.b16 %v4289
        %v4354 = vunpack.c.l.b16 %v4290
        %v4355 = vunpack.c.l.b16 %v4291
        %v4356 = vunpack.c.l.b16 %v4292
        %v4357 = vunpack.c.l.b16 %v4293
        %v4358 = vunpack.c.l.b16 %v4294
        %v4359 = vunpack.c.l.b16 %v4295
        %v4360 = vunpack.c.l.b16 %v4296
        %v4361 = vunpack.c.l.b16 %v4297
        %v4362 = vpack.c.b16 %v4347, %v4346
        %v4363 = vpack.c.b16 %v4349, %v4348
        %v4364 = vpack.c.b16 %v4351, %v4350
        %v4365 = vpack.c.b16 %v4353, %v4352
        %v4366 = vpack.c.b16 %v4355, %v4354
        %v4367 = vpack.c.b16 %v4357, %v4356
        %v4368 = vpack.c.b16 %v4359, %v4358
        %v4369 = vpack.c.b16 %v4361, %v4360
        %4378 = vmatpush.bf16.msra.mxu0 %v4369
        %4379 = vmatpush.bf16.msra.mxu0 %v4368
        %4380 = vmatpush.bf16.msra.mxu0 %v4367
        %4381 = vmatpush.bf16.msra.mxu0 %v4366
        %4382 = vmatpush.bf16.msra.mxu0 %v4365
        %4383 = vmatpush.bf16.msra.mxu0 %v4364
        %4384 = vmatpush.bf16.msra.mxu0 %v4363
        %4385 = vmatpush.bf16.msra.mxu0 %v4362
        %4386 = vmatmul.bf16.gmra.mxu0 %v4314
        %v4387 = vpop.f32.mrf.mxu0
        %v4388 = vadd.f32 0.0, %v4387
        %v4389 = vpop.f32.mrf.mxu0
        %v4390 = vadd.f32 0.0, %v4389
        %4391 = vmatmul.bf16.gmra.mxu0 %v4315
        %v4392 = vpop.f32.mrf.mxu0
        %v4393 = vadd.f32 0.0, %v4392
        %v4394 = vpop.f32.mrf.mxu0
        %v4395 = vadd.f32 0.0, %v4394
        %4396 = vmatmul.bf16.gmra.mxu0 %v4316
        %v4397 = vpop.f32.mrf.mxu0
        %v4398 = vadd.f32 0.0, %v4397
        %v4399 = vpop.f32.mrf.mxu0
        %v4400 = vadd.f32 0.0, %v4399
        %4401 = vmatmul.bf16.gmra.mxu0 %v4317
        %v4402 = vpop.f32.mrf.mxu0
        %v4403 = vadd.f32 0.0, %v4402
        %v4404 = vpop.f32.mrf.mxu0
        %v4405 = vadd.f32 0.0, %v4404
        %4406 = vmatmul.bf16.gmra.mxu0 %v4318
        %v4407 = vpop.f32.mrf.mxu0
        %v4408 = vadd.f32 0.0, %v4407
        %v4409 = vpop.f32.mrf.mxu0
        %v4410 = vadd.f32 0.0, %v4409
        %4411 = vmatmul.bf16.gmra.mxu0 %v4319
        %v4412 = vpop.f32.mrf.mxu0
        %v4413 = vadd.f32 0.0, %v4412
        %v4414 = vpop.f32.mrf.mxu0
        %v4415 = vadd.f32 0.0, %v4414
        %4416 = vmatmul.bf16.gmra.mxu0 %v4320
        %v4417 = vpop.f32.mrf.mxu0
        %v4418 = vadd.f32 0.0, %v4417
        %v4419 = vpop.f32.mrf.mxu0
        %v4420 = vadd.f32 0.0, %v4419
        %4421 = vmatmul.bf16.gmra.mxu0 %v4321
        %v4422 = vpop.f32.mrf.mxu0
        %v4423 = vadd.f32 0.0, %v4422
        %v4424 = vpop.f32.mrf.mxu0
        %v4425 = vadd.f32 0.0, %v4424
        %4426 = vdwg.mxu0
        %v4427 = vadd.f32 %v4263, %v4388
        %v4428 = vadd.f32 %v4264, %v4390
        %v4429 = vadd.f32 %v4265, %v4393
        %v4430 = vadd.f32 %v4266, %v4395
        %v4431 = vadd.f32 %v4267, %v4398
        %v4432 = vadd.f32 %v4268, %v4400
        %v4433 = vadd.f32 %v4269, %v4403
        %v4434 = vadd.f32 %v4270, %v4405
        %v4435 = vadd.f32 %v4271, %v4408
        %v4436 = vadd.f32 %v4272, %v4410
        %v4437 = vadd.f32 %v4273, %v4413
        %v4438 = vadd.f32 %v4274, %v4415
        %v4439 = vadd.f32 %v4275, %v4418
        %v4440 = vadd.f32 %v4276, %v4420
        %v4441 = vadd.f32 %v4277, %v4423
        %v4442 = vadd.f32 %v4278, %v4425
        %4443 = vst [vmem:[#allocation4] sm:$0xff] %v4427
        %4444 = vst [vmem:[#allocation4 + $0x8] sm:$0xff] %v4428
        %4445 = vst [vmem:[#allocation4 + $0x10] sm:$0xff] %v4429
        %4446 = vst [vmem:[#allocation4 + $0x18] sm:$0xff] %v4430
        %4447 = vst [vmem:[#allocation4 + $0x20] sm:$0xff] %v4431
        %4448 = vst [vmem:[#allocation4 + $0x28] sm:$0xff] %v4432
        %4449 = vst [vmem:[#allocation4 + $0x30] sm:$0xff] %v4433
        %4450 = vst [vmem:[#allocation4 + $0x38] sm:$0xff] %v4434
        %4451 = vst [vmem:[#allocation4 + $0x40] sm:$0xff] %v4435
        %4452 = vst [vmem:[#allocation4 + $0x48] sm:$0xff] %v4436
        %4453 = vst [vmem:[#allocation4 + $0x50] sm:$0xff] %v4437
        %4454 = vst [vmem:[#allocation4 + $0x58] sm:$0xff] %v4438
        %4455 = vst [vmem:[#allocation4 + $0x60] sm:$0xff] %v4439
        %4456 = vst [vmem:[#allocation4 + $0x68] sm:$0xff] %v4440
        %4457 = vst [vmem:[#allocation4 + $0x70] sm:$0xff] %v4441
        %4458 = vst [vmem:[#allocation4 + $0x78] sm:$0xff] %v4442
        %v4459 = vld [vmem:[%s3853] sm:$0x8]
        %v4460 = vld [vmem:[%s3853 + $0x4] sm:$0xf]
        %v4461 = vld [vmem:[%s3853 + $0x8] sm:$0x7]
        %v4462 = vld [vmem:[%s3853 + $0xc] sm:$0x8]
        %v4463 = vld [vmem:[%s3853 + $0x10] sm:$0xf]
        %v4464 = vld [vmem:[%s3853 + $0x14] sm:$0x7]
        %v4465 = vld [vmem:[%s3853 + $0x18] sm:$0x8]
        %v4466 = vld [vmem:[%s3853 + $0x1c] sm:$0xf]
        %v4467 = vld [vmem:[%s3853 + $0x20] sm:$0x7]
        %v4468 = vld [vmem:[%s3853 + $0x24] sm:$0x8]
        %v4469 = vld [vmem:[%s3853 + $0x28] sm:$0xf]
        %v4470 = vld [vmem:[%s3853 + $0x2c] sm:$0x7]
        %v4471 = vld [vmem:[%s3853 + $0x30] sm:$0x8]
        %v4472 = vld [vmem:[%s3853 + $0x34] sm:$0xf]
        %v4473 = vld [vmem:[%s3853 + $0x38] sm:$0x7]
        %v4474 = vld [vmem:[%s3853 + $0x3c] sm:$0x8]
        %v4475 = vld [vmem:[%s3853 + $0x40] sm:$0xf]
        %v4476 = vld [vmem:[%s3853 + $0x44] sm:$0x7]
        %v4477 = vld [vmem:[%s3853 + $0x48] sm:$0x8]
        %v4478 = vld [vmem:[%s3853 + $0x4c] sm:$0xf]
        %v4479 = vld [vmem:[%s3853 + $0x50] sm:$0x7]
        %v4480 = vld [vmem:[%s3853 + $0x54] sm:$0x8]
        %v4481 = vld [vmem:[%s3853 + $0x58] sm:$0xf]
        %v4482 = vld [vmem:[%s3853 + $0x5c] sm:$0x7]
        %vm4507 = vcmask 1040384
        %vm4508 = vcmask 1044484
        %vm4509 = vmor %vm4507, %vm4508
        %v4510 = vrot.slane %v4459, 7
        %v4511 = vrot.slane %v4510, 4
        %v4512 = vrot.slane %v4460, 7
        %v4513 = vsel %vm4509, %v4511, %v4512
        %v4514 = vrot.slane %v4512, 4
        %v4515 = vrot.slane %v4461, 7
        %v4516 = vsel %vm4509, %v4514, %v4515
        %v4517 = vrot.slane %v4462, 7
        %v4518 = vrot.slane %v4517, 4
        %v4519 = vrot.slane %v4463, 7
        %v4520 = vsel %vm4509, %v4518, %v4519
        %v4521 = vrot.slane %v4519, 4
        %v4522 = vrot.slane %v4464, 7
        %v4523 = vsel %vm4509, %v4521, %v4522
        %v4524 = vrot.slane %v4465, 7
        %v4525 = vrot.slane %v4524, 4
        %v4526 = vrot.slane %v4466, 7
        %v4527 = vsel %vm4509, %v4525, %v4526
        %v4528 = vrot.slane %v4526, 4
        %v4529 = vrot.slane %v4467, 7
        %v4530 = vsel %vm4509, %v4528, %v4529
        %v4531 = vrot.slane %v4468, 7
        %v4532 = vrot.slane %v4531, 4
        %v4533 = vrot.slane %v4469, 7
        %v4534 = vsel %vm4509, %v4532, %v4533
        %v4535 = vrot.slane %v4533, 4
        %v4536 = vrot.slane %v4470, 7
        %v4537 = vsel %vm4509, %v4535, %v4536
        %v4538 = vrot.slane %v4471, 7
        %v4539 = vrot.slane %v4538, 4
        %v4540 = vrot.slane %v4472, 7
        %v4541 = vsel %vm4509, %v4539, %v4540
        %v4542 = vrot.slane %v4540, 4
        %v4543 = vrot.slane %v4473, 7
        %v4544 = vsel %vm4509, %v4542, %v4543
        %v4545 = vrot.slane %v4474, 7
        %v4546 = vrot.slane %v4545, 4
        %v4547 = vrot.slane %v4475, 7
        %v4548 = vsel %vm4509, %v4546, %v4547
        %v4549 = vrot.slane %v4547, 4
        %v4550 = vrot.slane %v4476, 7
        %v4551 = vsel %vm4509, %v4549, %v4550
        %v4552 = vrot.slane %v4477, 7
        %v4553 = vrot.slane %v4552, 4
        %v4554 = vrot.slane %v4478, 7
        %v4555 = vsel %vm4509, %v4553, %v4554
        %v4556 = vrot.slane %v4554, 4
        %v4557 = vrot.slane %v4479, 7
        %v4558 = vsel %vm4509, %v4556, %v4557
        %v4559 = vrot.slane %v4480, 7
        %v4560 = vrot.slane %v4559, 4
        %v4561 = vrot.slane %v4481, 7
        %v4562 = vsel %vm4509, %v4560, %v4561
        %v4563 = vrot.slane %v4561, 4
        %v4564 = vrot.slane %v4482, 7
        %v4565 = vsel %vm4509, %v4563, %v4564
        %s4566 = sadd.s32 %s520, 11
        %v4567 = vld [vmem:[#allocation4] sm:$0xff]
        %v4568 = vld [vmem:[#allocation4 + $0x8] sm:$0xff]
        %v4569 = vld [vmem:[#allocation4 + $0x10] sm:$0xff]
        %v4570 = vld [vmem:[#allocation4 + $0x18] sm:$0xff]
        %v4571 = vld [vmem:[#allocation4 + $0x20] sm:$0xff]
        %v4572 = vld [vmem:[#allocation4 + $0x28] sm:$0xff]
        %v4573 = vld [vmem:[#allocation4 + $0x30] sm:$0xff]
        %v4574 = vld [vmem:[#allocation4 + $0x38] sm:$0xff]
        %v4575 = vld [vmem:[#allocation4 + $0x40] sm:$0xff]
        %v4576 = vld [vmem:[#allocation4 + $0x48] sm:$0xff]
        %v4577 = vld [vmem:[#allocation4 + $0x50] sm:$0xff]
        %v4578 = vld [vmem:[#allocation4 + $0x58] sm:$0xff]
        %v4579 = vld [vmem:[#allocation4 + $0x60] sm:$0xff]
        %v4580 = vld [vmem:[#allocation4 + $0x68] sm:$0xff]
        %v4581 = vld [vmem:[#allocation4 + $0x70] sm:$0xff]
        %v4582 = vld [vmem:[#allocation4 + $0x78] sm:$0xff]
        %s4583 = smul.u32 %s4566, 16
        %s4584 = smul.addr %s4583, 4
        %s4585 = scalar_lea.vmem [#allocation5], %s4584
        %v4586 = vld [vmem:[%s4585] sm:$0xf]
        %v4587 = vld [vmem:[%s4585 + $0x4] sm:$0xf]
        %v4588 = vld [vmem:[%s4585 + $0x8] sm:$0xf]
        %v4589 = vld [vmem:[%s4585 + $0xc] sm:$0xf]
        %v4590 = vld [vmem:[%s4585 + $0x10] sm:$0xf]
        %v4591 = vld [vmem:[%s4585 + $0x14] sm:$0xf]
        %v4592 = vld [vmem:[%s4585 + $0x18] sm:$0xf]
        %v4593 = vld [vmem:[%s4585 + $0x1c] sm:$0xf]
        %v4594 = vld [vmem:[%s4585 + $0x20] sm:$0xf]
        %v4595 = vld [vmem:[%s4585 + $0x24] sm:$0xf]
        %v4596 = vld [vmem:[%s4585 + $0x28] sm:$0xf]
        %v4597 = vld [vmem:[%s4585 + $0x2c] sm:$0xf]
        %v4598 = vld [vmem:[%s4585 + $0x30] sm:$0xf]
        %v4599 = vld [vmem:[%s4585 + $0x34] sm:$0xf]
        %v4600 = vld [vmem:[%s4585 + $0x38] sm:$0xf]
        %v4601 = vld [vmem:[%s4585 + $0x3c] sm:$0xf]
        %v4602 = vunpack.c.l.b16 %v4513
        %v4603 = vunpack.c.l.b16 %v4516
        %v4604 = vunpack.c.l.b16 %v4520
        %v4605 = vunpack.c.l.b16 %v4523
        %v4606 = vunpack.c.l.b16 %v4527
        %v4607 = vunpack.c.l.b16 %v4530
        %v4608 = vunpack.c.l.b16 %v4534
        %v4609 = vunpack.c.l.b16 %v4537
        %v4610 = vunpack.c.l.b16 %v4541
        %v4611 = vunpack.c.l.b16 %v4544
        %v4612 = vunpack.c.l.b16 %v4548
        %v4613 = vunpack.c.l.b16 %v4551
        %v4614 = vunpack.c.l.b16 %v4555
        %v4615 = vunpack.c.l.b16 %v4558
        %v4616 = vunpack.c.l.b16 %v4562
        %v4617 = vunpack.c.l.b16 %v4565
        %v4618 = vpack.c.b16 %v4603, %v4602
        %v4619 = vpack.c.b16 %v4605, %v4604
        %v4620 = vpack.c.b16 %v4607, %v4606
        %v4621 = vpack.c.b16 %v4609, %v4608
        %v4622 = vpack.c.b16 %v4611, %v4610
        %v4623 = vpack.c.b16 %v4613, %v4612
        %v4624 = vpack.c.b16 %v4615, %v4614
        %v4625 = vpack.c.b16 %v4617, %v4616
        %v4650 = vunpack.c.l.b16 %v4586
        %v4651 = vunpack.c.l.b16 %v4587
        %v4652 = vunpack.c.l.b16 %v4588
        %v4653 = vunpack.c.l.b16 %v4589
        %v4654 = vunpack.c.l.b16 %v4590
        %v4655 = vunpack.c.l.b16 %v4591
        %v4656 = vunpack.c.l.b16 %v4592
        %v4657 = vunpack.c.l.b16 %v4593
        %v4658 = vunpack.c.l.b16 %v4594
        %v4659 = vunpack.c.l.b16 %v4595
        %v4660 = vunpack.c.l.b16 %v4596
        %v4661 = vunpack.c.l.b16 %v4597
        %v4662 = vunpack.c.l.b16 %v4598
        %v4663 = vunpack.c.l.b16 %v4599
        %v4664 = vunpack.c.l.b16 %v4600
        %v4665 = vunpack.c.l.b16 %v4601
        %v4666 = vpack.c.b16 %v4651, %v4650
        %v4667 = vpack.c.b16 %v4653, %v4652
        %v4668 = vpack.c.b16 %v4655, %v4654
        %v4669 = vpack.c.b16 %v4657, %v4656
        %v4670 = vpack.c.b16 %v4659, %v4658
        %v4671 = vpack.c.b16 %v4661, %v4660
        %v4672 = vpack.c.b16 %v4663, %v4662
        %v4673 = vpack.c.b16 %v4665, %v4664
        %4682 = vmatpush.bf16.msra.mxu0 %v4673
        %4683 = vmatpush.bf16.msra.mxu0 %v4672
        %4684 = vmatpush.bf16.msra.mxu0 %v4671
        %4685 = vmatpush.bf16.msra.mxu0 %v4670
        %4686 = vmatpush.bf16.msra.mxu0 %v4669
        %4687 = vmatpush.bf16.msra.mxu0 %v4668
        %4688 = vmatpush.bf16.msra.mxu0 %v4667
        %4689 = vmatpush.bf16.msra.mxu0 %v4666
        %4690 = vmatmul.bf16.gmra.mxu0 %v4618
        %v4691 = vpop.f32.mrf.mxu0
        %v4692 = vadd.f32 0.0, %v4691
        %v4693 = vpop.f32.mrf.mxu0
        %v4694 = vadd.f32 0.0, %v4693
        %4695 = vmatmul.bf16.gmra.mxu0 %v4619
        %v4696 = vpop.f32.mrf.mxu0
        %v4697 = vadd.f32 0.0, %v4696
        %v4698 = vpop.f32.mrf.mxu0
        %v4699 = vadd.f32 0.0, %v4698
        %4700 = vmatmul.bf16.gmra.mxu0 %v4620
        %v4701 = vpop.f32.mrf.mxu0
        %v4702 = vadd.f32 0.0, %v4701
        %v4703 = vpop.f32.mrf.mxu0
        %v4704 = vadd.f32 0.0, %v4703
        %4705 = vmatmul.bf16.gmra.mxu0 %v4621
        %v4706 = vpop.f32.mrf.mxu0
        %v4707 = vadd.f32 0.0, %v4706
        %v4708 = vpop.f32.mrf.mxu0
        %v4709 = vadd.f32 0.0, %v4708
        %4710 = vmatmul.bf16.gmra.mxu0 %v4622
        %v4711 = vpop.f32.mrf.mxu0
        %v4712 = vadd.f32 0.0, %v4711
        %v4713 = vpop.f32.mrf.mxu0
        %v4714 = vadd.f32 0.0, %v4713
        %4715 = vmatmul.bf16.gmra.mxu0 %v4623
        %v4716 = vpop.f32.mrf.mxu0
        %v4717 = vadd.f32 0.0, %v4716
        %v4718 = vpop.f32.mrf.mxu0
        %v4719 = vadd.f32 0.0, %v4718
        %4720 = vmatmul.bf16.gmra.mxu0 %v4624
        %v4721 = vpop.f32.mrf.mxu0
        %v4722 = vadd.f32 0.0, %v4721
        %v4723 = vpop.f32.mrf.mxu0
        %v4724 = vadd.f32 0.0, %v4723
        %4725 = vmatmul.bf16.gmra.mxu0 %v4625
        %v4726 = vpop.f32.mrf.mxu0
        %v4727 = vadd.f32 0.0, %v4726
        %v4728 = vpop.f32.mrf.mxu0
        %v4729 = vadd.f32 0.0, %v4728
        %4730 = vdwg.mxu0
        %v4731 = vadd.f32 %v4567, %v4692
        %v4732 = vadd.f32 %v4568, %v4694
        %v4733 = vadd.f32 %v4569, %v4697
        %v4734 = vadd.f32 %v4570, %v4699
        %v4735 = vadd.f32 %v4571, %v4702
        %v4736 = vadd.f32 %v4572, %v4704
        %v4737 = vadd.f32 %v4573, %v4707
        %v4738 = vadd.f32 %v4574, %v4709
        %v4739 = vadd.f32 %v4575, %v4712
        %v4740 = vadd.f32 %v4576, %v4714
        %v4741 = vadd.f32 %v4577, %v4717
        %v4742 = vadd.f32 %v4578, %v4719
        %v4743 = vadd.f32 %v4579, %v4722
        %v4744 = vadd.f32 %v4580, %v4724
        %v4745 = vadd.f32 %v4581, %v4727
        %v4746 = vadd.f32 %v4582, %v4729
        %4747 = vst [vmem:[#allocation4] sm:$0xff] %v4731
        %4748 = vst [vmem:[#allocation4 + $0x8] sm:$0xff] %v4732
        %4749 = vst [vmem:[#allocation4 + $0x10] sm:$0xff] %v4733
        %4750 = vst [vmem:[#allocation4 + $0x18] sm:$0xff] %v4734
        %4751 = vst [vmem:[#allocation4 + $0x20] sm:$0xff] %v4735
        %4752 = vst [vmem:[#allocation4 + $0x28] sm:$0xff] %v4736
        %4753 = vst [vmem:[#allocation4 + $0x30] sm:$0xff] %v4737
        %4754 = vst [vmem:[#allocation4 + $0x38] sm:$0xff] %v4738
        %4755 = vst [vmem:[#allocation4 + $0x40] sm:$0xff] %v4739
        %4756 = vst [vmem:[#allocation4 + $0x48] sm:$0xff] %v4740
        %4757 = vst [vmem:[#allocation4 + $0x50] sm:$0xff] %v4741
        %4758 = vst [vmem:[#allocation4 + $0x58] sm:$0xff] %v4742
        %4759 = vst [vmem:[#allocation4 + $0x60] sm:$0xff] %v4743
        %4760 = vst [vmem:[#allocation4 + $0x68] sm:$0xff] %v4744
        %4761 = vst [vmem:[#allocation4 + $0x70] sm:$0xff] %v4745
        %4762 = vst [vmem:[#allocation4 + $0x78] sm:$0xff] %v4746
        %v4763 = vld [vmem:[%s1469] sm:$0xe]
        %v4764 = vld [vmem:[%s1469 + $0x4] sm:$0xf]
        %v4765 = vld [vmem:[%s1469 + $0x8] sm:$0x1]
        %v4766 = vld [vmem:[%s1469 + $0xc] sm:$0xe]
        %v4767 = vld [vmem:[%s1469 + $0x10] sm:$0xf]
        %v4768 = vld [vmem:[%s1469 + $0x14] sm:$0x1]
        %v4769 = vld [vmem:[%s1469 + $0x18] sm:$0xe]
        %v4770 = vld [vmem:[%s1469 + $0x1c] sm:$0xf]
        %v4771 = vld [vmem:[%s1469 + $0x20] sm:$0x1]
        %v4772 = vld [vmem:[%s1469 + $0x24] sm:$0xe]
        %v4773 = vld [vmem:[%s1469 + $0x28] sm:$0xf]
        %v4774 = vld [vmem:[%s1469 + $0x2c] sm:$0x1]
        %v4775 = vld [vmem:[%s1469 + $0x30] sm:$0xe]
        %v4776 = vld [vmem:[%s1469 + $0x34] sm:$0xf]
        %v4777 = vld [vmem:[%s1469 + $0x38] sm:$0x1]
        %v4778 = vld [vmem:[%s1469 + $0x3c] sm:$0xe]
        %v4779 = vld [vmem:[%s1469 + $0x40] sm:$0xf]
        %v4780 = vld [vmem:[%s1469 + $0x44] sm:$0x1]
        %v4781 = vld [vmem:[%s1469 + $0x48] sm:$0xe]
        %v4782 = vld [vmem:[%s1469 + $0x4c] sm:$0xf]
        %v4783 = vld [vmem:[%s1469 + $0x50] sm:$0x1]
        %v4784 = vld [vmem:[%s1469 + $0x54] sm:$0xe]
        %v4785 = vld [vmem:[%s1469 + $0x58] sm:$0xf]
        %v4786 = vld [vmem:[%s1469 + $0x5c] sm:$0x1]
        %v4811 = vrot.slane %v4763, 5
        %v4812 = vrot.slane %v4811, 4
        %v4813 = vrot.slane %v4764, 5
        %v4814 = vsel %vm3904, %v4812, %v4813
        %v4815 = vrot.slane %v4813, 4
        %v4816 = vrot.slane %v4765, 5
        %v4817 = vsel %vm3904, %v4815, %v4816
        %v4818 = vrot.slane %v4766, 5
        %v4819 = vrot.slane %v4818, 4
        %v4820 = vrot.slane %v4767, 5
        %v4821 = vsel %vm3904, %v4819, %v4820
        %v4822 = vrot.slane %v4820, 4
        %v4823 = vrot.slane %v4768, 5
        %v4824 = vsel %vm3904, %v4822, %v4823
        %v4825 = vrot.slane %v4769, 5
        %v4826 = vrot.slane %v4825, 4
        %v4827 = vrot.slane %v4770, 5
        %v4828 = vsel %vm3904, %v4826, %v4827
        %v4829 = vrot.slane %v4827, 4
        %v4830 = vrot.slane %v4771, 5
        %v4831 = vsel %vm3904, %v4829, %v4830
        %v4832 = vrot.slane %v4772, 5
        %v4833 = vrot.slane %v4832, 4
        %v4834 = vrot.slane %v4773, 5
        %v4835 = vsel %vm3904, %v4833, %v4834
        %v4836 = vrot.slane %v4834, 4
        %v4837 = vrot.slane %v4774, 5
        %v4838 = vsel %vm3904, %v4836, %v4837
        %v4839 = vrot.slane %v4775, 5
        %v4840 = vrot.slane %v4839, 4
        %v4841 = vrot.slane %v4776, 5
        %v4842 = vsel %vm3904, %v4840, %v4841
        %v4843 = vrot.slane %v4841, 4
        %v4844 = vrot.slane %v4777, 5
        %v4845 = vsel %vm3904, %v4843, %v4844
        %v4846 = vrot.slane %v4778, 5
        %v4847 = vrot.slane %v4846, 4
        %v4848 = vrot.slane %v4779, 5
        %v4849 = vsel %vm3904, %v4847, %v4848
        %v4850 = vrot.slane %v4848, 4
        %v4851 = vrot.slane %v4780, 5
        %v4852 = vsel %vm3904, %v4850, %v4851
        %v4853 = vrot.slane %v4781, 5
        %v4854 = vrot.slane %v4853, 4
        %v4855 = vrot.slane %v4782, 5
        %v4856 = vsel %vm3904, %v4854, %v4855
        %v4857 = vrot.slane %v4855, 4
        %v4858 = vrot.slane %v4783, 5
        %v4859 = vsel %vm3904, %v4857, %v4858
        %v4860 = vrot.slane %v4784, 5
        %v4861 = vrot.slane %v4860, 4
        %v4862 = vrot.slane %v4785, 5
        %v4863 = vsel %vm3904, %v4861, %v4862
        %v4864 = vrot.slane %v4862, 4
        %v4865 = vrot.slane %v4786, 5
        %v4866 = vsel %vm3904, %v4864, %v4865
        %s4867 = sadd.s32 %s520, 12
        %v4868 = vld [vmem:[#allocation4] sm:$0xff]
        %v4869 = vld [vmem:[#allocation4 + $0x8] sm:$0xff]
        %v4870 = vld [vmem:[#allocation4 + $0x10] sm:$0xff]
        %v4871 = vld [vmem:[#allocation4 + $0x18] sm:$0xff]
        %v4872 = vld [vmem:[#allocation4 + $0x20] sm:$0xff]
        %v4873 = vld [vmem:[#allocation4 + $0x28] sm:$0xff]
        %v4874 = vld [vmem:[#allocation4 + $0x30] sm:$0xff]
        %v4875 = vld [vmem:[#allocation4 + $0x38] sm:$0xff]
        %v4876 = vld [vmem:[#allocation4 + $0x40] sm:$0xff]
        %v4877 = vld [vmem:[#allocation4 + $0x48] sm:$0xff]
        %v4878 = vld [vmem:[#allocation4 + $0x50] sm:$0xff]
        %v4879 = vld [vmem:[#allocation4 + $0x58] sm:$0xff]
        %v4880 = vld [vmem:[#allocation4 + $0x60] sm:$0xff]
        %v4881 = vld [vmem:[#allocation4 + $0x68] sm:$0xff]
        %v4882 = vld [vmem:[#allocation4 + $0x70] sm:$0xff]
        %v4883 = vld [vmem:[#allocation4 + $0x78] sm:$0xff]
        %s4884 = smul.u32 %s4867, 16
        %s4885 = smul.addr %s4884, 4
        %s4886 = scalar_lea.vmem [#allocation5], %s4885
        %v4887 = vld [vmem:[%s4886] sm:$0xf]
        %v4888 = vld [vmem:[%s4886 + $0x4] sm:$0xf]
        %v4889 = vld [vmem:[%s4886 + $0x8] sm:$0xf]
        %v4890 = vld [vmem:[%s4886 + $0xc] sm:$0xf]
        %v4891 = vld [vmem:[%s4886 + $0x10] sm:$0xf]
        %v4892 = vld [vmem:[%s4886 + $0x14] sm:$0xf]
        %v4893 = vld [vmem:[%s4886 + $0x18] sm:$0xf]
        %v4894 = vld [vmem:[%s4886 + $0x1c] sm:$0xf]
        %v4895 = vld [vmem:[%s4886 + $0x20] sm:$0xf]
        %v4896 = vld [vmem:[%s4886 + $0x24] sm:$0xf]
        %v4897 = vld [vmem:[%s4886 + $0x28] sm:$0xf]
        %v4898 = vld [vmem:[%s4886 + $0x2c] sm:$0xf]
        %v4899 = vld [vmem:[%s4886 + $0x30] sm:$0xf]
        %v4900 = vld [vmem:[%s4886 + $0x34] sm:$0xf]
        %v4901 = vld [vmem:[%s4886 + $0x38] sm:$0xf]
        %v4902 = vld [vmem:[%s4886 + $0x3c] sm:$0xf]
        %v4903 = vunpack.c.l.b16 %v4814
        %v4904 = vunpack.c.l.b16 %v4817
        %v4905 = vunpack.c.l.b16 %v4821
        %v4906 = vunpack.c.l.b16 %v4824
        %v4907 = vunpack.c.l.b16 %v4828
        %v4908 = vunpack.c.l.b16 %v4831
        %v4909 = vunpack.c.l.b16 %v4835
        %v4910 = vunpack.c.l.b16 %v4838
        %v4911 = vunpack.c.l.b16 %v4842
        %v4912 = vunpack.c.l.b16 %v4845
        %v4913 = vunpack.c.l.b16 %v4849
        %v4914 = vunpack.c.l.b16 %v4852
        %v4915 = vunpack.c.l.b16 %v4856
        %v4916 = vunpack.c.l.b16 %v4859
        %v4917 = vunpack.c.l.b16 %v4863
        %v4918 = vunpack.c.l.b16 %v4866
        %v4919 = vpack.c.b16 %v4904, %v4903
        %v4920 = vpack.c.b16 %v4906, %v4905
        %v4921 = vpack.c.b16 %v4908, %v4907
        %v4922 = vpack.c.b16 %v4910, %v4909
        %v4923 = vpack.c.b16 %v4912, %v4911
        %v4924 = vpack.c.b16 %v4914, %v4913
        %v4925 = vpack.c.b16 %v4916, %v4915
        %v4926 = vpack.c.b16 %v4918, %v4917
        %v4951 = vunpack.c.l.b16 %v4887
        %v4952 = vunpack.c.l.b16 %v4888
        %v4953 = vunpack.c.l.b16 %v4889
        %v4954 = vunpack.c.l.b16 %v4890
        %v4955 = vunpack.c.l.b16 %v4891
        %v4956 = vunpack.c.l.b16 %v4892
        %v4957 = vunpack.c.l.b16 %v4893
        %v4958 = vunpack.c.l.b16 %v4894
        %v4959 = vunpack.c.l.b16 %v4895
        %v4960 = vunpack.c.l.b16 %v4896
        %v4961 = vunpack.c.l.b16 %v4897
        %v4962 = vunpack.c.l.b16 %v4898
        %v4963 = vunpack.c.l.b16 %v4899
        %v4964 = vunpack.c.l.b16 %v4900
        %v4965 = vunpack.c.l.b16 %v4901
        %v4966 = vunpack.c.l.b16 %v4902
        %v4967 = vpack.c.b16 %v4952, %v4951
        %v4968 = vpack.c.b16 %v4954, %v4953
        %v4969 = vpack.c.b16 %v4956, %v4955
        %v4970 = vpack.c.b16 %v4958, %v4957
        %v4971 = vpack.c.b16 %v4960, %v4959
        %v4972 = vpack.c.b16 %v4962, %v4961
        %v4973 = vpack.c.b16 %v4964, %v4963
        %v4974 = vpack.c.b16 %v4966, %v4965
        %4983 = vmatpush.bf16.msra.mxu0 %v4974
        %4984 = vmatpush.bf16.msra.mxu0 %v4973
        %4985 = vmatpush.bf16.msra.mxu0 %v4972
        %4986 = vmatpush.bf16.msra.mxu0 %v4971
        %4987 = vmatpush.bf16.msra.mxu0 %v4970
        %4988 = vmatpush.bf16.msra.mxu0 %v4969
        %4989 = vmatpush.bf16.msra.mxu0 %v4968
        %4990 = vmatpush.bf16.msra.mxu0 %v4967
        %4991 = vmatmul.bf16.gmra.mxu0 %v4919
        %v4992 = vpop.f32.mrf.mxu0
        %v4993 = vadd.f32 0.0, %v4992
        %v4994 = vpop.f32.mrf.mxu0
        %v4995 = vadd.f32 0.0, %v4994
        %4996 = vmatmul.bf16.gmra.mxu0 %v4920
        %v4997 = vpop.f32.mrf.mxu0
        %v4998 = vadd.f32 0.0, %v4997
        %v4999 = vpop.f32.mrf.mxu0
        %v5000 = vadd.f32 0.0, %v4999
        %5001 = vmatmul.bf16.gmra.mxu0 %v4921
        %v5002 = vpop.f32.mrf.mxu0
        %v5003 = vadd.f32 0.0, %v5002
        %v5004 = vpop.f32.mrf.mxu0
        %v5005 = vadd.f32 0.0, %v5004
        %5006 = vmatmul.bf16.gmra.mxu0 %v4922
        %v5007 = vpop.f32.mrf.mxu0
        %v5008 = vadd.f32 0.0, %v5007
        %v5009 = vpop.f32.mrf.mxu0
        %v5010 = vadd.f32 0.0, %v5009
        %5011 = vmatmul.bf16.gmra.mxu0 %v4923
        %v5012 = vpop.f32.mrf.mxu0
        %v5013 = vadd.f32 0.0, %v5012
        %v5014 = vpop.f32.mrf.mxu0
        %v5015 = vadd.f32 0.0, %v5014
        %5016 = vmatmul.bf16.gmra.mxu0 %v4924
        %v5017 = vpop.f32.mrf.mxu0
        %v5018 = vadd.f32 0.0, %v5017
        %v5019 = vpop.f32.mrf.mxu0
        %v5020 = vadd.f32 0.0, %v5019
        %5021 = vmatmul.bf16.gmra.mxu0 %v4925
        %v5022 = vpop.f32.mrf.mxu0
        %v5023 = vadd.f32 0.0, %v5022
        %v5024 = vpop.f32.mrf.mxu0
        %v5025 = vadd.f32 0.0, %v5024
        %5026 = vmatmul.bf16.gmra.mxu0 %v4926
        %v5027 = vpop.f32.mrf.mxu0
        %v5028 = vadd.f32 0.0, %v5027
        %v5029 = vpop.f32.mrf.mxu0
        %v5030 = vadd.f32 0.0, %v5029
        %5031 = vdwg.mxu0
        %v5032 = vadd.f32 %v4868, %v4993
        %v5033 = vadd.f32 %v4869, %v4995
        %v5034 = vadd.f32 %v4870, %v4998
        %v5035 = vadd.f32 %v4871, %v5000
        %v5036 = vadd.f32 %v4872, %v5003
        %v5037 = vadd.f32 %v4873, %v5005
        %v5038 = vadd.f32 %v4874, %v5008
        %v5039 = vadd.f32 %v4875, %v5010
        %v5040 = vadd.f32 %v4876, %v5013
        %v5041 = vadd.f32 %v4877, %v5015
        %v5042 = vadd.f32 %v4878, %v5018
        %v5043 = vadd.f32 %v4879, %v5020
        %v5044 = vadd.f32 %v4880, %v5023
        %v5045 = vadd.f32 %v4881, %v5025
        %v5046 = vadd.f32 %v4882, %v5028
        %v5047 = vadd.f32 %v4883, %v5030
        %5048 = vst [vmem:[#allocation4] sm:$0xff] %v5032
        %5049 = vst [vmem:[#allocation4 + $0x8] sm:$0xff] %v5033
        %5050 = vst [vmem:[#allocation4 + $0x10] sm:$0xff] %v5034
        %5051 = vst [vmem:[#allocation4 + $0x18] sm:$0xff] %v5035
        %5052 = vst [vmem:[#allocation4 + $0x20] sm:$0xff] %v5036
        %5053 = vst [vmem:[#allocation4 + $0x28] sm:$0xff] %v5037
        %5054 = vst [vmem:[#allocation4 + $0x30] sm:$0xff] %v5038
        %5055 = vst [vmem:[#allocation4 + $0x38] sm:$0xff] %v5039
        %5056 = vst [vmem:[#allocation4 + $0x40] sm:$0xff] %v5040
        %5057 = vst [vmem:[#allocation4 + $0x48] sm:$0xff] %v5041
        %5058 = vst [vmem:[#allocation4 + $0x50] sm:$0xff] %v5042
        %5059 = vst [vmem:[#allocation4 + $0x58] sm:$0xff] %v5043
        %5060 = vst [vmem:[#allocation4 + $0x60] sm:$0xff] %v5044
        %5061 = vst [vmem:[#allocation4 + $0x68] sm:$0xff] %v5045
        %5062 = vst [vmem:[#allocation4 + $0x70] sm:$0xff] %v5046
        %5063 = vst [vmem:[#allocation4 + $0x78] sm:$0xff] %v5047
        %v5064 = vld [vmem:[%s1469] sm:$0xc]
        %v5065 = vld [vmem:[%s1469 + $0x4] sm:$0xf]
        %v5066 = vld [vmem:[%s1469 + $0x8] sm:$0x3]
        %v5067 = vld [vmem:[%s1469 + $0xc] sm:$0xc]
        %v5068 = vld [vmem:[%s1469 + $0x10] sm:$0xf]
        %v5069 = vld [vmem:[%s1469 + $0x14] sm:$0x3]
        %v5070 = vld [vmem:[%s1469 + $0x18] sm:$0xc]
        %v5071 = vld [vmem:[%s1469 + $0x1c] sm:$0xf]
        %v5072 = vld [vmem:[%s1469 + $0x20] sm:$0x3]
        %v5073 = vld [vmem:[%s1469 + $0x24] sm:$0xc]
        %v5074 = vld [vmem:[%s1469 + $0x28] sm:$0xf]
        %v5075 = vld [vmem:[%s1469 + $0x2c] sm:$0x3]
        %v5076 = vld [vmem:[%s1469 + $0x30] sm:$0xc]
        %v5077 = vld [vmem:[%s1469 + $0x34] sm:$0xf]
        %v5078 = vld [vmem:[%s1469 + $0x38] sm:$0x3]
        %v5079 = vld [vmem:[%s1469 + $0x3c] sm:$0xc]
        %v5080 = vld [vmem:[%s1469 + $0x40] sm:$0xf]
        %v5081 = vld [vmem:[%s1469 + $0x44] sm:$0x3]
        %v5082 = vld [vmem:[%s1469 + $0x48] sm:$0xc]
        %v5083 = vld [vmem:[%s1469 + $0x4c] sm:$0xf]
        %v5084 = vld [vmem:[%s1469 + $0x50] sm:$0x3]
        %v5085 = vld [vmem:[%s1469 + $0x54] sm:$0xc]
        %v5086 = vld [vmem:[%s1469 + $0x58] sm:$0xf]
        %v5087 = vld [vmem:[%s1469 + $0x5c] sm:$0x3]
        %v5112 = vrot.slane %v5064, 6
        %v5113 = vrot.slane %v5112, 4
        %v5114 = vrot.slane %v5065, 6
        %v5115 = vsel %vm767, %v5113, %v5114
        %v5116 = vrot.slane %v5114, 4
        %v5117 = vrot.slane %v5066, 6
        %v5118 = vsel %vm767, %v5116, %v5117
        %v5119 = vrot.slane %v5067, 6
        %v5120 = vrot.slane %v5119, 4
        %v5121 = vrot.slane %v5068, 6
        %v5122 = vsel %vm767, %v5120, %v5121
        %v5123 = vrot.slane %v5121, 4
        %v5124 = vrot.slane %v5069, 6
        %v5125 = vsel %vm767, %v5123, %v5124
        %v5126 = vrot.slane %v5070, 6
        %v5127 = vrot.slane %v5126, 4
        %v5128 = vrot.slane %v5071, 6
        %v5129 = vsel %vm767, %v5127, %v5128
        %v5130 = vrot.slane %v5128, 4
        %v5131 = vrot.slane %v5072, 6
        %v5132 = vsel %vm767, %v5130, %v5131
        %v5133 = vrot.slane %v5073, 6
        %v5134 = vrot.slane %v5133, 4
        %v5135 = vrot.slane %v5074, 6
        %v5136 = vsel %vm767, %v5134, %v5135
        %v5137 = vrot.slane %v5135, 4
        %v5138 = vrot.slane %v5075, 6
        %v5139 = vsel %vm767, %v5137, %v5138
        %v5140 = vrot.slane %v5076, 6
        %v5141 = vrot.slane %v5140, 4
        %v5142 = vrot.slane %v5077, 6
        %v5143 = vsel %vm767, %v5141, %v5142
        %v5144 = vrot.slane %v5142, 4
        %v5145 = vrot.slane %v5078, 6
        %v5146 = vsel %vm767, %v5144, %v5145
        %v5147 = vrot.slane %v5079, 6
        %v5148 = vrot.slane %v5147, 4
        %v5149 = vrot.slane %v5080, 6
        %v5150 = vsel %vm767, %v5148, %v5149
        %v5151 = vrot.slane %v5149, 4
        %v5152 = vrot.slane %v5081, 6
        %v5153 = vsel %vm767, %v5151, %v5152
        %v5154 = vrot.slane %v5082, 6
        %v5155 = vrot.slane %v5154, 4
        %v5156 = vrot.slane %v5083, 6
        %v5157 = vsel %vm767, %v5155, %v5156
        %v5158 = vrot.slane %v5156, 4
        %v5159 = vrot.slane %v5084, 6
        %v5160 = vsel %vm767, %v5158, %v5159
        %v5161 = vrot.slane %v5085, 6
        %v5162 = vrot.slane %v5161, 4
        %v5163 = vrot.slane %v5086, 6
        %v5164 = vsel %vm767, %v5162, %v5163
        %v5165 = vrot.slane %v5163, 4
        %v5166 = vrot.slane %v5087, 6
        %v5167 = vsel %vm767, %v5165, %v5166
        %s5168 = sadd.s32 %s520, 13
        %v5169 = vld [vmem:[#allocation4] sm:$0xff]
        %v5170 = vld [vmem:[#allocation4 + $0x8] sm:$0xff]
        %v5171 = vld [vmem:[#allocation4 + $0x10] sm:$0xff]
        %v5172 = vld [vmem:[#allocation4 + $0x18] sm:$0xff]
        %v5173 = vld [vmem:[#allocation4 + $0x20] sm:$0xff]
        %v5174 = vld [vmem:[#allocation4 + $0x28] sm:$0xff]
        %v5175 = vld [vmem:[#allocation4 + $0x30] sm:$0xff]
        %v5176 = vld [vmem:[#allocation4 + $0x38] sm:$0xff]
        %v5177 = vld [vmem:[#allocation4 + $0x40] sm:$0xff]
        %v5178 = vld [vmem:[#allocation4 + $0x48] sm:$0xff]
        %v5179 = vld [vmem:[#allocation4 + $0x50] sm:$0xff]
        %v5180 = vld [vmem:[#allocation4 + $0x58] sm:$0xff]
        %v5181 = vld [vmem:[#allocation4 + $0x60] sm:$0xff]
        %v5182 = vld [vmem:[#allocation4 + $0x68] sm:$0xff]
        %v5183 = vld [vmem:[#allocation4 + $0x70] sm:$0xff]
        %v5184 = vld [vmem:[#allocation4 + $0x78] sm:$0xff]
        %s5185 = smul.u32 %s5168, 16
        %s5186 = smul.addr %s5185, 4
        %s5187 = scalar_lea.vmem [#allocation5], %s5186
        %v5188 = vld [vmem:[%s5187] sm:$0xf]
        %v5189 = vld [vmem:[%s5187 + $0x4] sm:$0xf]
        %v5190 = vld [vmem:[%s5187 + $0x8] sm:$0xf]
        %v5191 = vld [vmem:[%s5187 + $0xc] sm:$0xf]
        %v5192 = vld [vmem:[%s5187 + $0x10] sm:$0xf]
        %v5193 = vld [vmem:[%s5187 + $0x14] sm:$0xf]
        %v5194 = vld [vmem:[%s5187 + $0x18] sm:$0xf]
        %v5195 = vld [vmem:[%s5187 + $0x1c] sm:$0xf]
        %v5196 = vld [vmem:[%s5187 + $0x20] sm:$0xf]
        %v5197 = vld [vmem:[%s5187 + $0x24] sm:$0xf]
        %v5198 = vld [vmem:[%s5187 + $0x28] sm:$0xf]
        %v5199 = vld [vmem:[%s5187 + $0x2c] sm:$0xf]
        %v5200 = vld [vmem:[%s5187 + $0x30] sm:$0xf]
        %v5201 = vld [vmem:[%s5187 + $0x34] sm:$0xf]
        %v5202 = vld [vmem:[%s5187 + $0x38] sm:$0xf]
        %v5203 = vld [vmem:[%s5187 + $0x3c] sm:$0xf]
        %v5204 = vunpack.c.l.b16 %v5115
        %v5205 = vunpack.c.l.b16 %v5118
        %v5206 = vunpack.c.l.b16 %v5122
        %v5207 = vunpack.c.l.b16 %v5125
        %v5208 = vunpack.c.l.b16 %v5129
        %v5209 = vunpack.c.l.b16 %v5132
        %v5210 = vunpack.c.l.b16 %v5136
        %v5211 = vunpack.c.l.b16 %v5139
        %v5212 = vunpack.c.l.b16 %v5143
        %v5213 = vunpack.c.l.b16 %v5146
        %v5214 = vunpack.c.l.b16 %v5150
        %v5215 = vunpack.c.l.b16 %v5153
        %v5216 = vunpack.c.l.b16 %v5157
        %v5217 = vunpack.c.l.b16 %v5160
        %v5218 = vunpack.c.l.b16 %v5164
        %v5219 = vunpack.c.l.b16 %v5167
        %v5220 = vpack.c.b16 %v5205, %v5204
        %v5221 = vpack.c.b16 %v5207, %v5206
        %v5222 = vpack.c.b16 %v5209, %v5208
        %v5223 = vpack.c.b16 %v5211, %v5210
        %v5224 = vpack.c.b16 %v5213, %v5212
        %v5225 = vpack.c.b16 %v5215, %v5214
        %v5226 = vpack.c.b16 %v5217, %v5216
        %v5227 = vpack.c.b16 %v5219, %v5218
        %v5252 = vunpack.c.l.b16 %v5188
        %v5253 = vunpack.c.l.b16 %v5189
        %v5254 = vunpack.c.l.b16 %v5190
        %v5255 = vunpack.c.l.b16 %v5191
        %v5256 = vunpack.c.l.b16 %v5192
        %v5257 = vunpack.c.l.b16 %v5193
        %v5258 = vunpack.c.l.b16 %v5194
        %v5259 = vunpack.c.l.b16 %v5195
        %v5260 = vunpack.c.l.b16 %v5196
        %v5261 = vunpack.c.l.b16 %v5197
        %v5262 = vunpack.c.l.b16 %v5198
        %v5263 = vunpack.c.l.b16 %v5199
        %v5264 = vunpack.c.l.b16 %v5200
        %v5265 = vunpack.c.l.b16 %v5201
        %v5266 = vunpack.c.l.b16 %v5202
        %v5267 = vunpack.c.l.b16 %v5203
        %v5268 = vpack.c.b16 %v5253, %v5252
        %v5269 = vpack.c.b16 %v5255, %v5254
        %v5270 = vpack.c.b16 %v5257, %v5256
        %v5271 = vpack.c.b16 %v5259, %v5258
        %v5272 = vpack.c.b16 %v5261, %v5260
        %v5273 = vpack.c.b16 %v5263, %v5262
        %v5274 = vpack.c.b16 %v5265, %v5264
        %v5275 = vpack.c.b16 %v5267, %v5266
        %5284 = vmatpush.bf16.msra.mxu0 %v5275
        %5285 = vmatpush.bf16.msra.mxu0 %v5274
        %5286 = vmatpush.bf16.msra.mxu0 %v5273
        %5287 = vmatpush.bf16.msra.mxu0 %v5272
        %5288 = vmatpush.bf16.msra.mxu0 %v5271
        %5289 = vmatpush.bf16.msra.mxu0 %v5270
        %5290 = vmatpush.bf16.msra.mxu0 %v5269
        %5291 = vmatpush.bf16.msra.mxu0 %v5268
        %5292 = vmatmul.bf16.gmra.mxu0 %v5220
        %v5293 = vpop.f32.mrf.mxu0
        %v5294 = vadd.f32 0.0, %v5293
        %v5295 = vpop.f32.mrf.mxu0
        %v5296 = vadd.f32 0.0, %v5295
        %5297 = vmatmul.bf16.gmra.mxu0 %v5221
        %v5298 = vpop.f32.mrf.mxu0
        %v5299 = vadd.f32 0.0, %v5298
        %v5300 = vpop.f32.mrf.mxu0
        %v5301 = vadd.f32 0.0, %v5300
        %5302 = vmatmul.bf16.gmra.mxu0 %v5222
        %v5303 = vpop.f32.mrf.mxu0
        %v5304 = vadd.f32 0.0, %v5303
        %v5305 = vpop.f32.mrf.mxu0
        %v5306 = vadd.f32 0.0, %v5305
        %5307 = vmatmul.bf16.gmra.mxu0 %v5223
        %v5308 = vpop.f32.mrf.mxu0
        %v5309 = vadd.f32 0.0, %v5308
        %v5310 = vpop.f32.mrf.mxu0
        %v5311 = vadd.f32 0.0, %v5310
        %5312 = vmatmul.bf16.gmra.mxu0 %v5224
        %v5313 = vpop.f32.mrf.mxu0
        %v5314 = vadd.f32 0.0, %v5313
        %v5315 = vpop.f32.mrf.mxu0
        %v5316 = vadd.f32 0.0, %v5315
        %5317 = vmatmul.bf16.gmra.mxu0 %v5225
        %v5318 = vpop.f32.mrf.mxu0
        %v5319 = vadd.f32 0.0, %v5318
        %v5320 = vpop.f32.mrf.mxu0
        %v5321 = vadd.f32 0.0, %v5320
        %5322 = vmatmul.bf16.gmra.mxu0 %v5226
        %v5323 = vpop.f32.mrf.mxu0
        %v5324 = vadd.f32 0.0, %v5323
        %v5325 = vpop.f32.mrf.mxu0
        %v5326 = vadd.f32 0.0, %v5325
        %5327 = vmatmul.bf16.gmra.mxu0 %v5227
        %v5328 = vpop.f32.mrf.mxu0
        %v5329 = vadd.f32 0.0, %v5328
        %v5330 = vpop.f32.mrf.mxu0
        %v5331 = vadd.f32 0.0, %v5330
        %5332 = vdwg.mxu0
        %v5333 = vadd.f32 %v5169, %v5294
        %v5334 = vadd.f32 %v5170, %v5296
        %v5335 = vadd.f32 %v5171, %v5299
        %v5336 = vadd.f32 %v5172, %v5301
        %v5337 = vadd.f32 %v5173, %v5304
        %v5338 = vadd.f32 %v5174, %v5306
        %v5339 = vadd.f32 %v5175, %v5309
        %v5340 = vadd.f32 %v5176, %v5311
        %v5341 = vadd.f32 %v5177, %v5314
        %v5342 = vadd.f32 %v5178, %v5316
        %v5343 = vadd.f32 %v5179, %v5319
        %v5344 = vadd.f32 %v5180, %v5321
        %v5345 = vadd.f32 %v5181, %v5324
        %v5346 = vadd.f32 %v5182, %v5326
        %v5347 = vadd.f32 %v5183, %v5329
        %v5348 = vadd.f32 %v5184, %v5331
        %5349 = vst [vmem:[#allocation4] sm:$0xff] %v5333
        %5350 = vst [vmem:[#allocation4 + $0x8] sm:$0xff] %v5334
        %5351 = vst [vmem:[#allocation4 + $0x10] sm:$0xff] %v5335
        %5352 = vst [vmem:[#allocation4 + $0x18] sm:$0xff] %v5336
        %5353 = vst [vmem:[#allocation4 + $0x20] sm:$0xff] %v5337
        %5354 = vst [vmem:[#allocation4 + $0x28] sm:$0xff] %v5338
        %5355 = vst [vmem:[#allocation4 + $0x30] sm:$0xff] %v5339
        %5356 = vst [vmem:[#allocation4 + $0x38] sm:$0xff] %v5340
        %5357 = vst [vmem:[#allocation4 + $0x40] sm:$0xff] %v5341
        %5358 = vst [vmem:[#allocation4 + $0x48] sm:$0xff] %v5342
        %5359 = vst [vmem:[#allocation4 + $0x50] sm:$0xff] %v5343
        %5360 = vst [vmem:[#allocation4 + $0x58] sm:$0xff] %v5344
        %5361 = vst [vmem:[#allocation4 + $0x60] sm:$0xff] %v5345
        %5362 = vst [vmem:[#allocation4 + $0x68] sm:$0xff] %v5346
        %5363 = vst [vmem:[#allocation4 + $0x70] sm:$0xff] %v5347
        %5364 = vst [vmem:[#allocation4 + $0x78] sm:$0xff] %v5348
        %v5365 = vld [vmem:[%s1469] sm:$0x8]
        %v5366 = vld [vmem:[%s1469 + $0x4] sm:$0xf]
        %v5367 = vld [vmem:[%s1469 + $0x8] sm:$0x7]
        %v5368 = vld [vmem:[%s1469 + $0xc] sm:$0x8]
        %v5369 = vld [vmem:[%s1469 + $0x10] sm:$0xf]
        %v5370 = vld [vmem:[%s1469 + $0x14] sm:$0x7]
        %v5371 = vld [vmem:[%s1469 + $0x18] sm:$0x8]
        %v5372 = vld [vmem:[%s1469 + $0x1c] sm:$0xf]
        %v5373 = vld [vmem:[%s1469 + $0x20] sm:$0x7]
        %v5374 = vld [vmem:[%s1469 + $0x24] sm:$0x8]
        %v5375 = vld [vmem:[%s1469 + $0x28] sm:$0xf]
        %v5376 = vld [vmem:[%s1469 + $0x2c] sm:$0x7]
        %v5377 = vld [vmem:[%s1469 + $0x30] sm:$0x8]
        %v5378 = vld [vmem:[%s1469 + $0x34] sm:$0xf]
        %v5379 = vld [vmem:[%s1469 + $0x38] sm:$0x7]
        %v5380 = vld [vmem:[%s1469 + $0x3c] sm:$0x8]
        %v5381 = vld [vmem:[%s1469 + $0x40] sm:$0xf]
        %v5382 = vld [vmem:[%s1469 + $0x44] sm:$0x7]
        %v5383 = vld [vmem:[%s1469 + $0x48] sm:$0x8]
        %v5384 = vld [vmem:[%s1469 + $0x4c] sm:$0xf]
        %v5385 = vld [vmem:[%s1469 + $0x50] sm:$0x7]
        %v5386 = vld [vmem:[%s1469 + $0x54] sm:$0x8]
        %v5387 = vld [vmem:[%s1469 + $0x58] sm:$0xf]
        %v5388 = vld [vmem:[%s1469 + $0x5c] sm:$0x7]
        %v5413 = vrot.slane %v5365, 7
        %v5414 = vrot.slane %v5413, 4
        %v5415 = vrot.slane %v5366, 7
        %v5416 = vsel %vm4509, %v5414, %v5415
        %v5417 = vrot.slane %v5415, 4
        %v5418 = vrot.slane %v5367, 7
        %v5419 = vsel %vm4509, %v5417, %v5418
        %v5420 = vrot.slane %v5368, 7
        %v5421 = vrot.slane %v5420, 4
        %v5422 = vrot.slane %v5369, 7
        %v5423 = vsel %vm4509, %v5421, %v5422
        %v5424 = vrot.slane %v5422, 4
        %v5425 = vrot.slane %v5370, 7
        %v5426 = vsel %vm4509, %v5424, %v5425
        %v5427 = vrot.slane %v5371, 7
        %v5428 = vrot.slane %v5427, 4
        %v5429 = vrot.slane %v5372, 7
        %v5430 = vsel %vm4509, %v5428, %v5429
        %v5431 = vrot.slane %v5429, 4
        %v5432 = vrot.slane %v5373, 7
        %v5433 = vsel %vm4509, %v5431, %v5432
        %v5434 = vrot.slane %v5374, 7
        %v5435 = vrot.slane %v5434, 4
        %v5436 = vrot.slane %v5375, 7
        %v5437 = vsel %vm4509, %v5435, %v5436
        %v5438 = vrot.slane %v5436, 4
        %v5439 = vrot.slane %v5376, 7
        %v5440 = vsel %vm4509, %v5438, %v5439
        %v5441 = vrot.slane %v5377, 7
        %v5442 = vrot.slane %v5441, 4
        %v5443 = vrot.slane %v5378, 7
        %v5444 = vsel %vm4509, %v5442, %v5443
        %v5445 = vrot.slane %v5443, 4
        %v5446 = vrot.slane %v5379, 7
        %v5447 = vsel %vm4509, %v5445, %v5446
        %v5448 = vrot.slane %v5380, 7
        %v5449 = vrot.slane %v5448, 4
        %v5450 = vrot.slane %v5381, 7
        %v5451 = vsel %vm4509, %v5449, %v5450
        %v5452 = vrot.slane %v5450, 4
        %v5453 = vrot.slane %v5382, 7
        %v5454 = vsel %vm4509, %v5452, %v5453
        %v5455 = vrot.slane %v5383, 7
        %v5456 = vrot.slane %v5455, 4
        %v5457 = vrot.slane %v5384, 7
        %v5458 = vsel %vm4509, %v5456, %v5457
        %v5459 = vrot.slane %v5457, 4
        %v5460 = vrot.slane %v5385, 7
        %v5461 = vsel %vm4509, %v5459, %v5460
        %v5462 = vrot.slane %v5386, 7
        %v5463 = vrot.slane %v5462, 4
        %v5464 = vrot.slane %v5387, 7
        %v5465 = vsel %vm4509, %v5463, %v5464
        %v5466 = vrot.slane %v5464, 4
        %v5467 = vrot.slane %v5388, 7
        %v5468 = vsel %vm4509, %v5466, %v5467
        %s5469 = sadd.s32 %s520, 14
        %v5470 = vld [vmem:[#allocation4] sm:$0xff]
        %v5471 = vld [vmem:[#allocation4 + $0x8] sm:$0xff]
        %v5472 = vld [vmem:[#allocation4 + $0x10] sm:$0xff]
        %v5473 = vld [vmem:[#allocation4 + $0x18] sm:$0xff]
        %v5474 = vld [vmem:[#allocation4 + $0x20] sm:$0xff]
        %v5475 = vld [vmem:[#allocation4 + $0x28] sm:$0xff]
        %v5476 = vld [vmem:[#allocation4 + $0x30] sm:$0xff]
        %v5477 = vld [vmem:[#allocation4 + $0x38] sm:$0xff]
        %v5478 = vld [vmem:[#allocation4 + $0x40] sm:$0xff]
        %v5479 = vld [vmem:[#allocation4 + $0x48] sm:$0xff]
        %v5480 = vld [vmem:[#allocation4 + $0x50] sm:$0xff]
        %v5481 = vld [vmem:[#allocation4 + $0x58] sm:$0xff]
        %v5482 = vld [vmem:[#allocation4 + $0x60] sm:$0xff]
        %v5483 = vld [vmem:[#allocation4 + $0x68] sm:$0xff]
        %v5484 = vld [vmem:[#allocation4 + $0x70] sm:$0xff]
        %v5485 = vld [vmem:[#allocation4 + $0x78] sm:$0xff]
        %s5486 = smul.u32 %s5469, 16
        %s5487 = smul.addr %s5486, 4
        %s5488 = scalar_lea.vmem [#allocation5], %s5487
        %v5489 = vld [vmem:[%s5488] sm:$0xf]
        %v5490 = vld [vmem:[%s5488 + $0x4] sm:$0xf]
        %v5491 = vld [vmem:[%s5488 + $0x8] sm:$0xf]
        %v5492 = vld [vmem:[%s5488 + $0xc] sm:$0xf]
        %v5493 = vld [vmem:[%s5488 + $0x10] sm:$0xf]
        %v5494 = vld [vmem:[%s5488 + $0x14] sm:$0xf]
        %v5495 = vld [vmem:[%s5488 + $0x18] sm:$0xf]
        %v5496 = vld [vmem:[%s5488 + $0x1c] sm:$0xf]
        %v5497 = vld [vmem:[%s5488 + $0x20] sm:$0xf]
        %v5498 = vld [vmem:[%s5488 + $0x24] sm:$0xf]
        %v5499 = vld [vmem:[%s5488 + $0x28] sm:$0xf]
        %v5500 = vld [vmem:[%s5488 + $0x2c] sm:$0xf]
        %v5501 = vld [vmem:[%s5488 + $0x30] sm:$0xf]
        %v5502 = vld [vmem:[%s5488 + $0x34] sm:$0xf]
        %v5503 = vld [vmem:[%s5488 + $0x38] sm:$0xf]
        %v5504 = vld [vmem:[%s5488 + $0x3c] sm:$0xf]
        %v5505 = vunpack.c.l.b16 %v5416
        %v5506 = vunpack.c.l.b16 %v5419
        %v5507 = vunpack.c.l.b16 %v5423
        %v5508 = vunpack.c.l.b16 %v5426
        %v5509 = vunpack.c.l.b16 %v5430
        %v5510 = vunpack.c.l.b16 %v5433
        %v5511 = vunpack.c.l.b16 %v5437
        %v5512 = vunpack.c.l.b16 %v5440
        %v5513 = vunpack.c.l.b16 %v5444
        %v5514 = vunpack.c.l.b16 %v5447
        %v5515 = vunpack.c.l.b16 %v5451
        %v5516 = vunpack.c.l.b16 %v5454
        %v5517 = vunpack.c.l.b16 %v5458
        %v5518 = vunpack.c.l.b16 %v5461
        %v5519 = vunpack.c.l.b16 %v5465
        %v5520 = vunpack.c.l.b16 %v5468
        %v5521 = vpack.c.b16 %v5506, %v5505
        %v5522 = vpack.c.b16 %v5508, %v5507
        %v5523 = vpack.c.b16 %v5510, %v5509
        %v5524 = vpack.c.b16 %v5512, %v5511
        %v5525 = vpack.c.b16 %v5514, %v5513
        %v5526 = vpack.c.b16 %v5516, %v5515
        %v5527 = vpack.c.b16 %v5518, %v5517
        %v5528 = vpack.c.b16 %v5520, %v5519
        %v5553 = vunpack.c.l.b16 %v5489
        %v5554 = vunpack.c.l.b16 %v5490
        %v5555 = vunpack.c.l.b16 %v5491
        %v5556 = vunpack.c.l.b16 %v5492
        %v5557 = vunpack.c.l.b16 %v5493
        %v5558 = vunpack.c.l.b16 %v5494
        %v5559 = vunpack.c.l.b16 %v5495
        %v5560 = vunpack.c.l.b16 %v5496
        %v5561 = vunpack.c.l.b16 %v5497
        %v5562 = vunpack.c.l.b16 %v5498
        %v5563 = vunpack.c.l.b16 %v5499
        %v5564 = vunpack.c.l.b16 %v5500
        %v5565 = vunpack.c.l.b16 %v5501
        %v5566 = vunpack.c.l.b16 %v5502
        %v5567 = vunpack.c.l.b16 %v5503
        %v5568 = vunpack.c.l.b16 %v5504
        %v5569 = vpack.c.b16 %v5554, %v5553
        %v5570 = vpack.c.b16 %v5556, %v5555
        %v5571 = vpack.c.b16 %v5558, %v5557
        %v5572 = vpack.c.b16 %v5560, %v5559
        %v5573 = vpack.c.b16 %v5562, %v5561
        %v5574 = vpack.c.b16 %v5564, %v5563
        %v5575 = vpack.c.b16 %v5566, %v5565
        %v5576 = vpack.c.b16 %v5568, %v5567
        %5585 = vmatpush.bf16.msra.mxu0 %v5576
        %5586 = vmatpush.bf16.msra.mxu0 %v5575
        %5587 = vmatpush.bf16.msra.mxu0 %v5574
        %5588 = vmatpush.bf16.msra.mxu0 %v5573
        %5589 = vmatpush.bf16.msra.mxu0 %v5572
        %5590 = vmatpush.bf16.msra.mxu0 %v5571
        %5591 = vmatpush.bf16.msra.mxu0 %v5570
        %5592 = vmatpush.bf16.msra.mxu0 %v5569
        %5593 = vmatmul.bf16.gmra.mxu0 %v5521
        %v5594 = vpop.f32.mrf.mxu0
        %v5595 = vadd.f32 0.0, %v5594
        %v5596 = vpop.f32.mrf.mxu0
        %v5597 = vadd.f32 0.0, %v5596
        %5598 = vmatmul.bf16.gmra.mxu0 %v5522
        %v5599 = vpop.f32.mrf.mxu0
        %v5600 = vadd.f32 0.0, %v5599
        %v5601 = vpop.f32.mrf.mxu0
        %v5602 = vadd.f32 0.0, %v5601
        %5603 = vmatmul.bf16.gmra.mxu0 %v5523
        %v5604 = vpop.f32.mrf.mxu0
        %v5605 = vadd.f32 0.0, %v5604
        %v5606 = vpop.f32.mrf.mxu0
        %v5607 = vadd.f32 0.0, %v5606
        %5608 = vmatmul.bf16.gmra.mxu0 %v5524
        %v5609 = vpop.f32.mrf.mxu0
        %v5610 = vadd.f32 0.0, %v5609
        %v5611 = vpop.f32.mrf.mxu0
        %v5612 = vadd.f32 0.0, %v5611
        %5613 = vmatmul.bf16.gmra.mxu0 %v5525
        %v5614 = vpop.f32.mrf.mxu0
        %v5615 = vadd.f32 0.0, %v5614
        %v5616 = vpop.f32.mrf.mxu0
        %v5617 = vadd.f32 0.0, %v5616
        %5618 = vmatmul.bf16.gmra.mxu0 %v5526
        %v5619 = vpop.f32.mrf.mxu0
        %v5620 = vadd.f32 0.0, %v5619
        %v5621 = vpop.f32.mrf.mxu0
        %v5622 = vadd.f32 0.0, %v5621
        %5623 = vmatmul.bf16.gmra.mxu0 %v5527
        %v5624 = vpop.f32.mrf.mxu0
        %v5625 = vadd.f32 0.0, %v5624
        %v5626 = vpop.f32.mrf.mxu0
        %v5627 = vadd.f32 0.0, %v5626
        %5628 = vmatmul.bf16.gmra.mxu0 %v5528
        %v5629 = vpop.f32.mrf.mxu0
        %v5630 = vadd.f32 0.0, %v5629
        %v5631 = vpop.f32.mrf.mxu0
        %v5632 = vadd.f32 0.0, %v5631
        %5633 = vdwg.mxu0
        %v5634 = vadd.f32 %v5470, %v5595
        %v5635 = vadd.f32 %v5471, %v5597
        %v5636 = vadd.f32 %v5472, %v5600
        %v5637 = vadd.f32 %v5473, %v5602
        %v5638 = vadd.f32 %v5474, %v5605
        %v5639 = vadd.f32 %v5475, %v5607
        %v5640 = vadd.f32 %v5476, %v5610
        %v5641 = vadd.f32 %v5477, %v5612
        %v5642 = vadd.f32 %v5478, %v5615
        %v5643 = vadd.f32 %v5479, %v5617
        %v5644 = vadd.f32 %v5480, %v5620
        %v5645 = vadd.f32 %v5481, %v5622
        %v5646 = vadd.f32 %v5482, %v5625
        %v5647 = vadd.f32 %v5483, %v5627
        %v5648 = vadd.f32 %v5484, %v5630
        %v5649 = vadd.f32 %v5485, %v5632
        %5650 = vst [vmem:[#allocation4] sm:$0xff] %v5634
        %5651 = vst [vmem:[#allocation4 + $0x8] sm:$0xff] %v5635
        %5652 = vst [vmem:[#allocation4 + $0x10] sm:$0xff] %v5636
        %5653 = vst [vmem:[#allocation4 + $0x18] sm:$0xff] %v5637
        %5654 = vst [vmem:[#allocation4 + $0x20] sm:$0xff] %v5638
        %5655 = vst [vmem:[#allocation4 + $0x28] sm:$0xff] %v5639
        %5656 = vst [vmem:[#allocation4 + $0x30] sm:$0xff] %v5640
        %5657 = vst [vmem:[#allocation4 + $0x38] sm:$0xff] %v5641
        %5658 = vst [vmem:[#allocation4 + $0x40] sm:$0xff] %v5642
        %5659 = vst [vmem:[#allocation4 + $0x48] sm:$0xff] %v5643
        %5660 = vst [vmem:[#allocation4 + $0x50] sm:$0xff] %v5644
        %5661 = vst [vmem:[#allocation4 + $0x58] sm:$0xff] %v5645
        %5662 = vst [vmem:[#allocation4 + $0x60] sm:$0xff] %v5646
        %5663 = vst [vmem:[#allocation4 + $0x68] sm:$0xff] %v5647
        %5664 = vst [vmem:[#allocation4 + $0x70] sm:$0xff] %v5648
        %5665 = vst [vmem:[#allocation4 + $0x78] sm:$0xff] %v5649
        %s5666 = scalar_lea.vmem %s267, 72 [#allocation2]
        %v5667 = vld [vmem:[%s5666] sm:$0xe]
        %v5668 = vld [vmem:[%s5666 + $0x4] sm:$0xf]
        %v5669 = vld [vmem:[%s5666 + $0x8] sm:$0x1]
        %v5670 = vld [vmem:[%s5666 + $0xc] sm:$0xe]
        %v5671 = vld [vmem:[%s5666 + $0x10] sm:$0xf]
        %v5672 = vld [vmem:[%s5666 + $0x14] sm:$0x1]
        %v5673 = vld [vmem:[%s5666 + $0x18] sm:$0xe]
        %v5674 = vld [vmem:[%s5666 + $0x1c] sm:$0xf]
        %v5675 = vld [vmem:[%s5666 + $0x20] sm:$0x1]
        %v5676 = vld [vmem:[%s5666 + $0x24] sm:$0xe]
        %v5677 = vld [vmem:[%s5666 + $0x28] sm:$0xf]
        %v5678 = vld [vmem:[%s5666 + $0x2c] sm:$0x1]
        %v5679 = vld [vmem:[%s5666 + $0x30] sm:$0xe]
        %v5680 = vld [vmem:[%s5666 + $0x34] sm:$0xf]
        %v5681 = vld [vmem:[%s5666 + $0x38] sm:$0x1]
        %v5682 = vld [vmem:[%s5666 + $0x3c] sm:$0xe]
        %v5683 = vld [vmem:[%s5666 + $0x40] sm:$0xf]
        %v5684 = vld [vmem:[%s5666 + $0x44] sm:$0x1]
        %v5685 = vld [vmem:[%s5666 + $0x48] sm:$0xe]
        %v5686 = vld [vmem:[%s5666 + $0x4c] sm:$0xf]
        %v5687 = vld [vmem:[%s5666 + $0x50] sm:$0x1]
        %v5688 = vld [vmem:[%s5666 + $0x54] sm:$0xe]
        %v5689 = vld [vmem:[%s5666 + $0x58] sm:$0xf]
        %v5690 = vld [vmem:[%s5666 + $0x5c] sm:$0x1]
        %v5715 = vrot.slane %v5667, 5
        %v5716 = vrot.slane %v5715, 4
        %v5717 = vrot.slane %v5668, 5
        %v5718 = vsel %vm3904, %v5716, %v5717
        %v5719 = vrot.slane %v5717, 4
        %v5720 = vrot.slane %v5669, 5
        %v5721 = vsel %vm3904, %v5719, %v5720
        %v5722 = vrot.slane %v5670, 5
        %v5723 = vrot.slane %v5722, 4
        %v5724 = vrot.slane %v5671, 5
        %v5725 = vsel %vm3904, %v5723, %v5724
        %v5726 = vrot.slane %v5724, 4
        %v5727 = vrot.slane %v5672, 5
        %v5728 = vsel %vm3904, %v5726, %v5727
        %v5729 = vrot.slane %v5673, 5
        %v5730 = vrot.slane %v5729, 4
        %v5731 = vrot.slane %v5674, 5
        %v5732 = vsel %vm3904, %v5730, %v5731
        %v5733 = vrot.slane %v5731, 4
        %v5734 = vrot.slane %v5675, 5
        %v5735 = vsel %vm3904, %v5733, %v5734
        %v5736 = vrot.slane %v5676, 5
        %v5737 = vrot.slane %v5736, 4
        %v5738 = vrot.slane %v5677, 5
        %v5739 = vsel %vm3904, %v5737, %v5738
        %v5740 = vrot.slane %v5738, 4
        %v5741 = vrot.slane %v5678, 5
        %v5742 = vsel %vm3904, %v5740, %v5741
        %v5743 = vrot.slane %v5679, 5
        %v5744 = vrot.slane %v5743, 4
        %v5745 = vrot.slane %v5680, 5
        %v5746 = vsel %vm3904, %v5744, %v5745
        %v5747 = vrot.slane %v5745, 4
        %v5748 = vrot.slane %v5681, 5
        %v5749 = vsel %vm3904, %v5747, %v5748
        %v5750 = vrot.slane %v5682, 5
        %v5751 = vrot.slane %v5750, 4
        %v5752 = vrot.slane %v5683, 5
        %v5753 = vsel %vm3904, %v5751, %v5752
        %v5754 = vrot.slane %v5752, 4
        %v5755 = vrot.slane %v5684, 5
        %v5756 = vsel %vm3904, %v5754, %v5755
        %v5757 = vrot.slane %v5685, 5
        %v5758 = vrot.slane %v5757, 4
        %v5759 = vrot.slane %v5686, 5
        %v5760 = vsel %vm3904, %v5758, %v5759
        %v5761 = vrot.slane %v5759, 4
        %v5762 = vrot.slane %v5687, 5
        %v5763 = vsel %vm3904, %v5761, %v5762
        %v5764 = vrot.slane %v5688, 5
        %v5765 = vrot.slane %v5764, 4
        %v5766 = vrot.slane %v5689, 5
        %v5767 = vsel %vm3904, %v5765, %v5766
        %v5768 = vrot.slane %v5766, 4
        %v5769 = vrot.slane %v5690, 5
        %v5770 = vsel %vm3904, %v5768, %v5769
        %s5771 = sadd.s32 %s520, 15
        %v5772 = vld [vmem:[#allocation4] sm:$0xff]
        %v5773 = vld [vmem:[#allocation4 + $0x8] sm:$0xff]
        %v5774 = vld [vmem:[#allocation4 + $0x10] sm:$0xff]
        %v5775 = vld [vmem:[#allocation4 + $0x18] sm:$0xff]
        %v5776 = vld [vmem:[#allocation4 + $0x20] sm:$0xff]
        %v5777 = vld [vmem:[#allocation4 + $0x28] sm:$0xff]
        %v5778 = vld [vmem:[#allocation4 + $0x30] sm:$0xff]
        %v5779 = vld [vmem:[#allocation4 + $0x38] sm:$0xff]
        %v5780 = vld [vmem:[#allocation4 + $0x40] sm:$0xff]
        %v5781 = vld [vmem:[#allocation4 + $0x48] sm:$0xff]
        %v5782 = vld [vmem:[#allocation4 + $0x50] sm:$0xff]
        %v5783 = vld [vmem:[#allocation4 + $0x58] sm:$0xff]
        %v5784 = vld [vmem:[#allocation4 + $0x60] sm:$0xff]
        %v5785 = vld [vmem:[#allocation4 + $0x68] sm:$0xff]
        %v5786 = vld [vmem:[#allocation4 + $0x70] sm:$0xff]
        %v5787 = vld [vmem:[#allocation4 + $0x78] sm:$0xff]
        %s5788 = smul.u32 %s5771, 16
        %s5789 = smul.addr %s5788, 4
        %s5790 = scalar_lea.vmem [#allocation5], %s5789
        %v5791 = vld [vmem:[%s5790] sm:$0xf]
        %v5792 = vld [vmem:[%s5790 + $0x4] sm:$0xf]
        %v5793 = vld [vmem:[%s5790 + $0x8] sm:$0xf]
        %v5794 = vld [vmem:[%s5790 + $0xc] sm:$0xf]
        %v5795 = vld [vmem:[%s5790 + $0x10] sm:$0xf]
        %v5796 = vld [vmem:[%s5790 + $0x14] sm:$0xf]
        %v5797 = vld [vmem:[%s5790 + $0x18] sm:$0xf]
        %v5798 = vld [vmem:[%s5790 + $0x1c] sm:$0xf]
        %v5799 = vld [vmem:[%s5790 + $0x20] sm:$0xf]
        %v5800 = vld [vmem:[%s5790 + $0x24] sm:$0xf]
        %v5801 = vld [vmem:[%s5790 + $0x28] sm:$0xf]
        %v5802 = vld [vmem:[%s5790 + $0x2c] sm:$0xf]
        %v5803 = vld [vmem:[%s5790 + $0x30] sm:$0xf]
        %v5804 = vld [vmem:[%s5790 + $0x34] sm:$0xf]
        %v5805 = vld [vmem:[%s5790 + $0x38] sm:$0xf]
        %v5806 = vld [vmem:[%s5790 + $0x3c] sm:$0xf]
        %v5807 = vunpack.c.l.b16 %v5718
        %v5808 = vunpack.c.l.b16 %v5721
        %v5809 = vunpack.c.l.b16 %v5725
        %v5810 = vunpack.c.l.b16 %v5728
        %v5811 = vunpack.c.l.b16 %v5732
        %v5812 = vunpack.c.l.b16 %v5735
        %v5813 = vunpack.c.l.b16 %v5739
        %v5814 = vunpack.c.l.b16 %v5742
        %v5815 = vunpack.c.l.b16 %v5746
        %v5816 = vunpack.c.l.b16 %v5749
        %v5817 = vunpack.c.l.b16 %v5753
        %v5818 = vunpack.c.l.b16 %v5756
        %v5819 = vunpack.c.l.b16 %v5760
        %v5820 = vunpack.c.l.b16 %v5763
        %v5821 = vunpack.c.l.b16 %v5767
        %v5822 = vunpack.c.l.b16 %v5770
        %v5823 = vpack.c.b16 %v5808, %v5807
        %v5824 = vpack.c.b16 %v5810, %v5809
        %v5825 = vpack.c.b16 %v5812, %v5811
        %v5826 = vpack.c.b16 %v5814, %v5813
        %v5827 = vpack.c.b16 %v5816, %v5815
        %v5828 = vpack.c.b16 %v5818, %v5817
        %v5829 = vpack.c.b16 %v5820, %v5819
        %v5830 = vpack.c.b16 %v5822, %v5821
        %v5855 = vunpack.c.l.b16 %v5791
        %v5856 = vunpack.c.l.b16 %v5792
        %v5857 = vunpack.c.l.b16 %v5793
        %v5858 = vunpack.c.l.b16 %v5794
        %v5859 = vunpack.c.l.b16 %v5795
        %v5860 = vunpack.c.l.b16 %v5796
        %v5861 = vunpack.c.l.b16 %v5797
        %v5862 = vunpack.c.l.b16 %v5798
        %v5863 = vunpack.c.l.b16 %v5799
        %v5864 = vunpack.c.l.b16 %v5800
        %v5865 = vunpack.c.l.b16 %v5801
        %v5866 = vunpack.c.l.b16 %v5802
        %v5867 = vunpack.c.l.b16 %v5803
        %v5868 = vunpack.c.l.b16 %v5804
        %v5869 = vunpack.c.l.b16 %v5805
        %v5870 = vunpack.c.l.b16 %v5806
        %v5871 = vpack.c.b16 %v5856, %v5855
        %v5872 = vpack.c.b16 %v5858, %v5857
        %v5873 = vpack.c.b16 %v5860, %v5859
        %v5874 = vpack.c.b16 %v5862, %v5861
        %v5875 = vpack.c.b16 %v5864, %v5863
        %v5876 = vpack.c.b16 %v5866, %v5865
        %v5877 = vpack.c.b16 %v5868, %v5867
        %v5878 = vpack.c.b16 %v5870, %v5869
        %5887 = vmatpush.bf16.msra.mxu0 %v5878
        %5888 = vmatpush.bf16.msra.mxu0 %v5877
        %5889 = vmatpush.bf16.msra.mxu0 %v5876
        %5890 = vmatpush.bf16.msra.mxu0 %v5875
        %5891 = vmatpush.bf16.msra.mxu0 %v5874
        %5892 = vmatpush.bf16.msra.mxu0 %v5873
        %5893 = vmatpush.bf16.msra.mxu0 %v5872
        %5894 = vmatpush.bf16.msra.mxu0 %v5871
        %5895 = vmatmul.bf16.gmra.mxu0 %v5823
        %v5896 = vpop.f32.mrf.mxu0
        %v5897 = vadd.f32 0.0, %v5896
        %v5898 = vpop.f32.mrf.mxu0
        %v5899 = vadd.f32 0.0, %v5898
        %5900 = vmatmul.bf16.gmra.mxu0 %v5824
        %v5901 = vpop.f32.mrf.mxu0
        %v5902 = vadd.f32 0.0, %v5901
        %v5903 = vpop.f32.mrf.mxu0
        %v5904 = vadd.f32 0.0, %v5903
        %5905 = vmatmul.bf16.gmra.mxu0 %v5825
        %v5906 = vpop.f32.mrf.mxu0
        %v5907 = vadd.f32 0.0, %v5906
        %v5908 = vpop.f32.mrf.mxu0
        %v5909 = vadd.f32 0.0, %v5908
        %5910 = vmatmul.bf16.gmra.mxu0 %v5826
        %v5911 = vpop.f32.mrf.mxu0
        %v5912 = vadd.f32 0.0, %v5911
        %v5913 = vpop.f32.mrf.mxu0
        %v5914 = vadd.f32 0.0, %v5913
        %5915 = vmatmul.bf16.gmra.mxu0 %v5827
        %v5916 = vpop.f32.mrf.mxu0
        %v5917 = vadd.f32 0.0, %v5916
        %v5918 = vpop.f32.mrf.mxu0
        %v5919 = vadd.f32 0.0, %v5918
        %5920 = vmatmul.bf16.gmra.mxu0 %v5828
        %v5921 = vpop.f32.mrf.mxu0
        %v5922 = vadd.f32 0.0, %v5921
        %v5923 = vpop.f32.mrf.mxu0
        %v5924 = vadd.f32 0.0, %v5923
        %5925 = vmatmul.bf16.gmra.mxu0 %v5829
        %v5926 = vpop.f32.mrf.mxu0
        %v5927 = vadd.f32 0.0, %v5926
        %v5928 = vpop.f32.mrf.mxu0
        %v5929 = vadd.f32 0.0, %v5928
        %5930 = vmatmul.bf16.gmra.mxu0 %v5830
        %v5931 = vpop.f32.mrf.mxu0
        %v5932 = vadd.f32 0.0, %v5931
        %v5933 = vpop.f32.mrf.mxu0
        %v5934 = vadd.f32 0.0, %v5933
        %5935 = vdwg.mxu0
        %v5936 = vadd.f32 %v5772, %v5897
        %v5937 = vadd.f32 %v5773, %v5899
        %v5938 = vadd.f32 %v5774, %v5902
        %v5939 = vadd.f32 %v5775, %v5904
        %v5940 = vadd.f32 %v5776, %v5907
        %v5941 = vadd.f32 %v5777, %v5909
        %v5942 = vadd.f32 %v5778, %v5912
        %v5943 = vadd.f32 %v5779, %v5914
        %v5944 = vadd.f32 %v5780, %v5917
        %v5945 = vadd.f32 %v5781, %v5919
        %v5946 = vadd.f32 %v5782, %v5922
        %v5947 = vadd.f32 %v5783, %v5924
        %v5948 = vadd.f32 %v5784, %v5927
        %v5949 = vadd.f32 %v5785, %v5929
        %v5950 = vadd.f32 %v5786, %v5932
        %v5951 = vadd.f32 %v5787, %v5934
        %5952 = vst [vmem:[#allocation4] sm:$0xff] %v5936
        %5953 = vst [vmem:[#allocation4 + $0x8] sm:$0xff] %v5937
        %5954 = vst [vmem:[#allocation4 + $0x10] sm:$0xff] %v5938
        %5955 = vst [vmem:[#allocation4 + $0x18] sm:$0xff] %v5939
        %5956 = vst [vmem:[#allocation4 + $0x20] sm:$0xff] %v5940
        %5957 = vst [vmem:[#allocation4 + $0x28] sm:$0xff] %v5941
        %5958 = vst [vmem:[#allocation4 + $0x30] sm:$0xff] %v5942
        %5959 = vst [vmem:[#allocation4 + $0x38] sm:$0xff] %v5943
        %5960 = vst [vmem:[#allocation4 + $0x40] sm:$0xff] %v5944
        %5961 = vst [vmem:[#allocation4 + $0x48] sm:$0xff] %v5945
        %5962 = vst [vmem:[#allocation4 + $0x50] sm:$0xff] %v5946
        %5963 = vst [vmem:[#allocation4 + $0x58] sm:$0xff] %v5947
        %5964 = vst [vmem:[#allocation4 + $0x60] sm:$0xff] %v5948
        %5965 = vst [vmem:[#allocation4 + $0x68] sm:$0xff] %v5949
        %5966 = vst [vmem:[#allocation4 + $0x70] sm:$0xff] %v5950
        %5967 = vst [vmem:[#allocation4 + $0x78] sm:$0xff] %v5951
        %v5968 = vld [vmem:[%s5666] sm:$0xc]
        %v5969 = vld [vmem:[%s5666 + $0x4] sm:$0xf]
        %v5970 = vld [vmem:[%s5666 + $0x8] sm:$0x3]
        %v5971 = vld [vmem:[%s5666 + $0xc] sm:$0xc]
        %v5972 = vld [vmem:[%s5666 + $0x10] sm:$0xf]
        %v5973 = vld [vmem:[%s5666 + $0x14] sm:$0x3]
        %v5974 = vld [vmem:[%s5666 + $0x18] sm:$0xc]
        %v5975 = vld [vmem:[%s5666 + $0x1c] sm:$0xf]
        %v5976 = vld [vmem:[%s5666 + $0x20] sm:$0x3]
        %v5977 = vld [vmem:[%s5666 + $0x24] sm:$0xc]
        %v5978 = vld [vmem:[%s5666 + $0x28] sm:$0xf]
        %v5979 = vld [vmem:[%s5666 + $0x2c] sm:$0x3]
        %v5980 = vld [vmem:[%s5666 + $0x30] sm:$0xc]
        %v5981 = vld [vmem:[%s5666 + $0x34] sm:$0xf]
        %v5982 = vld [vmem:[%s5666 + $0x38] sm:$0x3]
        %v5983 = vld [vmem:[%s5666 + $0x3c] sm:$0xc]
        %v5984 = vld [vmem:[%s5666 + $0x40] sm:$0xf]
        %v5985 = vld [vmem:[%s5666 + $0x44] sm:$0x3]
        %v5986 = vld [vmem:[%s5666 + $0x48] sm:$0xc]
        %v5987 = vld [vmem:[%s5666 + $0x4c] sm:$0xf]
        %v5988 = vld [vmem:[%s5666 + $0x50] sm:$0x3]
        %v5989 = vld [vmem:[%s5666 + $0x54] sm:$0xc]
        %v5990 = vld [vmem:[%s5666 + $0x58] sm:$0xf]
        %v5991 = vld [vmem:[%s5666 + $0x5c] sm:$0x3]
        %v6016 = vrot.slane %v5968, 6
        %v6017 = vrot.slane %v6016, 4
        %v6018 = vrot.slane %v5969, 6
        %v6019 = vsel %vm767, %v6017, %v6018
        %v6020 = vrot.slane %v6018, 4
        %v6021 = vrot.slane %v5970, 6
        %v6022 = vsel %vm767, %v6020, %v6021
        %v6023 = vrot.slane %v5971, 6
        %v6024 = vrot.slane %v6023, 4
        %v6025 = vrot.slane %v5972, 6
        %v6026 = vsel %vm767, %v6024, %v6025
        %v6027 = vrot.slane %v6025, 4
        %v6028 = vrot.slane %v5973, 6
        %v6029 = vsel %vm767, %v6027, %v6028
        %v6030 = vrot.slane %v5974, 6
        %v6031 = vrot.slane %v6030, 4
        %v6032 = vrot.slane %v5975, 6
        %v6033 = vsel %vm767, %v6031, %v6032
        %v6034 = vrot.slane %v6032, 4
        %v6035 = vrot.slane %v5976, 6
        %v6036 = vsel %vm767, %v6034, %v6035
        %v6037 = vrot.slane %v5977, 6
        %v6038 = vrot.slane %v6037, 4
        %v6039 = vrot.slane %v5978, 6
        %v6040 = vsel %vm767, %v6038, %v6039
        %v6041 = vrot.slane %v6039, 4
        %v6042 = vrot.slane %v5979, 6
        %v6043 = vsel %vm767, %v6041, %v6042
        %v6044 = vrot.slane %v5980, 6
        %v6045 = vrot.slane %v6044, 4
        %v6046 = vrot.slane %v5981, 6
        %v6047 = vsel %vm767, %v6045, %v6046
        %v6048 = vrot.slane %v6046, 4
        %v6049 = vrot.slane %v5982, 6
        %v6050 = vsel %vm767, %v6048, %v6049
        %v6051 = vrot.slane %v5983, 6
        %v6052 = vrot.slane %v6051, 4
        %v6053 = vrot.slane %v5984, 6
        %v6054 = vsel %vm767, %v6052, %v6053
        %v6055 = vrot.slane %v6053, 4
        %v6056 = vrot.slane %v5985, 6
        %v6057 = vsel %vm767, %v6055, %v6056
        %v6058 = vrot.slane %v5986, 6
        %v6059 = vrot.slane %v6058, 4
        %v6060 = vrot.slane %v5987, 6
        %v6061 = vsel %vm767, %v6059, %v6060
        %v6062 = vrot.slane %v6060, 4
        %v6063 = vrot.slane %v5988, 6
        %v6064 = vsel %vm767, %v6062, %v6063
        %v6065 = vrot.slane %v5989, 6
        %v6066 = vrot.slane %v6065, 4
        %v6067 = vrot.slane %v5990, 6
        %v6068 = vsel %vm767, %v6066, %v6067
        %v6069 = vrot.slane %v6067, 4
        %v6070 = vrot.slane %v5991, 6
        %v6071 = vsel %vm767, %v6069, %v6070
        %s6072 = sadd.s32 %s520, 16
        %v6073 = vld [vmem:[#allocation4] sm:$0xff]
        %v6074 = vld [vmem:[#allocation4 + $0x8] sm:$0xff]
        %v6075 = vld [vmem:[#allocation4 + $0x10] sm:$0xff]
        %v6076 = vld [vmem:[#allocation4 + $0x18] sm:$0xff]
        %v6077 = vld [vmem:[#allocation4 + $0x20] sm:$0xff]
        %v6078 = vld [vmem:[#allocation4 + $0x28] sm:$0xff]
        %v6079 = vld [vmem:[#allocation4 + $0x30] sm:$0xff]
        %v6080 = vld [vmem:[#allocation4 + $0x38] sm:$0xff]
        %v6081 = vld [vmem:[#allocation4 + $0x40] sm:$0xff]
        %v6082 = vld [vmem:[#allocation4 + $0x48] sm:$0xff]
        %v6083 = vld [vmem:[#allocation4 + $0x50] sm:$0xff]
        %v6084 = vld [vmem:[#allocation4 + $0x58] sm:$0xff]
        %v6085 = vld [vmem:[#allocation4 + $0x60] sm:$0xff]
        %v6086 = vld [vmem:[#allocation4 + $0x68] sm:$0xff]
        %v6087 = vld [vmem:[#allocation4 + $0x70] sm:$0xff]
        %v6088 = vld [vmem:[#allocation4 + $0x78] sm:$0xff]
        %s6089 = smul.u32 %s6072, 16
        %s6090 = smul.addr %s6089, 4
        %s6091 = scalar_lea.vmem [#allocation5], %s6090
        %v6092 = vld [vmem:[%s6091] sm:$0xf]
        %v6093 = vld [vmem:[%s6091 + $0x4] sm:$0xf]
        %v6094 = vld [vmem:[%s6091 + $0x8] sm:$0xf]
        %v6095 = vld [vmem:[%s6091 + $0xc] sm:$0xf]
        %v6096 = vld [vmem:[%s6091 + $0x10] sm:$0xf]
        %v6097 = vld [vmem:[%s6091 + $0x14] sm:$0xf]
        %v6098 = vld [vmem:[%s6091 + $0x18] sm:$0xf]
        %v6099 = vld [vmem:[%s6091 + $0x1c] sm:$0xf]
        %v6100 = vld [vmem:[%s6091 + $0x20] sm:$0xf]
        %v6101 = vld [vmem:[%s6091 + $0x24] sm:$0xf]
        %v6102 = vld [vmem:[%s6091 + $0x28] sm:$0xf]
        %v6103 = vld [vmem:[%s6091 + $0x2c] sm:$0xf]
        %v6104 = vld [vmem:[%s6091 + $0x30] sm:$0xf]
        %v6105 = vld [vmem:[%s6091 + $0x34] sm:$0xf]
        %v6106 = vld [vmem:[%s6091 + $0x38] sm:$0xf]
        %v6107 = vld [vmem:[%s6091 + $0x3c] sm:$0xf]
        %v6108 = vunpack.c.l.b16 %v6019
        %v6109 = vunpack.c.l.b16 %v6022
        %v6110 = vunpack.c.l.b16 %v6026
        %v6111 = vunpack.c.l.b16 %v6029
        %v6112 = vunpack.c.l.b16 %v6033
        %v6113 = vunpack.c.l.b16 %v6036
        %v6114 = vunpack.c.l.b16 %v6040
        %v6115 = vunpack.c.l.b16 %v6043
        %v6116 = vunpack.c.l.b16 %v6047
        %v6117 = vunpack.c.l.b16 %v6050
        %v6118 = vunpack.c.l.b16 %v6054
        %v6119 = vunpack.c.l.b16 %v6057
        %v6120 = vunpack.c.l.b16 %v6061
        %v6121 = vunpack.c.l.b16 %v6064
        %v6122 = vunpack.c.l.b16 %v6068
        %v6123 = vunpack.c.l.b16 %v6071
        %v6124 = vpack.c.b16 %v6109, %v6108
        %v6125 = vpack.c.b16 %v6111, %v6110
        %v6126 = vpack.c.b16 %v6113, %v6112
        %v6127 = vpack.c.b16 %v6115, %v6114
        %v6128 = vpack.c.b16 %v6117, %v6116
        %v6129 = vpack.c.b16 %v6119, %v6118
        %v6130 = vpack.c.b16 %v6121, %v6120
        %v6131 = vpack.c.b16 %v6123, %v6122
        %v6156 = vunpack.c.l.b16 %v6092
        %v6157 = vunpack.c.l.b16 %v6093
        %v6158 = vunpack.c.l.b16 %v6094
        %v6159 = vunpack.c.l.b16 %v6095
        %v6160 = vunpack.c.l.b16 %v6096
        %v6161 = vunpack.c.l.b16 %v6097
        %v6162 = vunpack.c.l.b16 %v6098
        %v6163 = vunpack.c.l.b16 %v6099
        %v6164 = vunpack.c.l.b16 %v6100
        %v6165 = vunpack.c.l.b16 %v6101
        %v6166 = vunpack.c.l.b16 %v6102
        %v6167 = vunpack.c.l.b16 %v6103
        %v6168 = vunpack.c.l.b16 %v6104
        %v6169 = vunpack.c.l.b16 %v6105
        %v6170 = vunpack.c.l.b16 %v6106
        %v6171 = vunpack.c.l.b16 %v6107
        %v6172 = vpack.c.b16 %v6157, %v6156
        %v6173 = vpack.c.b16 %v6159, %v6158
        %v6174 = vpack.c.b16 %v6161, %v6160
        %v6175 = vpack.c.b16 %v6163, %v6162
        %v6176 = vpack.c.b16 %v6165, %v6164
        %v6177 = vpack.c.b16 %v6167, %v6166
        %v6178 = vpack.c.b16 %v6169, %v6168
        %v6179 = vpack.c.b16 %v6171, %v6170
        %6188 = vmatpush.bf16.msra.mxu0 %v6179
        %6189 = vmatpush.bf16.msra.mxu0 %v6178
        %6190 = vmatpush.bf16.msra.mxu0 %v6177
        %6191 = vmatpush.bf16.msra.mxu0 %v6176
        %6192 = vmatpush.bf16.msra.mxu0 %v6175
        %6193 = vmatpush.bf16.msra.mxu0 %v6174
        %6194 = vmatpush.bf16.msra.mxu0 %v6173
        %6195 = vmatpush.bf16.msra.mxu0 %v6172
        %6196 = vmatmul.bf16.gmra.mxu0 %v6124
        %v6197 = vpop.f32.mrf.mxu0
        %v6198 = vadd.f32 0.0, %v6197
        %v6199 = vpop.f32.mrf.mxu0
        %v6200 = vadd.f32 0.0, %v6199
        %6201 = vmatmul.bf16.gmra.mxu0 %v6125
        %v6202 = vpop.f32.mrf.mxu0
        %v6203 = vadd.f32 0.0, %v6202
        %v6204 = vpop.f32.mrf.mxu0
        %v6205 = vadd.f32 0.0, %v6204
        %6206 = vmatmul.bf16.gmra.mxu0 %v6126
        %v6207 = vpop.f32.mrf.mxu0
        %v6208 = vadd.f32 0.0, %v6207
        %v6209 = vpop.f32.mrf.mxu0
        %v6210 = vadd.f32 0.0, %v6209
        %6211 = vmatmul.bf16.gmra.mxu0 %v6127
        %v6212 = vpop.f32.mrf.mxu0
        %v6213 = vadd.f32 0.0, %v6212
        %v6214 = vpop.f32.mrf.mxu0
        %v6215 = vadd.f32 0.0, %v6214
        %6216 = vmatmul.bf16.gmra.mxu0 %v6128
        %v6217 = vpop.f32.mrf.mxu0
        %v6218 = vadd.f32 0.0, %v6217
        %v6219 = vpop.f32.mrf.mxu0
        %v6220 = vadd.f32 0.0, %v6219
        %6221 = vmatmul.bf16.gmra.mxu0 %v6129
        %v6222 = vpop.f32.mrf.mxu0
        %v6223 = vadd.f32 0.0, %v6222
        %v6224 = vpop.f32.mrf.mxu0
        %v6225 = vadd.f32 0.0, %v6224
        %6226 = vmatmul.bf16.gmra.mxu0 %v6130
        %v6227 = vpop.f32.mrf.mxu0
        %v6228 = vadd.f32 0.0, %v6227
        %v6229 = vpop.f32.mrf.mxu0
        %v6230 = vadd.f32 0.0, %v6229
        %6231 = vmatmul.bf16.gmra.mxu0 %v6131
        %v6232 = vpop.f32.mrf.mxu0
        %v6233 = vadd.f32 0.0, %v6232
        %v6234 = vpop.f32.mrf.mxu0
        %v6235 = vadd.f32 0.0, %v6234
        %6236 = vdwg.mxu0
        %v6237 = vadd.f32 %v6073, %v6198
        %v6238 = vadd.f32 %v6074, %v6200
        %v6239 = vadd.f32 %v6075, %v6203
        %v6240 = vadd.f32 %v6076, %v6205
        %v6241 = vadd.f32 %v6077, %v6208
        %v6242 = vadd.f32 %v6078, %v6210
        %v6243 = vadd.f32 %v6079, %v6213
        %v6244 = vadd.f32 %v6080, %v6215
        %v6245 = vadd.f32 %v6081, %v6218
        %v6246 = vadd.f32 %v6082, %v6220
        %v6247 = vadd.f32 %v6083, %v6223
        %v6248 = vadd.f32 %v6084, %v6225
        %v6249 = vadd.f32 %v6085, %v6228
        %v6250 = vadd.f32 %v6086, %v6230
        %v6251 = vadd.f32 %v6087, %v6233
        %v6252 = vadd.f32 %v6088, %v6235
        %6253 = vst [vmem:[#allocation4] sm:$0xff] %v6237
        %6254 = vst [vmem:[#allocation4 + $0x8] sm:$0xff] %v6238
        %6255 = vst [vmem:[#allocation4 + $0x10] sm:$0xff] %v6239
        %6256 = vst [vmem:[#allocation4 + $0x18] sm:$0xff] %v6240
        %6257 = vst [vmem:[#allocation4 + $0x20] sm:$0xff] %v6241
        %6258 = vst [vmem:[#allocation4 + $0x28] sm:$0xff] %v6242
        %6259 = vst [vmem:[#allocation4 + $0x30] sm:$0xff] %v6243
        %6260 = vst [vmem:[#allocation4 + $0x38] sm:$0xff] %v6244
        %6261 = vst [vmem:[#allocation4 + $0x40] sm:$0xff] %v6245
        %6262 = vst [vmem:[#allocation4 + $0x48] sm:$0xff] %v6246
        %6263 = vst [vmem:[#allocation4 + $0x50] sm:$0xff] %v6247
        %6264 = vst [vmem:[#allocation4 + $0x58] sm:$0xff] %v6248
        %6265 = vst [vmem:[#allocation4 + $0x60] sm:$0xff] %v6249
        %6266 = vst [vmem:[#allocation4 + $0x68] sm:$0xff] %v6250
        %6267 = vst [vmem:[#allocation4 + $0x70] sm:$0xff] %v6251
        %6268 = vst [vmem:[#allocation4 + $0x78] sm:$0xff] %v6252
        %v6269 = vld [vmem:[%s5666] sm:$0x8]
        %v6270 = vld [vmem:[%s5666 + $0x4] sm:$0xf]
        %v6271 = vld [vmem:[%s5666 + $0x8] sm:$0x7]
        %v6272 = vld [vmem:[%s5666 + $0xc] sm:$0x8]
        %v6273 = vld [vmem:[%s5666 + $0x10] sm:$0xf]
        %v6274 = vld [vmem:[%s5666 + $0x14] sm:$0x7]
        %v6275 = vld [vmem:[%s5666 + $0x18] sm:$0x8]
        %v6276 = vld [vmem:[%s5666 + $0x1c] sm:$0xf]
        %v6277 = vld [vmem:[%s5666 + $0x20] sm:$0x7]
        %v6278 = vld [vmem:[%s5666 + $0x24] sm:$0x8]
        %v6279 = vld [vmem:[%s5666 + $0x28] sm:$0xf]
        %v6280 = vld [vmem:[%s5666 + $0x2c] sm:$0x7]
        %v6281 = vld [vmem:[%s5666 + $0x30] sm:$0x8]
        %v6282 = vld [vmem:[%s5666 + $0x34] sm:$0xf]
        %v6283 = vld [vmem:[%s5666 + $0x38] sm:$0x7]
        %v6284 = vld [vmem:[%s5666 + $0x3c] sm:$0x8]
        %v6285 = vld [vmem:[%s5666 + $0x40] sm:$0xf]
        %v6286 = vld [vmem:[%s5666 + $0x44] sm:$0x7]
        %v6287 = vld [vmem:[%s5666 + $0x48] sm:$0x8]
        %v6288 = vld [vmem:[%s5666 + $0x4c] sm:$0xf]
        %v6289 = vld [vmem:[%s5666 + $0x50] sm:$0x7]
        %v6290 = vld [vmem:[%s5666 + $0x54] sm:$0x8]
        %v6291 = vld [vmem:[%s5666 + $0x58] sm:$0xf]
        %v6292 = vld [vmem:[%s5666 + $0x5c] sm:$0x7]
        %v6317 = vrot.slane %v6269, 7
        %v6318 = vrot.slane %v6317, 4
        %v6319 = vrot.slane %v6270, 7
        %v6320 = vsel %vm4509, %v6318, %v6319
        %v6321 = vrot.slane %v6319, 4
        %v6322 = vrot.slane %v6271, 7
        %v6323 = vsel %vm4509, %v6321, %v6322
        %v6324 = vrot.slane %v6272, 7
        %v6325 = vrot.slane %v6324, 4
        %v6326 = vrot.slane %v6273, 7
        %v6327 = vsel %vm4509, %v6325, %v6326
        %v6328 = vrot.slane %v6326, 4
        %v6329 = vrot.slane %v6274, 7
        %v6330 = vsel %vm4509, %v6328, %v6329
        %v6331 = vrot.slane %v6275, 7
        %v6332 = vrot.slane %v6331, 4
        %v6333 = vrot.slane %v6276, 7
        %v6334 = vsel %vm4509, %v6332, %v6333
        %v6335 = vrot.slane %v6333, 4
        %v6336 = vrot.slane %v6277, 7
        %v6337 = vsel %vm4509, %v6335, %v6336
        %v6338 = vrot.slane %v6278, 7
        %v6339 = vrot.slane %v6338, 4
        %v6340 = vrot.slane %v6279, 7
        %v6341 = vsel %vm4509, %v6339, %v6340
        %v6342 = vrot.slane %v6340, 4
        %v6343 = vrot.slane %v6280, 7
        %v6344 = vsel %vm4509, %v6342, %v6343
        %v6345 = vrot.slane %v6281, 7
        %v6346 = vrot.slane %v6345, 4
        %v6347 = vrot.slane %v6282, 7
        %v6348 = vsel %vm4509, %v6346, %v6347
        %v6349 = vrot.slane %v6347, 4
        %v6350 = vrot.slane %v6283, 7
        %v6351 = vsel %vm4509, %v6349, %v6350
        %v6352 = vrot.slane %v6284, 7
        %v6353 = vrot.slane %v6352, 4
        %v6354 = vrot.slane %v6285, 7
        %v6355 = vsel %vm4509, %v6353, %v6354
        %v6356 = vrot.slane %v6354, 4
        %v6357 = vrot.slane %v6286, 7
        %v6358 = vsel %vm4509, %v6356, %v6357
        %v6359 = vrot.slane %v6287, 7
        %v6360 = vrot.slane %v6359, 4
        %v6361 = vrot.slane %v6288, 7
        %v6362 = vsel %vm4509, %v6360, %v6361
        %v6363 = vrot.slane %v6361, 4
        %v6364 = vrot.slane %v6289, 7
        %v6365 = vsel %vm4509, %v6363, %v6364
        %v6366 = vrot.slane %v6290, 7
        %v6367 = vrot.slane %v6366, 4
        %v6368 = vrot.slane %v6291, 7
        %v6369 = vsel %vm4509, %v6367, %v6368
        %v6370 = vrot.slane %v6368, 4
        %v6371 = vrot.slane %v6292, 7
        %v6372 = vsel %vm4509, %v6370, %v6371
        %s6373 = sadd.s32 %s520, 17
        %v6374 = vld [vmem:[#allocation4] sm:$0xff]
        %v6375 = vld [vmem:[#allocation4 + $0x8] sm:$0xff]
        %v6376 = vld [vmem:[#allocation4 + $0x10] sm:$0xff]
        %v6377 = vld [vmem:[#allocation4 + $0x18] sm:$0xff]
        %v6378 = vld [vmem:[#allocation4 + $0x20] sm:$0xff]
        %v6379 = vld [vmem:[#allocation4 + $0x28] sm:$0xff]
        %v6380 = vld [vmem:[#allocation4 + $0x30] sm:$0xff]
        %v6381 = vld [vmem:[#allocation4 + $0x38] sm:$0xff]
        %v6382 = vld [vmem:[#allocation4 + $0x40] sm:$0xff]
        %v6383 = vld [vmem:[#allocation4 + $0x48] sm:$0xff]
        %v6384 = vld [vmem:[#allocation4 + $0x50] sm:$0xff]
        %v6385 = vld [vmem:[#allocation4 + $0x58] sm:$0xff]
        %v6386 = vld [vmem:[#allocation4 + $0x60] sm:$0xff]
        %v6387 = vld [vmem:[#allocation4 + $0x68] sm:$0xff]
        %v6388 = vld [vmem:[#allocation4 + $0x70] sm:$0xff]
        %v6389 = vld [vmem:[#allocation4 + $0x78] sm:$0xff]
        %s6390 = smul.u32 %s6373, 16
        %s6391 = smul.addr %s6390, 4
        %s6392 = scalar_lea.vmem [#allocation5], %s6391
        %v6393 = vld [vmem:[%s6392] sm:$0xf]
        %v6394 = vld [vmem:[%s6392 + $0x4] sm:$0xf]
        %v6395 = vld [vmem:[%s6392 + $0x8] sm:$0xf]
        %v6396 = vld [vmem:[%s6392 + $0xc] sm:$0xf]
        %v6397 = vld [vmem:[%s6392 + $0x10] sm:$0xf]
        %v6398 = vld [vmem:[%s6392 + $0x14] sm:$0xf]
        %v6399 = vld [vmem:[%s6392 + $0x18] sm:$0xf]
        %v6400 = vld [vmem:[%s6392 + $0x1c] sm:$0xf]
        %v6401 = vld [vmem:[%s6392 + $0x20] sm:$0xf]
        %v6402 = vld [vmem:[%s6392 + $0x24] sm:$0xf]
        %v6403 = vld [vmem:[%s6392 + $0x28] sm:$0xf]
        %v6404 = vld [vmem:[%s6392 + $0x2c] sm:$0xf]
        %v6405 = vld [vmem:[%s6392 + $0x30] sm:$0xf]
        %v6406 = vld [vmem:[%s6392 + $0x34] sm:$0xf]
        %v6407 = vld [vmem:[%s6392 + $0x38] sm:$0xf]
        %v6408 = vld [vmem:[%s6392 + $0x3c] sm:$0xf]
        %v6409 = vunpack.c.l.b16 %v6320
        %v6410 = vunpack.c.l.b16 %v6323
        %v6411 = vunpack.c.l.b16 %v6327
        %v6412 = vunpack.c.l.b16 %v6330
        %v6413 = vunpack.c.l.b16 %v6334
        %v6414 = vunpack.c.l.b16 %v6337
        %v6415 = vunpack.c.l.b16 %v6341
        %v6416 = vunpack.c.l.b16 %v6344
        %v6417 = vunpack.c.l.b16 %v6348
        %v6418 = vunpack.c.l.b16 %v6351
        %v6419 = vunpack.c.l.b16 %v6355
        %v6420 = vunpack.c.l.b16 %v6358
        %v6421 = vunpack.c.l.b16 %v6362
        %v6422 = vunpack.c.l.b16 %v6365
        %v6423 = vunpack.c.l.b16 %v6369
        %v6424 = vunpack.c.l.b16 %v6372
        %v6425 = vpack.c.b16 %v6410, %v6409
        %v6426 = vpack.c.b16 %v6412, %v6411
        %v6427 = vpack.c.b16 %v6414, %v6413
        %v6428 = vpack.c.b16 %v6416, %v6415
        %v6429 = vpack.c.b16 %v6418, %v6417
        %v6430 = vpack.c.b16 %v6420, %v6419
        %v6431 = vpack.c.b16 %v6422, %v6421
        %v6432 = vpack.c.b16 %v6424, %v6423
        %v6457 = vunpack.c.l.b16 %v6393
        %v6458 = vunpack.c.l.b16 %v6394
        %v6459 = vunpack.c.l.b16 %v6395
        %v6460 = vunpack.c.l.b16 %v6396
        %v6461 = vunpack.c.l.b16 %v6397
        %v6462 = vunpack.c.l.b16 %v6398
        %v6463 = vunpack.c.l.b16 %v6399
        %v6464 = vunpack.c.l.b16 %v6400
        %v6465 = vunpack.c.l.b16 %v6401
        %v6466 = vunpack.c.l.b16 %v6402
        %v6467 = vunpack.c.l.b16 %v6403
        %v6468 = vunpack.c.l.b16 %v6404
        %v6469 = vunpack.c.l.b16 %v6405
        %v6470 = vunpack.c.l.b16 %v6406
        %v6471 = vunpack.c.l.b16 %v6407
        %v6472 = vunpack.c.l.b16 %v6408
        %v6473 = vpack.c.b16 %v6458, %v6457
        %v6474 = vpack.c.b16 %v6460, %v6459
        %v6475 = vpack.c.b16 %v6462, %v6461
        %v6476 = vpack.c.b16 %v6464, %v6463
        %v6477 = vpack.c.b16 %v6466, %v6465
        %v6478 = vpack.c.b16 %v6468, %v6467
        %v6479 = vpack.c.b16 %v6470, %v6469
        %v6480 = vpack.c.b16 %v6472, %v6471
        %6489 = vmatpush.bf16.msra.mxu0 %v6480
        %6490 = vmatpush.bf16.msra.mxu0 %v6479
        %6491 = vmatpush.bf16.msra.mxu0 %v6478
        %6492 = vmatpush.bf16.msra.mxu0 %v6477
        %6493 = vmatpush.bf16.msra.mxu0 %v6476
        %6494 = vmatpush.bf16.msra.mxu0 %v6475
        %6495 = vmatpush.bf16.msra.mxu0 %v6474
        %6496 = vmatpush.bf16.msra.mxu0 %v6473
        %6497 = vmatmul.bf16.gmra.mxu0 %v6425
        %v6498 = vpop.f32.mrf.mxu0
        %v6499 = vadd.f32 0.0, %v6498
        %v6500 = vpop.f32.mrf.mxu0
        %v6501 = vadd.f32 0.0, %v6500
        %6502 = vmatmul.bf16.gmra.mxu0 %v6426
        %v6503 = vpop.f32.mrf.mxu0
        %v6504 = vadd.f32 0.0, %v6503
        %v6505 = vpop.f32.mrf.mxu0
        %v6506 = vadd.f32 0.0, %v6505
        %6507 = vmatmul.bf16.gmra.mxu0 %v6427
        %v6508 = vpop.f32.mrf.mxu0
        %v6509 = vadd.f32 0.0, %v6508
        %v6510 = vpop.f32.mrf.mxu0
        %v6511 = vadd.f32 0.0, %v6510
        %6512 = vmatmul.bf16.gmra.mxu0 %v6428
        %v6513 = vpop.f32.mrf.mxu0
        %v6514 = vadd.f32 0.0, %v6513
        %v6515 = vpop.f32.mrf.mxu0
        %v6516 = vadd.f32 0.0, %v6515
        %6517 = vmatmul.bf16.gmra.mxu0 %v6429
        %v6518 = vpop.f32.mrf.mxu0
        %v6519 = vadd.f32 0.0, %v6518
        %v6520 = vpop.f32.mrf.mxu0
        %v6521 = vadd.f32 0.0, %v6520
        %6522 = vmatmul.bf16.gmra.mxu0 %v6430
        %v6523 = vpop.f32.mrf.mxu0
        %v6524 = vadd.f32 0.0, %v6523
        %v6525 = vpop.f32.mrf.mxu0
        %v6526 = vadd.f32 0.0, %v6525
        %6527 = vmatmul.bf16.gmra.mxu0 %v6431
        %v6528 = vpop.f32.mrf.mxu0
        %v6529 = vadd.f32 0.0, %v6528
        %v6530 = vpop.f32.mrf.mxu0
        %v6531 = vadd.f32 0.0, %v6530
        %6532 = vmatmul.bf16.gmra.mxu0 %v6432
        %v6533 = vpop.f32.mrf.mxu0
        %v6534 = vadd.f32 0.0, %v6533
        %v6535 = vpop.f32.mrf.mxu0
        %v6536 = vadd.f32 0.0, %v6535
        %6537 = vdwg.mxu0
        %v6538 = vadd.f32 %v6374, %v6499
        %v6539 = vadd.f32 %v6375, %v6501
        %v6540 = vadd.f32 %v6376, %v6504
        %v6541 = vadd.f32 %v6377, %v6506
        %v6542 = vadd.f32 %v6378, %v6509
        %v6543 = vadd.f32 %v6379, %v6511
        %v6544 = vadd.f32 %v6380, %v6514
        %v6545 = vadd.f32 %v6381, %v6516
        %v6546 = vadd.f32 %v6382, %v6519
        %v6547 = vadd.f32 %v6383, %v6521
        %v6548 = vadd.f32 %v6384, %v6524
        %v6549 = vadd.f32 %v6385, %v6526
        %v6550 = vadd.f32 %v6386, %v6529
        %v6551 = vadd.f32 %v6387, %v6531
        %v6552 = vadd.f32 %v6388, %v6534
        %v6553 = vadd.f32 %v6389, %v6536
        %6554 = vst [vmem:[#allocation4] sm:$0xff] %v6538
        %6555 = vst [vmem:[#allocation4 + $0x8] sm:$0xff] %v6539
        %6556 = vst [vmem:[#allocation4 + $0x10] sm:$0xff] %v6540
        %6557 = vst [vmem:[#allocation4 + $0x18] sm:$0xff] %v6541
        %6558 = vst [vmem:[#allocation4 + $0x20] sm:$0xff] %v6542
        %6559 = vst [vmem:[#allocation4 + $0x28] sm:$0xff] %v6543
        %6560 = vst [vmem:[#allocation4 + $0x30] sm:$0xff] %v6544
        %6561 = vst [vmem:[#allocation4 + $0x38] sm:$0xff] %v6545
        %6562 = vst [vmem:[#allocation4 + $0x40] sm:$0xff] %v6546
        %6563 = vst [vmem:[#allocation4 + $0x48] sm:$0xff] %v6547
        %6564 = vst [vmem:[#allocation4 + $0x50] sm:$0xff] %v6548
        %6565 = vst [vmem:[#allocation4 + $0x58] sm:$0xff] %v6549
        %6566 = vst [vmem:[#allocation4 + $0x60] sm:$0xff] %v6550
        %6567 = vst [vmem:[#allocation4 + $0x68] sm:$0xff] %v6551
        %6568 = vst [vmem:[#allocation4 + $0x70] sm:$0xff] %v6552
        %6569 = vst [vmem:[#allocation4 + $0x78] sm:$0xff] %v6553
        %v6570 = vld [vmem:[%s267] sm:$0xf]
        %v6571 = vld [vmem:[%s267 + $0x4] sm:$0xf]
        %v6572 = vld [vmem:[%s267 + $0xc] sm:$0xf]
        %v6573 = vld [vmem:[%s267 + $0x10] sm:$0xf]
        %v6574 = vld [vmem:[%s267 + $0x18] sm:$0xf]
        %v6575 = vld [vmem:[%s267 + $0x1c] sm:$0xf]
        %v6576 = vld [vmem:[%s267 + $0x24] sm:$0xf]
        %v6577 = vld [vmem:[%s267 + $0x28] sm:$0xf]
        %v6578 = vld [vmem:[%s267 + $0x30] sm:$0xf]
        %v6579 = vld [vmem:[%s267 + $0x34] sm:$0xf]
        %v6580 = vld [vmem:[%s267 + $0x3c] sm:$0xf]
        %v6581 = vld [vmem:[%s267 + $0x40] sm:$0xf]
        %v6582 = vld [vmem:[%s267 + $0x48] sm:$0xf]
        %v6583 = vld [vmem:[%s267 + $0x4c] sm:$0xf]
        %v6584 = vld [vmem:[%s267 + $0x54] sm:$0xf]
        %v6585 = vld [vmem:[%s267 + $0x58] sm:$0xf]
        %s6586 = sadd.s32 %s520, 18
        %v6587 = vld [vmem:[#allocation4] sm:$0xff]
        %v6588 = vld [vmem:[#allocation4 + $0x8] sm:$0xff]
        %v6589 = vld [vmem:[#allocation4 + $0x10] sm:$0xff]
        %v6590 = vld [vmem:[#allocation4 + $0x18] sm:$0xff]
        %v6591 = vld [vmem:[#allocation4 + $0x20] sm:$0xff]
        %v6592 = vld [vmem:[#allocation4 + $0x28] sm:$0xff]
        %v6593 = vld [vmem:[#allocation4 + $0x30] sm:$0xff]
        %v6594 = vld [vmem:[#allocation4 + $0x38] sm:$0xff]
        %v6595 = vld [vmem:[#allocation4 + $0x40] sm:$0xff]
        %v6596 = vld [vmem:[#allocation4 + $0x48] sm:$0xff]
        %v6597 = vld [vmem:[#allocation4 + $0x50] sm:$0xff]
        %v6598 = vld [vmem:[#allocation4 + $0x58] sm:$0xff]
        %v6599 = vld [vmem:[#allocation4 + $0x60] sm:$0xff]
        %v6600 = vld [vmem:[#allocation4 + $0x68] sm:$0xff]
        %v6601 = vld [vmem:[#allocation4 + $0x70] sm:$0xff]
        %v6602 = vld [vmem:[#allocation4 + $0x78] sm:$0xff]
        %s6603 = smul.u32 %s6586, 16
        %s6604 = smul.addr %s6603, 4
        %s6605 = scalar_lea.vmem [#allocation5], %s6604
        %v6606 = vld [vmem:[%s6605] sm:$0xf]
        %v6607 = vld [vmem:[%s6605 + $0x4] sm:$0xf]
        %v6608 = vld [vmem:[%s6605 + $0x8] sm:$0xf]
        %v6609 = vld [vmem:[%s6605 + $0xc] sm:$0xf]
        %v6610 = vld [vmem:[%s6605 + $0x10] sm:$0xf]
        %v6611 = vld [vmem:[%s6605 + $0x14] sm:$0xf]
        %v6612 = vld [vmem:[%s6605 + $0x18] sm:$0xf]
        %v6613 = vld [vmem:[%s6605 + $0x1c] sm:$0xf]
        %v6614 = vld [vmem:[%s6605 + $0x20] sm:$0xf]
        %v6615 = vld [vmem:[%s6605 + $0x24] sm:$0xf]
        %v6616 = vld [vmem:[%s6605 + $0x28] sm:$0xf]
        %v6617 = vld [vmem:[%s6605 + $0x2c] sm:$0xf]
        %v6618 = vld [vmem:[%s6605 + $0x30] sm:$0xf]
        %v6619 = vld [vmem:[%s6605 + $0x34] sm:$0xf]
        %v6620 = vld [vmem:[%s6605 + $0x38] sm:$0xf]
        %v6621 = vld [vmem:[%s6605 + $0x3c] sm:$0xf]
        %v6638 = vunpack.c.l.b16 %v6570
        %v6639 = vunpack.c.l.b16 %v6571
        %v6640 = vunpack.c.l.b16 %v6572
        %v6641 = vunpack.c.l.b16 %v6573
        %v6642 = vunpack.c.l.b16 %v6574
        %v6643 = vunpack.c.l.b16 %v6575
        %v6644 = vunpack.c.l.b16 %v6576
        %v6645 = vunpack.c.l.b16 %v6577
        %v6646 = vunpack.c.l.b16 %v6578
        %v6647 = vunpack.c.l.b16 %v6579
        %v6648 = vunpack.c.l.b16 %v6580
        %v6649 = vunpack.c.l.b16 %v6581
        %v6650 = vunpack.c.l.b16 %v6582
        %v6651 = vunpack.c.l.b16 %v6583
        %v6652 = vunpack.c.l.b16 %v6584
        %v6653 = vunpack.c.l.b16 %v6585
        %v6654 = vpack.c.b16 %v6639, %v6638
        %v6655 = vpack.c.b16 %v6641, %v6640
        %v6656 = vpack.c.b16 %v6643, %v6642
        %v6657 = vpack.c.b16 %v6645, %v6644
        %v6658 = vpack.c.b16 %v6647, %v6646
        %v6659 = vpack.c.b16 %v6649, %v6648
        %v6660 = vpack.c.b16 %v6651, %v6650
        %v6661 = vpack.c.b16 %v6653, %v6652
        %v6686 = vunpack.c.l.b16 %v6606
        %v6687 = vunpack.c.l.b16 %v6607
        %v6688 = vunpack.c.l.b16 %v6608
        %v6689 = vunpack.c.l.b16 %v6609
        %v6690 = vunpack.c.l.b16 %v6610
        %v6691 = vunpack.c.l.b16 %v6611
        %v6692 = vunpack.c.l.b16 %v6612
        %v6693 = vunpack.c.l.b16 %v6613
        %v6694 = vunpack.c.l.b16 %v6614
        %v6695 = vunpack.c.l.b16 %v6615
        %v6696 = vunpack.c.l.b16 %v6616
        %v6697 = vunpack.c.l.b16 %v6617
        %v6698 = vunpack.c.l.b16 %v6618
        %v6699 = vunpack.c.l.b16 %v6619
        %v6700 = vunpack.c.l.b16 %v6620
        %v6701 = vunpack.c.l.b16 %v6621
        %v6702 = vpack.c.b16 %v6687, %v6686
        %v6703 = vpack.c.b16 %v6689, %v6688
        %v6704 = vpack.c.b16 %v6691, %v6690
        %v6705 = vpack.c.b16 %v6693, %v6692
        %v6706 = vpack.c.b16 %v6695, %v6694
        %v6707 = vpack.c.b16 %v6697, %v6696
        %v6708 = vpack.c.b16 %v6699, %v6698
        %v6709 = vpack.c.b16 %v6701, %v6700
        %6718 = vmatpush.bf16.msra.mxu0 %v6709
        %6719 = vmatpush.bf16.msra.mxu0 %v6708
        %6720 = vmatpush.bf16.msra.mxu0 %v6707
        %6721 = vmatpush.bf16.msra.mxu0 %v6706
        %6722 = vmatpush.bf16.msra.mxu0 %v6705
        %6723 = vmatpush.bf16.msra.mxu0 %v6704
        %6724 = vmatpush.bf16.msra.mxu0 %v6703
        %6725 = vmatpush.bf16.msra.mxu0 %v6702
        %6726 = vmatmul.bf16.gmra.mxu0 %v6654
        %v6727 = vpop.f32.mrf.mxu0
        %v6728 = vadd.f32 0.0, %v6727
        %v6729 = vpop.f32.mrf.mxu0
        %v6730 = vadd.f32 0.0, %v6729
        %6731 = vmatmul.bf16.gmra.mxu0 %v6655
        %v6732 = vpop.f32.mrf.mxu0
        %v6733 = vadd.f32 0.0, %v6732
        %v6734 = vpop.f32.mrf.mxu0
        %v6735 = vadd.f32 0.0, %v6734
        %6736 = vmatmul.bf16.gmra.mxu0 %v6656
        %v6737 = vpop.f32.mrf.mxu0
        %v6738 = vadd.f32 0.0, %v6737
        %v6739 = vpop.f32.mrf.mxu0
        %v6740 = vadd.f32 0.0, %v6739
        %6741 = vmatmul.bf16.gmra.mxu0 %v6657
        %v6742 = vpop.f32.mrf.mxu0
        %v6743 = vadd.f32 0.0, %v6742
        %v6744 = vpop.f32.mrf.mxu0
        %v6745 = vadd.f32 0.0, %v6744
        %6746 = vmatmul.bf16.gmra.mxu0 %v6658
        %v6747 = vpop.f32.mrf.mxu0
        %v6748 = vadd.f32 0.0, %v6747
        %v6749 = vpop.f32.mrf.mxu0
        %v6750 = vadd.f32 0.0, %v6749
        %6751 = vmatmul.bf16.gmra.mxu0 %v6659
        %v6752 = vpop.f32.mrf.mxu0
        %v6753 = vadd.f32 0.0, %v6752
        %v6754 = vpop.f32.mrf.mxu0
        %v6755 = vadd.f32 0.0, %v6754
        %6756 = vmatmul.bf16.gmra.mxu0 %v6660
        %v6757 = vpop.f32.mrf.mxu0
        %v6758 = vadd.f32 0.0, %v6757
        %v6759 = vpop.f32.mrf.mxu0
        %v6760 = vadd.f32 0.0, %v6759
        %6761 = vmatmul.bf16.gmra.mxu0 %v6661
        %v6762 = vpop.f32.mrf.mxu0
        %v6763 = vadd.f32 0.0, %v6762
        %v6764 = vpop.f32.mrf.mxu0
        %v6765 = vadd.f32 0.0, %v6764
        %6766 = vdwg.mxu0
        %v6767 = vadd.f32 %v6587, %v6728
        %v6768 = vadd.f32 %v6588, %v6730
        %v6769 = vadd.f32 %v6589, %v6733
        %v6770 = vadd.f32 %v6590, %v6735
        %v6771 = vadd.f32 %v6591, %v6738
        %v6772 = vadd.f32 %v6592, %v6740
        %v6773 = vadd.f32 %v6593, %v6743
        %v6774 = vadd.f32 %v6594, %v6745
        %v6775 = vadd.f32 %v6595, %v6748
        %v6776 = vadd.f32 %v6596, %v6750
        %v6777 = vadd.f32 %v6597, %v6753
        %v6778 = vadd.f32 %v6598, %v6755
        %v6779 = vadd.f32 %v6599, %v6758
        %v6780 = vadd.f32 %v6600, %v6760
        %v6781 = vadd.f32 %v6601, %v6763
        %v6782 = vadd.f32 %v6602, %v6765
        %6783 = vst [vmem:[#allocation4] sm:$0xff] %v6767
        %6784 = vst [vmem:[#allocation4 + $0x8] sm:$0xff] %v6768
        %6785 = vst [vmem:[#allocation4 + $0x10] sm:$0xff] %v6769
        %6786 = vst [vmem:[#allocation4 + $0x18] sm:$0xff] %v6770
        %6787 = vst [vmem:[#allocation4 + $0x20] sm:$0xff] %v6771
        %6788 = vst [vmem:[#allocation4 + $0x28] sm:$0xff] %v6772
        %6789 = vst [vmem:[#allocation4 + $0x30] sm:$0xff] %v6773
        %6790 = vst [vmem:[#allocation4 + $0x38] sm:$0xff] %v6774
        %6791 = vst [vmem:[#allocation4 + $0x40] sm:$0xff] %v6775
        %6792 = vst [vmem:[#allocation4 + $0x48] sm:$0xff] %v6776
        %6793 = vst [vmem:[#allocation4 + $0x50] sm:$0xff] %v6777
        %6794 = vst [vmem:[#allocation4 + $0x58] sm:$0xff] %v6778
        %6795 = vst [vmem:[#allocation4 + $0x60] sm:$0xff] %v6779
        %6796 = vst [vmem:[#allocation4 + $0x68] sm:$0xff] %v6780
        %6797 = vst [vmem:[#allocation4 + $0x70] sm:$0xff] %v6781
        %6798 = vst [vmem:[#allocation4 + $0x78] sm:$0xff] %v6782
        %v6799 = vld [vmem:[%s267] sm:$0xc]
        %v6800 = vld [vmem:[%s267 + $0x4] sm:$0xf]
        %v6801 = vld [vmem:[%s267 + $0x8] sm:$0x3]
        %v6802 = vld [vmem:[%s267 + $0xc] sm:$0xc]
        %v6803 = vld [vmem:[%s267 + $0x10] sm:$0xf]
        %v6804 = vld [vmem:[%s267 + $0x14] sm:$0x3]
        %v6805 = vld [vmem:[%s267 + $0x18] sm:$0xc]
        %v6806 = vld [vmem:[%s267 + $0x1c] sm:$0xf]
        %v6807 = vld [vmem:[%s267 + $0x20] sm:$0x3]
        %v6808 = vld [vmem:[%s267 + $0x24] sm:$0xc]
        %v6809 = vld [vmem:[%s267 + $0x28] sm:$0xf]
        %v6810 = vld [vmem:[%s267 + $0x2c] sm:$0x3]
        %v6811 = vld [vmem:[%s267 + $0x30] sm:$0xc]
        %v6812 = vld [vmem:[%s267 + $0x34] sm:$0xf]
        %v6813 = vld [vmem:[%s267 + $0x38] sm:$0x3]
        %v6814 = vld [vmem:[%s267 + $0x3c] sm:$0xc]
        %v6815 = vld [vmem:[%s267 + $0x40] sm:$0xf]
        %v6816 = vld [vmem:[%s267 + $0x44] sm:$0x3]
        %v6817 = vld [vmem:[%s267 + $0x48] sm:$0xc]
        %v6818 = vld [vmem:[%s267 + $0x4c] sm:$0xf]
        %v6819 = vld [vmem:[%s267 + $0x50] sm:$0x3]
        %v6820 = vld [vmem:[%s267 + $0x54] sm:$0xc]
        %v6821 = vld [vmem:[%s267 + $0x58] sm:$0xf]
        %v6822 = vld [vmem:[%s267 + $0x5c] sm:$0x3]
        %v6847 = vrot.slane %v6799, 6
        %v6848 = vrot.slane %v6847, 4
        %v6849 = vrot.slane %v6800, 6
        %v6850 = vsel %vm767, %v6848, %v6849
        %v6851 = vrot.slane %v6849, 4
        %v6852 = vrot.slane %v6801, 6
        %v6853 = vsel %vm767, %v6851, %v6852
        %v6854 = vrot.slane %v6802, 6
        %v6855 = vrot.slane %v6854, 4
        %v6856 = vrot.slane %v6803, 6
        %v6857 = vsel %vm767, %v6855, %v6856
        %v6858 = vrot.slane %v6856, 4
        %v6859 = vrot.slane %v6804, 6
        %v6860 = vsel %vm767, %v6858, %v6859
        %v6861 = vrot.slane %v6805, 6
        %v6862 = vrot.slane %v6861, 4
        %v6863 = vrot.slane %v6806, 6
        %v6864 = vsel %vm767, %v6862, %v6863
        %v6865 = vrot.slane %v6863, 4
        %v6866 = vrot.slane %v6807, 6
        %v6867 = vsel %vm767, %v6865, %v6866
        %v6868 = vrot.slane %v6808, 6
        %v6869 = vrot.slane %v6868, 4
        %v6870 = vrot.slane %v6809, 6
        %v6871 = vsel %vm767, %v6869, %v6870
        %v6872 = vrot.slane %v6870, 4
        %v6873 = vrot.slane %v6810, 6
        %v6874 = vsel %vm767, %v6872, %v6873
        %v6875 = vrot.slane %v6811, 6
        %v6876 = vrot.slane %v6875, 4
        %v6877 = vrot.slane %v6812, 6
        %v6878 = vsel %vm767, %v6876, %v6877
        %v6879 = vrot.slane %v6877, 4
        %v6880 = vrot.slane %v6813, 6
        %v6881 = vsel %vm767, %v6879, %v6880
        %v6882 = vrot.slane %v6814, 6
        %v6883 = vrot.slane %v6882, 4
        %v6884 = vrot.slane %v6815, 6
        %v6885 = vsel %vm767, %v6883, %v6884
        %v6886 = vrot.slane %v6884, 4
        %v6887 = vrot.slane %v6816, 6
        %v6888 = vsel %vm767, %v6886, %v6887
        %v6889 = vrot.slane %v6817, 6
        %v6890 = vrot.slane %v6889, 4
        %v6891 = vrot.slane %v6818, 6
        %v6892 = vsel %vm767, %v6890, %v6891
        %v6893 = vrot.slane %v6891, 4
        %v6894 = vrot.slane %v6819, 6
        %v6895 = vsel %vm767, %v6893, %v6894
        %v6896 = vrot.slane %v6820, 6
        %v6897 = vrot.slane %v6896, 4
        %v6898 = vrot.slane %v6821, 6
        %v6899 = vsel %vm767, %v6897, %v6898
        %v6900 = vrot.slane %v6898, 4
        %v6901 = vrot.slane %v6822, 6
        %v6902 = vsel %vm767, %v6900, %v6901
        %s6903 = sadd.s32 %s520, 19
        %v6904 = vld [vmem:[#allocation4] sm:$0xff]
        %v6905 = vld [vmem:[#allocation4 + $0x8] sm:$0xff]
        %v6906 = vld [vmem:[#allocation4 + $0x10] sm:$0xff]
        %v6907 = vld [vmem:[#allocation4 + $0x18] sm:$0xff]
        %v6908 = vld [vmem:[#allocation4 + $0x20] sm:$0xff]
        %v6909 = vld [vmem:[#allocation4 + $0x28] sm:$0xff]
        %v6910 = vld [vmem:[#allocation4 + $0x30] sm:$0xff]
        %v6911 = vld [vmem:[#allocation4 + $0x38] sm:$0xff]
        %v6912 = vld [vmem:[#allocation4 + $0x40] sm:$0xff]
        %v6913 = vld [vmem:[#allocation4 + $0x48] sm:$0xff]
        %v6914 = vld [vmem:[#allocation4 + $0x50] sm:$0xff]
        %v6915 = vld [vmem:[#allocation4 + $0x58] sm:$0xff]
        %v6916 = vld [vmem:[#allocation4 + $0x60] sm:$0xff]
        %v6917 = vld [vmem:[#allocation4 + $0x68] sm:$0xff]
        %v6918 = vld [vmem:[#allocation4 + $0x70] sm:$0xff]
        %v6919 = vld [vmem:[#allocation4 + $0x78] sm:$0xff]
        %s6920 = smul.u32 %s6903, 16
        %s6921 = smul.addr %s6920, 4
        %s6922 = scalar_lea.vmem [#allocation5], %s6921
        %v6923 = vld [vmem:[%s6922] sm:$0xf]
        %v6924 = vld [vmem:[%s6922 + $0x4] sm:$0xf]
        %v6925 = vld [vmem:[%s6922 + $0x8] sm:$0xf]
        %v6926 = vld [vmem:[%s6922 + $0xc] sm:$0xf]
        %v6927 = vld [vmem:[%s6922 + $0x10] sm:$0xf]
        %v6928 = vld [vmem:[%s6922 + $0x14] sm:$0xf]
        %v6929 = vld [vmem:[%s6922 + $0x18] sm:$0xf]
        %v6930 = vld [vmem:[%s6922 + $0x1c] sm:$0xf]
        %v6931 = vld [vmem:[%s6922 + $0x20] sm:$0xf]
        %v6932 = vld [vmem:[%s6922 + $0x24] sm:$0xf]
        %v6933 = vld [vmem:[%s6922 + $0x28] sm:$0xf]
        %v6934 = vld [vmem:[%s6922 + $0x2c] sm:$0xf]
        %v6935 = vld [vmem:[%s6922 + $0x30] sm:$0xf]
        %v6936 = vld [vmem:[%s6922 + $0x34] sm:$0xf]
        %v6937 = vld [vmem:[%s6922 + $0x38] sm:$0xf]
        %v6938 = vld [vmem:[%s6922 + $0x3c] sm:$0xf]
        %v6939 = vunpack.c.l.b16 %v6850
        %v6940 = vunpack.c.l.b16 %v6853
        %v6941 = vunpack.c.l.b16 %v6857
        %v6942 = vunpack.c.l.b16 %v6860
        %v6943 = vunpack.c.l.b16 %v6864
        %v6944 = vunpack.c.l.b16 %v6867
        %v6945 = vunpack.c.l.b16 %v6871
        %v6946 = vunpack.c.l.b16 %v6874
        %v6947 = vunpack.c.l.b16 %v6878
        %v6948 = vunpack.c.l.b16 %v6881
        %v6949 = vunpack.c.l.b16 %v6885
        %v6950 = vunpack.c.l.b16 %v6888
        %v6951 = vunpack.c.l.b16 %v6892
        %v6952 = vunpack.c.l.b16 %v6895
        %v6953 = vunpack.c.l.b16 %v6899
        %v6954 = vunpack.c.l.b16 %v6902
        %v6955 = vpack.c.b16 %v6940, %v6939
        %v6956 = vpack.c.b16 %v6942, %v6941
        %v6957 = vpack.c.b16 %v6944, %v6943
        %v6958 = vpack.c.b16 %v6946, %v6945
        %v6959 = vpack.c.b16 %v6948, %v6947
        %v6960 = vpack.c.b16 %v6950, %v6949
        %v6961 = vpack.c.b16 %v6952, %v6951
        %v6962 = vpack.c.b16 %v6954, %v6953
        %v6987 = vunpack.c.l.b16 %v6923
        %v6988 = vunpack.c.l.b16 %v6924
        %v6989 = vunpack.c.l.b16 %v6925
        %v6990 = vunpack.c.l.b16 %v6926
        %v6991 = vunpack.c.l.b16 %v6927
        %v6992 = vunpack.c.l.b16 %v6928
        %v6993 = vunpack.c.l.b16 %v6929
        %v6994 = vunpack.c.l.b16 %v6930
        %v6995 = vunpack.c.l.b16 %v6931
        %v6996 = vunpack.c.l.b16 %v6932
        %v6997 = vunpack.c.l.b16 %v6933
        %v6998 = vunpack.c.l.b16 %v6934
        %v6999 = vunpack.c.l.b16 %v6935
        %v7000 = vunpack.c.l.b16 %v6936
        %v7001 = vunpack.c.l.b16 %v6937
        %v7002 = vunpack.c.l.b16 %v6938
        %v7003 = vpack.c.b16 %v6988, %v6987
        %v7004 = vpack.c.b16 %v6990, %v6989
        %v7005 = vpack.c.b16 %v6992, %v6991
        %v7006 = vpack.c.b16 %v6994, %v6993
        %v7007 = vpack.c.b16 %v6996, %v6995
        %v7008 = vpack.c.b16 %v6998, %v6997
        %v7009 = vpack.c.b16 %v7000, %v6999
        %v7010 = vpack.c.b16 %v7002, %v7001
        %7019 = vmatpush.bf16.msra.mxu0 %v7010
        %7020 = vmatpush.bf16.msra.mxu0 %v7009
        %7021 = vmatpush.bf16.msra.mxu0 %v7008
        %7022 = vmatpush.bf16.msra.mxu0 %v7007
        %7023 = vmatpush.bf16.msra.mxu0 %v7006
        %7024 = vmatpush.bf16.msra.mxu0 %v7005
        %7025 = vmatpush.bf16.msra.mxu0 %v7004
        %7026 = vmatpush.bf16.msra.mxu0 %v7003
        %7027 = vmatmul.bf16.gmra.mxu0 %v6955
        %v7028 = vpop.f32.mrf.mxu0
        %v7029 = vadd.f32 0.0, %v7028
        %v7030 = vpop.f32.mrf.mxu0
        %v7031 = vadd.f32 0.0, %v7030
        %7032 = vmatmul.bf16.gmra.mxu0 %v6956
        %v7033 = vpop.f32.mrf.mxu0
        %v7034 = vadd.f32 0.0, %v7033
        %v7035 = vpop.f32.mrf.mxu0
        %v7036 = vadd.f32 0.0, %v7035
        %7037 = vmatmul.bf16.gmra.mxu0 %v6957
        %v7038 = vpop.f32.mrf.mxu0
        %v7039 = vadd.f32 0.0, %v7038
        %v7040 = vpop.f32.mrf.mxu0
        %v7041 = vadd.f32 0.0, %v7040
        %7042 = vmatmul.bf16.gmra.mxu0 %v6958
        %v7043 = vpop.f32.mrf.mxu0
        %v7044 = vadd.f32 0.0, %v7043
        %v7045 = vpop.f32.mrf.mxu0
        %v7046 = vadd.f32 0.0, %v7045
        %7047 = vmatmul.bf16.gmra.mxu0 %v6959
        %v7048 = vpop.f32.mrf.mxu0
        %v7049 = vadd.f32 0.0, %v7048
        %v7050 = vpop.f32.mrf.mxu0
        %v7051 = vadd.f32 0.0, %v7050
        %7052 = vmatmul.bf16.gmra.mxu0 %v6960
        %v7053 = vpop.f32.mrf.mxu0
        %v7054 = vadd.f32 0.0, %v7053
        %v7055 = vpop.f32.mrf.mxu0
        %v7056 = vadd.f32 0.0, %v7055
        %7057 = vmatmul.bf16.gmra.mxu0 %v6961
        %v7058 = vpop.f32.mrf.mxu0
        %v7059 = vadd.f32 0.0, %v7058
        %v7060 = vpop.f32.mrf.mxu0
        %v7061 = vadd.f32 0.0, %v7060
        %7062 = vmatmul.bf16.gmra.mxu0 %v6962
        %v7063 = vpop.f32.mrf.mxu0
        %v7064 = vadd.f32 0.0, %v7063
        %v7065 = vpop.f32.mrf.mxu0
        %v7066 = vadd.f32 0.0, %v7065
        %7067 = vdwg.mxu0
        %v7068 = vadd.f32 %v6904, %v7029
        %v7069 = vadd.f32 %v6905, %v7031
        %v7070 = vadd.f32 %v6906, %v7034
        %v7071 = vadd.f32 %v6907, %v7036
        %v7072 = vadd.f32 %v6908, %v7039
        %v7073 = vadd.f32 %v6909, %v7041
        %v7074 = vadd.f32 %v6910, %v7044
        %v7075 = vadd.f32 %v6911, %v7046
        %v7076 = vadd.f32 %v6912, %v7049
        %v7077 = vadd.f32 %v6913, %v7051
        %v7078 = vadd.f32 %v6914, %v7054
        %v7079 = vadd.f32 %v6915, %v7056
        %v7080 = vadd.f32 %v6916, %v7059
        %v7081 = vadd.f32 %v6917, %v7061
        %v7082 = vadd.f32 %v6918, %v7064
        %v7083 = vadd.f32 %v6919, %v7066
        %7084 = vst [vmem:[#allocation4] sm:$0xff] %v7068
        %7085 = vst [vmem:[#allocation4 + $0x8] sm:$0xff] %v7069
        %7086 = vst [vmem:[#allocation4 + $0x10] sm:$0xff] %v7070
        %7087 = vst [vmem:[#allocation4 + $0x18] sm:$0xff] %v7071
        %7088 = vst [vmem:[#allocation4 + $0x20] sm:$0xff] %v7072
        %7089 = vst [vmem:[#allocation4 + $0x28] sm:$0xff] %v7073
        %7090 = vst [vmem:[#allocation4 + $0x30] sm:$0xff] %v7074
        %7091 = vst [vmem:[#allocation4 + $0x38] sm:$0xff] %v7075
        %7092 = vst [vmem:[#allocation4 + $0x40] sm:$0xff] %v7076
        %7093 = vst [vmem:[#allocation4 + $0x48] sm:$0xff] %v7077
        %7094 = vst [vmem:[#allocation4 + $0x50] sm:$0xff] %v7078
        %7095 = vst [vmem:[#allocation4 + $0x58] sm:$0xff] %v7079
        %7096 = vst [vmem:[#allocation4 + $0x60] sm:$0xff] %v7080
        %7097 = vst [vmem:[#allocation4 + $0x68] sm:$0xff] %v7081
        %7098 = vst [vmem:[#allocation4 + $0x70] sm:$0xff] %v7082
        %7099 = vst [vmem:[#allocation4 + $0x78] sm:$0xff] %v7083
        %v7100 = vld [vmem:[%s267 + $0x4] sm:$0xf]
        %v7101 = vld [vmem:[%s267 + $0x8] sm:$0xf]
        %v7102 = vld [vmem:[%s267 + $0x10] sm:$0xf]
        %v7103 = vld [vmem:[%s267 + $0x14] sm:$0xf]
        %v7104 = vld [vmem:[%s267 + $0x1c] sm:$0xf]
        %v7105 = vld [vmem:[%s267 + $0x20] sm:$0xf]
        %v7106 = vld [vmem:[%s267 + $0x28] sm:$0xf]
        %v7107 = vld [vmem:[%s267 + $0x2c] sm:$0xf]
        %v7108 = vld [vmem:[%s267 + $0x34] sm:$0xf]
        %v7109 = vld [vmem:[%s267 + $0x38] sm:$0xf]
        %v7110 = vld [vmem:[%s267 + $0x40] sm:$0xf]
        %v7111 = vld [vmem:[%s267 + $0x44] sm:$0xf]
        %v7112 = vld [vmem:[%s267 + $0x4c] sm:$0xf]
        %v7113 = vld [vmem:[%s267 + $0x50] sm:$0xf]
        %v7114 = vld [vmem:[%s267 + $0x58] sm:$0xf]
        %v7115 = vld [vmem:[%s267 + $0x5c] sm:$0xf]
        %s7116 = sadd.s32 %s520, 20
        %v7117 = vld [vmem:[#allocation4] sm:$0xff]
        %v7118 = vld [vmem:[#allocation4 + $0x8] sm:$0xff]
        %v7119 = vld [vmem:[#allocation4 + $0x10] sm:$0xff]
        %v7120 = vld [vmem:[#allocation4 + $0x18] sm:$0xff]
        %v7121 = vld [vmem:[#allocation4 + $0x20] sm:$0xff]
        %v7122 = vld [vmem:[#allocation4 + $0x28] sm:$0xff]
        %v7123 = vld [vmem:[#allocation4 + $0x30] sm:$0xff]
        %v7124 = vld [vmem:[#allocation4 + $0x38] sm:$0xff]
        %v7125 = vld [vmem:[#allocation4 + $0x40] sm:$0xff]
        %v7126 = vld [vmem:[#allocation4 + $0x48] sm:$0xff]
        %v7127 = vld [vmem:[#allocation4 + $0x50] sm:$0xff]
        %v7128 = vld [vmem:[#allocation4 + $0x58] sm:$0xff]
        %v7129 = vld [vmem:[#allocation4 + $0x60] sm:$0xff]
        %v7130 = vld [vmem:[#allocation4 + $0x68] sm:$0xff]
        %v7131 = vld [vmem:[#allocation4 + $0x70] sm:$0xff]
        %v7132 = vld [vmem:[#allocation4 + $0x78] sm:$0xff]
        %s7133 = smul.u32 %s7116, 16
        %s7134 = smul.addr %s7133, 4
        %s7135 = scalar_lea.vmem [#allocation5], %s7134
        %v7136 = vld [vmem:[%s7135] sm:$0xf]
        %v7137 = vld [vmem:[%s7135 + $0x4] sm:$0xf]
        %v7138 = vld [vmem:[%s7135 + $0x8] sm:$0xf]
        %v7139 = vld [vmem:[%s7135 + $0xc] sm:$0xf]
        %v7140 = vld [vmem:[%s7135 + $0x10] sm:$0xf]
        %v7141 = vld [vmem:[%s7135 + $0x14] sm:$0xf]
        %v7142 = vld [vmem:[%s7135 + $0x18] sm:$0xf]
        %v7143 = vld [vmem:[%s7135 + $0x1c] sm:$0xf]
        %v7144 = vld [vmem:[%s7135 + $0x20] sm:$0xf]
        %v7145 = vld [vmem:[%s7135 + $0x24] sm:$0xf]
        %v7146 = vld [vmem:[%s7135 + $0x28] sm:$0xf]
        %v7147 = vld [vmem:[%s7135 + $0x2c] sm:$0xf]
        %v7148 = vld [vmem:[%s7135 + $0x30] sm:$0xf]
        %v7149 = vld [vmem:[%s7135 + $0x34] sm:$0xf]
        %v7150 = vld [vmem:[%s7135 + $0x38] sm:$0xf]
        %v7151 = vld [vmem:[%s7135 + $0x3c] sm:$0xf]
        %v7168 = vunpack.c.l.b16 %v7100
        %v7169 = vunpack.c.l.b16 %v7101
        %v7170 = vunpack.c.l.b16 %v7102
        %v7171 = vunpack.c.l.b16 %v7103
        %v7172 = vunpack.c.l.b16 %v7104
        %v7173 = vunpack.c.l.b16 %v7105
        %v7174 = vunpack.c.l.b16 %v7106
        %v7175 = vunpack.c.l.b16 %v7107
        %v7176 = vunpack.c.l.b16 %v7108
        %v7177 = vunpack.c.l.b16 %v7109
        %v7178 = vunpack.c.l.b16 %v7110
        %v7179 = vunpack.c.l.b16 %v7111
        %v7180 = vunpack.c.l.b16 %v7112
        %v7181 = vunpack.c.l.b16 %v7113
        %v7182 = vunpack.c.l.b16 %v7114
        %v7183 = vunpack.c.l.b16 %v7115
        %v7184 = vpack.c.b16 %v7169, %v7168
        %v7185 = vpack.c.b16 %v7171, %v7170
        %v7186 = vpack.c.b16 %v7173, %v7172
        %v7187 = vpack.c.b16 %v7175, %v7174
        %v7188 = vpack.c.b16 %v7177, %v7176
        %v7189 = vpack.c.b16 %v7179, %v7178
        %v7190 = vpack.c.b16 %v7181, %v7180
        %v7191 = vpack.c.b16 %v7183, %v7182
        %v7216 = vunpack.c.l.b16 %v7136
        %v7217 = vunpack.c.l.b16 %v7137
        %v7218 = vunpack.c.l.b16 %v7138
        %v7219 = vunpack.c.l.b16 %v7139
        %v7220 = vunpack.c.l.b16 %v7140
        %v7221 = vunpack.c.l.b16 %v7141
        %v7222 = vunpack.c.l.b16 %v7142
        %v7223 = vunpack.c.l.b16 %v7143
        %v7224 = vunpack.c.l.b16 %v7144
        %v7225 = vunpack.c.l.b16 %v7145
        %v7226 = vunpack.c.l.b16 %v7146
        %v7227 = vunpack.c.l.b16 %v7147
        %v7228 = vunpack.c.l.b16 %v7148
        %v7229 = vunpack.c.l.b16 %v7149
        %v7230 = vunpack.c.l.b16 %v7150
        %v7231 = vunpack.c.l.b16 %v7151
        %v7232 = vpack.c.b16 %v7217, %v7216
        %v7233 = vpack.c.b16 %v7219, %v7218
        %v7234 = vpack.c.b16 %v7221, %v7220
        %v7235 = vpack.c.b16 %v7223, %v7222
        %v7236 = vpack.c.b16 %v7225, %v7224
        %v7237 = vpack.c.b16 %v7227, %v7226
        %v7238 = vpack.c.b16 %v7229, %v7228
        %v7239 = vpack.c.b16 %v7231, %v7230
        %7248 = vmatpush.bf16.msra.mxu0 %v7239
        %7249 = vmatpush.bf16.msra.mxu0 %v7238
        %7250 = vmatpush.bf16.msra.mxu0 %v7237
        %7251 = vmatpush.bf16.msra.mxu0 %v7236
        %7252 = vmatpush.bf16.msra.mxu0 %v7235
        %7253 = vmatpush.bf16.msra.mxu0 %v7234
        %7254 = vmatpush.bf16.msra.mxu0 %v7233
        %7255 = vmatpush.bf16.msra.mxu0 %v7232
        %7256 = vmatmul.bf16.gmra.mxu0 %v7184
        %v7257 = vpop.f32.mrf.mxu0
        %v7258 = vadd.f32 0.0, %v7257
        %v7259 = vpop.f32.mrf.mxu0
        %v7260 = vadd.f32 0.0, %v7259
        %7261 = vmatmul.bf16.gmra.mxu0 %v7185
        %v7262 = vpop.f32.mrf.mxu0
        %v7263 = vadd.f32 0.0, %v7262
        %v7264 = vpop.f32.mrf.mxu0
        %v7265 = vadd.f32 0.0, %v7264
        %7266 = vmatmul.bf16.gmra.mxu0 %v7186
        %v7267 = vpop.f32.mrf.mxu0
        %v7268 = vadd.f32 0.0, %v7267
        %v7269 = vpop.f32.mrf.mxu0
        %v7270 = vadd.f32 0.0, %v7269
        %7271 = vmatmul.bf16.gmra.mxu0 %v7187
        %v7272 = vpop.f32.mrf.mxu0
        %v7273 = vadd.f32 0.0, %v7272
        %v7274 = vpop.f32.mrf.mxu0
        %v7275 = vadd.f32 0.0, %v7274
        %7276 = vmatmul.bf16.gmra.mxu0 %v7188
        %v7277 = vpop.f32.mrf.mxu0
        %v7278 = vadd.f32 0.0, %v7277
        %v7279 = vpop.f32.mrf.mxu0
        %v7280 = vadd.f32 0.0, %v7279
        %7281 = vmatmul.bf16.gmra.mxu0 %v7189
        %v7282 = vpop.f32.mrf.mxu0
        %v7283 = vadd.f32 0.0, %v7282
        %v7284 = vpop.f32.mrf.mxu0
        %v7285 = vadd.f32 0.0, %v7284
        %7286 = vmatmul.bf16.gmra.mxu0 %v7190
        %v7287 = vpop.f32.mrf.mxu0
        %v7288 = vadd.f32 0.0, %v7287
        %v7289 = vpop.f32.mrf.mxu0
        %v7290 = vadd.f32 0.0, %v7289
        %7291 = vmatmul.bf16.gmra.mxu0 %v7191
        %v7292 = vpop.f32.mrf.mxu0
        %v7293 = vadd.f32 0.0, %v7292
        %v7294 = vpop.f32.mrf.mxu0
        %v7295 = vadd.f32 0.0, %v7294
        %7296 = vdwg.mxu0
        %v7297 = vadd.f32 %v7117, %v7258
        %v7298 = vadd.f32 %v7118, %v7260
        %v7299 = vadd.f32 %v7119, %v7263
        %v7300 = vadd.f32 %v7120, %v7265
        %v7301 = vadd.f32 %v7121, %v7268
        %v7302 = vadd.f32 %v7122, %v7270
        %v7303 = vadd.f32 %v7123, %v7273
        %v7304 = vadd.f32 %v7124, %v7275
        %v7305 = vadd.f32 %v7125, %v7278
        %v7306 = vadd.f32 %v7126, %v7280
        %v7307 = vadd.f32 %v7127, %v7283
        %v7308 = vadd.f32 %v7128, %v7285
        %v7309 = vadd.f32 %v7129, %v7288
        %v7310 = vadd.f32 %v7130, %v7290
        %v7311 = vadd.f32 %v7131, %v7293
        %v7312 = vadd.f32 %v7132, %v7295
        %7313 = vst [vmem:[#allocation4] sm:$0xff] %v7297
        %7314 = vst [vmem:[#allocation4 + $0x8] sm:$0xff] %v7298
        %7315 = vst [vmem:[#allocation4 + $0x10] sm:$0xff] %v7299
        %7316 = vst [vmem:[#allocation4 + $0x18] sm:$0xff] %v7300
        %7317 = vst [vmem:[#allocation4 + $0x20] sm:$0xff] %v7301
        %7318 = vst [vmem:[#allocation4 + $0x28] sm:$0xff] %v7302
        %7319 = vst [vmem:[#allocation4 + $0x30] sm:$0xff] %v7303
        %7320 = vst [vmem:[#allocation4 + $0x38] sm:$0xff] %v7304
        %7321 = vst [vmem:[#allocation4 + $0x40] sm:$0xff] %v7305
        %7322 = vst [vmem:[#allocation4 + $0x48] sm:$0xff] %v7306
        %7323 = vst [vmem:[#allocation4 + $0x50] sm:$0xff] %v7307
        %7324 = vst [vmem:[#allocation4 + $0x58] sm:$0xff] %v7308
        %7325 = vst [vmem:[#allocation4 + $0x60] sm:$0xff] %v7309
        %7326 = vst [vmem:[#allocation4 + $0x68] sm:$0xff] %v7310
        %7327 = vst [vmem:[#allocation4 + $0x70] sm:$0xff] %v7311
        %7328 = vst [vmem:[#allocation4 + $0x78] sm:$0xff] %v7312
        %v7329 = vld [vmem:[%s1469] sm:$0xf]
        %v7330 = vld [vmem:[%s1469 + $0x4] sm:$0xf]
        %v7331 = vld [vmem:[%s1469 + $0xc] sm:$0xf]
        %v7332 = vld [vmem:[%s1469 + $0x10] sm:$0xf]
        %v7333 = vld [vmem:[%s1469 + $0x18] sm:$0xf]
        %v7334 = vld [vmem:[%s1469 + $0x1c] sm:$0xf]
        %v7335 = vld [vmem:[%s1469 + $0x24] sm:$0xf]
        %v7336 = vld [vmem:[%s1469 + $0x28] sm:$0xf]
        %v7337 = vld [vmem:[%s1469 + $0x30] sm:$0xf]
        %v7338 = vld [vmem:[%s1469 + $0x34] sm:$0xf]
        %v7339 = vld [vmem:[%s1469 + $0x3c] sm:$0xf]
        %v7340 = vld [vmem:[%s1469 + $0x40] sm:$0xf]
        %v7341 = vld [vmem:[%s1469 + $0x48] sm:$0xf]
        %v7342 = vld [vmem:[%s1469 + $0x4c] sm:$0xf]
        %v7343 = vld [vmem:[%s1469 + $0x54] sm:$0xf]
        %v7344 = vld [vmem:[%s1469 + $0x58] sm:$0xf]
        %s7345 = sadd.s32 %s520, 21
        %v7346 = vld [vmem:[#allocation4] sm:$0xff]
        %v7347 = vld [vmem:[#allocation4 + $0x8] sm:$0xff]
        %v7348 = vld [vmem:[#allocation4 + $0x10] sm:$0xff]
        %v7349 = vld [vmem:[#allocation4 + $0x18] sm:$0xff]
        %v7350 = vld [vmem:[#allocation4 + $0x20] sm:$0xff]
        %v7351 = vld [vmem:[#allocation4 + $0x28] sm:$0xff]
        %v7352 = vld [vmem:[#allocation4 + $0x30] sm:$0xff]
        %v7353 = vld [vmem:[#allocation4 + $0x38] sm:$0xff]
        %v7354 = vld [vmem:[#allocation4 + $0x40] sm:$0xff]
        %v7355 = vld [vmem:[#allocation4 + $0x48] sm:$0xff]
        %v7356 = vld [vmem:[#allocation4 + $0x50] sm:$0xff]
        %v7357 = vld [vmem:[#allocation4 + $0x58] sm:$0xff]
        %v7358 = vld [vmem:[#allocation4 + $0x60] sm:$0xff]
        %v7359 = vld [vmem:[#allocation4 + $0x68] sm:$0xff]
        %v7360 = vld [vmem:[#allocation4 + $0x70] sm:$0xff]
        %v7361 = vld [vmem:[#allocation4 + $0x78] sm:$0xff]
        %s7362 = smul.u32 %s7345, 16
        %s7363 = smul.addr %s7362, 4
        %s7364 = scalar_lea.vmem [#allocation5], %s7363
        %v7365 = vld [vmem:[%s7364] sm:$0xf]
        %v7366 = vld [vmem:[%s7364 + $0x4] sm:$0xf]
        %v7367 = vld [vmem:[%s7364 + $0x8] sm:$0xf]
        %v7368 = vld [vmem:[%s7364 + $0xc] sm:$0xf]
        %v7369 = vld [vmem:[%s7364 + $0x10] sm:$0xf]
        %v7370 = vld [vmem:[%s7364 + $0x14] sm:$0xf]
        %v7371 = vld [vmem:[%s7364 + $0x18] sm:$0xf]
        %v7372 = vld [vmem:[%s7364 + $0x1c] sm:$0xf]
        %v7373 = vld [vmem:[%s7364 + $0x20] sm:$0xf]
        %v7374 = vld [vmem:[%s7364 + $0x24] sm:$0xf]
        %v7375 = vld [vmem:[%s7364 + $0x28] sm:$0xf]
        %v7376 = vld [vmem:[%s7364 + $0x2c] sm:$0xf]
        %v7377 = vld [vmem:[%s7364 + $0x30] sm:$0xf]
        %v7378 = vld [vmem:[%s7364 + $0x34] sm:$0xf]
        %v7379 = vld [vmem:[%s7364 + $0x38] sm:$0xf]
        %v7380 = vld [vmem:[%s7364 + $0x3c] sm:$0xf]
        %v7397 = vunpack.c.l.b16 %v7329
        %v7398 = vunpack.c.l.b16 %v7330
        %v7399 = vunpack.c.l.b16 %v7331
        %v7400 = vunpack.c.l.b16 %v7332
        %v7401 = vunpack.c.l.b16 %v7333
        %v7402 = vunpack.c.l.b16 %v7334
        %v7403 = vunpack.c.l.b16 %v7335
        %v7404 = vunpack.c.l.b16 %v7336
        %v7405 = vunpack.c.l.b16 %v7337
        %v7406 = vunpack.c.l.b16 %v7338
        %v7407 = vunpack.c.l.b16 %v7339
        %v7408 = vunpack.c.l.b16 %v7340
        %v7409 = vunpack.c.l.b16 %v7341
        %v7410 = vunpack.c.l.b16 %v7342
        %v7411 = vunpack.c.l.b16 %v7343
        %v7412 = vunpack.c.l.b16 %v7344
        %v7413 = vpack.c.b16 %v7398, %v7397
        %v7414 = vpack.c.b16 %v7400, %v7399
        %v7415 = vpack.c.b16 %v7402, %v7401
        %v7416 = vpack.c.b16 %v7404, %v7403
        %v7417 = vpack.c.b16 %v7406, %v7405
        %v7418 = vpack.c.b16 %v7408, %v7407
        %v7419 = vpack.c.b16 %v7410, %v7409
        %v7420 = vpack.c.b16 %v7412, %v7411
        %v7445 = vunpack.c.l.b16 %v7365
        %v7446 = vunpack.c.l.b16 %v7366
        %v7447 = vunpack.c.l.b16 %v7367
        %v7448 = vunpack.c.l.b16 %v7368
        %v7449 = vunpack.c.l.b16 %v7369
        %v7450 = vunpack.c.l.b16 %v7370
        %v7451 = vunpack.c.l.b16 %v7371
        %v7452 = vunpack.c.l.b16 %v7372
        %v7453 = vunpack.c.l.b16 %v7373
        %v7454 = vunpack.c.l.b16 %v7374
        %v7455 = vunpack.c.l.b16 %v7375
        %v7456 = vunpack.c.l.b16 %v7376
        %v7457 = vunpack.c.l.b16 %v7377
        %v7458 = vunpack.c.l.b16 %v7378
        %v7459 = vunpack.c.l.b16 %v7379
        %v7460 = vunpack.c.l.b16 %v7380
        %v7461 = vpack.c.b16 %v7446, %v7445
        %v7462 = vpack.c.b16 %v7448, %v7447
        %v7463 = vpack.c.b16 %v7450, %v7449
        %v7464 = vpack.c.b16 %v7452, %v7451
        %v7465 = vpack.c.b16 %v7454, %v7453
        %v7466 = vpack.c.b16 %v7456, %v7455
        %v7467 = vpack.c.b16 %v7458, %v7457
        %v7468 = vpack.c.b16 %v7460, %v7459
        %7477 = vmatpush.bf16.msra.mxu0 %v7468
        %7478 = vmatpush.bf16.msra.mxu0 %v7467
        %7479 = vmatpush.bf16.msra.mxu0 %v7466
        %7480 = vmatpush.bf16.msra.mxu0 %v7465
        %7481 = vmatpush.bf16.msra.mxu0 %v7464
        %7482 = vmatpush.bf16.msra.mxu0 %v7463
        %7483 = vmatpush.bf16.msra.mxu0 %v7462
        %7484 = vmatpush.bf16.msra.mxu0 %v7461
        %7485 = vmatmul.bf16.gmra.mxu0 %v7413
        %v7486 = vpop.f32.mrf.mxu0
        %v7487 = vadd.f32 0.0, %v7486
        %v7488 = vpop.f32.mrf.mxu0
        %v7489 = vadd.f32 0.0, %v7488
        %7490 = vmatmul.bf16.gmra.mxu0 %v7414
        %v7491 = vpop.f32.mrf.mxu0
        %v7492 = vadd.f32 0.0, %v7491
        %v7493 = vpop.f32.mrf.mxu0
        %v7494 = vadd.f32 0.0, %v7493
        %7495 = vmatmul.bf16.gmra.mxu0 %v7415
        %v7496 = vpop.f32.mrf.mxu0
        %v7497 = vadd.f32 0.0, %v7496
        %v7498 = vpop.f32.mrf.mxu0
        %v7499 = vadd.f32 0.0, %v7498
        %7500 = vmatmul.bf16.gmra.mxu0 %v7416
        %v7501 = vpop.f32.mrf.mxu0
        %v7502 = vadd.f32 0.0, %v7501
        %v7503 = vpop.f32.mrf.mxu0
        %v7504 = vadd.f32 0.0, %v7503
        %7505 = vmatmul.bf16.gmra.mxu0 %v7417
        %v7506 = vpop.f32.mrf.mxu0
        %v7507 = vadd.f32 0.0, %v7506
        %v7508 = vpop.f32.mrf.mxu0
        %v7509 = vadd.f32 0.0, %v7508
        %7510 = vmatmul.bf16.gmra.mxu0 %v7418
        %v7511 = vpop.f32.mrf.mxu0
        %v7512 = vadd.f32 0.0, %v7511
        %v7513 = vpop.f32.mrf.mxu0
        %v7514 = vadd.f32 0.0, %v7513
        %7515 = vmatmul.bf16.gmra.mxu0 %v7419
        %v7516 = vpop.f32.mrf.mxu0
        %v7517 = vadd.f32 0.0, %v7516
        %v7518 = vpop.f32.mrf.mxu0
        %v7519 = vadd.f32 0.0, %v7518
        %7520 = vmatmul.bf16.gmra.mxu0 %v7420
        %v7521 = vpop.f32.mrf.mxu0
        %v7522 = vadd.f32 0.0, %v7521
        %v7523 = vpop.f32.mrf.mxu0
        %v7524 = vadd.f32 0.0, %v7523
        %7525 = vdwg.mxu0
        %v7526 = vadd.f32 %v7346, %v7487
        %v7527 = vadd.f32 %v7347, %v7489
        %v7528 = vadd.f32 %v7348, %v7492
        %v7529 = vadd.f32 %v7349, %v7494
        %v7530 = vadd.f32 %v7350, %v7497
        %v7531 = vadd.f32 %v7351, %v7499
        %v7532 = vadd.f32 %v7352, %v7502
        %v7533 = vadd.f32 %v7353, %v7504
        %v7534 = vadd.f32 %v7354, %v7507
        %v7535 = vadd.f32 %v7355, %v7509
        %v7536 = vadd.f32 %v7356, %v7512
        %v7537 = vadd.f32 %v7357, %v7514
        %v7538 = vadd.f32 %v7358, %v7517
        %v7539 = vadd.f32 %v7359, %v7519
        %v7540 = vadd.f32 %v7360, %v7522
        %v7541 = vadd.f32 %v7361, %v7524
        %7542 = vst [vmem:[#allocation4] sm:$0xff] %v7526
        %7543 = vst [vmem:[#allocation4 + $0x8] sm:$0xff] %v7527
        %7544 = vst [vmem:[#allocation4 + $0x10] sm:$0xff] %v7528
        %7545 = vst [vmem:[#allocation4 + $0x18] sm:$0xff] %v7529
        %7546 = vst [vmem:[#allocation4 + $0x20] sm:$0xff] %v7530
        %7547 = vst [vmem:[#allocation4 + $0x28] sm:$0xff] %v7531
        %7548 = vst [vmem:[#allocation4 + $0x30] sm:$0xff] %v7532
        %7549 = vst [vmem:[#allocation4 + $0x38] sm:$0xff] %v7533
        %7550 = vst [vmem:[#allocation4 + $0x40] sm:$0xff] %v7534
        %7551 = vst [vmem:[#allocation4 + $0x48] sm:$0xff] %v7535
        %7552 = vst [vmem:[#allocation4 + $0x50] sm:$0xff] %v7536
        %7553 = vst [vmem:[#allocation4 + $0x58] sm:$0xff] %v7537
        %7554 = vst [vmem:[#allocation4 + $0x60] sm:$0xff] %v7538
        %7555 = vst [vmem:[#allocation4 + $0x68] sm:$0xff] %v7539
        %7556 = vst [vmem:[#allocation4 + $0x70] sm:$0xff] %v7540
        %7557 = vst [vmem:[#allocation4 + $0x78] sm:$0xff] %v7541
        %v7558 = vld [vmem:[%s1469] sm:$0xc]
        %v7559 = vld [vmem:[%s1469 + $0x4] sm:$0xf]
        %v7560 = vld [vmem:[%s1469 + $0x8] sm:$0x3]
        %v7561 = vld [vmem:[%s1469 + $0xc] sm:$0xc]
        %v7562 = vld [vmem:[%s1469 + $0x10] sm:$0xf]
        %v7563 = vld [vmem:[%s1469 + $0x14] sm:$0x3]
        %v7564 = vld [vmem:[%s1469 + $0x18] sm:$0xc]
        %v7565 = vld [vmem:[%s1469 + $0x1c] sm:$0xf]
        %v7566 = vld [vmem:[%s1469 + $0x20] sm:$0x3]
        %v7567 = vld [vmem:[%s1469 + $0x24] sm:$0xc]
        %v7568 = vld [vmem:[%s1469 + $0x28] sm:$0xf]
        %v7569 = vld [vmem:[%s1469 + $0x2c] sm:$0x3]
        %v7570 = vld [vmem:[%s1469 + $0x30] sm:$0xc]
        %v7571 = vld [vmem:[%s1469 + $0x34] sm:$0xf]
        %v7572 = vld [vmem:[%s1469 + $0x38] sm:$0x3]
        %v7573 = vld [vmem:[%s1469 + $0x3c] sm:$0xc]
        %v7574 = vld [vmem:[%s1469 + $0x40] sm:$0xf]
        %v7575 = vld [vmem:[%s1469 + $0x44] sm:$0x3]
        %v7576 = vld [vmem:[%s1469 + $0x48] sm:$0xc]
        %v7577 = vld [vmem:[%s1469 + $0x4c] sm:$0xf]
        %v7578 = vld [vmem:[%s1469 + $0x50] sm:$0x3]
        %v7579 = vld [vmem:[%s1469 + $0x54] sm:$0xc]
        %v7580 = vld [vmem:[%s1469 + $0x58] sm:$0xf]
        %v7581 = vld [vmem:[%s1469 + $0x5c] sm:$0x3]
        %v7606 = vrot.slane %v7558, 6
        %v7607 = vrot.slane %v7606, 4
        %v7608 = vrot.slane %v7559, 6
        %v7609 = vsel %vm767, %v7607, %v7608
        %v7610 = vrot.slane %v7608, 4
        %v7611 = vrot.slane %v7560, 6
        %v7612 = vsel %vm767, %v7610, %v7611
        %v7613 = vrot.slane %v7561, 6
        %v7614 = vrot.slane %v7613, 4
        %v7615 = vrot.slane %v7562, 6
        %v7616 = vsel %vm767, %v7614, %v7615
        %v7617 = vrot.slane %v7615, 4
        %v7618 = vrot.slane %v7563, 6
        %v7619 = vsel %vm767, %v7617, %v7618
        %v7620 = vrot.slane %v7564, 6
        %v7621 = vrot.slane %v7620, 4
        %v7622 = vrot.slane %v7565, 6
        %v7623 = vsel %vm767, %v7621, %v7622
        %v7624 = vrot.slane %v7622, 4
        %v7625 = vrot.slane %v7566, 6
        %v7626 = vsel %vm767, %v7624, %v7625
        %v7627 = vrot.slane %v7567, 6
        %v7628 = vrot.slane %v7627, 4
        %v7629 = vrot.slane %v7568, 6
        %v7630 = vsel %vm767, %v7628, %v7629
        %v7631 = vrot.slane %v7629, 4
        %v7632 = vrot.slane %v7569, 6
        %v7633 = vsel %vm767, %v7631, %v7632
        %v7634 = vrot.slane %v7570, 6
        %v7635 = vrot.slane %v7634, 4
        %v7636 = vrot.slane %v7571, 6
        %v7637 = vsel %vm767, %v7635, %v7636
        %v7638 = vrot.slane %v7636, 4
        %v7639 = vrot.slane %v7572, 6
        %v7640 = vsel %vm767, %v7638, %v7639
        %v7641 = vrot.slane %v7573, 6
        %v7642 = vrot.slane %v7641, 4
        %v7643 = vrot.slane %v7574, 6
        %v7644 = vsel %vm767, %v7642, %v7643
        %v7645 = vrot.slane %v7643, 4
        %v7646 = vrot.slane %v7575, 6
        %v7647 = vsel %vm767, %v7645, %v7646
        %v7648 = vrot.slane %v7576, 6
        %v7649 = vrot.slane %v7648, 4
        %v7650 = vrot.slane %v7577, 6
        %v7651 = vsel %vm767, %v7649, %v7650
        %v7652 = vrot.slane %v7650, 4
        %v7653 = vrot.slane %v7578, 6
        %v7654 = vsel %vm767, %v7652, %v7653
        %v7655 = vrot.slane %v7579, 6
        %v7656 = vrot.slane %v7655, 4
        %v7657 = vrot.slane %v7580, 6
        %v7658 = vsel %vm767, %v7656, %v7657
        %v7659 = vrot.slane %v7657, 4
        %v7660 = vrot.slane %v7581, 6
        %v7661 = vsel %vm767, %v7659, %v7660
        %s7662 = sadd.s32 %s520, 22
        %v7663 = vld [vmem:[#allocation4] sm:$0xff]
        %v7664 = vld [vmem:[#allocation4 + $0x8] sm:$0xff]
        %v7665 = vld [vmem:[#allocation4 + $0x10] sm:$0xff]
        %v7666 = vld [vmem:[#allocation4 + $0x18] sm:$0xff]
        %v7667 = vld [vmem:[#allocation4 + $0x20] sm:$0xff]
        %v7668 = vld [vmem:[#allocation4 + $0x28] sm:$0xff]
        %v7669 = vld [vmem:[#allocation4 + $0x30] sm:$0xff]
        %v7670 = vld [vmem:[#allocation4 + $0x38] sm:$0xff]
        %v7671 = vld [vmem:[#allocation4 + $0x40] sm:$0xff]
        %v7672 = vld [vmem:[#allocation4 + $0x48] sm:$0xff]
        %v7673 = vld [vmem:[#allocation4 + $0x50] sm:$0xff]
        %v7674 = vld [vmem:[#allocation4 + $0x58] sm:$0xff]
        %v7675 = vld [vmem:[#allocation4 + $0x60] sm:$0xff]
        %v7676 = vld [vmem:[#allocation4 + $0x68] sm:$0xff]
        %v7677 = vld [vmem:[#allocation4 + $0x70] sm:$0xff]
        %v7678 = vld [vmem:[#allocation4 + $0x78] sm:$0xff]
        %s7679 = smul.u32 %s7662, 16
        %s7680 = smul.addr %s7679, 4
        %s7681 = scalar_lea.vmem [#allocation5], %s7680
        %v7682 = vld [vmem:[%s7681] sm:$0xf]
        %v7683 = vld [vmem:[%s7681 + $0x4] sm:$0xf]
        %v7684 = vld [vmem:[%s7681 + $0x8] sm:$0xf]
        %v7685 = vld [vmem:[%s7681 + $0xc] sm:$0xf]
        %v7686 = vld [vmem:[%s7681 + $0x10] sm:$0xf]
        %v7687 = vld [vmem:[%s7681 + $0x14] sm:$0xf]
        %v7688 = vld [vmem:[%s7681 + $0x18] sm:$0xf]
        %v7689 = vld [vmem:[%s7681 + $0x1c] sm:$0xf]
        %v7690 = vld [vmem:[%s7681 + $0x20] sm:$0xf]
        %v7691 = vld [vmem:[%s7681 + $0x24] sm:$0xf]
        %v7692 = vld [vmem:[%s7681 + $0x28] sm:$0xf]
        %v7693 = vld [vmem:[%s7681 + $0x2c] sm:$0xf]
        %v7694 = vld [vmem:[%s7681 + $0x30] sm:$0xf]
        %v7695 = vld [vmem:[%s7681 + $0x34] sm:$0xf]
        %v7696 = vld [vmem:[%s7681 + $0x38] sm:$0xf]
        %v7697 = vld [vmem:[%s7681 + $0x3c] sm:$0xf]
        %v7698 = vunpack.c.l.b16 %v7609
        %v7699 = vunpack.c.l.b16 %v7612
        %v7700 = vunpack.c.l.b16 %v7616
        %v7701 = vunpack.c.l.b16 %v7619
        %v7702 = vunpack.c.l.b16 %v7623
        %v7703 = vunpack.c.l.b16 %v7626
        %v7704 = vunpack.c.l.b16 %v7630
        %v7705 = vunpack.c.l.b16 %v7633
        %v7706 = vunpack.c.l.b16 %v7637
        %v7707 = vunpack.c.l.b16 %v7640
        %v7708 = vunpack.c.l.b16 %v7644
        %v7709 = vunpack.c.l.b16 %v7647
        %v7710 = vunpack.c.l.b16 %v7651
        %v7711 = vunpack.c.l.b16 %v7654
        %v7712 = vunpack.c.l.b16 %v7658
        %v7713 = vunpack.c.l.b16 %v7661
        %v7714 = vpack.c.b16 %v7699, %v7698
        %v7715 = vpack.c.b16 %v7701, %v7700
        %v7716 = vpack.c.b16 %v7703, %v7702
        %v7717 = vpack.c.b16 %v7705, %v7704
        %v7718 = vpack.c.b16 %v7707, %v7706
        %v7719 = vpack.c.b16 %v7709, %v7708
        %v7720 = vpack.c.b16 %v7711, %v7710
        %v7721 = vpack.c.b16 %v7713, %v7712
        %v7746 = vunpack.c.l.b16 %v7682
        %v7747 = vunpack.c.l.b16 %v7683
        %v7748 = vunpack.c.l.b16 %v7684
        %v7749 = vunpack.c.l.b16 %v7685
        %v7750 = vunpack.c.l.b16 %v7686
        %v7751 = vunpack.c.l.b16 %v7687
        %v7752 = vunpack.c.l.b16 %v7688
        %v7753 = vunpack.c.l.b16 %v7689
        %v7754 = vunpack.c.l.b16 %v7690
        %v7755 = vunpack.c.l.b16 %v7691
        %v7756 = vunpack.c.l.b16 %v7692
        %v7757 = vunpack.c.l.b16 %v7693
        %v7758 = vunpack.c.l.b16 %v7694
        %v7759 = vunpack.c.l.b16 %v7695
        %v7760 = vunpack.c.l.b16 %v7696
        %v7761 = vunpack.c.l.b16 %v7697
        %v7762 = vpack.c.b16 %v7747, %v7746
        %v7763 = vpack.c.b16 %v7749, %v7748
        %v7764 = vpack.c.b16 %v7751, %v7750
        %v7765 = vpack.c.b16 %v7753, %v7752
        %v7766 = vpack.c.b16 %v7755, %v7754
        %v7767 = vpack.c.b16 %v7757, %v7756
        %v7768 = vpack.c.b16 %v7759, %v7758
        %v7769 = vpack.c.b16 %v7761, %v7760
        %7778 = vmatpush.bf16.msra.mxu0 %v7769
        %7779 = vmatpush.bf16.msra.mxu0 %v7768
        %7780 = vmatpush.bf16.msra.mxu0 %v7767
        %7781 = vmatpush.bf16.msra.mxu0 %v7766
        %7782 = vmatpush.bf16.msra.mxu0 %v7765
        %7783 = vmatpush.bf16.msra.mxu0 %v7764
        %7784 = vmatpush.bf16.msra.mxu0 %v7763
        %7785 = vmatpush.bf16.msra.mxu0 %v7762
        %7786 = vmatmul.bf16.gmra.mxu0 %v7714
        %v7787 = vpop.f32.mrf.mxu0
        %v7788 = vadd.f32 0.0, %v7787
        %v7789 = vpop.f32.mrf.mxu0
        %v7790 = vadd.f32 0.0, %v7789
        %7791 = vmatmul.bf16.gmra.mxu0 %v7715
        %v7792 = vpop.f32.mrf.mxu0
        %v7793 = vadd.f32 0.0, %v7792
        %v7794 = vpop.f32.mrf.mxu0
        %v7795 = vadd.f32 0.0, %v7794
        %7796 = vmatmul.bf16.gmra.mxu0 %v7716
        %v7797 = vpop.f32.mrf.mxu0
        %v7798 = vadd.f32 0.0, %v7797
        %v7799 = vpop.f32.mrf.mxu0
        %v7800 = vadd.f32 0.0, %v7799
        %7801 = vmatmul.bf16.gmra.mxu0 %v7717
        %v7802 = vpop.f32.mrf.mxu0
        %v7803 = vadd.f32 0.0, %v7802
        %v7804 = vpop.f32.mrf.mxu0
        %v7805 = vadd.f32 0.0, %v7804
        %7806 = vmatmul.bf16.gmra.mxu0 %v7718
        %v7807 = vpop.f32.mrf.mxu0
        %v7808 = vadd.f32 0.0, %v7807
        %v7809 = vpop.f32.mrf.mxu0
        %v7810 = vadd.f32 0.0, %v7809
        %7811 = vmatmul.bf16.gmra.mxu0 %v7719
        %v7812 = vpop.f32.mrf.mxu0
        %v7813 = vadd.f32 0.0, %v7812
        %v7814 = vpop.f32.mrf.mxu0
        %v7815 = vadd.f32 0.0, %v7814
        %7816 = vmatmul.bf16.gmra.mxu0 %v7720
        %v7817 = vpop.f32.mrf.mxu0
        %v7818 = vadd.f32 0.0, %v7817
        %v7819 = vpop.f32.mrf.mxu0
        %v7820 = vadd.f32 0.0, %v7819
        %7821 = vmatmul.bf16.gmra.mxu0 %v7721
        %v7822 = vpop.f32.mrf.mxu0
        %v7823 = vadd.f32 0.0, %v7822
        %v7824 = vpop.f32.mrf.mxu0
        %v7825 = vadd.f32 0.0, %v7824
        %7826 = vdwg.mxu0
        %v7827 = vadd.f32 %v7663, %v7788
        %v7828 = vadd.f32 %v7664, %v7790
        %v7829 = vadd.f32 %v7665, %v7793
        %v7830 = vadd.f32 %v7666, %v7795
        %v7831 = vadd.f32 %v7667, %v7798
        %v7832 = vadd.f32 %v7668, %v7800
        %v7833 = vadd.f32 %v7669, %v7803
        %v7834 = vadd.f32 %v7670, %v7805
        %v7835 = vadd.f32 %v7671, %v7808
        %v7836 = vadd.f32 %v7672, %v7810
        %v7837 = vadd.f32 %v7673, %v7813
        %v7838 = vadd.f32 %v7674, %v7815
        %v7839 = vadd.f32 %v7675, %v7818
        %v7840 = vadd.f32 %v7676, %v7820
        %v7841 = vadd.f32 %v7677, %v7823
        %v7842 = vadd.f32 %v7678, %v7825
        %7843 = vst [vmem:[#allocation4] sm:$0xff] %v7827
        %7844 = vst [vmem:[#allocation4 + $0x8] sm:$0xff] %v7828
        %7845 = vst [vmem:[#allocation4 + $0x10] sm:$0xff] %v7829
        %7846 = vst [vmem:[#allocation4 + $0x18] sm:$0xff] %v7830
        %7847 = vst [vmem:[#allocation4 + $0x20] sm:$0xff] %v7831
        %7848 = vst [vmem:[#allocation4 + $0x28] sm:$0xff] %v7832
        %7849 = vst [vmem:[#allocation4 + $0x30] sm:$0xff] %v7833
        %7850 = vst [vmem:[#allocation4 + $0x38] sm:$0xff] %v7834
        %7851 = vst [vmem:[#allocation4 + $0x40] sm:$0xff] %v7835
        %7852 = vst [vmem:[#allocation4 + $0x48] sm:$0xff] %v7836
        %7853 = vst [vmem:[#allocation4 + $0x50] sm:$0xff] %v7837
        %7854 = vst [vmem:[#allocation4 + $0x58] sm:$0xff] %v7838
        %7855 = vst [vmem:[#allocation4 + $0x60] sm:$0xff] %v7839
        %7856 = vst [vmem:[#allocation4 + $0x68] sm:$0xff] %v7840
        %7857 = vst [vmem:[#allocation4 + $0x70] sm:$0xff] %v7841
        %7858 = vst [vmem:[#allocation4 + $0x78] sm:$0xff] %v7842
        %v7859 = vld [vmem:[%s1469 + $0x4] sm:$0xf]
        %v7860 = vld [vmem:[%s1469 + $0x8] sm:$0xf]
        %v7861 = vld [vmem:[%s1469 + $0x10] sm:$0xf]
        %v7862 = vld [vmem:[%s1469 + $0x14] sm:$0xf]
        %v7863 = vld [vmem:[%s1469 + $0x1c] sm:$0xf]
        %v7864 = vld [vmem:[%s1469 + $0x20] sm:$0xf]
        %v7865 = vld [vmem:[%s1469 + $0x28] sm:$0xf]
        %v7866 = vld [vmem:[%s1469 + $0x2c] sm:$0xf]
        %v7867 = vld [vmem:[%s1469 + $0x34] sm:$0xf]
        %v7868 = vld [vmem:[%s1469 + $0x38] sm:$0xf]
        %v7869 = vld [vmem:[%s1469 + $0x40] sm:$0xf]
        %v7870 = vld [vmem:[%s1469 + $0x44] sm:$0xf]
        %v7871 = vld [vmem:[%s1469 + $0x4c] sm:$0xf]
        %v7872 = vld [vmem:[%s1469 + $0x50] sm:$0xf]
        %v7873 = vld [vmem:[%s1469 + $0x58] sm:$0xf]
        %v7874 = vld [vmem:[%s1469 + $0x5c] sm:$0xf]
        %s7875 = sadd.s32 %s520, 23
        %v7876 = vld [vmem:[#allocation4] sm:$0xff]
        %v7877 = vld [vmem:[#allocation4 + $0x8] sm:$0xff]
        %v7878 = vld [vmem:[#allocation4 + $0x10] sm:$0xff]
        %v7879 = vld [vmem:[#allocation4 + $0x18] sm:$0xff]
        %v7880 = vld [vmem:[#allocation4 + $0x20] sm:$0xff]
        %v7881 = vld [vmem:[#allocation4 + $0x28] sm:$0xff]
        %v7882 = vld [vmem:[#allocation4 + $0x30] sm:$0xff]
        %v7883 = vld [vmem:[#allocation4 + $0x38] sm:$0xff]
        %v7884 = vld [vmem:[#allocation4 + $0x40] sm:$0xff]
        %v7885 = vld [vmem:[#allocation4 + $0x48] sm:$0xff]
        %v7886 = vld [vmem:[#allocation4 + $0x50] sm:$0xff]
        %v7887 = vld [vmem:[#allocation4 + $0x58] sm:$0xff]
        %v7888 = vld [vmem:[#allocation4 + $0x60] sm:$0xff]
        %v7889 = vld [vmem:[#allocation4 + $0x68] sm:$0xff]
        %v7890 = vld [vmem:[#allocation4 + $0x70] sm:$0xff]
        %v7891 = vld [vmem:[#allocation4 + $0x78] sm:$0xff]
        %s7892 = smul.u32 %s7875, 16
        %s7893 = smul.addr %s7892, 4
        %s7894 = scalar_lea.vmem [#allocation5], %s7893
        %v7895 = vld [vmem:[%s7894] sm:$0xf]
        %v7896 = vld [vmem:[%s7894 + $0x4] sm:$0xf]
        %v7897 = vld [vmem:[%s7894 + $0x8] sm:$0xf]
        %v7898 = vld [vmem:[%s7894 + $0xc] sm:$0xf]
        %v7899 = vld [vmem:[%s7894 + $0x10] sm:$0xf]
        %v7900 = vld [vmem:[%s7894 + $0x14] sm:$0xf]
        %v7901 = vld [vmem:[%s7894 + $0x18] sm:$0xf]
        %v7902 = vld [vmem:[%s7894 + $0x1c] sm:$0xf]
        %v7903 = vld [vmem:[%s7894 + $0x20] sm:$0xf]
        %v7904 = vld [vmem:[%s7894 + $0x24] sm:$0xf]
        %v7905 = vld [vmem:[%s7894 + $0x28] sm:$0xf]
        %v7906 = vld [vmem:[%s7894 + $0x2c] sm:$0xf]
        %v7907 = vld [vmem:[%s7894 + $0x30] sm:$0xf]
        %v7908 = vld [vmem:[%s7894 + $0x34] sm:$0xf]
        %v7909 = vld [vmem:[%s7894 + $0x38] sm:$0xf]
        %v7910 = vld [vmem:[%s7894 + $0x3c] sm:$0xf]
        %v7927 = vunpack.c.l.b16 %v7859
        %v7928 = vunpack.c.l.b16 %v7860
        %v7929 = vunpack.c.l.b16 %v7861
        %v7930 = vunpack.c.l.b16 %v7862
        %v7931 = vunpack.c.l.b16 %v7863
        %v7932 = vunpack.c.l.b16 %v7864
        %v7933 = vunpack.c.l.b16 %v7865
        %v7934 = vunpack.c.l.b16 %v7866
        %v7935 = vunpack.c.l.b16 %v7867
        %v7936 = vunpack.c.l.b16 %v7868
        %v7937 = vunpack.c.l.b16 %v7869
        %v7938 = vunpack.c.l.b16 %v7870
        %v7939 = vunpack.c.l.b16 %v7871
        %v7940 = vunpack.c.l.b16 %v7872
        %v7941 = vunpack.c.l.b16 %v7873
        %v7942 = vunpack.c.l.b16 %v7874
        %v7943 = vpack.c.b16 %v7928, %v7927
        %v7944 = vpack.c.b16 %v7930, %v7929
        %v7945 = vpack.c.b16 %v7932, %v7931
        %v7946 = vpack.c.b16 %v7934, %v7933
        %v7947 = vpack.c.b16 %v7936, %v7935
        %v7948 = vpack.c.b16 %v7938, %v7937
        %v7949 = vpack.c.b16 %v7940, %v7939
        %v7950 = vpack.c.b16 %v7942, %v7941
        %v7975 = vunpack.c.l.b16 %v7895
        %v7976 = vunpack.c.l.b16 %v7896
        %v7977 = vunpack.c.l.b16 %v7897
        %v7978 = vunpack.c.l.b16 %v7898
        %v7979 = vunpack.c.l.b16 %v7899
        %v7980 = vunpack.c.l.b16 %v7900
        %v7981 = vunpack.c.l.b16 %v7901
        %v7982 = vunpack.c.l.b16 %v7902
        %v7983 = vunpack.c.l.b16 %v7903
        %v7984 = vunpack.c.l.b16 %v7904
        %v7985 = vunpack.c.l.b16 %v7905
        %v7986 = vunpack.c.l.b16 %v7906
        %v7987 = vunpack.c.l.b16 %v7907
        %v7988 = vunpack.c.l.b16 %v7908
        %v7989 = vunpack.c.l.b16 %v7909
        %v7990 = vunpack.c.l.b16 %v7910
        %v7991 = vpack.c.b16 %v7976, %v7975
        %v7992 = vpack.c.b16 %v7978, %v7977
        %v7993 = vpack.c.b16 %v7980, %v7979
        %v7994 = vpack.c.b16 %v7982, %v7981
        %v7995 = vpack.c.b16 %v7984, %v7983
        %v7996 = vpack.c.b16 %v7986, %v7985
        %v7997 = vpack.c.b16 %v7988, %v7987
        %v7998 = vpack.c.b16 %v7990, %v7989
        %8007 = vmatpush.bf16.msra.mxu0 %v7998
        %8008 = vmatpush.bf16.msra.mxu0 %v7997
        %8009 = vmatpush.bf16.msra.mxu0 %v7996
        %8010 = vmatpush.bf16.msra.mxu0 %v7995
        %8011 = vmatpush.bf16.msra.mxu0 %v7994
        %8012 = vmatpush.bf16.msra.mxu0 %v7993
        %8013 = vmatpush.bf16.msra.mxu0 %v7992
        %8014 = vmatpush.bf16.msra.mxu0 %v7991
        %8015 = vmatmul.bf16.gmra.mxu0 %v7943
        %v8016 = vpop.f32.mrf.mxu0
        %v8017 = vadd.f32 0.0, %v8016
        %v8018 = vpop.f32.mrf.mxu0
        %v8019 = vadd.f32 0.0, %v8018
        %8020 = vmatmul.bf16.gmra.mxu0 %v7944
        %v8021 = vpop.f32.mrf.mxu0
        %v8022 = vadd.f32 0.0, %v8021
        %v8023 = vpop.f32.mrf.mxu0
        %v8024 = vadd.f32 0.0, %v8023
        %8025 = vmatmul.bf16.gmra.mxu0 %v7945
        %v8026 = vpop.f32.mrf.mxu0
        %v8027 = vadd.f32 0.0, %v8026
        %v8028 = vpop.f32.mrf.mxu0
        %v8029 = vadd.f32 0.0, %v8028
        %8030 = vmatmul.bf16.gmra.mxu0 %v7946
        %v8031 = vpop.f32.mrf.mxu0
        %v8032 = vadd.f32 0.0, %v8031
        %v8033 = vpop.f32.mrf.mxu0
        %v8034 = vadd.f32 0.0, %v8033
        %8035 = vmatmul.bf16.gmra.mxu0 %v7947
        %v8036 = vpop.f32.mrf.mxu0
        %v8037 = vadd.f32 0.0, %v8036
        %v8038 = vpop.f32.mrf.mxu0
        %v8039 = vadd.f32 0.0, %v8038
        %8040 = vmatmul.bf16.gmra.mxu0 %v7948
        %v8041 = vpop.f32.mrf.mxu0
        %v8042 = vadd.f32 0.0, %v8041
        %v8043 = vpop.f32.mrf.mxu0
        %v8044 = vadd.f32 0.0, %v8043
        %8045 = vmatmul.bf16.gmra.mxu0 %v7949
        %v8046 = vpop.f32.mrf.mxu0
        %v8047 = vadd.f32 0.0, %v8046
        %v8048 = vpop.f32.mrf.mxu0
        %v8049 = vadd.f32 0.0, %v8048
        %8050 = vmatmul.bf16.gmra.mxu0 %v7950
        %v8051 = vpop.f32.mrf.mxu0
        %v8052 = vadd.f32 0.0, %v8051
        %v8053 = vpop.f32.mrf.mxu0
        %v8054 = vadd.f32 0.0, %v8053
        %8055 = vdwg.mxu0
        %v8056 = vadd.f32 %v7876, %v8017
        %v8057 = vadd.f32 %v7877, %v8019
        %v8058 = vadd.f32 %v7878, %v8022
        %v8059 = vadd.f32 %v7879, %v8024
        %v8060 = vadd.f32 %v7880, %v8027
        %v8061 = vadd.f32 %v7881, %v8029
        %v8062 = vadd.f32 %v7882, %v8032
        %v8063 = vadd.f32 %v7883, %v8034
        %v8064 = vadd.f32 %v7884, %v8037
        %v8065 = vadd.f32 %v7885, %v8039
        %v8066 = vadd.f32 %v7886, %v8042
        %v8067 = vadd.f32 %v7887, %v8044
        %v8068 = vadd.f32 %v7888, %v8047
        %v8069 = vadd.f32 %v7889, %v8049
        %v8070 = vadd.f32 %v7890, %v8052
        %v8071 = vadd.f32 %v7891, %v8054
        %8072 = vst [vmem:[#allocation4] sm:$0xff] %v8056
        %8073 = vst [vmem:[#allocation4 + $0x8] sm:$0xff] %v8057
        %8074 = vst [vmem:[#allocation4 + $0x10] sm:$0xff] %v8058
        %8075 = vst [vmem:[#allocation4 + $0x18] sm:$0xff] %v8059
        %8076 = vst [vmem:[#allocation4 + $0x20] sm:$0xff] %v8060
        %8077 = vst [vmem:[#allocation4 + $0x28] sm:$0xff] %v8061
        %8078 = vst [vmem:[#allocation4 + $0x30] sm:$0xff] %v8062
        %8079 = vst [vmem:[#allocation4 + $0x38] sm:$0xff] %v8063
        %8080 = vst [vmem:[#allocation4 + $0x40] sm:$0xff] %v8064
        %8081 = vst [vmem:[#allocation4 + $0x48] sm:$0xff] %v8065
        %8082 = vst [vmem:[#allocation4 + $0x50] sm:$0xff] %v8066
        %8083 = vst [vmem:[#allocation4 + $0x58] sm:$0xff] %v8067
        %8084 = vst [vmem:[#allocation4 + $0x60] sm:$0xff] %v8068
        %8085 = vst [vmem:[#allocation4 + $0x68] sm:$0xff] %v8069
        %8086 = vst [vmem:[#allocation4 + $0x70] sm:$0xff] %v8070
        %8087 = vst [vmem:[#allocation4 + $0x78] sm:$0xff] %v8071
        %s8088 = scalar_lea.vmem %s267, 96 [#allocation2]
        %v8089 = vld [vmem:[%s8088] sm:$0xf]
        %v8090 = vld [vmem:[%s8088 + $0x4] sm:$0xf]
        %v8091 = vld [vmem:[%s8088 + $0xc] sm:$0xf]
        %v8092 = vld [vmem:[%s8088 + $0x10] sm:$0xf]
        %v8093 = vld [vmem:[%s8088 + $0x18] sm:$0xf]
        %v8094 = vld [vmem:[%s8088 + $0x1c] sm:$0xf]
        %v8095 = vld [vmem:[%s8088 + $0x24] sm:$0xf]
        %v8096 = vld [vmem:[%s8088 + $0x28] sm:$0xf]
        %v8097 = vld [vmem:[%s8088 + $0x30] sm:$0xf]
        %v8098 = vld [vmem:[%s8088 + $0x34] sm:$0xf]
        %v8099 = vld [vmem:[%s8088 + $0x3c] sm:$0xf]
        %v8100 = vld [vmem:[%s8088 + $0x40] sm:$0xf]
        %v8101 = vld [vmem:[%s8088 + $0x48] sm:$0xf]
        %v8102 = vld [vmem:[%s8088 + $0x4c] sm:$0xf]
        %v8103 = vld [vmem:[%s8088 + $0x54] sm:$0xf]
        %v8104 = vld [vmem:[%s8088 + $0x58] sm:$0xf]
        %s8105 = sadd.s32 %s520, 24
        %v8106 = vld [vmem:[#allocation4] sm:$0xff]
        %v8107 = vld [vmem:[#allocation4 + $0x8] sm:$0xff]
        %v8108 = vld [vmem:[#allocation4 + $0x10] sm:$0xff]
        %v8109 = vld [vmem:[#allocation4 + $0x18] sm:$0xff]
        %v8110 = vld [vmem:[#allocation4 + $0x20] sm:$0xff]
        %v8111 = vld [vmem:[#allocation4 + $0x28] sm:$0xff]
        %v8112 = vld [vmem:[#allocation4 + $0x30] sm:$0xff]
        %v8113 = vld [vmem:[#allocation4 + $0x38] sm:$0xff]
        %v8114 = vld [vmem:[#allocation4 + $0x40] sm:$0xff]
        %v8115 = vld [vmem:[#allocation4 + $0x48] sm:$0xff]
        %v8116 = vld [vmem:[#allocation4 + $0x50] sm:$0xff]
        %v8117 = vld [vmem:[#allocation4 + $0x58] sm:$0xff]
        %v8118 = vld [vmem:[#allocation4 + $0x60] sm:$0xff]
        %v8119 = vld [vmem:[#allocation4 + $0x68] sm:$0xff]
        %v8120 = vld [vmem:[#allocation4 + $0x70] sm:$0xff]
        %v8121 = vld [vmem:[#allocation4 + $0x78] sm:$0xff]
        %s8122 = smul.u32 %s8105, 16
        %s8123 = smul.addr %s8122, 4
        %s8124 = scalar_lea.vmem [#allocation5], %s8123
        %v8125 = vld [vmem:[%s8124] sm:$0xf]
        %v8126 = vld [vmem:[%s8124 + $0x4] sm:$0xf]
        %v8127 = vld [vmem:[%s8124 + $0x8] sm:$0xf]
        %v8128 = vld [vmem:[%s8124 + $0xc] sm:$0xf]
        %v8129 = vld [vmem:[%s8124 + $0x10] sm:$0xf]
        %v8130 = vld [vmem:[%s8124 + $0x14] sm:$0xf]
        %v8131 = vld [vmem:[%s8124 + $0x18] sm:$0xf]
        %v8132 = vld [vmem:[%s8124 + $0x1c] sm:$0xf]
        %v8133 = vld [vmem:[%s8124 + $0x20] sm:$0xf]
        %v8134 = vld [vmem:[%s8124 + $0x24] sm:$0xf]
        %v8135 = vld [vmem:[%s8124 + $0x28] sm:$0xf]
        %v8136 = vld [vmem:[%s8124 + $0x2c] sm:$0xf]
        %v8137 = vld [vmem:[%s8124 + $0x30] sm:$0xf]
        %v8138 = vld [vmem:[%s8124 + $0x34] sm:$0xf]
        %v8139 = vld [vmem:[%s8124 + $0x38] sm:$0xf]
        %v8140 = vld [vmem:[%s8124 + $0x3c] sm:$0xf]
        %v8157 = vunpack.c.l.b16 %v8089
        %v8158 = vunpack.c.l.b16 %v8090
        %v8159 = vunpack.c.l.b16 %v8091
        %v8160 = vunpack.c.l.b16 %v8092
        %v8161 = vunpack.c.l.b16 %v8093
        %v8162 = vunpack.c.l.b16 %v8094
        %v8163 = vunpack.c.l.b16 %v8095
        %v8164 = vunpack.c.l.b16 %v8096
        %v8165 = vunpack.c.l.b16 %v8097
        %v8166 = vunpack.c.l.b16 %v8098
        %v8167 = vunpack.c.l.b16 %v8099
        %v8168 = vunpack.c.l.b16 %v8100
        %v8169 = vunpack.c.l.b16 %v8101
        %v8170 = vunpack.c.l.b16 %v8102
        %v8171 = vunpack.c.l.b16 %v8103
        %v8172 = vunpack.c.l.b16 %v8104
        %v8173 = vpack.c.b16 %v8158, %v8157
        %v8174 = vpack.c.b16 %v8160, %v8159
        %v8175 = vpack.c.b16 %v8162, %v8161
        %v8176 = vpack.c.b16 %v8164, %v8163
        %v8177 = vpack.c.b16 %v8166, %v8165
        %v8178 = vpack.c.b16 %v8168, %v8167
        %v8179 = vpack.c.b16 %v8170, %v8169
        %v8180 = vpack.c.b16 %v8172, %v8171
        %v8205 = vunpack.c.l.b16 %v8125
        %v8206 = vunpack.c.l.b16 %v8126
        %v8207 = vunpack.c.l.b16 %v8127
        %v8208 = vunpack.c.l.b16 %v8128
        %v8209 = vunpack.c.l.b16 %v8129
        %v8210 = vunpack.c.l.b16 %v8130
        %v8211 = vunpack.c.l.b16 %v8131
        %v8212 = vunpack.c.l.b16 %v8132
        %v8213 = vunpack.c.l.b16 %v8133
        %v8214 = vunpack.c.l.b16 %v8134
        %v8215 = vunpack.c.l.b16 %v8135
        %v8216 = vunpack.c.l.b16 %v8136
        %v8217 = vunpack.c.l.b16 %v8137
        %v8218 = vunpack.c.l.b16 %v8138
        %v8219 = vunpack.c.l.b16 %v8139
        %v8220 = vunpack.c.l.b16 %v8140
        %v8221 = vpack.c.b16 %v8206, %v8205
        %v8222 = vpack.c.b16 %v8208, %v8207
        %v8223 = vpack.c.b16 %v8210, %v8209
        %v8224 = vpack.c.b16 %v8212, %v8211
        %v8225 = vpack.c.b16 %v8214, %v8213
        %v8226 = vpack.c.b16 %v8216, %v8215
        %v8227 = vpack.c.b16 %v8218, %v8217
        %v8228 = vpack.c.b16 %v8220, %v8219
        %8237 = vmatpush.bf16.msra.mxu0 %v8228
        %8238 = vmatpush.bf16.msra.mxu0 %v8227
        %8239 = vmatpush.bf16.msra.mxu0 %v8226
        %8240 = vmatpush.bf16.msra.mxu0 %v8225
        %8241 = vmatpush.bf16.msra.mxu0 %v8224
        %8242 = vmatpush.bf16.msra.mxu0 %v8223
        %8243 = vmatpush.bf16.msra.mxu0 %v8222
        %8244 = vmatpush.bf16.msra.mxu0 %v8221
        %8245 = vmatmul.bf16.gmra.mxu0 %v8173
        %v8246 = vpop.f32.mrf.mxu0
        %v8247 = vadd.f32 0.0, %v8246
        %v8248 = vpop.f32.mrf.mxu0
        %v8249 = vadd.f32 0.0, %v8248
        %8250 = vmatmul.bf16.gmra.mxu0 %v8174
        %v8251 = vpop.f32.mrf.mxu0
        %v8252 = vadd.f32 0.0, %v8251
        %v8253 = vpop.f32.mrf.mxu0
        %v8254 = vadd.f32 0.0, %v8253
        %8255 = vmatmul.bf16.gmra.mxu0 %v8175
        %v8256 = vpop.f32.mrf.mxu0
        %v8257 = vadd.f32 0.0, %v8256
        %v8258 = vpop.f32.mrf.mxu0
        %v8259 = vadd.f32 0.0, %v8258
        %8260 = vmatmul.bf16.gmra.mxu0 %v8176
        %v8261 = vpop.f32.mrf.mxu0
        %v8262 = vadd.f32 0.0, %v8261
        %v8263 = vpop.f32.mrf.mxu0
        %v8264 = vadd.f32 0.0, %v8263
        %8265 = vmatmul.bf16.gmra.mxu0 %v8177
        %v8266 = vpop.f32.mrf.mxu0
        %v8267 = vadd.f32 0.0, %v8266
        %v8268 = vpop.f32.mrf.mxu0
        %v8269 = vadd.f32 0.0, %v8268
        %8270 = vmatmul.bf16.gmra.mxu0 %v8178
        %v8271 = vpop.f32.mrf.mxu0
        %v8272 = vadd.f32 0.0, %v8271
        %v8273 = vpop.f32.mrf.mxu0
        %v8274 = vadd.f32 0.0, %v8273
        %8275 = vmatmul.bf16.gmra.mxu0 %v8179
        %v8276 = vpop.f32.mrf.mxu0
        %v8277 = vadd.f32 0.0, %v8276
        %v8278 = vpop.f32.mrf.mxu0
        %v8279 = vadd.f32 0.0, %v8278
        %8280 = vmatmul.bf16.gmra.mxu0 %v8180
        %v8281 = vpop.f32.mrf.mxu0
        %v8282 = vadd.f32 0.0, %v8281
        %v8283 = vpop.f32.mrf.mxu0
        %v8284 = vadd.f32 0.0, %v8283
        %8285 = vdwg.mxu0
        %v8286 = vadd.f32 %v8106, %v8247
        %v8287 = vadd.f32 %v8107, %v8249
        %v8288 = vadd.f32 %v8108, %v8252
        %v8289 = vadd.f32 %v8109, %v8254
        %v8290 = vadd.f32 %v8110, %v8257
        %v8291 = vadd.f32 %v8111, %v8259
        %v8292 = vadd.f32 %v8112, %v8262
        %v8293 = vadd.f32 %v8113, %v8264
        %v8294 = vadd.f32 %v8114, %v8267
        %v8295 = vadd.f32 %v8115, %v8269
        %v8296 = vadd.f32 %v8116, %v8272
        %v8297 = vadd.f32 %v8117, %v8274
        %v8298 = vadd.f32 %v8118, %v8277
        %v8299 = vadd.f32 %v8119, %v8279
        %v8300 = vadd.f32 %v8120, %v8282
        %v8301 = vadd.f32 %v8121, %v8284
        %8302 = vst [vmem:[#allocation4] sm:$0xff] %v8286
        %8303 = vst [vmem:[#allocation4 + $0x8] sm:$0xff] %v8287
        %8304 = vst [vmem:[#allocation4 + $0x10] sm:$0xff] %v8288
        %8305 = vst [vmem:[#allocation4 + $0x18] sm:$0xff] %v8289
        %8306 = vst [vmem:[#allocation4 + $0x20] sm:$0xff] %v8290
        %8307 = vst [vmem:[#allocation4 + $0x28] sm:$0xff] %v8291
        %8308 = vst [vmem:[#allocation4 + $0x30] sm:$0xff] %v8292
        %8309 = vst [vmem:[#allocation4 + $0x38] sm:$0xff] %v8293
        %8310 = vst [vmem:[#allocation4 + $0x40] sm:$0xff] %v8294
        %8311 = vst [vmem:[#allocation4 + $0x48] sm:$0xff] %v8295
        %8312 = vst [vmem:[#allocation4 + $0x50] sm:$0xff] %v8296
        %8313 = vst [vmem:[#allocation4 + $0x58] sm:$0xff] %v8297
        %8314 = vst [vmem:[#allocation4 + $0x60] sm:$0xff] %v8298
        %8315 = vst [vmem:[#allocation4 + $0x68] sm:$0xff] %v8299
        %8316 = vst [vmem:[#allocation4 + $0x70] sm:$0xff] %v8300
        %8317 = vst [vmem:[#allocation4 + $0x78] sm:$0xff] %v8301
        %v8318 = vld [vmem:[%s8088] sm:$0xc]
        %v8319 = vld [vmem:[%s8088 + $0x4] sm:$0xf]
        %v8320 = vld [vmem:[%s8088 + $0x8] sm:$0x3]
        %v8321 = vld [vmem:[%s8088 + $0xc] sm:$0xc]
        %v8322 = vld [vmem:[%s8088 + $0x10] sm:$0xf]
        %v8323 = vld [vmem:[%s8088 + $0x14] sm:$0x3]
        %v8324 = vld [vmem:[%s8088 + $0x18] sm:$0xc]
        %v8325 = vld [vmem:[%s8088 + $0x1c] sm:$0xf]
        %v8326 = vld [vmem:[%s8088 + $0x20] sm:$0x3]
        %v8327 = vld [vmem:[%s8088 + $0x24] sm:$0xc]
        %v8328 = vld [vmem:[%s8088 + $0x28] sm:$0xf]
        %v8329 = vld [vmem:[%s8088 + $0x2c] sm:$0x3]
        %v8330 = vld [vmem:[%s8088 + $0x30] sm:$0xc]
        %v8331 = vld [vmem:[%s8088 + $0x34] sm:$0xf]
        %v8332 = vld [vmem:[%s8088 + $0x38] sm:$0x3]
        %v8333 = vld [vmem:[%s8088 + $0x3c] sm:$0xc]
        %v8334 = vld [vmem:[%s8088 + $0x40] sm:$0xf]
        %v8335 = vld [vmem:[%s8088 + $0x44] sm:$0x3]
        %v8336 = vld [vmem:[%s8088 + $0x48] sm:$0xc]
        %v8337 = vld [vmem:[%s8088 + $0x4c] sm:$0xf]
        %v8338 = vld [vmem:[%s8088 + $0x50] sm:$0x3]
        %v8339 = vld [vmem:[%s8088 + $0x54] sm:$0xc]
        %v8340 = vld [vmem:[%s8088 + $0x58] sm:$0xf]
        %v8341 = vld [vmem:[%s8088 + $0x5c] sm:$0x3]
        %v8366 = vrot.slane %v8318, 6
        %v8367 = vrot.slane %v8366, 4
        %v8368 = vrot.slane %v8319, 6
        %v8369 = vsel %vm767, %v8367, %v8368
        %v8370 = vrot.slane %v8368, 4
        %v8371 = vrot.slane %v8320, 6
        %v8372 = vsel %vm767, %v8370, %v8371
        %v8373 = vrot.slane %v8321, 6
        %v8374 = vrot.slane %v8373, 4
        %v8375 = vrot.slane %v8322, 6
        %v8376 = vsel %vm767, %v8374, %v8375
        %v8377 = vrot.slane %v8375, 4
        %v8378 = vrot.slane %v8323, 6
        %v8379 = vsel %vm767, %v8377, %v8378
        %v8380 = vrot.slane %v8324, 6
        %v8381 = vrot.slane %v8380, 4
        %v8382 = vrot.slane %v8325, 6
        %v8383 = vsel %vm767, %v8381, %v8382
        %v8384 = vrot.slane %v8382, 4
        %v8385 = vrot.slane %v8326, 6
        %v8386 = vsel %vm767, %v8384, %v8385
        %v8387 = vrot.slane %v8327, 6
        %v8388 = vrot.slane %v8387, 4
        %v8389 = vrot.slane %v8328, 6
        %v8390 = vsel %vm767, %v8388, %v8389
        %v8391 = vrot.slane %v8389, 4
        %v8392 = vrot.slane %v8329, 6
        %v8393 = vsel %vm767, %v8391, %v8392
        %v8394 = vrot.slane %v8330, 6
        %v8395 = vrot.slane %v8394, 4
        %v8396 = vrot.slane %v8331, 6
        %v8397 = vsel %vm767, %v8395, %v8396
        %v8398 = vrot.slane %v8396, 4
        %v8399 = vrot.slane %v8332, 6
        %v8400 = vsel %vm767, %v8398, %v8399
        %v8401 = vrot.slane %v8333, 6
        %v8402 = vrot.slane %v8401, 4
        %v8403 = vrot.slane %v8334, 6
        %v8404 = vsel %vm767, %v8402, %v8403
        %v8405 = vrot.slane %v8403, 4
        %v8406 = vrot.slane %v8335, 6
        %v8407 = vsel %vm767, %v8405, %v8406
        %v8408 = vrot.slane %v8336, 6
        %v8409 = vrot.slane %v8408, 4
        %v8410 = vrot.slane %v8337, 6
        %v8411 = vsel %vm767, %v8409, %v8410
        %v8412 = vrot.slane %v8410, 4
        %v8413 = vrot.slane %v8338, 6
        %v8414 = vsel %vm767, %v8412, %v8413
        %v8415 = vrot.slane %v8339, 6
        %v8416 = vrot.slane %v8415, 4
        %v8417 = vrot.slane %v8340, 6
        %v8418 = vsel %vm767, %v8416, %v8417
        %v8419 = vrot.slane %v8417, 4
        %v8420 = vrot.slane %v8341, 6
        %v8421 = vsel %vm767, %v8419, %v8420
        %s8422 = sadd.s32 %s520, 25
        %v8423 = vld [vmem:[#allocation4] sm:$0xff]
        %v8424 = vld [vmem:[#allocation4 + $0x8] sm:$0xff]
        %v8425 = vld [vmem:[#allocation4 + $0x10] sm:$0xff]
        %v8426 = vld [vmem:[#allocation4 + $0x18] sm:$0xff]
        %v8427 = vld [vmem:[#allocation4 + $0x20] sm:$0xff]
        %v8428 = vld [vmem:[#allocation4 + $0x28] sm:$0xff]
        %v8429 = vld [vmem:[#allocation4 + $0x30] sm:$0xff]
        %v8430 = vld [vmem:[#allocation4 + $0x38] sm:$0xff]
        %v8431 = vld [vmem:[#allocation4 + $0x40] sm:$0xff]
        %v8432 = vld [vmem:[#allocation4 + $0x48] sm:$0xff]
        %v8433 = vld [vmem:[#allocation4 + $0x50] sm:$0xff]
        %v8434 = vld [vmem:[#allocation4 + $0x58] sm:$0xff]
        %v8435 = vld [vmem:[#allocation4 + $0x60] sm:$0xff]
        %v8436 = vld [vmem:[#allocation4 + $0x68] sm:$0xff]
        %v8437 = vld [vmem:[#allocation4 + $0x70] sm:$0xff]
        %v8438 = vld [vmem:[#allocation4 + $0x78] sm:$0xff]
        %s8439 = smul.u32 %s8422, 16
        %s8440 = smul.addr %s8439, 4
        %s8441 = scalar_lea.vmem [#allocation5], %s8440
        %v8442 = vld [vmem:[%s8441] sm:$0xf]
        %v8443 = vld [vmem:[%s8441 + $0x4] sm:$0xf]
        %v8444 = vld [vmem:[%s8441 + $0x8] sm:$0xf]
        %v8445 = vld [vmem:[%s8441 + $0xc] sm:$0xf]
        %v8446 = vld [vmem:[%s8441 + $0x10] sm:$0xf]
        %v8447 = vld [vmem:[%s8441 + $0x14] sm:$0xf]
        %v8448 = vld [vmem:[%s8441 + $0x18] sm:$0xf]
        %v8449 = vld [vmem:[%s8441 + $0x1c] sm:$0xf]
        %v8450 = vld [vmem:[%s8441 + $0x20] sm:$0xf]
        %v8451 = vld [vmem:[%s8441 + $0x24] sm:$0xf]
        %v8452 = vld [vmem:[%s8441 + $0x28] sm:$0xf]
        %v8453 = vld [vmem:[%s8441 + $0x2c] sm:$0xf]
        %v8454 = vld [vmem:[%s8441 + $0x30] sm:$0xf]
        %v8455 = vld [vmem:[%s8441 + $0x34] sm:$0xf]
        %v8456 = vld [vmem:[%s8441 + $0x38] sm:$0xf]
        %v8457 = vld [vmem:[%s8441 + $0x3c] sm:$0xf]
        %v8458 = vunpack.c.l.b16 %v8369
        %v8459 = vunpack.c.l.b16 %v8372
        %v8460 = vunpack.c.l.b16 %v8376
        %v8461 = vunpack.c.l.b16 %v8379
        %v8462 = vunpack.c.l.b16 %v8383
        %v8463 = vunpack.c.l.b16 %v8386
        %v8464 = vunpack.c.l.b16 %v8390
        %v8465 = vunpack.c.l.b16 %v8393
        %v8466 = vunpack.c.l.b16 %v8397
        %v8467 = vunpack.c.l.b16 %v8400
        %v8468 = vunpack.c.l.b16 %v8404
        %v8469 = vunpack.c.l.b16 %v8407
        %v8470 = vunpack.c.l.b16 %v8411
        %v8471 = vunpack.c.l.b16 %v8414
        %v8472 = vunpack.c.l.b16 %v8418
        %v8473 = vunpack.c.l.b16 %v8421
        %v8474 = vpack.c.b16 %v8459, %v8458
        %v8475 = vpack.c.b16 %v8461, %v8460
        %v8476 = vpack.c.b16 %v8463, %v8462
        %v8477 = vpack.c.b16 %v8465, %v8464
        %v8478 = vpack.c.b16 %v8467, %v8466
        %v8479 = vpack.c.b16 %v8469, %v8468
        %v8480 = vpack.c.b16 %v8471, %v8470
        %v8481 = vpack.c.b16 %v8473, %v8472
        %v8506 = vunpack.c.l.b16 %v8442
        %v8507 = vunpack.c.l.b16 %v8443
        %v8508 = vunpack.c.l.b16 %v8444
        %v8509 = vunpack.c.l.b16 %v8445
        %v8510 = vunpack.c.l.b16 %v8446
        %v8511 = vunpack.c.l.b16 %v8447
        %v8512 = vunpack.c.l.b16 %v8448
        %v8513 = vunpack.c.l.b16 %v8449
        %v8514 = vunpack.c.l.b16 %v8450
        %v8515 = vunpack.c.l.b16 %v8451
        %v8516 = vunpack.c.l.b16 %v8452
        %v8517 = vunpack.c.l.b16 %v8453
        %v8518 = vunpack.c.l.b16 %v8454
        %v8519 = vunpack.c.l.b16 %v8455
        %v8520 = vunpack.c.l.b16 %v8456
        %v8521 = vunpack.c.l.b16 %v8457
        %v8522 = vpack.c.b16 %v8507, %v8506
        %v8523 = vpack.c.b16 %v8509, %v8508
        %v8524 = vpack.c.b16 %v8511, %v8510
        %v8525 = vpack.c.b16 %v8513, %v8512
        %v8526 = vpack.c.b16 %v8515, %v8514
        %v8527 = vpack.c.b16 %v8517, %v8516
        %v8528 = vpack.c.b16 %v8519, %v8518
        %v8529 = vpack.c.b16 %v8521, %v8520
        %8538 = vmatpush.bf16.msra.mxu0 %v8529
        %8539 = vmatpush.bf16.msra.mxu0 %v8528
        %8540 = vmatpush.bf16.msra.mxu0 %v8527
        %8541 = vmatpush.bf16.msra.mxu0 %v8526
        %8542 = vmatpush.bf16.msra.mxu0 %v8525
        %8543 = vmatpush.bf16.msra.mxu0 %v8524
        %8544 = vmatpush.bf16.msra.mxu0 %v8523
        %8545 = vmatpush.bf16.msra.mxu0 %v8522
        %8546 = vmatmul.bf16.gmra.mxu0 %v8474
        %v8547 = vpop.f32.mrf.mxu0
        %v8548 = vadd.f32 0.0, %v8547
        %v8549 = vpop.f32.mrf.mxu0
        %v8550 = vadd.f32 0.0, %v8549
        %8551 = vmatmul.bf16.gmra.mxu0 %v8475
        %v8552 = vpop.f32.mrf.mxu0
        %v8553 = vadd.f32 0.0, %v8552
        %v8554 = vpop.f32.mrf.mxu0
        %v8555 = vadd.f32 0.0, %v8554
        %8556 = vmatmul.bf16.gmra.mxu0 %v8476
        %v8557 = vpop.f32.mrf.mxu0
        %v8558 = vadd.f32 0.0, %v8557
        %v8559 = vpop.f32.mrf.mxu0
        %v8560 = vadd.f32 0.0, %v8559
        %8561 = vmatmul.bf16.gmra.mxu0 %v8477
        %v8562 = vpop.f32.mrf.mxu0
        %v8563 = vadd.f32 0.0, %v8562
        %v8564 = vpop.f32.mrf.mxu0
        %v8565 = vadd.f32 0.0, %v8564
        %8566 = vmatmul.bf16.gmra.mxu0 %v8478
        %v8567 = vpop.f32.mrf.mxu0
        %v8568 = vadd.f32 0.0, %v8567
        %v8569 = vpop.f32.mrf.mxu0
        %v8570 = vadd.f32 0.0, %v8569
        %8571 = vmatmul.bf16.gmra.mxu0 %v8479
        %v8572 = vpop.f32.mrf.mxu0
        %v8573 = vadd.f32 0.0, %v8572
        %v8574 = vpop.f32.mrf.mxu0
        %v8575 = vadd.f32 0.0, %v8574
        %8576 = vmatmul.bf16.gmra.mxu0 %v8480
        %v8577 = vpop.f32.mrf.mxu0
        %v8578 = vadd.f32 0.0, %v8577
        %v8579 = vpop.f32.mrf.mxu0
        %v8580 = vadd.f32 0.0, %v8579
        %8581 = vmatmul.bf16.gmra.mxu0 %v8481
        %v8582 = vpop.f32.mrf.mxu0
        %v8583 = vadd.f32 0.0, %v8582
        %v8584 = vpop.f32.mrf.mxu0
        %v8585 = vadd.f32 0.0, %v8584
        %8586 = vdwg.mxu0
        %v8587 = vadd.f32 %v8423, %v8548
        %v8588 = vadd.f32 %v8424, %v8550
        %v8589 = vadd.f32 %v8425, %v8553
        %v8590 = vadd.f32 %v8426, %v8555
        %v8591 = vadd.f32 %v8427, %v8558
        %v8592 = vadd.f32 %v8428, %v8560
        %v8593 = vadd.f32 %v8429, %v8563
        %v8594 = vadd.f32 %v8430, %v8565
        %v8595 = vadd.f32 %v8431, %v8568
        %v8596 = vadd.f32 %v8432, %v8570
        %v8597 = vadd.f32 %v8433, %v8573
        %v8598 = vadd.f32 %v8434, %v8575
        %v8599 = vadd.f32 %v8435, %v8578
        %v8600 = vadd.f32 %v8436, %v8580
        %v8601 = vadd.f32 %v8437, %v8583
        %v8602 = vadd.f32 %v8438, %v8585
        %8603 = vst [vmem:[#allocation4] sm:$0xff] %v8587
        %8604 = vst [vmem:[#allocation4 + $0x8] sm:$0xff] %v8588
        %8605 = vst [vmem:[#allocation4 + $0x10] sm:$0xff] %v8589
        %8606 = vst [vmem:[#allocation4 + $0x18] sm:$0xff] %v8590
        %8607 = vst [vmem:[#allocation4 + $0x20] sm:$0xff] %v8591
        %8608 = vst [vmem:[#allocation4 + $0x28] sm:$0xff] %v8592
        %8609 = vst [vmem:[#allocation4 + $0x30] sm:$0xff] %v8593
        %8610 = vst [vmem:[#allocation4 + $0x38] sm:$0xff] %v8594
        %8611 = vst [vmem:[#allocation4 + $0x40] sm:$0xff] %v8595
        %8612 = vst [vmem:[#allocation4 + $0x48] sm:$0xff] %v8596
        %8613 = vst [vmem:[#allocation4 + $0x50] sm:$0xff] %v8597
        %8614 = vst [vmem:[#allocation4 + $0x58] sm:$0xff] %v8598
        %8615 = vst [vmem:[#allocation4 + $0x60] sm:$0xff] %v8599
        %8616 = vst [vmem:[#allocation4 + $0x68] sm:$0xff] %v8600
        %8617 = vst [vmem:[#allocation4 + $0x70] sm:$0xff] %v8601
        %8618 = vst [vmem:[#allocation4 + $0x78] sm:$0xff] %v8602
        %v8619 = vld [vmem:[%s8088 + $0x4] sm:$0xf]
        %v8620 = vld [vmem:[%s8088 + $0x8] sm:$0xf]
        %v8621 = vld [vmem:[%s8088 + $0x10] sm:$0xf]
        %v8622 = vld [vmem:[%s8088 + $0x14] sm:$0xf]
        %v8623 = vld [vmem:[%s8088 + $0x1c] sm:$0xf]
        %v8624 = vld [vmem:[%s8088 + $0x20] sm:$0xf]
        %v8625 = vld [vmem:[%s8088 + $0x28] sm:$0xf]
        %v8626 = vld [vmem:[%s8088 + $0x2c] sm:$0xf]
        %v8627 = vld [vmem:[%s8088 + $0x34] sm:$0xf]
        %v8628 = vld [vmem:[%s8088 + $0x38] sm:$0xf]
        %v8629 = vld [vmem:[%s8088 + $0x40] sm:$0xf]
        %v8630 = vld [vmem:[%s8088 + $0x44] sm:$0xf]
        %v8631 = vld [vmem:[%s8088 + $0x4c] sm:$0xf]
        %v8632 = vld [vmem:[%s8088 + $0x50] sm:$0xf]
        %v8633 = vld [vmem:[%s8088 + $0x58] sm:$0xf]
        %v8634 = vld [vmem:[%s8088 + $0x5c] sm:$0xf]
        %s8635 = sadd.s32 %s520, 26
        %v8636 = vld [vmem:[#allocation4] sm:$0xff]
        %v8637 = vld [vmem:[#allocation4 + $0x8] sm:$0xff]
        %v8638 = vld [vmem:[#allocation4 + $0x10] sm:$0xff]
        %v8639 = vld [vmem:[#allocation4 + $0x18] sm:$0xff]
        %v8640 = vld [vmem:[#allocation4 + $0x20] sm:$0xff]
        %v8641 = vld [vmem:[#allocation4 + $0x28] sm:$0xff]
        %v8642 = vld [vmem:[#allocation4 + $0x30] sm:$0xff]
        %v8643 = vld [vmem:[#allocation4 + $0x38] sm:$0xff]
        %v8644 = vld [vmem:[#allocation4 + $0x40] sm:$0xff]
        %v8645 = vld [vmem:[#allocation4 + $0x48] sm:$0xff]
        %v8646 = vld [vmem:[#allocation4 + $0x50] sm:$0xff]
        %v8647 = vld [vmem:[#allocation4 + $0x58] sm:$0xff]
        %v8648 = vld [vmem:[#allocation4 + $0x60] sm:$0xff]
        %v8649 = vld [vmem:[#allocation4 + $0x68] sm:$0xff]
        %v8650 = vld [vmem:[#allocation4 + $0x70] sm:$0xff]
        %v8651 = vld [vmem:[#allocation4 + $0x78] sm:$0xff]
        %s8652 = smul.u32 %s8635, 16
        %s8653 = smul.addr %s8652, 4
        %s8654 = scalar_lea.vmem [#allocation5], %s8653
        %v8655 = vld [vmem:[%s8654] sm:$0xf]
        %v8656 = vld [vmem:[%s8654 + $0x4] sm:$0xf]
        %v8657 = vld [vmem:[%s8654 + $0x8] sm:$0xf]
        %v8658 = vld [vmem:[%s8654 + $0xc] sm:$0xf]
        %v8659 = vld [vmem:[%s8654 + $0x10] sm:$0xf]
        %v8660 = vld [vmem:[%s8654 + $0x14] sm:$0xf]
        %v8661 = vld [vmem:[%s8654 + $0x18] sm:$0xf]
        %v8662 = vld [vmem:[%s8654 + $0x1c] sm:$0xf]
        %v8663 = vld [vmem:[%s8654 + $0x20] sm:$0xf]
        %v8664 = vld [vmem:[%s8654 + $0x24] sm:$0xf]
        %v8665 = vld [vmem:[%s8654 + $0x28] sm:$0xf]
        %v8666 = vld [vmem:[%s8654 + $0x2c] sm:$0xf]
        %v8667 = vld [vmem:[%s8654 + $0x30] sm:$0xf]
        %v8668 = vld [vmem:[%s8654 + $0x34] sm:$0xf]
        %v8669 = vld [vmem:[%s8654 + $0x38] sm:$0xf]
        %v8670 = vld [vmem:[%s8654 + $0x3c] sm:$0xf]
        %v8687 = vunpack.c.l.b16 %v8619
        %v8688 = vunpack.c.l.b16 %v8620
        %v8689 = vunpack.c.l.b16 %v8621
        %v8690 = vunpack.c.l.b16 %v8622
        %v8691 = vunpack.c.l.b16 %v8623
        %v8692 = vunpack.c.l.b16 %v8624
        %v8693 = vunpack.c.l.b16 %v8625
        %v8694 = vunpack.c.l.b16 %v8626
        %v8695 = vunpack.c.l.b16 %v8627
        %v8696 = vunpack.c.l.b16 %v8628
        %v8697 = vunpack.c.l.b16 %v8629
        %v8698 = vunpack.c.l.b16 %v8630
        %v8699 = vunpack.c.l.b16 %v8631
        %v8700 = vunpack.c.l.b16 %v8632
        %v8701 = vunpack.c.l.b16 %v8633
        %v8702 = vunpack.c.l.b16 %v8634
        %v8703 = vpack.c.b16 %v8688, %v8687
        %v8704 = vpack.c.b16 %v8690, %v8689
        %v8705 = vpack.c.b16 %v8692, %v8691
        %v8706 = vpack.c.b16 %v8694, %v8693
        %v8707 = vpack.c.b16 %v8696, %v8695
        %v8708 = vpack.c.b16 %v8698, %v8697
        %v8709 = vpack.c.b16 %v8700, %v8699
        %v8710 = vpack.c.b16 %v8702, %v8701
        %v8735 = vunpack.c.l.b16 %v8655
        %v8736 = vunpack.c.l.b16 %v8656
        %v8737 = vunpack.c.l.b16 %v8657
        %v8738 = vunpack.c.l.b16 %v8658
        %v8739 = vunpack.c.l.b16 %v8659
        %v8740 = vunpack.c.l.b16 %v8660
        %v8741 = vunpack.c.l.b16 %v8661
        %v8742 = vunpack.c.l.b16 %v8662
        %v8743 = vunpack.c.l.b16 %v8663
        %v8744 = vunpack.c.l.b16 %v8664
        %v8745 = vunpack.c.l.b16 %v8665
        %v8746 = vunpack.c.l.b16 %v8666
        %v8747 = vunpack.c.l.b16 %v8667
        %v8748 = vunpack.c.l.b16 %v8668
        %v8749 = vunpack.c.l.b16 %v8669
        %v8750 = vunpack.c.l.b16 %v8670
        %v8751 = vpack.c.b16 %v8736, %v8735
        %v8752 = vpack.c.b16 %v8738, %v8737
        %v8753 = vpack.c.b16 %v8740, %v8739
        %v8754 = vpack.c.b16 %v8742, %v8741
        %v8755 = vpack.c.b16 %v8744, %v8743
        %v8756 = vpack.c.b16 %v8746, %v8745
        %v8757 = vpack.c.b16 %v8748, %v8747
        %v8758 = vpack.c.b16 %v8750, %v8749
        %8767 = vmatpush.bf16.msra.mxu0 %v8758
        %8768 = vmatpush.bf16.msra.mxu0 %v8757
        %8769 = vmatpush.bf16.msra.mxu0 %v8756
        %8770 = vmatpush.bf16.msra.mxu0 %v8755
        %8771 = vmatpush.bf16.msra.mxu0 %v8754
        %8772 = vmatpush.bf16.msra.mxu0 %v8753
        %8773 = vmatpush.bf16.msra.mxu0 %v8752
        %8774 = vmatpush.bf16.msra.mxu0 %v8751
        %8775 = vmatmul.bf16.gmra.mxu0 %v8703
        %v8776 = vpop.f32.mrf.mxu0
        %v8777 = vadd.f32 0.0, %v8776
        %v8778 = vpop.f32.mrf.mxu0
        %v8779 = vadd.f32 0.0, %v8778
        %8780 = vmatmul.bf16.gmra.mxu0 %v8704
        %v8781 = vpop.f32.mrf.mxu0
        %v8782 = vadd.f32 0.0, %v8781
        %v8783 = vpop.f32.mrf.mxu0
        %v8784 = vadd.f32 0.0, %v8783
        %8785 = vmatmul.bf16.gmra.mxu0 %v8705
        %v8786 = vpop.f32.mrf.mxu0
        %v8787 = vadd.f32 0.0, %v8786
        %v8788 = vpop.f32.mrf.mxu0
        %v8789 = vadd.f32 0.0, %v8788
        %8790 = vmatmul.bf16.gmra.mxu0 %v8706
        %v8791 = vpop.f32.mrf.mxu0
        %v8792 = vadd.f32 0.0, %v8791
        %v8793 = vpop.f32.mrf.mxu0
        %v8794 = vadd.f32 0.0, %v8793
        %8795 = vmatmul.bf16.gmra.mxu0 %v8707
        %v8796 = vpop.f32.mrf.mxu0
        %v8797 = vadd.f32 0.0, %v8796
        %v8798 = vpop.f32.mrf.mxu0
        %v8799 = vadd.f32 0.0, %v8798
        %8800 = vmatmul.bf16.gmra.mxu0 %v8708
        %v8801 = vpop.f32.mrf.mxu0
        %v8802 = vadd.f32 0.0, %v8801
        %v8803 = vpop.f32.mrf.mxu0
        %v8804 = vadd.f32 0.0, %v8803
        %8805 = vmatmul.bf16.gmra.mxu0 %v8709
        %v8806 = vpop.f32.mrf.mxu0
        %v8807 = vadd.f32 0.0, %v8806
        %v8808 = vpop.f32.mrf.mxu0
        %v8809 = vadd.f32 0.0, %v8808
        %8810 = vmatmul.bf16.gmra.mxu0 %v8710
        %v8811 = vpop.f32.mrf.mxu0
        %v8812 = vadd.f32 0.0, %v8811
        %v8813 = vpop.f32.mrf.mxu0
        %v8814 = vadd.f32 0.0, %v8813
        %8815 = vdwg.mxu0
        %v8816 = vadd.f32 %v8636, %v8777
        %v8817 = vadd.f32 %v8637, %v8779
        %v8818 = vadd.f32 %v8638, %v8782
        %v8819 = vadd.f32 %v8639, %v8784
        %v8820 = vadd.f32 %v8640, %v8787
        %v8821 = vadd.f32 %v8641, %v8789
        %v8822 = vadd.f32 %v8642, %v8792
        %v8823 = vadd.f32 %v8643, %v8794
        %v8824 = vadd.f32 %v8644, %v8797
        %v8825 = vadd.f32 %v8645, %v8799
        %v8826 = vadd.f32 %v8646, %v8802
        %v8827 = vadd.f32 %v8647, %v8804
        %v8828 = vadd.f32 %v8648, %v8807
        %v8829 = vadd.f32 %v8649, %v8809
        %v8830 = vadd.f32 %v8650, %v8812
        %v8831 = vadd.f32 %v8651, %v8814
        %8832 = vst [vmem:[#allocation4] sm:$0xff] %v8816
        %8833 = vst [vmem:[#allocation4 + $0x8] sm:$0xff] %v8817
        %8834 = vst [vmem:[#allocation4 + $0x10] sm:$0xff] %v8818
        %8835 = vst [vmem:[#allocation4 + $0x18] sm:$0xff] %v8819
        %8836 = vst [vmem:[#allocation4 + $0x20] sm:$0xff] %v8820
        %8837 = vst [vmem:[#allocation4 + $0x28] sm:$0xff] %v8821
        %8838 = vst [vmem:[#allocation4 + $0x30] sm:$0xff] %v8822
        %8839 = vst [vmem:[#allocation4 + $0x38] sm:$0xff] %v8823
        %8840 = vst [vmem:[#allocation4 + $0x40] sm:$0xff] %v8824
        %8841 = vst [vmem:[#allocation4 + $0x48] sm:$0xff] %v8825
        %8842 = vst [vmem:[#allocation4 + $0x50] sm:$0xff] %v8826
        %8843 = vst [vmem:[#allocation4 + $0x58] sm:$0xff] %v8827
        %8844 = vst [vmem:[#allocation4 + $0x60] sm:$0xff] %v8828
        %8845 = vst [vmem:[#allocation4 + $0x68] sm:$0xff] %v8829
        %8846 = vst [vmem:[#allocation4 + $0x70] sm:$0xff] %v8830
        %8847 = vst [vmem:[#allocation4 + $0x78] sm:$0xff] %v8831
        %v8848 = vld [vmem:[#allocation4] sm:$0xff]
        %v8849 = vld [vmem:[#allocation4 + $0x8] sm:$0xff]
        %v8850 = vld [vmem:[#allocation4 + $0x10] sm:$0xff]
        %v8851 = vld [vmem:[#allocation4 + $0x18] sm:$0xff]
        %v8852 = vld [vmem:[#allocation4 + $0x20] sm:$0xff]
        %v8853 = vld [vmem:[#allocation4 + $0x28] sm:$0xff]
        %v8854 = vld [vmem:[#allocation4 + $0x30] sm:$0xff]
        %v8855 = vld [vmem:[#allocation4 + $0x38] sm:$0xff]
        %v8856 = vld [vmem:[#allocation4 + $0x40] sm:$0xff]
        %v8857 = vld [vmem:[#allocation4 + $0x48] sm:$0xff]
        %v8858 = vld [vmem:[#allocation4 + $0x50] sm:$0xff]
        %v8859 = vld [vmem:[#allocation4 + $0x58] sm:$0xff]
        %v8860 = vld [vmem:[#allocation4 + $0x60] sm:$0xff]
        %v8861 = vld [vmem:[#allocation4 + $0x68] sm:$0xff]
        %v8862 = vld [vmem:[#allocation4 + $0x70] sm:$0xff]
        %v8863 = vld [vmem:[#allocation4 + $0x78] sm:$0xff]
        %8864 = vst [vmem:[%s173] sm:$0xff] %v8848
        %8865 = vst [vmem:[%s173 + $0x8] sm:$0xff] %v8849
        %8866 = vst [vmem:[%s173 + $0x10] sm:$0xff] %v8850
        %8867 = vst [vmem:[%s173 + $0x18] sm:$0xff] %v8851
        %8868 = vst [vmem:[%s173 + $0x20] sm:$0xff] %v8852
        %8869 = vst [vmem:[%s173 + $0x28] sm:$0xff] %v8853
        %8870 = vst [vmem:[%s173 + $0x30] sm:$0xff] %v8854
        %8871 = vst [vmem:[%s173 + $0x38] sm:$0xff] %v8855
        %8872 = vst [vmem:[%s173 + $0x40] sm:$0xff] %v8856
        %8873 = vst [vmem:[%s173 + $0x48] sm:$0xff] %v8857
        %8874 = vst [vmem:[%s173 + $0x50] sm:$0xff] %v8858
        %8875 = vst [vmem:[%s173 + $0x58] sm:$0xff] %v8859
        %8876 = vst [vmem:[%s173 + $0x60] sm:$0xff] %v8860
        %8877 = vst [vmem:[%s173 + $0x68] sm:$0xff] %v8861
        %8878 = vst [vmem:[%s173 + $0x70] sm:$0xff] %v8862
        %8879 = vst [vmem:[%s173 + $0x78] sm:$0xff] %v8863
        %s8880 = sand.u32 %s96, 1
        %s8881 = scalar_lea.sflag [#allocation7], %s8880
        %s8882 = sand.u32 %s96, 1
        %s8883 = smul.addr %s8882, 128
        %s8884 = scalar_lea.vmem [#allocation8], %s8883
        // Predicated region
        $region53: #{tpu_custom_call.1} parent=27 // pred_check
          %p8885 = pneg %p106
        $region54: #{tpu_custom_call.1} parent=27 // pred_check_branch
          %8887 = sbr.rel (%p8885) target = $region56
        $region55: #{tpu_custom_call.1} parent=27 // pred_region
          %s8888 = smul.u32 16, %s24
          %8890 = vsyncadd %s8881, 0
          %s8891 = sadd.s32 %s25, %s8888
          %s8892 = smul.addr %s23, 32
          %s8893 = sadd.s32 %s8891, %s8892
          %s8894 = smul.addr %s8893, 8
          %s8895 = scalar_lea.hbm %s3, %s8894
          %s8896 = sshll.u32 %s8884, 4
          %s8897 = int_to_ptr.vmem [resolvable:$true] %s8896
          %s8898 = sshll.u32 %s8895, 4
          %s8899 = int_to_ptr.hbm [resolvable:$true] %s8898
          %8904 = dma.vmem_to_hbm [thread:$0]  %s8897, 2048, %s8899, %s8881, 128, 128, 8
        $region56: #{tpu_custom_call.1} parent=27 // pred_fallthru
          _
      $region28: #{tpu_custom_call.1} parent=5 // pred_fallthru
        _
      %p8905 = scmp.le.s32.totalorder 2, %s13
      // Predicated region
      $region57: #{tpu_custom_call.1} parent=5 // pred_check
        %p8906 = pneg %p8905
      $region58: #{tpu_custom_call.1} parent=5 // pred_check_branch
        %8908 = sbr.rel (%p8906) target = $region60
      $region59: #{tpu_custom_call.1} parent=5 // pred_region
        %s8909 = ssub.s32 %s13, 2
        // Predicated region
        $region61: #{tpu_custom_call.1} parent=59 // pred_check
          %p8910 = pneg %p112
        $region62: #{tpu_custom_call.1} parent=59 // pred_check_branch
          %8912 = sbr.rel (%p8910) target = $region64
        $region63: #{tpu_custom_call.1} parent=59 // pred_region
          %s8913 = sand.u32 %s97, 1
          %s8914 = scalar_lea.sflag [#allocation7], %s8913
          %s8915 = sand.u32 %s97, 1
          %s8916 = smul.addr %s8915, 128
          %s8917 = scalar_lea.vmem [#allocation8], %s8916
          %8919 = dma.done %s8914, 2048
        $region64: #{tpu_custom_call.1} parent=59 // pred_fallthru
          _
      $region60: #{tpu_custom_call.1} parent=5 // pred_fallthru
        _
    $region6: #{tpu_custom_call.1} parent=1 // loop_footer
      %s17 = sadd.s32 1, %s13
    $region7: #{tpu_custom_call.1} parent=1 // loop_footer_branch
      %12 = sbr.rel target = $region3
    $region8: #{tpu_custom_call.1} parent=1 // loop_exit
      _
    %8920 = vsyncpa [#allocation6], 1
    %s8921 = scalar_lea.sflag [#allocation6], 1
    %8922 = vsyncpa %s8921, 1
    %8923 = vsyncpa [#allocation7], 1
    %s8924 = scalar_lea.sflag [#allocation7], 1
    %8925 = vsyncpa %s8924, 1
  %8926 = vsyncmov [#allocation3]
  %s8927 = vpop.sfrf %8926
  %p8928 = scmp.eq.s32.totalorder %s8927, 0
  %p8929 = pneg %p8928
  %8931 = shalt.err (%p8929)
  %s8932 = scalar_lea.sflag [#allocation3], 1
  %8933 = vsyncmov %s8932
  %s8934 = vpop.sfrf %8933
  %p8935 = scmp.eq.s32.totalorder %s8934, 0
  %p8936 = pneg %p8935
  %8938 = shalt.err (%p8936)

</llo_original>
